<compile_context>
chip_gen: v7x
topology: tpu7x:2x2x1
jax: 0.10.0
libtpu: 0.0.40
codegen_flags: <defaults>
</compile_context>

<pallas_src>
import functools

import jax
import jax.numpy as jnp
from jax import lax
from jax.experimental import pallas as pl
from jax.experimental.pallas import tpu as pltpu

NUM_SPECTRAL = 4   # S
NUM_RES = 4
NUM_FM = 32        # F


# ---------------------------------------------------------------------------
# Glue: PyTorch-equivalent bicubic interpolation (align_corners=True, a=-0.75)
# TODO(synk): bicubic resize is gather-heavy; kept in plain JAX, not in-kernel.
# ---------------------------------------------------------------------------
def _cubic_kernel(x, a=-0.75):
    ax = jnp.abs(x)
    w1 = ((a + 2.0) * ax - (a + 3.0)) * ax * ax + 1.0
    w2 = ((a * ax - 5.0 * a) * ax + 8.0 * a) * ax - 4.0 * a
    return jnp.where(ax <= 1.0, w1, jnp.where(ax < 2.0, w2, 0.0))


def _bicubic_1d_params(in_size, out_size):
    dst = jnp.arange(out_size, dtype=jnp.float32)
    if out_size > 1:
        src = dst * float(in_size - 1) / float(out_size - 1)
    else:
        src = jnp.zeros((out_size,), jnp.float32)
    i0f = jnp.floor(src)
    t = src - i0f
    i0 = i0f.astype(jnp.int32)
    idx = jnp.stack([i0 - 1, i0, i0 + 1, i0 + 2], axis=-1)        # [out, 4]
    idx = jnp.clip(idx, 0, in_size - 1)
    w = jnp.stack([_cubic_kernel(t + 1.0), _cubic_kernel(t),
                   _cubic_kernel(1.0 - t), _cubic_kernel(2.0 - t)], axis=-1)
    return idx, w.astype(jnp.float32)


def bicubic_resize_align_corners(x, out_h, out_w):
    """x: [B, C, H, W] -> [B, C, out_h, out_w], matches F.interpolate bicubic/AC."""
    _, _, H, W = x.shape
    hi, hw = _bicubic_1d_params(H, out_h)
    g = x[:, :, hi, :]                                             # [B,C,oh,4,W]
    y = jnp.sum(g * hw[None, None, :, :, None], axis=3)            # [B,C,oh,W]
    wi, ww = _bicubic_1d_params(W, out_w)
    g = y[:, :, :, wi]                                             # [B,C,oh,ow,4]
    return jnp.sum(g * ww[None, None, None, :, :], axis=4)         # [B,C,oh,ow]


# ---------------------------------------------------------------------------
# Pallas kernel: whole FusionNet conv stack, one batch element per grid step.
# ---------------------------------------------------------------------------
def _fusionnet_kernel(lms_ref, pan_ref, w0_ref, b0_ref, wr_ref, br_ref,
                      wo_ref, bo_ref, out_ref, pad_ref, rs_ref, rsout_ref,
                      *, H, W, S, F, num_res):
    Wp = pad_ref.shape[1]            # (W + 2) rounded up to a multiple of 8

    # Zero the halo scratch ONCE per image.  Convs only ever write the
    # interior [1:H+1, 1:W+1], so borders (and the sublane-pad columns, and
    # channels S..F-1 before the first conv) stay zero for all 10 convs.
    pad_ref[...] = jnp.zeros(pad_ref.shape, pad_ref.dtype)

    def conv3x3(x, w3, bias, cout):
        # x: [H, W, cin] f32; w3: [3, F, 3*cout] bf16 (kw packed into N);
        # bias: [1, cout] f32.  Returns [H, W, cout] f32.
        cin = x.shape[-1]
        pad_ref[1:H + 1, 1:W + 1, :cin] = x
        acc = None
        for kh in range(3):
            # Full padded rows: contiguous, 8-aligned -> layout-free reshape.
            rows = pad_ref[kh:kh + H, :, :].reshape(H * Wp, F)
            part = jnp.dot(rows.astype(jnp.bfloat16), w3[kh],
                           preferred_element_type=jnp.float32)
            acc = part if acc is None else acc + part
        y = acc.reshape(H, Wp, 3 * cout)
        # Combine the 3 kw taps (N-blocks of y) with shifted adds.
        out = (y[:, 0:W, 0:cout]
               + y[:, 1:W + 1, cout:2 * cout]
               + y[:, 2:W + 2, 2 * cout:3 * cout])
        return out + bias

    lms = lms_ref[0]                      # [H, W, S]
    pan = pan_ref[0]                      # [H, W, 1]
    # ms = cat([pan]*S, C) - lms  (broadcast over the S lanes)
    ms = pan - lms                        # [H, W, S]

    # pan_concat branch: Conv(S->F) + ReLU.  Input channels S..F-1 of the
    # halo scratch are zero (and w0 rows S..F-1 are zero), so contracting
    # over F lanes is exact.
    rs0 = jnp.maximum(conv3x3(ms, w0_ref[...], b0_ref[...], F), 0.0)
    rs_ref[...] = rs0
    rsout_ref[...] = rs0

    # Residual stack: torch iterates every layer of the Sequential
    # (Conv, ReLU, Conv) x num_res, accumulating rs_out after EACH layer.
    def res_block(r, carry):
        rs1 = conv3x3(rs_ref[...], wr_ref[2 * r], br_ref[2 * r], F)
        rs1r = jnp.maximum(rs1, 0.0)
        rs2 = conv3x3(rs1r, wr_ref[2 * r + 1], br_ref[2 * r + 1], F)
        rsout_ref[...] = rsout_ref[...] + (rs1 + rs1r + rs2)
        rs_ref[...] = rs2
        return carry

    lax.fori_loop(0, num_res, res_block, 0)

    # Output conv: Cout padded S->F for a uniform matmul path; only the first
    # S channels are stored (HBM output stays S-wide, no write amplification).
    out_full = conv3x3(rsout_ref[...], wo_ref[...], bo_ref[...], F)
    out_ref[0] = out_full[:, :, :S]


# ---------------------------------------------------------------------------
# Wrapper
# ---------------------------------------------------------------------------
def _repack_weights(w):
    """[..., 9, Cin, Cout] (tap = kh*3+kw)  ->  bf16 [..., 3, Cin, 3*Cout].

    Row (ci) x column (kw*Cout + co) so each per-kh matmul computes all three
    kw taps in the MXU N dimension.
    """
    lead = w.shape[:-3]
    cin, cout = w.shape[-2], w.shape[-1]
    L = len(lead)
    k = w.reshape(lead + (3, 3, cin, cout))                       # kh, kw, ci, co
    k = jnp.transpose(k, tuple(range(L)) + (L, L + 2, L + 1, L + 3))
    return k.reshape(lead + (3, cin, 3 * cout)).astype(jnp.bfloat16)


def fusionnet_forward(lms, pan, params):
    """lms: [B, S, h, w] (NCHW), pan: [B, 1, H, W] (NCHW) -> [B, S, H, W]."""
    B, S, _, _ = lms.shape
    _, _, H, W = pan.shape
    F = NUM_FM
    Wp = ((W + 2 + 7) // 8) * 8        # sublane-aligned padded row width

    lms_up = bicubic_resize_align_corners(lms, H, W)                 # [B,S,H,W]
    lms_nhwc = jnp.transpose(lms_up, (0, 2, 3, 1))                   # [B,H,W,S]
    pan_nhwc = jnp.transpose(pan, (0, 2, 3, 1))                      # [B,H,W,1]

    w0, b0, wr, br, wo, bo = params
    # Pad the output conv to Cout=F (uniform matmul width); sliced to S in-kernel.
    wo_p = jnp.zeros((9, F, F), wo.dtype).at[:, :, :S].set(wo)
    bo_p = jnp.zeros((1, F), bo.dtype).at[:, :S].set(bo)

    # bf16 matmul operands (accumulation stays f32 inside the kernel).
    w0_b = _repack_weights(w0)     # [3, F, 3F]
    wr_b = _repack_weights(wr)     # [2R, 3, F, 3F]
    wo_b = _repack_weights(wo_p)   # [3, F, 3F]

    kernel = functools.partial(_fusionnet_kernel, H=H, W=W, S=S, F=F,
                               num_res=NUM_RES)

    # VMEM budget: halo scratch + rs/rs_out + matmul accumulator + I/O blocks.
    approx_bytes = 4 * ((H + 2) * Wp * F           # halo scratch (f32)
                        + 2 * H * W * F            # rs, rs_out scratch
                        + H * Wp * 3 * F           # matmul accumulator (spill)
                        + 2 * H * W * S            # lms blocks (2 buffers)
                        + 2 * H * W                # pan blocks
                        + 2 * H * W * S)           # out blocks
    approx_bytes += 2 * 3 * F * 3 * F * (2 * NUM_RES + 2)   # bf16 weights
    vmem_limit = int(min(64 * 1024 * 1024,
                         max(32 * 1024 * 1024, 2 * approx_bytes)))
    # TODO(synk): for large H,W (esp. v7x's 64 MiB VMEM) switch to row-strip
    # spatial tiling with conv halos instead of whole-image blocks.

    out_nhwc = pl.pallas_call(
        kernel,
        out_shape=jax.ShapeDtypeStruct((B, H, W, S), jnp.float32),
        grid_spec=pltpu.PrefetchScalarGridSpec(
            num_scalar_prefetch=0,
            grid=(B,),
            in_specs=[
                pl.BlockSpec((1, H, W, S), lambda b: (b, 0, 0, 0)),
                pl.BlockSpec((1, H, W, 1), lambda b: (b, 0, 0, 0)),
                pl.BlockSpec(w0_b.shape, lambda b: (0, 0, 0)),
                pl.BlockSpec(b0.shape, lambda b: (0, 0)),
                pl.BlockSpec(wr_b.shape, lambda b: (0, 0, 0, 0)),
                pl.BlockSpec(br.shape, lambda b: (0, 0, 0)),
                pl.BlockSpec(wo_b.shape, lambda b: (0, 0, 0)),
                pl.BlockSpec(bo_p.shape, lambda b: (0, 0)),
            ],
            out_specs=pl.BlockSpec((1, H, W, S), lambda b: (b, 0, 0, 0)),
            scratch_shapes=[
                pltpu.VMEM((H + 2, Wp, F), jnp.float32),   # zero-halo activation
                pltpu.VMEM((H, W, F), jnp.float32),        # rs
                pltpu.VMEM((H, W, F), jnp.float32),        # rs_out
            ],
        ),
        compiler_params=pltpu.CompilerParams(
            dimension_semantics=("parallel",),
            vmem_limit_bytes=vmem_limit),
    )(lms_nhwc, pan_nhwc, w0_b, b0, wr_b, br, wo_b, bo_p)

    return jnp.transpose(out_nhwc, (0, 3, 1, 2))                     # NCHW


def init_params(key):
    """Deterministic synthetic weights; conv weights stored as [9, Cin, Cout]."""
    ks = jax.random.split(key, 6)
    scale = 0.05
    S, F, R = NUM_SPECTRAL, NUM_FM, NUM_RES
    w0_s = scale * jax.random.normal(ks[0], (9, S, F), jnp.float32)
    # zero-pad input channels of the first conv from S to F so the kernel can
    # always contract over F lanes (padded ms channels contribute nothing).
    w0 = jnp.zeros((9, F, F), jnp.float32).at[:, :S, :].set(w0_s)
    b0 = scale * jax.random.normal(ks[1], (1, F), jnp.float32)
    wr = scale * jax.random.normal(ks[2], (2 * R, 9, F, F), jnp.float32)
    br = scale * jax.random.normal(ks[3], (2 * R, 1, F), jnp.float32)
    wo = scale * jax.random.normal(ks[4], (9, F, S), jnp.float32)
    bo = scale * jax.random.normal(ks[5], (1, S), jnp.float32)
    return (w0, b0, wr, br, wo, bo)


if __name__ == "__main__":
    key = jax.random.PRNGKey(0)
    kp, k1, k2 = jax.random.split(key, 3)
    params = init_params(kp)

    B, H, W = 2, 16, 16
    lms = jax.random.normal(k1, (B, NUM_SPECTRAL, H // 2, W // 2), jnp.float32)
    pan = jax.random.normal(k2, (B, 1, H, W), jnp.float32)

    out = fusionnet_forward(lms, pan, params)
    out = jax.block_until_ready(out)

    assert out.shape == (B, NUM_SPECTRAL, H, W), out.shape
    assert bool(jnp.all(jnp.isfinite(out)))
    print("KERNEL_OK")
</pallas_src>

<mosaic_0001>
module attributes {stable_mosaic.version = 11 : i64} {
  func.func @_fusionnet_kernel(%arg0: i32, %arg1: memref<1x16x16x4xf32, #tpu.memory_space<vmem>>, %arg2: memref<1x16x16x1xf32, #tpu.memory_space<vmem>>, %arg3: memref<3x32x96xbf16, #tpu.memory_space<vmem>>, %arg4: memref<1x32xf32, #tpu.memory_space<vmem>>, %arg5: memref<8x3x32x96xbf16, #tpu.memory_space<vmem>>, %arg6: memref<8x1x32xf32, #tpu.memory_space<vmem>>, %arg7: memref<3x32x96xbf16, #tpu.memory_space<vmem>>, %arg8: memref<1x32xf32, #tpu.memory_space<vmem>>, %arg9: memref<1x16x16x4xf32, #tpu.memory_space<vmem>>, %arg10: memref<18x24x32xf32, #tpu.memory_space<vmem>>, %arg11: memref<16x16x32xf32, #tpu.memory_space<vmem>>, %arg12: memref<16x16x32xf32, #tpu.memory_space<vmem>>) attributes {dimension_semantics = [#tpu.dimension_semantics<parallel>], iteration_bounds = array<i64: 2>, scalar_prefetch = 0 : i64, scratch_operands = 3 : i64, tpu.core_type = #tpu.core_type<tc>, window_params = [{transform_indices = @transform_0, window_bounds = array<i64: 1, 16, 16, 4>}, {transform_indices = @transform_1, window_bounds = array<i64: 1, 16, 16, 1>}, {pipeline_mode = #tpu.pipeline_mode<synchronous>, transform_indices = @transform_2, window_bounds = array<i64: 3, 32, 96>}, {pipeline_mode = #tpu.pipeline_mode<synchronous>, transform_indices = @transform_3, window_bounds = array<i64: 1, 32>}, {pipeline_mode = #tpu.pipeline_mode<synchronous>, transform_indices = @transform_4, window_bounds = array<i64: 8, 3, 32, 96>}, {pipeline_mode = #tpu.pipeline_mode<synchronous>, transform_indices = @transform_5, window_bounds = array<i64: 8, 1, 32>}, {pipeline_mode = #tpu.pipeline_mode<synchronous>, transform_indices = @transform_6, window_bounds = array<i64: 3, 32, 96>}, {pipeline_mode = #tpu.pipeline_mode<synchronous>, transform_indices = @transform_7, window_bounds = array<i64: 1, 32>}, {transform_indices = @transform_8, window_bounds = array<i64: 1, 16, 16, 4>}]} {
    %cst = arith.constant 0.000000e+00 : f32
    %0 = vector.broadcast %cst : f32 to vector<18x24x32xf32>
    %c0 = arith.constant 0 : index
    %c0_0 = arith.constant 0 : index
    %c0_1 = arith.constant 0 : index
    %1 = vector.load %arg10[%c0, %c0_0, %c0_1] : memref<18x24x32xf32, #tpu.memory_space<vmem>>, vector<18x24x32xf32>
    tpu.vector_store %arg10[%c0, %c0_0, %c0_1], %0 {strides = array<i32>} : memref<18x24x32xf32, #tpu.memory_space<vmem>>, vector<18x24x32xf32>,
    %c0_2 = arith.constant 0 : index
    %c0_3 = arith.constant 0 : index
    %c0_4 = arith.constant 0 : index
    %c0_5 = arith.constant 0 : index
    %2 = vector.load %arg1[%c0_2, %c0_3, %c0_4, %c0_5] : memref<1x16x16x4xf32, #tpu.memory_space<vmem>>, vector<1x16x16x4xf32>
    %3 = vector.shape_cast %2 : vector<1x16x16x4xf32> to vector<16x16x4xf32>
    %c0_6 = arith.constant 0 : index
    %c0_7 = arith.constant 0 : index
    %c0_8 = arith.constant 0 : index
    %c0_9 = arith.constant 0 : index
    %4 = vector.load %arg2[%c0_6, %c0_7, %c0_8, %c0_9] : memref<1x16x16x1xf32, #tpu.memory_space<vmem>>, vector<1x16x16x1xf32>
    %5 = vector.shape_cast %4 : vector<1x16x16x1xf32> to vector<16x16x1xf32>
    %6 = vector.broadcast %5 : vector<16x16x1xf32> to vector<16x16x4xf32>
    %7 = arith.subf %6, %3 : vector<16x16x4xf32>
    %c0_10 = arith.constant 0 : index
    %c0_11 = arith.constant 0 : index
    %c0_12 = arith.constant 0 : index
    %8 = vector.load %arg3[%c0_10, %c0_11, %c0_12] : memref<3x32x96xbf16, #tpu.memory_space<vmem>>, vector<3x32x96xbf16>
    %c0_13 = arith.constant 0 : index
    %c0_14 = arith.constant 0 : index
    %9 = vector.load %arg4[%c0_13, %c0_14] : memref<1x32xf32, #tpu.memory_space<vmem>>, vector<1x32xf32>
    %c1 = arith.constant 1 : index
    %c1_15 = arith.constant 1 : index
    %c0_16 = arith.constant 0 : index
    %10 = vector.load %arg10[%c1, %c1_15, %c0_16] : memref<18x24x32xf32, #tpu.memory_space<vmem>>, vector<16x16x4xf32>
    tpu.vector_store %arg10[%c1, %c1_15, %c0_16], %7 {strides = array<i32>} : memref<18x24x32xf32, #tpu.memory_space<vmem>>, vector<16x16x4xf32>,
    %c0_17 = arith.constant 0 : index
    %c0_18 = arith.constant 0 : index
    %c0_19 = arith.constant 0 : index
    %11 = vector.load %arg10[%c0_17, %c0_18, %c0_19] : memref<18x24x32xf32, #tpu.memory_space<vmem>>, vector<16x24x32xf32>
    %12 = vector.shape_cast %11 : vector<16x24x32xf32> to vector<384x32xf32>
    %13 = arith.truncf %12 : vector<384x32xf32> to vector<384x32xbf16>
    %14 = vector.extract_strided_slice %8 {offsets = [0, 0, 0], sizes = [1, 32, 96], strides = [1, 1, 1]} : vector<3x32x96xbf16> to vector<1x32x96xbf16>
    %15 = vector.shape_cast %14 : vector<1x32x96xbf16> to vector<32x96xbf16>
    %cst_20 = arith.constant dense<0.000000e+00> : vector<384x96xf32>
    %16 = tpu.matmul %13, %15, %cst_20 {dimension_numbers = #tpu.dot_dimension_numbers<[1], [0], [0], [1], [0, 0, 1, 1], [], []>} : vector<384x32xbf16>, vector<32x96xbf16>, vector<384x96xf32> -> vector<384x96xf32>
    %c1_21 = arith.constant 1 : index
    %c0_22 = arith.constant 0 : index
    %c0_23 = arith.constant 0 : index
    %17 = vector.load %arg10[%c1_21, %c0_22, %c0_23] : memref<18x24x32xf32, #tpu.memory_space<vmem>>, vector<16x24x32xf32>
    %18 = vector.shape_cast %17 : vector<16x24x32xf32> to vector<384x32xf32>
    %19 = arith.truncf %18 : vector<384x32xf32> to vector<384x32xbf16>
    %20 = vector.extract_strided_slice %8 {offsets = [1, 0, 0], sizes = [1, 32, 96], strides = [1, 1, 1]} : vector<3x32x96xbf16> to vector<1x32x96xbf16>
    %21 = vector.shape_cast %20 : vector<1x32x96xbf16> to vector<32x96xbf16>
    %cst_24 = arith.constant dense<0.000000e+00> : vector<384x96xf32>
    %22 = tpu.matmul %19, %21, %cst_24 {dimension_numbers = #tpu.dot_dimension_numbers<[1], [0], [0], [1], [0, 0, 1, 1], [], []>} : vector<384x32xbf16>, vector<32x96xbf16>, vector<384x96xf32> -> vector<384x96xf32>
    %23 = arith.addf %16, %22 : vector<384x96xf32>
    %c2 = arith.constant 2 : index
    %c0_25 = arith.constant 0 : index
    %c0_26 = arith.constant 0 : index
    %24 = vector.load %arg10[%c2, %c0_25, %c0_26] : memref<18x24x32xf32, #tpu.memory_space<vmem>>, vector<16x24x32xf32>
    %25 = vector.shape_cast %24 : vector<16x24x32xf32> to vector<384x32xf32>
    %26 = arith.truncf %25 : vector<384x32xf32> to vector<384x32xbf16>
    %27 = vector.extract_strided_slice %8 {offsets = [2, 0, 0], sizes = [1, 32, 96], strides = [1, 1, 1]} : vector<3x32x96xbf16> to vector<1x32x96xbf16>
    %28 = vector.shape_cast %27 : vector<1x32x96xbf16> to vector<32x96xbf16>
    %cst_27 = arith.constant dense<0.000000e+00> : vector<384x96xf32>
    %29 = tpu.matmul %26, %28, %cst_27 {dimension_numbers = #tpu.dot_dimension_numbers<[1], [0], [0], [1], [0, 0, 1, 1], [], []>} : vector<384x32xbf16>, vector<32x96xbf16>, vector<384x96xf32> -> vector<384x96xf32>
    %30 = arith.addf %23, %29 : vector<384x96xf32>
    %31 = vector.shape_cast %30 : vector<384x96xf32> to vector<16x24x96xf32>
    %32 = vector.extract_strided_slice %31 {offsets = [0, 0, 0], sizes = [16, 16, 32], strides = [1, 1, 1]} : vector<16x24x96xf32> to vector<16x16x32xf32>
    %33 = vector.extract_strided_slice %31 {offsets = [0, 1, 32], sizes = [16, 16, 32], strides = [1, 1, 1]} : vector<16x24x96xf32> to vector<16x16x32xf32>
    %34 = arith.addf %32, %33 : vector<16x16x32xf32>
    %35 = vector.extract_strided_slice %31 {offsets = [0, 2, 64], sizes = [16, 16, 32], strides = [1, 1, 1]} : vector<16x24x96xf32> to vector<16x16x32xf32>
    %36 = arith.addf %34, %35 : vector<16x16x32xf32>
    %37 = vector.shape_cast %9 : vector<1x32xf32> to vector<1x1x32xf32>
    %38 = vector.broadcast %37 : vector<1x1x32xf32> to vector<16x16x32xf32>
    %39 = arith.addf %36, %38 : vector<16x16x32xf32>
    %cst_28 = arith.constant 0.000000e+00 : f32
    %40 = vector.broadcast %cst_28 : f32 to vector<16x16x32xf32>
    %41 = arith.maximumf %39, %40 : vector<16x16x32xf32>
    %c0_29 = arith.constant 0 : index
    %c0_30 = arith.constant 0 : index
    %c0_31 = arith.constant 0 : index
    %42 = vector.load %arg11[%c0_29, %c0_30, %c0_31] : memref<16x16x32xf32, #tpu.memory_space<vmem>>, vector<16x16x32xf32>
    tpu.vector_store %arg11[%c0_29, %c0_30, %c0_31], %41 {strides = array<i32>} : memref<16x16x32xf32, #tpu.memory_space<vmem>>, vector<16x16x32xf32>,
    %c0_32 = arith.constant 0 : index
    %c0_33 = arith.constant 0 : index
    %c0_34 = arith.constant 0 : index
    %43 = vector.load %arg12[%c0_32, %c0_33, %c0_34] : memref<16x16x32xf32, #tpu.memory_space<vmem>>, vector<16x16x32xf32>
    tpu.vector_store %arg12[%c0_32, %c0_33, %c0_34], %41 {strides = array<i32>} : memref<16x16x32xf32, #tpu.memory_space<vmem>>, vector<16x16x32xf32>,
    %c0_i32 = arith.constant 0 : i32
    %c4_i32 = arith.constant 4 : i32
    %44 = arith.addi %c0_i32, %c4_i32 : i32
    %c1_i32 = arith.constant 1 : i32
    scf.for %arg13 = %c0_i32 to %44 step %c1_i32  : i32 {
      %c0_63 = arith.constant 0 : index
      %c0_64 = arith.constant 0 : index
      %c0_65 = arith.constant 0 : index
      %82 = vector.load %arg11[%c0_63, %c0_64, %c0_65] : memref<16x16x32xf32, #tpu.memory_space<vmem>>, vector<16x16x32xf32>
      %c2_i32 = arith.constant 2 : i32
      %83 = arith.muli %c2_i32, %arg13 : i32
      %84 = arith.index_cast %83 : i32 to index
      %c0_66 = arith.constant 0 : index
      %c0_67 = arith.constant 0 : index
      %c0_68 = arith.constant 0 : index
      %85 = vector.load %arg5[%84, %c0_66, %c0_67, %c0_68] : memref<8x3x32x96xbf16, #tpu.memory_space<vmem>>, vector<1x3x32x96xbf16>
      %86 = vector.shape_cast %85 : vector<1x3x32x96xbf16> to vector<3x32x96xbf16>
      %c2_i32_69 = arith.constant 2 : i32
      %87 = arith.muli %c2_i32_69, %arg13 : i32
      %88 = arith.index_cast %87 : i32 to index
      %c0_70 = arith.constant 0 : index
      %c0_71 = arith.constant 0 : index
      %89 = vector.load %arg6[%88, %c0_70, %c0_71] : memref<8x1x32xf32, #tpu.memory_space<vmem>>, vector<1x1x32xf32>
      %90 = vector.shape_cast %89 : vector<1x1x32xf32> to vector<1x32xf32>
      %c1_72 = arith.constant 1 : index
      %c1_73 = arith.constant 1 : index
      %c0_74 = arith.constant 0 : index
      %91 = vector.load %arg10[%c1_72, %c1_73, %c0_74] : memref<18x24x32xf32, #tpu.memory_space<vmem>>, vector<16x16x32xf32>
      tpu.vector_store %arg10[%c1_72, %c1_73, %c0_74], %82 {strides = array<i32>} : memref<18x24x32xf32, #tpu.memory_space<vmem>>, vector<16x16x32xf32>,
      %c0_75 = arith.constant 0 : index
      %c0_76 = arith.constant 0 : index
      %c0_77 = arith.constant 0 : index
      %92 = vector.load %arg10[%c0_75, %c0_76, %c0_77] : memref<18x24x32xf32, #tpu.memory_space<vmem>>, vector<16x24x32xf32>
      %93 = vector.shape_cast %92 : vector<16x24x32xf32> to vector<384x32xf32>
      %94 = arith.truncf %93 : vector<384x32xf32> to vector<384x32xbf16>
      %95 = vector.extract_strided_slice %86 {offsets = [0, 0, 0], sizes = [1, 32, 96], strides = [1, 1, 1]} : vector<3x32x96xbf16> to vector<1x32x96xbf16>
      %96 = vector.shape_cast %95 : vector<1x32x96xbf16> to vector<32x96xbf16>
      %cst_78 = arith.constant dense<0.000000e+00> : vector<384x96xf32>
      %97 = tpu.matmul %94, %96, %cst_78 {dimension_numbers = #tpu.dot_dimension_numbers<[1], [0], [0], [1], [0, 0, 1, 1], [], []>} : vector<384x32xbf16>, vector<32x96xbf16>, vector<384x96xf32> -> vector<384x96xf32>
      %c1_79 = arith.constant 1 : index
      %c0_80 = arith.constant 0 : index
      %c0_81 = arith.constant 0 : index
      %98 = vector.load %arg10[%c1_79, %c0_80, %c0_81] : memref<18x24x32xf32, #tpu.memory_space<vmem>>, vector<16x24x32xf32>
      %99 = vector.shape_cast %98 : vector<16x24x32xf32> to vector<384x32xf32>
      %100 = arith.truncf %99 : vector<384x32xf32> to vector<384x32xbf16>
      %101 = vector.extract_strided_slice %86 {offsets = [1, 0, 0], sizes = [1, 32, 96], strides = [1, 1, 1]} : vector<3x32x96xbf16> to vector<1x32x96xbf16>
      %102 = vector.shape_cast %101 : vector<1x32x96xbf16> to vector<32x96xbf16>
      %cst_82 = arith.constant dense<0.000000e+00> : vector<384x96xf32>
      %103 = tpu.matmul %100, %102, %cst_82 {dimension_numbers = #tpu.dot_dimension_numbers<[1], [0], [0], [1], [0, 0, 1, 1], [], []>} : vector<384x32xbf16>, vector<32x96xbf16>, vector<384x96xf32> -> vector<384x96xf32>
      %104 = arith.addf %97, %103 : vector<384x96xf32>
      %c2_83 = arith.constant 2 : index
      %c0_84 = arith.constant 0 : index
      %c0_85 = arith.constant 0 : index
      %105 = vector.load %arg10[%c2_83, %c0_84, %c0_85] : memref<18x24x32xf32, #tpu.memory_space<vmem>>, vector<16x24x32xf32>
      %106 = vector.shape_cast %105 : vector<16x24x32xf32> to vector<384x32xf32>
      %107 = arith.truncf %106 : vector<384x32xf32> to vector<384x32xbf16>
      %108 = vector.extract_strided_slice %86 {offsets = [2, 0, 0], sizes = [1, 32, 96], strides = [1, 1, 1]} : vector<3x32x96xbf16> to vector<1x32x96xbf16>
      %109 = vector.shape_cast %108 : vector<1x32x96xbf16> to vector<32x96xbf16>
      %cst_86 = arith.constant dense<0.000000e+00> : vector<384x96xf32>
      %110 = tpu.matmul %107, %109, %cst_86 {dimension_numbers = #tpu.dot_dimension_numbers<[1], [0], [0], [1], [0, 0, 1, 1], [], []>} : vector<384x32xbf16>, vector<32x96xbf16>, vector<384x96xf32> -> vector<384x96xf32>
      %111 = arith.addf %104, %110 : vector<384x96xf32>
      %112 = vector.shape_cast %111 : vector<384x96xf32> to vector<16x24x96xf32>
      %113 = vector.extract_strided_slice %112 {offsets = [0, 0, 0], sizes = [16, 16, 32], strides = [1, 1, 1]} : vector<16x24x96xf32> to vector<16x16x32xf32>
      %114 = vector.extract_strided_slice %112 {offsets = [0, 1, 32], sizes = [16, 16, 32], strides = [1, 1, 1]} : vector<16x24x96xf32> to vector<16x16x32xf32>
      %115 = arith.addf %113, %114 : vector<16x16x32xf32>
      %116 = vector.extract_strided_slice %112 {offsets = [0, 2, 64], sizes = [16, 16, 32], strides = [1, 1, 1]} : vector<16x24x96xf32> to vector<16x16x32xf32>
      %117 = arith.addf %115, %116 : vector<16x16x32xf32>
      %118 = vector.shape_cast %90 : vector<1x32xf32> to vector<1x1x32xf32>
      %119 = vector.broadcast %118 : vector<1x1x32xf32> to vector<16x16x32xf32>
      %120 = arith.addf %117, %119 : vector<16x16x32xf32>
      %cst_87 = arith.constant 0.000000e+00 : f32
      %121 = vector.broadcast %cst_87 : f32 to vector<16x16x32xf32>
      %122 = arith.maximumf %120, %121 : vector<16x16x32xf32>
      %c2_i32_88 = arith.constant 2 : i32
      %123 = arith.muli %c2_i32_88, %arg13 : i32
      %c1_i32_89 = arith.constant 1 : i32
      %124 = arith.addi %123, %c1_i32_89 : i32
      %125 = arith.index_cast %124 : i32 to index
      %c0_90 = arith.constant 0 : index
      %c0_91 = arith.constant 0 : index
      %c0_92 = arith.constant 0 : index
      %126 = vector.load %arg5[%125, %c0_90, %c0_91, %c0_92] : memref<8x3x32x96xbf16, #tpu.memory_space<vmem>>, vector<1x3x32x96xbf16>
      %127 = vector.shape_cast %126 : vector<1x3x32x96xbf16> to vector<3x32x96xbf16>
      %c2_i32_93 = arith.constant 2 : i32
      %128 = arith.muli %c2_i32_93, %arg13 : i32
      %c1_i32_94 = arith.constant 1 : i32
      %129 = arith.addi %128, %c1_i32_94 : i32
      %130 = arith.index_cast %129 : i32 to index
      %c0_95 = arith.constant 0 : index
      %c0_96 = arith.constant 0 : index
      %131 = vector.load %arg6[%130, %c0_95, %c0_96] : memref<8x1x32xf32, #tpu.memory_space<vmem>>, vector<1x1x32xf32>
      %132 = vector.shape_cast %131 : vector<1x1x32xf32> to vector<1x32xf32>
      %c1_97 = arith.constant 1 : index
      %c1_98 = arith.constant 1 : index
      %c0_99 = arith.constant 0 : index
      %133 = vector.load %arg10[%c1_97, %c1_98, %c0_99] : memref<18x24x32xf32, #tpu.memory_space<vmem>>, vector<16x16x32xf32>
      tpu.vector_store %arg10[%c1_97, %c1_98, %c0_99], %122 {strides = array<i32>} : memref<18x24x32xf32, #tpu.memory_space<vmem>>, vector<16x16x32xf32>,
      %c0_100 = arith.constant 0 : index
      %c0_101 = arith.constant 0 : index
      %c0_102 = arith.constant 0 : index
      %134 = vector.load %arg10[%c0_100, %c0_101, %c0_102] : memref<18x24x32xf32, #tpu.memory_space<vmem>>, vector<16x24x32xf32>
      %135 = vector.shape_cast %134 : vector<16x24x32xf32> to vector<384x32xf32>
      %136 = arith.truncf %135 : vector<384x32xf32> to vector<384x32xbf16>
      %137 = vector.extract_strided_slice %127 {offsets = [0, 0, 0], sizes = [1, 32, 96], strides = [1, 1, 1]} : vector<3x32x96xbf16> to vector<1x32x96xbf16>
      %138 = vector.shape_cast %137 : vector<1x32x96xbf16> to vector<32x96xbf16>
      %cst_103 = arith.constant dense<0.000000e+00> : vector<384x96xf32>
      %139 = tpu.matmul %136, %138, %cst_103 {dimension_numbers = #tpu.dot_dimension_numbers<[1], [0], [0], [1], [0, 0, 1, 1], [], []>} : vector<384x32xbf16>, vector<32x96xbf16>, vector<384x96xf32> -> vector<384x96xf32>
      %c1_104 = arith.constant 1 : index
      %c0_105 = arith.constant 0 : index
      %c0_106 = arith.constant 0 : index
      %140 = vector.load %arg10[%c1_104, %c0_105, %c0_106] : memref<18x24x32xf32, #tpu.memory_space<vmem>>, vector<16x24x32xf32>
      %141 = vector.shape_cast %140 : vector<16x24x32xf32> to vector<384x32xf32>
      %142 = arith.truncf %141 : vector<384x32xf32> to vector<384x32xbf16>
      %143 = vector.extract_strided_slice %127 {offsets = [1, 0, 0], sizes = [1, 32, 96], strides = [1, 1, 1]} : vector<3x32x96xbf16> to vector<1x32x96xbf16>
      %144 = vector.shape_cast %143 : vector<1x32x96xbf16> to vector<32x96xbf16>
      %cst_107 = arith.constant dense<0.000000e+00> : vector<384x96xf32>
      %145 = tpu.matmul %142, %144, %cst_107 {dimension_numbers = #tpu.dot_dimension_numbers<[1], [0], [0], [1], [0, 0, 1, 1], [], []>} : vector<384x32xbf16>, vector<32x96xbf16>, vector<384x96xf32> -> vector<384x96xf32>
      %146 = arith.addf %139, %145 : vector<384x96xf32>
      %c2_108 = arith.constant 2 : index
      %c0_109 = arith.constant 0 : index
      %c0_110 = arith.constant 0 : index
      %147 = vector.load %arg10[%c2_108, %c0_109, %c0_110] : memref<18x24x32xf32, #tpu.memory_space<vmem>>, vector<16x24x32xf32>
      %148 = vector.shape_cast %147 : vector<16x24x32xf32> to vector<384x32xf32>
      %149 = arith.truncf %148 : vector<384x32xf32> to vector<384x32xbf16>
      %150 = vector.extract_strided_slice %127 {offsets = [2, 0, 0], sizes = [1, 32, 96], strides = [1, 1, 1]} : vector<3x32x96xbf16> to vector<1x32x96xbf16>
      %151 = vector.shape_cast %150 : vector<1x32x96xbf16> to vector<32x96xbf16>
      %cst_111 = arith.constant dense<0.000000e+00> : vector<384x96xf32>
      %152 = tpu.matmul %149, %151, %cst_111 {dimension_numbers = #tpu.dot_dimension_numbers<[1], [0], [0], [1], [0, 0, 1, 1], [], []>} : vector<384x32xbf16>, vector<32x96xbf16>, vector<384x96xf32> -> vector<384x96xf32>
      %153 = arith.addf %146, %152 : vector<384x96xf32>
      %154 = vector.shape_cast %153 : vector<384x96xf32> to vector<16x24x96xf32>
      %155 = vector.extract_strided_slice %154 {offsets = [0, 0, 0], sizes = [16, 16, 32], strides = [1, 1, 1]} : vector<16x24x96xf32> to vector<16x16x32xf32>
      %156 = vector.extract_strided_slice %154 {offsets = [0, 1, 32], sizes = [16, 16, 32], strides = [1, 1, 1]} : vector<16x24x96xf32> to vector<16x16x32xf32>
      %157 = arith.addf %155, %156 : vector<16x16x32xf32>
      %158 = vector.extract_strided_slice %154 {offsets = [0, 2, 64], sizes = [16, 16, 32], strides = [1, 1, 1]} : vector<16x24x96xf32> to vector<16x16x32xf32>
      %159 = arith.addf %157, %158 : vector<16x16x32xf32>
      %160 = vector.shape_cast %132 : vector<1x32xf32> to vector<1x1x32xf32>
      %161 = vector.broadcast %160 : vector<1x1x32xf32> to vector<16x16x32xf32>
      %162 = arith.addf %159, %161 : vector<16x16x32xf32>
      %c0_112 = arith.constant 0 : index
      %c0_113 = arith.constant 0 : index
      %c0_114 = arith.constant 0 : index
      %163 = vector.load %arg12[%c0_112, %c0_113, %c0_114] : memref<16x16x32xf32, #tpu.memory_space<vmem>>, vector<16x16x32xf32>
      %164 = arith.addf %120, %122 : vector<16x16x32xf32>
      %165 = arith.addf %164, %162 : vector<16x16x32xf32>
      %166 = arith.addf %163, %165 : vector<16x16x32xf32>
      %c0_115 = arith.constant 0 : index
      %c0_116 = arith.constant 0 : index
      %c0_117 = arith.constant 0 : index
      %167 = vector.load %arg12[%c0_115, %c0_116, %c0_117] : memref<16x16x32xf32, #tpu.memory_space<vmem>>, vector<16x16x32xf32>
      tpu.vector_store %arg12[%c0_115, %c0_116, %c0_117], %166 {strides = array<i32>} : memref<16x16x32xf32, #tpu.memory_space<vmem>>, vector<16x16x32xf32>,
      %c0_118 = arith.constant 0 : index
      %c0_119 = arith.constant 0 : index
      %c0_120 = arith.constant 0 : index
      %168 = vector.load %arg11[%c0_118, %c0_119, %c0_120] : memref<16x16x32xf32, #tpu.memory_space<vmem>>, vector<16x16x32xf32>
      tpu.vector_store %arg11[%c0_118, %c0_119, %c0_120], %162 {strides = array<i32>} : memref<16x16x32xf32, #tpu.memory_space<vmem>>, vector<16x16x32xf32>,
    }
    %c4_i32_35 = arith.constant 4 : i32
    %c0_36 = arith.constant 0 : index
    %c0_37 = arith.constant 0 : index
    %c0_38 = arith.constant 0 : index
    %45 = vector.load %arg12[%c0_36, %c0_37, %c0_38] : memref<16x16x32xf32, #tpu.memory_space<vmem>>, vector<16x16x32xf32>
    %c0_39 = arith.constant 0 : index
    %c0_40 = arith.constant 0 : index
    %c0_41 = arith.constant 0 : index
    %46 = vector.load %arg7[%c0_39, %c0_40, %c0_41] : memref<3x32x96xbf16, #tpu.memory_space<vmem>>, vector<3x32x96xbf16>
    %c0_42 = arith.constant 0 : index
    %c0_43 = arith.constant 0 : index
    %47 = vector.load %arg8[%c0_42, %c0_43] : memref<1x32xf32, #tpu.memory_space<vmem>>, vector<1x32xf32>
    %c1_44 = arith.constant 1 : index
    %c1_45 = arith.constant 1 : index
    %c0_46 = arith.constant 0 : index
    %48 = vector.load %arg10[%c1_44, %c1_45, %c0_46] : memref<18x24x32xf32, #tpu.memory_space<vmem>>, vector<16x16x32xf32>
    tpu.vector_store %arg10[%c1_44, %c1_45, %c0_46], %45 {strides = array<i32>} : memref<18x24x32xf32, #tpu.memory_space<vmem>>, vector<16x16x32xf32>,
    %c0_47 = arith.constant 0 : index
    %c0_48 = arith.constant 0 : index
    %c0_49 = arith.constant 0 : index
    %49 = vector.load %arg10[%c0_47, %c0_48, %c0_49] : memref<18x24x32xf32, #tpu.memory_space<vmem>>, vector<16x24x32xf32>
    %50 = vector.shape_cast %49 : vector<16x24x32xf32> to vector<384x32xf32>
    %51 = arith.truncf %50 : vector<384x32xf32> to vector<384x32xbf16>
    %52 = vector.extract_strided_slice %46 {offsets = [0, 0, 0], sizes = [1, 32, 96], strides = [1, 1, 1]} : vector<3x32x96xbf16> to vector<1x32x96xbf16>
    %53 = vector.shape_cast %52 : vector<1x32x96xbf16> to vector<32x96xbf16>
    %cst_50 = arith.constant dense<0.000000e+00> : vector<384x96xf32>
    %54 = tpu.matmul %51, %53, %cst_50 {dimension_numbers = #tpu.dot_dimension_numbers<[1], [0], [0], [1], [0, 0, 1, 1], [], []>} : vector<384x32xbf16>, vector<32x96xbf16>, vector<384x96xf32> -> vector<384x96xf32>
    %c1_51 = arith.constant 1 : index
    %c0_52 = arith.constant 0 : index
    %c0_53 = arith.constant 0 : index
    %55 = vector.load %arg10[%c1_51, %c0_52, %c0_53] : memref<18x24x32xf32, #tpu.memory_space<vmem>>, vector<16x24x32xf32>
    %56 = vector.shape_cast %55 : vector<16x24x32xf32> to vector<384x32xf32>
    %57 = arith.truncf %56 : vector<384x32xf32> to vector<384x32xbf16>
    %58 = vector.extract_strided_slice %46 {offsets = [1, 0, 0], sizes = [1, 32, 96], strides = [1, 1, 1]} : vector<3x32x96xbf16> to vector<1x32x96xbf16>
    %59 = vector.shape_cast %58 : vector<1x32x96xbf16> to vector<32x96xbf16>
    %cst_54 = arith.constant dense<0.000000e+00> : vector<384x96xf32>
    %60 = tpu.matmul %57, %59, %cst_54 {dimension_numbers = #tpu.dot_dimension_numbers<[1], [0], [0], [1], [0, 0, 1, 1], [], []>} : vector<384x32xbf16>, vector<32x96xbf16>, vector<384x96xf32> -> vector<384x96xf32>
    %61 = arith.addf %54, %60 : vector<384x96xf32>
    %c2_55 = arith.constant 2 : index
    %c0_56 = arith.constant 0 : index
    %c0_57 = arith.constant 0 : index
    %62 = vector.load %arg10[%c2_55, %c0_56, %c0_57] : memref<18x24x32xf32, #tpu.memory_space<vmem>>, vector<16x24x32xf32>
    %63 = vector.shape_cast %62 : vector<16x24x32xf32> to vector<384x32xf32>
    %64 = arith.truncf %63 : vector<384x32xf32> to vector<384x32xbf16>
    %65 = vector.extract_strided_slice %46 {offsets = [2, 0, 0], sizes = [1, 32, 96], strides = [1, 1, 1]} : vector<3x32x96xbf16> to vector<1x32x96xbf16>
    %66 = vector.shape_cast %65 : vector<1x32x96xbf16> to vector<32x96xbf16>
    %cst_58 = arith.constant dense<0.000000e+00> : vector<384x96xf32>
    %67 = tpu.matmul %64, %66, %cst_58 {dimension_numbers = #tpu.dot_dimension_numbers<[1], [0], [0], [1], [0, 0, 1, 1], [], []>} : vector<384x32xbf16>, vector<32x96xbf16>, vector<384x96xf32> -> vector<384x96xf32>
    %68 = arith.addf %61, %67 : vector<384x96xf32>
    %69 = vector.shape_cast %68 : vector<384x96xf32> to vector<16x24x96xf32>
    %70 = vector.extract_strided_slice %69 {offsets = [0, 0, 0], sizes = [16, 16, 32], strides = [1, 1, 1]} : vector<16x24x96xf32> to vector<16x16x32xf32>
    %71 = vector.extract_strided_slice %69 {offsets = [0, 1, 32], sizes = [16, 16, 32], strides = [1, 1, 1]} : vector<16x24x96xf32> to vector<16x16x32xf32>
    %72 = arith.addf %70, %71 : vector<16x16x32xf32>
    %73 = vector.extract_strided_slice %69 {offsets = [0, 2, 64], sizes = [16, 16, 32], strides = [1, 1, 1]} : vector<16x24x96xf32> to vector<16x16x32xf32>
    %74 = arith.addf %72, %73 : vector<16x16x32xf32>
    %75 = vector.shape_cast %47 : vector<1x32xf32> to vector<1x1x32xf32>
    %76 = vector.broadcast %75 : vector<1x1x32xf32> to vector<16x16x32xf32>
    %77 = arith.addf %74, %76 : vector<16x16x32xf32>
    %78 = vector.extract_strided_slice %77 {offsets = [0, 0, 0], sizes = [16, 16, 4], strides = [1, 1, 1]} : vector<16x16x32xf32> to vector<16x16x4xf32>
    %c0_59 = arith.constant 0 : index
    %c0_60 = arith.constant 0 : index
    %c0_61 = arith.constant 0 : index
    %c0_62 = arith.constant 0 : index
    %79 = vector.load %arg9[%c0_59, %c0_60, %c0_61, %c0_62] : memref<1x16x16x4xf32, #tpu.memory_space<vmem>>, vector<1x16x16x4xf32>
    %80 = vector.shape_cast %79 : vector<1x16x16x4xf32> to vector<16x16x4xf32>
    %81 = vector.shape_cast %78 : vector<16x16x4xf32> to vector<1x16x16x4xf32>
    tpu.vector_store %arg9[%c0_59, %c0_60, %c0_61, %c0_62], %81 {strides = array<i32>} : memref<1x16x16x4xf32, #tpu.memory_space<vmem>>, vector<1x16x16x4xf32>,
    return
  }
  func.func @transform_0(%arg0: i32) -> (i32, i32, i32, i32) {
    %c0_i32 = arith.constant 0 : i32
    %c0_i32_0 = arith.constant 0 : i32
    %c0_i32_1 = arith.constant 0 : i32
    %c0_i32_2 = arith.constant 0 : i32
    return %arg0, %c0_i32, %c0_i32_0, %c0_i32_1 : i32, i32, i32, i32
  }
  func.func @transform_1(%arg0: i32) -> (i32, i32, i32, i32) {
    %c0_i32 = arith.constant 0 : i32
    %c0_i32_0 = arith.constant 0 : i32
    %c0_i32_1 = arith.constant 0 : i32
    %c0_i32_2 = arith.constant 0 : i32
    return %arg0, %c0_i32, %c0_i32_0, %c0_i32_1 : i32, i32, i32, i32
  }
  func.func @transform_2(%arg0: i32) -> (i32, i32, i32) {
    %c0_i32 = arith.constant 0 : i32
    %c0_i32_0 = arith.constant 0 : i32
    %c0_i32_1 = arith.constant 0 : i32
    %c0_i32_2 = arith.constant 0 : i32
    return %c0_i32, %c0_i32_0, %c0_i32_1 : i32, i32, i32
  }
  func.func @transform_3(%arg0: i32) -> (i32, i32) {
    %c0_i32 = arith.constant 0 : i32
    %c0_i32_0 = arith.constant 0 : i32
    %c0_i32_1 = arith.constant 0 : i32
    return %c0_i32, %c0_i32_0 : i32, i32
  }
  func.func @transform_4(%arg0: i32) -> (i32, i32, i32, i32) {
    %c0_i32 = arith.constant 0 : i32
    %c0_i32_0 = arith.constant 0 : i32
    %c0_i32_1 = arith.constant 0 : i32
    %c0_i32_2 = arith.constant 0 : i32
    %c0_i32_3 = arith.constant 0 : i32
    return %c0_i32, %c0_i32_0, %c0_i32_1, %c0_i32_2 : i32, i32, i32, i32
  }
  func.func @transform_5(%arg0: i32) -> (i32, i32, i32) {
    %c0_i32 = arith.constant 0 : i32
    %c0_i32_0 = arith.constant 0 : i32
    %c0_i32_1 = arith.constant 0 : i32
    %c0_i32_2 = arith.constant 0 : i32
    return %c0_i32, %c0_i32_0, %c0_i32_1 : i32, i32, i32
  }
  func.func @transform_6(%arg0: i32) -> (i32, i32, i32) {
    %c0_i32 = arith.constant 0 : i32
    %c0_i32_0 = arith.constant 0 : i32
    %c0_i32_1 = arith.constant 0 : i32
    %c0_i32_2 = arith.constant 0 : i32
    return %c0_i32, %c0_i32_0, %c0_i32_1 : i32, i32, i32
  }
  func.func @transform_7(%arg0: i32) -> (i32, i32) {
    %c0_i32 = arith.constant 0 : i32
    %c0_i32_0 = arith.constant 0 : i32
    %c0_i32_1 = arith.constant 0 : i32
    return %c0_i32, %c0_i32_0 : i32, i32
  }
  func.func @transform_8(%arg0: i32) -> (i32, i32, i32, i32) {
    %c0_i32 = arith.constant 0 : i32
    %c0_i32_0 = arith.constant 0 : i32
    %c0_i32_1 = arith.constant 0 : i32
    %c0_i32_2 = arith.constant 0 : i32
    return %arg0, %c0_i32, %c0_i32_0, %c0_i32_1 : i32, i32, i32, i32
  }
}

</mosaic_0001>

<llo_original>
// kernel: tpu_custom_call.1
$region0: #{tpu_custom_call.1}
  #allocation0 [shape = 'u32[]', space=smem, size = 0x4, offset = 0x4, fixed_abs, tag = 'smem constant byte address 0x4 - core index']
  #allocation1 [shape = 'u32[144,128]{1,0:T(1,128)}', space=vmem, size = 0x12000, scoped, tag = 'internal scratch']
  #allocation2 [shape = 'f32[18,24,32]{2,1,0:T(8,128)}', space=vmem, size = 0x36000, scoped, tag = 'scratch operand']
  #allocation3 [shape = 'f32[16,16,32]{2,1,0:T(8,128)}', space=vmem, size = 0x20000, scoped, tag = 'scratch operand']
  #allocation4 [shape = 'f32[16,16,32]{2,1,0:T(8,128)}', space=vmem, size = 0x20000, scoped, tag = 'scratch operand']
  %s0 = inlined_call_operand.vmem [shape: f32[2,16,16,4], index: 0, kind: input, shape index: {}]
  %s1 = inlined_call_operand.vmem [shape: f32[2,16,16,1], index: 1, kind: input, shape index: {}]
  %s2 = inlined_call_operand.vmem [shape: bf16[3,32,96], index: 2, kind: input, shape index: {}]
  %s3 = inlined_call_operand.vmem [shape: f32[1,32], index: 3, kind: input, shape index: {}]
  %s4 = inlined_call_operand.vmem [shape: bf16[8,3,32,96], index: 4, kind: input, shape index: {}]
  %s5 = inlined_call_operand.vmem [shape: f32[8,1,32], index: 5, kind: input, shape index: {}]
  %s6 = inlined_call_operand.vmem [shape: bf16[3,32,96], index: 6, kind: input, shape index: {}]
  %s7 = inlined_call_operand.vmem [shape: f32[1,32], index: 7, kind: input, shape index: {}]
  %s8 = inlined_call_operand.vmem [shape: f32[2,16,16,4], index: 8, kind: output, shape index: {}]
  %s9 = sld [smem:[#allocation0]]
  $region72: #{tpu_custom_call.1} parent=0
    _
  %s11 = ssub.s32 1, %s9
  %s12 = scalar_select 0, %s11, %s9
  loop: start=0, step=1, limit=4
  $region2: #{tpu_custom_call.1} parent=0 // loop_pre_header
    _
  $region3: #{tpu_custom_call.1} parent=0 // loop_header
    %s14 = sphi 0, %s18
    %p15 = scmp.ge.s32.totalorder %s14, 4
    %s24 = sphi 0, %s26
    %s27 = sphi 0, %s24
    %s28 = sphi 0, %s27
    %s44 = sphi 0, %s28
    %s50 = sphi 0, %s52
    %s53 = sphi 0, %s50
    %s54 = sphi 0, %s53
    %s70 = sphi 0, %s54
    %s74 = sphi 0, %s74
    %s76 = sphi 0, %s74
    %s77 = sphi 0, %s76
    %s91 = sphi 0, %s77
    %s95 = sphi 0, %s95
    %s97 = sphi 0, %s95
    %s98 = sphi 0, %s97
    %s112 = sphi 0, %s98
    %s116 = sphi 0, %s116
    %s118 = sphi 0, %s116
    %s119 = sphi 0, %s118
    %s133 = sphi 0, %s119
    %s137 = sphi 0, %s137
    %s139 = sphi 0, %s137
    %s140 = sphi 0, %s139
    %s154 = sphi 0, %s140
    %s158 = sphi 0, %s158
    %s160 = sphi 0, %s158
    %s161 = sphi 0, %s160
    %s175 = sphi 0, %s161
    %s179 = sphi 0, %s179
    %s181 = sphi 0, %s179
    %s182 = sphi 0, %s181
    %s196 = sphi 0, %s182
    %s202 = sphi 0, %s204
    %s205 = sphi 0, %s202
    %s206 = sphi 0, %s205
    %s222 = sphi 0, %s206
  $region4: #{tpu_custom_call.1} parent=0 // loop_header_branch
    %17 = sbr.rel (%p15) target = $region8
  $region5: #{tpu_custom_call.1} parent=0 // loop_body
    %s19 = ssub.s32 %s14, 1
    %s20 = ssub.s32 %s14, 2
    %s21 = sadd.s32 %s14, 1
    %s22 = ssub.s32 %s14, %s21
    %p23 = scmp.eq.s32.totalorder %s22, 0
    %s25 = sadd.s32 %s24, 1
    %s26 = scalar_select %p23, %s24, %s25
    %p29 = pneg %p23
    %p30 = scmp.eq.s32.totalorder %s14, 1
    %p31 = por %p29, %p30
    %p32 = scmp.ne.s32.totalorder %s24, %s27
    %p33 = scmp.eq.s32.totalorder %s14, 0
    %p34 = por %p32, %p33
    %p35 = scmp.ne.s32.totalorder %s24, %s27
    %p36 = scmp.eq.s32.totalorder %s19, 1
    %p37 = por %p35, %p36
    %p38 = scmp.ne.s32.totalorder %s27, %s28
    %p39 = scmp.eq.s32.totalorder %s19, 0
    %p40 = por %p38, %p39
    %p41 = scmp.ne.s32.totalorder %s27, %s28
    %p42 = scmp.eq.s32.totalorder %s20, 1
    %p43 = por %p41, %p42
    %p45 = scmp.ne.s32.totalorder %s28, %s44
    %p46 = scmp.eq.s32.totalorder %s20, 0
    %p47 = por %p45, %p46
    %s48 = ssub.s32 %s14, %s21
    %p49 = scmp.eq.s32.totalorder %s48, 0
    %s51 = sadd.s32 %s50, 1
    %s52 = scalar_select %p49, %s50, %s51
    %p55 = pneg %p49
    %p56 = scmp.eq.s32.totalorder %s14, 1
    %p57 = por %p55, %p56
    %p58 = scmp.ne.s32.totalorder %s50, %s53
    %p59 = scmp.eq.s32.totalorder %s14, 0
    %p60 = por %p58, %p59
    %p61 = scmp.ne.s32.totalorder %s50, %s53
    %p62 = scmp.eq.s32.totalorder %s19, 1
    %p63 = por %p61, %p62
    %p64 = scmp.ne.s32.totalorder %s53, %s54
    %p65 = scmp.eq.s32.totalorder %s19, 0
    %p66 = por %p64, %p65
    %p67 = scmp.ne.s32.totalorder %s53, %s54
    %p68 = scmp.eq.s32.totalorder %s20, 1
    %p69 = por %p67, %p68
    %p71 = scmp.ne.s32.totalorder %s54, %s70
    %p72 = scmp.eq.s32.totalorder %s20, 0
    %p73 = por %p71, %p72
    %s75 = sadd.s32 %s74, 1
    %p78 = scmp.eq.s32.totalorder %s14, 1
    %p79 = scmp.ne.s32.totalorder %s74, %s76
    %p80 = scmp.eq.s32.totalorder %s14, 0
    %p81 = por %p79, %p80
    %p82 = scmp.ne.s32.totalorder %s74, %s76
    %p83 = scmp.eq.s32.totalorder %s19, 1
    %p84 = por %p82, %p83
    %p85 = scmp.ne.s32.totalorder %s76, %s77
    %p86 = scmp.eq.s32.totalorder %s19, 0
    %p87 = por %p85, %p86
    %p88 = scmp.ne.s32.totalorder %s76, %s77
    %p89 = scmp.eq.s32.totalorder %s20, 1
    %p90 = por %p88, %p89
    %p92 = scmp.ne.s32.totalorder %s77, %s91
    %p93 = scmp.eq.s32.totalorder %s20, 0
    %p94 = por %p92, %p93
    %s96 = sadd.s32 %s95, 1
    %p99 = scmp.eq.s32.totalorder %s14, 1
    %p100 = scmp.ne.s32.totalorder %s95, %s97
    %p101 = scmp.eq.s32.totalorder %s14, 0
    %p102 = por %p100, %p101
    %p103 = scmp.ne.s32.totalorder %s95, %s97
    %p104 = scmp.eq.s32.totalorder %s19, 1
    %p105 = por %p103, %p104
    %p106 = scmp.ne.s32.totalorder %s97, %s98
    %p107 = scmp.eq.s32.totalorder %s19, 0
    %p108 = por %p106, %p107
    %p109 = scmp.ne.s32.totalorder %s97, %s98
    %p110 = scmp.eq.s32.totalorder %s20, 1
    %p111 = por %p109, %p110
    %p113 = scmp.ne.s32.totalorder %s98, %s112
    %p114 = scmp.eq.s32.totalorder %s20, 0
    %p115 = por %p113, %p114
    %s117 = sadd.s32 %s116, 1
    %p120 = scmp.eq.s32.totalorder %s14, 1
    %p121 = scmp.ne.s32.totalorder %s116, %s118
    %p122 = scmp.eq.s32.totalorder %s14, 0
    %p123 = por %p121, %p122
    %p124 = scmp.ne.s32.totalorder %s116, %s118
    %p125 = scmp.eq.s32.totalorder %s19, 1
    %p126 = por %p124, %p125
    %p127 = scmp.ne.s32.totalorder %s118, %s119
    %p128 = scmp.eq.s32.totalorder %s19, 0
    %p129 = por %p127, %p128
    %p130 = scmp.ne.s32.totalorder %s118, %s119
    %p131 = scmp.eq.s32.totalorder %s20, 1
    %p132 = por %p130, %p131
    %p134 = scmp.ne.s32.totalorder %s119, %s133
    %p135 = scmp.eq.s32.totalorder %s20, 0
    %p136 = por %p134, %p135
    %s138 = sadd.s32 %s137, 1
    %p141 = scmp.eq.s32.totalorder %s14, 1
    %p142 = scmp.ne.s32.totalorder %s137, %s139
    %p143 = scmp.eq.s32.totalorder %s14, 0
    %p144 = por %p142, %p143
    %p145 = scmp.ne.s32.totalorder %s137, %s139
    %p146 = scmp.eq.s32.totalorder %s19, 1
    %p147 = por %p145, %p146
    %p148 = scmp.ne.s32.totalorder %s139, %s140
    %p149 = scmp.eq.s32.totalorder %s19, 0
    %p150 = por %p148, %p149
    %p151 = scmp.ne.s32.totalorder %s139, %s140
    %p152 = scmp.eq.s32.totalorder %s20, 1
    %p153 = por %p151, %p152
    %p155 = scmp.ne.s32.totalorder %s140, %s154
    %p156 = scmp.eq.s32.totalorder %s20, 0
    %p157 = por %p155, %p156
    %s159 = sadd.s32 %s158, 1
    %p162 = scmp.eq.s32.totalorder %s14, 1
    %p163 = scmp.ne.s32.totalorder %s158, %s160
    %p164 = scmp.eq.s32.totalorder %s14, 0
    %p165 = por %p163, %p164
    %p166 = scmp.ne.s32.totalorder %s158, %s160
    %p167 = scmp.eq.s32.totalorder %s19, 1
    %p168 = por %p166, %p167
    %p169 = scmp.ne.s32.totalorder %s160, %s161
    %p170 = scmp.eq.s32.totalorder %s19, 0
    %p171 = por %p169, %p170
    %p172 = scmp.ne.s32.totalorder %s160, %s161
    %p173 = scmp.eq.s32.totalorder %s20, 1
    %p174 = por %p172, %p173
    %p176 = scmp.ne.s32.totalorder %s161, %s175
    %p177 = scmp.eq.s32.totalorder %s20, 0
    %p178 = por %p176, %p177
    %s180 = sadd.s32 %s179, 1
    %p183 = scmp.eq.s32.totalorder %s14, 1
    %p184 = scmp.ne.s32.totalorder %s179, %s181
    %p185 = scmp.eq.s32.totalorder %s14, 0
    %p186 = por %p184, %p185
    %p187 = scmp.ne.s32.totalorder %s179, %s181
    %p188 = scmp.eq.s32.totalorder %s19, 1
    %p189 = por %p187, %p188
    %p190 = scmp.ne.s32.totalorder %s181, %s182
    %p191 = scmp.eq.s32.totalorder %s19, 0
    %p192 = por %p190, %p191
    %p193 = scmp.ne.s32.totalorder %s181, %s182
    %p194 = scmp.eq.s32.totalorder %s20, 1
    %p195 = por %p193, %p194
    %p197 = scmp.ne.s32.totalorder %s182, %s196
    %p198 = scmp.eq.s32.totalorder %s20, 0
    %p199 = por %p197, %p198
    %s200 = ssub.s32 %s14, %s21
    %p201 = scmp.eq.s32.totalorder %s200, 0
    %s203 = sadd.s32 %s202, 1
    %s204 = scalar_select %p201, %s202, %s203
    %p207 = pneg %p201
    %p208 = scmp.eq.s32.totalorder %s14, 1
    %p209 = por %p207, %p208
    %p210 = scmp.ne.s32.totalorder %s202, %s205
    %p211 = scmp.eq.s32.totalorder %s14, 0
    %p212 = por %p210, %p211
    %p213 = scmp.ne.s32.totalorder %s202, %s205
    %p214 = scmp.eq.s32.totalorder %s19, 1
    %p215 = por %p213, %p214
    %p216 = scmp.ne.s32.totalorder %s205, %s206
    %p217 = scmp.eq.s32.totalorder %s19, 0
    %p218 = por %p216, %p217
    %p219 = scmp.ne.s32.totalorder %s205, %s206
    %p220 = scmp.eq.s32.totalorder %s20, 1
    %p221 = por %p219, %p220
    %p223 = scmp.ne.s32.totalorder %s206, %s222
    %p224 = scmp.eq.s32.totalorder %s20, 0
    %p225 = por %p223, %p224
    %p226 = scmp.le.s32.totalorder 1, %s14
    %p227 = scmp.lt.s32.totalorder %s14, 3
    %p228 = pnand %p226, %p227
    %p229 = pneg %p228
    // Predicated region
    $region9: #{tpu_custom_call.1} parent=5 // pred_check
      _
    $region10: #{tpu_custom_call.1} parent=5 // pred_check_branch
      %231 = sbr.rel (%p228) target = $region12
    $region11: #{tpu_custom_call.1} parent=5 // pred_region
      %s232 = ssub.s32 %s14, 1
      // Predicated region
      $region13: #{tpu_custom_call.1} parent=11 // pred_check
        %p233 = pneg %p87
      $region14: #{tpu_custom_call.1} parent=11 // pred_check_branch
        %235 = sbr.rel (%p233) target = $region16
      $region15: #{tpu_custom_call.1} parent=11 // pred_region
        _
      $region16: #{tpu_custom_call.1} parent=11 // pred_fallthru
        _
      // Predicated region
      $region17: #{tpu_custom_call.1} parent=11 // pred_check
        %p236 = pneg %p108
      $region18: #{tpu_custom_call.1} parent=11 // pred_check_branch
        %238 = sbr.rel (%p236) target = $region20
      $region19: #{tpu_custom_call.1} parent=11 // pred_region
        _
      $region20: #{tpu_custom_call.1} parent=11 // pred_fallthru
        _
      // Predicated region
      $region21: #{tpu_custom_call.1} parent=11 // pred_check
        %p239 = pneg %p129
      $region22: #{tpu_custom_call.1} parent=11 // pred_check_branch
        %241 = sbr.rel (%p239) target = $region24
      $region23: #{tpu_custom_call.1} parent=11 // pred_region
        _
      $region24: #{tpu_custom_call.1} parent=11 // pred_fallthru
        _
      // Predicated region
      $region25: #{tpu_custom_call.1} parent=11 // pred_check
        %p242 = pneg %p150
      $region26: #{tpu_custom_call.1} parent=11 // pred_check_branch
        %244 = sbr.rel (%p242) target = $region28
      $region27: #{tpu_custom_call.1} parent=11 // pred_region
        _
      $region28: #{tpu_custom_call.1} parent=11 // pred_fallthru
        _
      // Predicated region
      $region29: #{tpu_custom_call.1} parent=11 // pred_check
        %p245 = pneg %p171
      $region30: #{tpu_custom_call.1} parent=11 // pred_check_branch
        %247 = sbr.rel (%p245) target = $region32
      $region31: #{tpu_custom_call.1} parent=11 // pred_region
        _
      $region32: #{tpu_custom_call.1} parent=11 // pred_fallthru
        _
      // Predicated region
      $region33: #{tpu_custom_call.1} parent=11 // pred_check
        %p248 = pneg %p192
      $region34: #{tpu_custom_call.1} parent=11 // pred_check_branch
        %250 = sbr.rel (%p248) target = $region36
      $region35: #{tpu_custom_call.1} parent=11 // pred_region
        _
      $region36: #{tpu_custom_call.1} parent=11 // pred_fallthru
        _
    $region12: #{tpu_custom_call.1} parent=5 // pred_fallthru
      _
    %p251 = scmp.lt.s32.totalorder %s14, 2
    // Predicated region
    $region37: #{tpu_custom_call.1} parent=5 // pred_check
      %p252 = pneg %p251
    $region38: #{tpu_custom_call.1} parent=5 // pred_check_branch
      %254 = sbr.rel (%p252) target = $region40
    $region39: #{tpu_custom_call.1} parent=5 // pred_region
      // Predicated region
      $region41: #{tpu_custom_call.1} parent=39 // pred_check
        %p255 = pneg %p34
      $region42: #{tpu_custom_call.1} parent=39 // pred_check_branch
        %257 = sbr.rel (%p255) target = $region44
      $region43: #{tpu_custom_call.1} parent=39 // pred_region
        %p258 = scmp.lt.s32.totalorder %s14, 1
        %s259 = scalar_select %p258, %s14, 1
        %s260 = smul.addr %s259, 32
        %s261 = smul.addr %s260, 8
        %s262 = scalar_lea.vmem %s0, %s261
      $region44: #{tpu_custom_call.1} parent=39 // pred_fallthru
        _
      // Predicated region
      $region45: #{tpu_custom_call.1} parent=39 // pred_check
        %p263 = pneg %p60
      $region46: #{tpu_custom_call.1} parent=39 // pred_check_branch
        %265 = sbr.rel (%p263) target = $region48
      $region47: #{tpu_custom_call.1} parent=39 // pred_region
        %p266 = scmp.lt.s32.totalorder %s14, 1
        %s267 = scalar_select %p266, %s14, 1
        %s268 = smul.addr %s267, 32
        %s269 = smul.addr %s268, 8
        %s270 = scalar_lea.vmem %s1, %s269
      $region48: #{tpu_custom_call.1} parent=39 // pred_fallthru
        _
    $region40: #{tpu_custom_call.1} parent=5 // pred_fallthru
      _
    %p271 = scmp.le.s32.totalorder 1, %s14
    %p272 = scmp.lt.s32.totalorder %s14, 3
    %p273 = pnand %p271, %p272
    %p274 = pneg %p273
    // Predicated region
    $region49: #{tpu_custom_call.1} parent=5 // pred_check
      _
    $region50: #{tpu_custom_call.1} parent=5 // pred_check_branch
      %276 = sbr.rel (%p273) target = $region52
    $region51: #{tpu_custom_call.1} parent=5 // pred_region
      %s277 = ssub.s32 %s14, 1
      %p278 = scmp.lt.s32.totalorder %s19, 1
      %s279 = scalar_select %p278, %s19, 1
      %s280 = smul.addr %s279, 32
      %s281 = smul.addr %s280, 8
      %s282 = scalar_lea.vmem %s0, %s281
      %p283 = pneg %p40
      %p284 = pneg %p37
      %p285 = scmp.lt.s32.totalorder %s19, 1
      %s286 = scalar_select %p285, %s19, 1
      %s287 = smul.addr %s286, 32
      %s288 = smul.addr %s287, 8
      %s289 = scalar_lea.vmem %s1, %s288
      %p290 = pneg %p66
      %p291 = pneg %p63
      %p292 = pneg %p87
      %p293 = pneg %p84
      %p294 = pneg %p108
      %p295 = pneg %p105
      %p296 = pneg %p129
      %p297 = pneg %p126
      %p298 = pneg %p150
      %p299 = pneg %p147
      %p300 = pneg %p171
      %p301 = pneg %p168
      %p302 = pneg %p192
      %p303 = pneg %p189
      %p304 = pneg %p218
      %p305 = pneg %p215
      %p306 = scmp.lt.s32.totalorder %s19, 1
      %s307 = scalar_select %p306, %s19, 1
      %s308 = smul.addr %s307, 32
      %s309 = smul.addr %s308, 8
      %s310 = scalar_lea.vmem %s8, %s309
      %p311 = scmp.lt.s32.totalorder %s19, 1
      %s312 = scalar_select %p311, %s19, 1
      %s313 = smul.addr %s312, 32
      %s314 = smul.addr %s313, 8
      %s315 = scalar_lea.vmem %s0, %s314
      %p316 = scmp.lt.s32.totalorder %s19, 1
      %s317 = scalar_select %p316, %s19, 1
      %s318 = smul.addr %s317, 32
      %s319 = smul.addr %s318, 8
      %s320 = scalar_lea.vmem %s1, %s319
      %p321 = scmp.lt.s32.totalorder %s19, 1
      %s322 = scalar_select %p321, %s19, 1
      %s323 = smul.addr %s322, 32
      %s324 = smul.addr %s323, 8
      %s325 = scalar_lea.vmem %s8, %s324
      %vm327 = vcmask 261120
      %328 = vst.msk [vmem:[#allocation2] sm:$0xff] %vm327, 0.0
      %329 = vst.msk [vmem:[#allocation2 + $0x8] sm:$0xff] %vm327, 0.0
      %330 = vst.msk [vmem:[#allocation2 + $0x10] sm:$0xff] %vm327, 0.0
      %331 = vst.msk [vmem:[#allocation2 + $0x18] sm:$0xff] %vm327, 0.0
      %332 = vst.msk [vmem:[#allocation2 + $0x20] sm:$0xff] %vm327, 0.0
      %333 = vst.msk [vmem:[#allocation2 + $0x28] sm:$0xff] %vm327, 0.0
      %334 = vst.msk [vmem:[#allocation2 + $0x30] sm:$0xff] %vm327, 0.0
      %335 = vst.msk [vmem:[#allocation2 + $0x38] sm:$0xff] %vm327, 0.0
      %336 = vst.msk [vmem:[#allocation2 + $0x40] sm:$0xff] %vm327, 0.0
      %337 = vst.msk [vmem:[#allocation2 + $0x48] sm:$0xff] %vm327, 0.0
      %338 = vst.msk [vmem:[#allocation2 + $0x50] sm:$0xff] %vm327, 0.0
      %339 = vst.msk [vmem:[#allocation2 + $0x58] sm:$0xff] %vm327, 0.0
      %340 = vst.msk [vmem:[#allocation2 + $0x60] sm:$0xff] %vm327, 0.0
      %341 = vst.msk [vmem:[#allocation2 + $0x68] sm:$0xff] %vm327, 0.0
      %342 = vst.msk [vmem:[#allocation2 + $0x70] sm:$0xff] %vm327, 0.0
      %343 = vst.msk [vmem:[#allocation2 + $0x78] sm:$0xff] %vm327, 0.0
      %344 = vst.msk [vmem:[#allocation2 + $0x80] sm:$0xff] %vm327, 0.0
      %345 = vst.msk [vmem:[#allocation2 + $0x88] sm:$0xff] %vm327, 0.0
      %346 = vst.msk [vmem:[#allocation2 + $0x90] sm:$0xff] %vm327, 0.0
      %347 = vst.msk [vmem:[#allocation2 + $0x98] sm:$0xff] %vm327, 0.0
      %348 = vst.msk [vmem:[#allocation2 + $0xa0] sm:$0xff] %vm327, 0.0
      %349 = vst.msk [vmem:[#allocation2 + $0xa8] sm:$0xff] %vm327, 0.0
      %350 = vst.msk [vmem:[#allocation2 + $0xb0] sm:$0xff] %vm327, 0.0
      %351 = vst.msk [vmem:[#allocation2 + $0xb8] sm:$0xff] %vm327, 0.0
      %352 = vst.msk [vmem:[#allocation2 + $0xc0] sm:$0xff] %vm327, 0.0
      %353 = vst.msk [vmem:[#allocation2 + $0xc8] sm:$0xff] %vm327, 0.0
      %354 = vst.msk [vmem:[#allocation2 + $0xd0] sm:$0xff] %vm327, 0.0
      %355 = vst.msk [vmem:[#allocation2 + $0xd8] sm:$0xff] %vm327, 0.0
      %356 = vst.msk [vmem:[#allocation2 + $0xe0] sm:$0xff] %vm327, 0.0
      %357 = vst.msk [vmem:[#allocation2 + $0xe8] sm:$0xff] %vm327, 0.0
      %358 = vst.msk [vmem:[#allocation2 + $0xf0] sm:$0xff] %vm327, 0.0
      %359 = vst.msk [vmem:[#allocation2 + $0xf8] sm:$0xff] %vm327, 0.0
      %360 = vst.msk [vmem:[#allocation2 + $0x100] sm:$0xff] %vm327, 0.0
      %361 = vst.msk [vmem:[#allocation2 + $0x108] sm:$0xff] %vm327, 0.0
      %362 = vst.msk [vmem:[#allocation2 + $0x110] sm:$0xff] %vm327, 0.0
      %363 = vst.msk [vmem:[#allocation2 + $0x118] sm:$0xff] %vm327, 0.0
      %364 = vst.msk [vmem:[#allocation2 + $0x120] sm:$0xff] %vm327, 0.0
      %365 = vst.msk [vmem:[#allocation2 + $0x128] sm:$0xff] %vm327, 0.0
      %366 = vst.msk [vmem:[#allocation2 + $0x130] sm:$0xff] %vm327, 0.0
      %367 = vst.msk [vmem:[#allocation2 + $0x138] sm:$0xff] %vm327, 0.0
      %368 = vst.msk [vmem:[#allocation2 + $0x140] sm:$0xff] %vm327, 0.0
      %369 = vst.msk [vmem:[#allocation2 + $0x148] sm:$0xff] %vm327, 0.0
      %370 = vst.msk [vmem:[#allocation2 + $0x150] sm:$0xff] %vm327, 0.0
      %371 = vst.msk [vmem:[#allocation2 + $0x158] sm:$0xff] %vm327, 0.0
      %372 = vst.msk [vmem:[#allocation2 + $0x160] sm:$0xff] %vm327, 0.0
      %373 = vst.msk [vmem:[#allocation2 + $0x168] sm:$0xff] %vm327, 0.0
      %374 = vst.msk [vmem:[#allocation2 + $0x170] sm:$0xff] %vm327, 0.0
      %375 = vst.msk [vmem:[#allocation2 + $0x178] sm:$0xff] %vm327, 0.0
      %376 = vst.msk [vmem:[#allocation2 + $0x180] sm:$0xff] %vm327, 0.0
      %377 = vst.msk [vmem:[#allocation2 + $0x188] sm:$0xff] %vm327, 0.0
      %378 = vst.msk [vmem:[#allocation2 + $0x190] sm:$0xff] %vm327, 0.0
      %379 = vst.msk [vmem:[#allocation2 + $0x198] sm:$0xff] %vm327, 0.0
      %380 = vst.msk [vmem:[#allocation2 + $0x1a0] sm:$0xff] %vm327, 0.0
      %381 = vst.msk [vmem:[#allocation2 + $0x1a8] sm:$0xff] %vm327, 0.0
      %v382 = vld [vmem:[%s315] sm:$0xff]
      %v383 = vld [vmem:[%s315 + $0x8] sm:$0xff]
      %v384 = vld [vmem:[%s315 + $0x10] sm:$0xff]
      %v385 = vld [vmem:[%s315 + $0x18] sm:$0xff]
      %v386 = vld [vmem:[%s315 + $0x20] sm:$0xff]
      %v387 = vld [vmem:[%s315 + $0x28] sm:$0xff]
      %v388 = vld [vmem:[%s315 + $0x30] sm:$0xff]
      %v389 = vld [vmem:[%s315 + $0x38] sm:$0xff]
      %v390 = vld [vmem:[%s315 + $0x40] sm:$0xff]
      %v391 = vld [vmem:[%s315 + $0x48] sm:$0xff]
      %v392 = vld [vmem:[%s315 + $0x50] sm:$0xff]
      %v393 = vld [vmem:[%s315 + $0x58] sm:$0xff]
      %v394 = vld [vmem:[%s315 + $0x60] sm:$0xff]
      %v395 = vld [vmem:[%s315 + $0x68] sm:$0xff]
      %v396 = vld [vmem:[%s315 + $0x70] sm:$0xff]
      %v397 = vld [vmem:[%s315 + $0x78] sm:$0xff]
      %v398 = vld [vmem:[%s315 + $0x80] sm:$0xff]
      %v399 = vld [vmem:[%s315 + $0x88] sm:$0xff]
      %v400 = vld [vmem:[%s315 + $0x90] sm:$0xff]
      %v401 = vld [vmem:[%s315 + $0x98] sm:$0xff]
      %v402 = vld [vmem:[%s315 + $0xa0] sm:$0xff]
      %v403 = vld [vmem:[%s315 + $0xa8] sm:$0xff]
      %v404 = vld [vmem:[%s315 + $0xb0] sm:$0xff]
      %v405 = vld [vmem:[%s315 + $0xb8] sm:$0xff]
      %v406 = vld [vmem:[%s315 + $0xc0] sm:$0xff]
      %v407 = vld [vmem:[%s315 + $0xc8] sm:$0xff]
      %v408 = vld [vmem:[%s315 + $0xd0] sm:$0xff]
      %v409 = vld [vmem:[%s315 + $0xd8] sm:$0xff]
      %v410 = vld [vmem:[%s315 + $0xe0] sm:$0xff]
      %v411 = vld [vmem:[%s315 + $0xe8] sm:$0xff]
      %v412 = vld [vmem:[%s315 + $0xf0] sm:$0xff]
      %v413 = vld [vmem:[%s315 + $0xf8] sm:$0xff]
      %v414 = vld [vmem:[%s320] sm:$0xff]
      %v415 = vld [vmem:[%s320 + $0x8] sm:$0xff]
      %v416 = vld [vmem:[%s320 + $0x10] sm:$0xff]
      %v417 = vld [vmem:[%s320 + $0x18] sm:$0xff]
      %v418 = vld [vmem:[%s320 + $0x20] sm:$0xff]
      %v419 = vld [vmem:[%s320 + $0x28] sm:$0xff]
      %v420 = vld [vmem:[%s320 + $0x30] sm:$0xff]
      %v421 = vld [vmem:[%s320 + $0x38] sm:$0xff]
      %v422 = vld [vmem:[%s320 + $0x40] sm:$0xff]
      %v423 = vld [vmem:[%s320 + $0x48] sm:$0xff]
      %v424 = vld [vmem:[%s320 + $0x50] sm:$0xff]
      %v425 = vld [vmem:[%s320 + $0x58] sm:$0xff]
      %v426 = vld [vmem:[%s320 + $0x60] sm:$0xff]
      %v427 = vld [vmem:[%s320 + $0x68] sm:$0xff]
      %v428 = vld [vmem:[%s320 + $0x70] sm:$0xff]
      %v429 = vld [vmem:[%s320 + $0x78] sm:$0xff]
      %v430 = vld [vmem:[%s320 + $0x80] sm:$0xff]
      %v431 = vld [vmem:[%s320 + $0x88] sm:$0xff]
      %v432 = vld [vmem:[%s320 + $0x90] sm:$0xff]
      %v433 = vld [vmem:[%s320 + $0x98] sm:$0xff]
      %v434 = vld [vmem:[%s320 + $0xa0] sm:$0xff]
      %v435 = vld [vmem:[%s320 + $0xa8] sm:$0xff]
      %v436 = vld [vmem:[%s320 + $0xb0] sm:$0xff]
      %v437 = vld [vmem:[%s320 + $0xb8] sm:$0xff]
      %v438 = vld [vmem:[%s320 + $0xc0] sm:$0xff]
      %v439 = vld [vmem:[%s320 + $0xc8] sm:$0xff]
      %v440 = vld [vmem:[%s320 + $0xd0] sm:$0xff]
      %v441 = vld [vmem:[%s320 + $0xd8] sm:$0xff]
      %v442 = vld [vmem:[%s320 + $0xe0] sm:$0xff]
      %v443 = vld [vmem:[%s320 + $0xe8] sm:$0xff]
      %v444 = vld [vmem:[%s320 + $0xf0] sm:$0xff]
      %v445 = vld [vmem:[%s320 + $0xf8] sm:$0xff]
      %447 = vset.pattern.permute.xlu0 0
      %448 = vperm.xlu0 %447, %v414
      %v449 = vpop.permute.xlu0 %448
      %452 = vset.pattern.permute.xlu0 0
      %453 = vperm.xlu0 %452, %v415
      %v454 = vpop.permute.xlu0 %453
      %457 = vset.pattern.permute.xlu0 0
      %458 = vperm.xlu0 %457, %v416
      %v459 = vpop.permute.xlu0 %458
      %462 = vset.pattern.permute.xlu0 0
      %463 = vperm.xlu0 %462, %v417
      %v464 = vpop.permute.xlu0 %463
      %467 = vset.pattern.permute.xlu0 0
      %468 = vperm.xlu0 %467, %v418
      %v469 = vpop.permute.xlu0 %468
      %472 = vset.pattern.permute.xlu0 0
      %473 = vperm.xlu0 %472, %v419
      %v474 = vpop.permute.xlu0 %473
      %477 = vset.pattern.permute.xlu0 0
      %478 = vperm.xlu0 %477, %v420
      %v479 = vpop.permute.xlu0 %478
      %482 = vset.pattern.permute.xlu0 0
      %483 = vperm.xlu0 %482, %v421
      %v484 = vpop.permute.xlu0 %483
      %487 = vset.pattern.permute.xlu0 0
      %488 = vperm.xlu0 %487, %v422
      %v489 = vpop.permute.xlu0 %488
      %492 = vset.pattern.permute.xlu0 0
      %493 = vperm.xlu0 %492, %v423
      %v494 = vpop.permute.xlu0 %493
      %497 = vset.pattern.permute.xlu0 0
      %498 = vperm.xlu0 %497, %v424
      %v499 = vpop.permute.xlu0 %498
      %502 = vset.pattern.permute.xlu0 0
      %503 = vperm.xlu0 %502, %v425
      %v504 = vpop.permute.xlu0 %503
      %507 = vset.pattern.permute.xlu0 0
      %508 = vperm.xlu0 %507, %v426
      %v509 = vpop.permute.xlu0 %508
      %512 = vset.pattern.permute.xlu0 0
      %513 = vperm.xlu0 %512, %v427
      %v514 = vpop.permute.xlu0 %513
      %517 = vset.pattern.permute.xlu0 0
      %518 = vperm.xlu0 %517, %v428
      %v519 = vpop.permute.xlu0 %518
      %522 = vset.pattern.permute.xlu0 0
      %523 = vperm.xlu0 %522, %v429
      %v524 = vpop.permute.xlu0 %523
      %527 = vset.pattern.permute.xlu0 0
      %528 = vperm.xlu0 %527, %v430
      %v529 = vpop.permute.xlu0 %528
      %532 = vset.pattern.permute.xlu0 0
      %533 = vperm.xlu0 %532, %v431
      %v534 = vpop.permute.xlu0 %533
      %537 = vset.pattern.permute.xlu0 0
      %538 = vperm.xlu0 %537, %v432
      %v539 = vpop.permute.xlu0 %538
      %542 = vset.pattern.permute.xlu0 0
      %543 = vperm.xlu0 %542, %v433
      %v544 = vpop.permute.xlu0 %543
      %547 = vset.pattern.permute.xlu0 0
      %548 = vperm.xlu0 %547, %v434
      %v549 = vpop.permute.xlu0 %548
      %552 = vset.pattern.permute.xlu0 0
      %553 = vperm.xlu0 %552, %v435
      %v554 = vpop.permute.xlu0 %553
      %557 = vset.pattern.permute.xlu0 0
      %558 = vperm.xlu0 %557, %v436
      %v559 = vpop.permute.xlu0 %558
      %562 = vset.pattern.permute.xlu0 0
      %563 = vperm.xlu0 %562, %v437
      %v564 = vpop.permute.xlu0 %563
      %567 = vset.pattern.permute.xlu0 0
      %568 = vperm.xlu0 %567, %v438
      %v569 = vpop.permute.xlu0 %568
      %572 = vset.pattern.permute.xlu0 0
      %573 = vperm.xlu0 %572, %v439
      %v574 = vpop.permute.xlu0 %573
      %577 = vset.pattern.permute.xlu0 0
      %578 = vperm.xlu0 %577, %v440
      %v579 = vpop.permute.xlu0 %578
      %582 = vset.pattern.permute.xlu0 0
      %583 = vperm.xlu0 %582, %v441
      %v584 = vpop.permute.xlu0 %583
      %587 = vset.pattern.permute.xlu0 0
      %588 = vperm.xlu0 %587, %v442
      %v589 = vpop.permute.xlu0 %588
      %592 = vset.pattern.permute.xlu0 0
      %593 = vperm.xlu0 %592, %v443
      %v594 = vpop.permute.xlu0 %593
      %597 = vset.pattern.permute.xlu0 0
      %598 = vperm.xlu0 %597, %v444
      %v599 = vpop.permute.xlu0 %598
      %602 = vset.pattern.permute.xlu0 0
      %603 = vperm.xlu0 %602, %v445
      %v604 = vpop.permute.xlu0 %603
      %v606 = vsub.f32 %v449, %v382
      %v607 = vsub.f32 %v454, %v383
      %v608 = vsub.f32 %v459, %v384
      %v609 = vsub.f32 %v464, %v385
      %v610 = vsub.f32 %v469, %v386
      %v611 = vsub.f32 %v474, %v387
      %v612 = vsub.f32 %v479, %v388
      %v613 = vsub.f32 %v484, %v389
      %v614 = vsub.f32 %v489, %v390
      %v615 = vsub.f32 %v494, %v391
      %v616 = vsub.f32 %v499, %v392
      %v617 = vsub.f32 %v504, %v393
      %v618 = vsub.f32 %v509, %v394
      %v619 = vsub.f32 %v514, %v395
      %v620 = vsub.f32 %v519, %v396
      %v621 = vsub.f32 %v524, %v397
      %v622 = vsub.f32 %v529, %v398
      %v623 = vsub.f32 %v534, %v399
      %v624 = vsub.f32 %v539, %v400
      %v625 = vsub.f32 %v544, %v401
      %v626 = vsub.f32 %v549, %v402
      %v627 = vsub.f32 %v554, %v403
      %v628 = vsub.f32 %v559, %v404
      %v629 = vsub.f32 %v564, %v405
      %v630 = vsub.f32 %v569, %v406
      %v631 = vsub.f32 %v574, %v407
      %v632 = vsub.f32 %v579, %v408
      %v633 = vsub.f32 %v584, %v409
      %v634 = vsub.f32 %v589, %v410
      %v635 = vsub.f32 %v594, %v411
      %v636 = vsub.f32 %v599, %v412
      %v637 = vsub.f32 %v604, %v413
      %v638 = vld [vmem:[%s2] sm:$0xf]
      %v639 = vld [vmem:[%s2 + $0x4] sm:$0xf]
      %v640 = vld [vmem:[%s2 + $0x8] sm:$0xf]
      %v641 = vld [vmem:[%s2 + $0xc] sm:$0xf]
      %v642 = vld [vmem:[%s2 + $0x10] sm:$0xf]
      %v643 = vld [vmem:[%s2 + $0x14] sm:$0xf]
      %v644 = vld [vmem:[%s2 + $0x18] sm:$0xf]
      %v645 = vld [vmem:[%s2 + $0x1c] sm:$0xf]
      %v646 = vld [vmem:[%s2 + $0x20] sm:$0xf]
      %v647 = vld [vmem:[%s2 + $0x24] sm:$0xf]
      %v648 = vld [vmem:[%s2 + $0x28] sm:$0xf]
      %v649 = vld [vmem:[%s2 + $0x2c] sm:$0xf]
      %v650 = vld [vmem:[%s3] sm:$0x1]
      %s651 = scalar_lea.vmem [#allocation2], 24
      %vm652 = vcmask 31744
      %653 = vst.msk [vmem:[%s651 + $0x1] sm:$0xff] %vm652, %v606
      %654 = vst.msk [vmem:[%s651 + $0x9] sm:$0xff] %vm652, %v607
      %655 = vst.msk [vmem:[%s651 + $0x19] sm:$0xff] %vm652, %v608
      %656 = vst.msk [vmem:[%s651 + $0x21] sm:$0xff] %vm652, %v609
      %657 = vst.msk [vmem:[%s651 + $0x31] sm:$0xff] %vm652, %v610
      %658 = vst.msk [vmem:[%s651 + $0x39] sm:$0xff] %vm652, %v611
      %659 = vst.msk [vmem:[%s651 + $0x49] sm:$0xff] %vm652, %v612
      %660 = vst.msk [vmem:[%s651 + $0x51] sm:$0xff] %vm652, %v613
      %661 = vst.msk [vmem:[%s651 + $0x61] sm:$0xff] %vm652, %v614
      %662 = vst.msk [vmem:[%s651 + $0x69] sm:$0xff] %vm652, %v615
      %663 = vst.msk [vmem:[%s651 + $0x79] sm:$0xff] %vm652, %v616
      %664 = vst.msk [vmem:[%s651 + $0x81] sm:$0xff] %vm652, %v617
      %665 = vst.msk [vmem:[%s651 + $0x91] sm:$0xff] %vm652, %v618
      %666 = vst.msk [vmem:[%s651 + $0x99] sm:$0xff] %vm652, %v619
      %667 = vst.msk [vmem:[%s651 + $0xa9] sm:$0xff] %vm652, %v620
      %668 = vst.msk [vmem:[%s651 + $0xb1] sm:$0xff] %vm652, %v621
      %669 = vst.msk [vmem:[%s651 + $0xc1] sm:$0xff] %vm652, %v622
      %670 = vst.msk [vmem:[%s651 + $0xc9] sm:$0xff] %vm652, %v623
      %671 = vst.msk [vmem:[%s651 + $0xd9] sm:$0xff] %vm652, %v624
      %672 = vst.msk [vmem:[%s651 + $0xe1] sm:$0xff] %vm652, %v625
      %673 = vst.msk [vmem:[%s651 + $0xf1] sm:$0xff] %vm652, %v626
      %674 = vst.msk [vmem:[%s651 + $0xf9] sm:$0xff] %vm652, %v627
      %675 = vst.msk [vmem:[%s651 + $0x109] sm:$0xff] %vm652, %v628
      %676 = vst.msk [vmem:[%s651 + $0x111] sm:$0xff] %vm652, %v629
      %677 = vst.msk [vmem:[%s651 + $0x121] sm:$0xff] %vm652, %v630
      %678 = vst.msk [vmem:[%s651 + $0x129] sm:$0xff] %vm652, %v631
      %679 = vst.msk [vmem:[%s651 + $0x139] sm:$0xff] %vm652, %v632
      %680 = vst.msk [vmem:[%s651 + $0x141] sm:$0xff] %vm652, %v633
      %681 = vst.msk [vmem:[%s651 + $0x151] sm:$0xff] %vm652, %v634
      %682 = vst.msk [vmem:[%s651 + $0x159] sm:$0xff] %vm652, %v635
      %683 = vst.msk [vmem:[%s651 + $0x169] sm:$0xff] %vm652, %v636
      %684 = vst.msk [vmem:[%s651 + $0x171] sm:$0xff] %vm652, %v637
      %v685 = vld [vmem:[#allocation2] sm:$0xff]
      %v686 = vld [vmem:[#allocation2 + $0x8] sm:$0xff]
      %v687 = vld [vmem:[#allocation2 + $0x10] sm:$0xff]
      %v688 = vld [vmem:[#allocation2 + $0x18] sm:$0xff]
      %v689 = vld [vmem:[#allocation2 + $0x20] sm:$0xff]
      %v690 = vld [vmem:[#allocation2 + $0x28] sm:$0xff]
      %v691 = vld [vmem:[#allocation2 + $0x30] sm:$0xff]
      %v692 = vld [vmem:[#allocation2 + $0x38] sm:$0xff]
      %v693 = vld [vmem:[#allocation2 + $0x40] sm:$0xff]
      %v694 = vld [vmem:[#allocation2 + $0x48] sm:$0xff]
      %v695 = vld [vmem:[#allocation2 + $0x50] sm:$0xff]
      %v696 = vld [vmem:[#allocation2 + $0x58] sm:$0xff]
      %v697 = vld [vmem:[#allocation2 + $0x60] sm:$0xff]
      %v698 = vld [vmem:[#allocation2 + $0x68] sm:$0xff]
      %v699 = vld [vmem:[#allocation2 + $0x70] sm:$0xff]
      %v700 = vld [vmem:[#allocation2 + $0x78] sm:$0xff]
      %v701 = vld [vmem:[#allocation2 + $0x80] sm:$0xff]
      %v702 = vld [vmem:[#allocation2 + $0x88] sm:$0xff]
      %v703 = vld [vmem:[#allocation2 + $0x90] sm:$0xff]
      %v704 = vld [vmem:[#allocation2 + $0x98] sm:$0xff]
      %v705 = vld [vmem:[#allocation2 + $0xa0] sm:$0xff]
      %v706 = vld [vmem:[#allocation2 + $0xa8] sm:$0xff]
      %v707 = vld [vmem:[#allocation2 + $0xb0] sm:$0xff]
      %v708 = vld [vmem:[#allocation2 + $0xb8] sm:$0xff]
      %v709 = vld [vmem:[#allocation2 + $0xc0] sm:$0xff]
      %v710 = vld [vmem:[#allocation2 + $0xc8] sm:$0xff]
      %v711 = vld [vmem:[#allocation2 + $0xd0] sm:$0xff]
      %v712 = vld [vmem:[#allocation2 + $0xd8] sm:$0xff]
      %v713 = vld [vmem:[#allocation2 + $0xe0] sm:$0xff]
      %v714 = vld [vmem:[#allocation2 + $0xe8] sm:$0xff]
      %v715 = vld [vmem:[#allocation2 + $0xf0] sm:$0xff]
      %v716 = vld [vmem:[#allocation2 + $0xf8] sm:$0xff]
      %v717 = vld [vmem:[#allocation2 + $0x100] sm:$0xff]
      %v718 = vld [vmem:[#allocation2 + $0x108] sm:$0xff]
      %v719 = vld [vmem:[#allocation2 + $0x110] sm:$0xff]
      %v720 = vld [vmem:[#allocation2 + $0x118] sm:$0xff]
      %v721 = vld [vmem:[#allocation2 + $0x120] sm:$0xff]
      %v722 = vld [vmem:[#allocation2 + $0x128] sm:$0xff]
      %v723 = vld [vmem:[#allocation2 + $0x130] sm:$0xff]
      %v724 = vld [vmem:[#allocation2 + $0x138] sm:$0xff]
      %v725 = vld [vmem:[#allocation2 + $0x140] sm:$0xff]
      %v726 = vld [vmem:[#allocation2 + $0x148] sm:$0xff]
      %v727 = vld [vmem:[#allocation2 + $0x150] sm:$0xff]
      %v728 = vld [vmem:[#allocation2 + $0x158] sm:$0xff]
      %v729 = vld [vmem:[#allocation2 + $0x160] sm:$0xff]
      %v730 = vld [vmem:[#allocation2 + $0x168] sm:$0xff]
      %v731 = vld [vmem:[#allocation2 + $0x170] sm:$0xff]
      %v732 = vld [vmem:[#allocation2 + $0x178] sm:$0xff]
      %v733 = vpack.c.bf16 %v686, %v685
      %v734 = vpack.c.bf16 %v688, %v687
      %v735 = vpack.c.bf16 %v690, %v689
      %v736 = vpack.c.bf16 %v692, %v691
      %v737 = vpack.c.bf16 %v694, %v693
      %v738 = vpack.c.bf16 %v696, %v695
      %v739 = vpack.c.bf16 %v698, %v697
      %v740 = vpack.c.bf16 %v700, %v699
      %v741 = vpack.c.bf16 %v702, %v701
      %v742 = vpack.c.bf16 %v704, %v703
      %v743 = vpack.c.bf16 %v706, %v705
      %v744 = vpack.c.bf16 %v708, %v707
      %v745 = vpack.c.bf16 %v710, %v709
      %v746 = vpack.c.bf16 %v712, %v711
      %v747 = vpack.c.bf16 %v714, %v713
      %v748 = vpack.c.bf16 %v716, %v715
      %v749 = vpack.c.bf16 %v718, %v717
      %v750 = vpack.c.bf16 %v720, %v719
      %v751 = vpack.c.bf16 %v722, %v721
      %v752 = vpack.c.bf16 %v724, %v723
      %v753 = vpack.c.bf16 %v726, %v725
      %v754 = vpack.c.bf16 %v728, %v727
      %v755 = vpack.c.bf16 %v730, %v729
      %v756 = vpack.c.bf16 %v732, %v731
      %v757 = vld [vmem:[%s651] sm:$0xff]
      %v758 = vld [vmem:[%s651 + $0x8] sm:$0xff]
      %v759 = vld [vmem:[%s651 + $0x10] sm:$0xff]
      %v760 = vld [vmem:[%s651 + $0x18] sm:$0xff]
      %v761 = vld [vmem:[%s651 + $0x20] sm:$0xff]
      %v762 = vld [vmem:[%s651 + $0x28] sm:$0xff]
      %v763 = vld [vmem:[%s651 + $0x30] sm:$0xff]
      %v764 = vld [vmem:[%s651 + $0x38] sm:$0xff]
      %v765 = vld [vmem:[%s651 + $0x40] sm:$0xff]
      %v766 = vld [vmem:[%s651 + $0x48] sm:$0xff]
      %v767 = vld [vmem:[%s651 + $0x50] sm:$0xff]
      %v768 = vld [vmem:[%s651 + $0x58] sm:$0xff]
      %v769 = vld [vmem:[%s651 + $0x60] sm:$0xff]
      %v770 = vld [vmem:[%s651 + $0x68] sm:$0xff]
      %v771 = vld [vmem:[%s651 + $0x70] sm:$0xff]
      %v772 = vld [vmem:[%s651 + $0x78] sm:$0xff]
      %v773 = vld [vmem:[%s651 + $0x80] sm:$0xff]
      %v774 = vld [vmem:[%s651 + $0x88] sm:$0xff]
      %v775 = vld [vmem:[%s651 + $0x90] sm:$0xff]
      %v776 = vld [vmem:[%s651 + $0x98] sm:$0xff]
      %v777 = vld [vmem:[%s651 + $0xa0] sm:$0xff]
      %v778 = vld [vmem:[%s651 + $0xa8] sm:$0xff]
      %v779 = vld [vmem:[%s651 + $0xb0] sm:$0xff]
      %v780 = vld [vmem:[%s651 + $0xb8] sm:$0xff]
      %v781 = vld [vmem:[%s651 + $0xc0] sm:$0xff]
      %v782 = vld [vmem:[%s651 + $0xc8] sm:$0xff]
      %v783 = vld [vmem:[%s651 + $0xd0] sm:$0xff]
      %v784 = vld [vmem:[%s651 + $0xd8] sm:$0xff]
      %v785 = vld [vmem:[%s651 + $0xe0] sm:$0xff]
      %v786 = vld [vmem:[%s651 + $0xe8] sm:$0xff]
      %v787 = vld [vmem:[%s651 + $0xf0] sm:$0xff]
      %v788 = vld [vmem:[%s651 + $0xf8] sm:$0xff]
      %v789 = vld [vmem:[%s651 + $0x100] sm:$0xff]
      %v790 = vld [vmem:[%s651 + $0x108] sm:$0xff]
      %v791 = vld [vmem:[%s651 + $0x110] sm:$0xff]
      %v792 = vld [vmem:[%s651 + $0x118] sm:$0xff]
      %v793 = vld [vmem:[%s651 + $0x120] sm:$0xff]
      %v794 = vld [vmem:[%s651 + $0x128] sm:$0xff]
      %v795 = vld [vmem:[%s651 + $0x130] sm:$0xff]
      %v796 = vld [vmem:[%s651 + $0x138] sm:$0xff]
      %v797 = vld [vmem:[%s651 + $0x140] sm:$0xff]
      %v798 = vld [vmem:[%s651 + $0x148] sm:$0xff]
      %v799 = vld [vmem:[%s651 + $0x150] sm:$0xff]
      %v800 = vld [vmem:[%s651 + $0x158] sm:$0xff]
      %v801 = vld [vmem:[%s651 + $0x160] sm:$0xff]
      %v802 = vld [vmem:[%s651 + $0x168] sm:$0xff]
      %v803 = vld [vmem:[%s651 + $0x170] sm:$0xff]
      %v804 = vld [vmem:[%s651 + $0x178] sm:$0xff]
      %v805 = vpack.c.bf16 %v758, %v757
      %v806 = vpack.c.bf16 %v760, %v759
      %v807 = vpack.c.bf16 %v762, %v761
      %v808 = vpack.c.bf16 %v764, %v763
      %v809 = vpack.c.bf16 %v766, %v765
      %v810 = vpack.c.bf16 %v768, %v767
      %v811 = vpack.c.bf16 %v770, %v769
      %v812 = vpack.c.bf16 %v772, %v771
      %v813 = vpack.c.bf16 %v774, %v773
      %v814 = vpack.c.bf16 %v776, %v775
      %v815 = vpack.c.bf16 %v778, %v777
      %v816 = vpack.c.bf16 %v780, %v779
      %v817 = vpack.c.bf16 %v782, %v781
      %v818 = vpack.c.bf16 %v784, %v783
      %v819 = vpack.c.bf16 %v786, %v785
      %v820 = vpack.c.bf16 %v788, %v787
      %v821 = vpack.c.bf16 %v790, %v789
      %v822 = vpack.c.bf16 %v792, %v791
      %v823 = vpack.c.bf16 %v794, %v793
      %v824 = vpack.c.bf16 %v796, %v795
      %v825 = vpack.c.bf16 %v798, %v797
      %v826 = vpack.c.bf16 %v800, %v799
      %v827 = vpack.c.bf16 %v802, %v801
      %v828 = vpack.c.bf16 %v804, %v803
      %v833 = vunpack.c.l.b16 %v642
      %v834 = vunpack.c.l.b16 %v643
      %v835 = vunpack.c.l.b16 %v644
      %v836 = vunpack.c.l.b16 %v645
      %v837 = vpack.c.b16 %v834, %v833
      %v838 = vpack.c.b16 %v836, %v835
      %v842 = vsel %vm327, %v805, 0
      %v845 = vsel %vm327, %v806, 0
      %v848 = vsel %vm327, %v807, 0
      %v851 = vsel %vm327, %v808, 0
      %v854 = vsel %vm327, %v809, 0
      %v857 = vsel %vm327, %v810, 0
      %v860 = vsel %vm327, %v811, 0
      %v863 = vsel %vm327, %v812, 0
      %v866 = vsel %vm327, %v813, 0
      %v869 = vsel %vm327, %v814, 0
      %v872 = vsel %vm327, %v815, 0
      %v875 = vsel %vm327, %v816, 0
      %v878 = vsel %vm327, %v817, 0
      %v881 = vsel %vm327, %v818, 0
      %v884 = vsel %vm327, %v819, 0
      %v887 = vsel %vm327, %v820, 0
      %v890 = vsel %vm327, %v821, 0
      %v893 = vsel %vm327, %v822, 0
      %v896 = vsel %vm327, %v823, 0
      %v899 = vsel %vm327, %v824, 0
      %v902 = vsel %vm327, %v825, 0
      %v905 = vsel %vm327, %v826, 0
      %v908 = vsel %vm327, %v827, 0
      %v911 = vsel %vm327, %v828, 0
      %913 = vmatprep.subr.bf16.mxu0 0
      %914 = vmatpush1.bf16.msra.mxu0 %v837
      %915 = vmatprep.subr.bf16.mxu0 0
      %916 = vmatpush1.bf16.msra.mxu0 %v838
      %917 = vmatprep.subr.bf16.mxu0 0
      %918 = vmatpush1.bf16.msra.mxu0 0
      %919 = vmatprep.subr.bf16.mxu0 0
      %920 = vmatpush1.bf16.msra.mxu0 0
      %921 = vmatprep.subr.bf16.mxu0 0
      %922 = vmatpush1.bf16.msra.mxu0 0
      %923 = vmatprep.subr.bf16.mxu0 0
      %924 = vmatpush1.bf16.msra.mxu0 0
      %925 = vmatprep.subr.bf16.mxu0 0
      %926 = vmatpush1.bf16.msra.mxu0 0
      %927 = vmatprep.subr.bf16.mxu0 0
      %928 = vmatpush1.bf16.msra.mxu0 0
      %929 = vmatprep.subr.bf16.mxu0 0
      %930 = vmatpush1.bf16.msra.mxu0 0
      %931 = vmatprep.subr.bf16.mxu0 0
      %932 = vmatpush1.bf16.msra.mxu0 0
      %933 = vmatprep.subr.bf16.mxu0 0
      %934 = vmatpush1.bf16.msra.mxu0 0
      %935 = vmatprep.subr.bf16.mxu0 0
      %936 = vmatpush1.bf16.msra.mxu0 0
      %937 = vmatprep.subr.bf16.mxu0 0
      %938 = vmatpush1.bf16.msra.mxu0 0
      %939 = vmatprep.subr.bf16.mxu0 0
      %940 = vmatpush1.bf16.msra.mxu0 0
      %941 = vmatprep.subr.bf16.mxu0 0
      %942 = vmatpush1.bf16.msra.mxu0 0
      %943 = vmatprep.subr.bf16.mxu0 0
      %944 = vmatpush1.bf16.msra.mxu0 0
      %945 = vmatprep.mubr.bf16.mxu0 0
      %946 = vmatmul.mubr.bf16.gmra.mrb[0].mxu0 %v842
      %v947 = vpop.f32.mrb[0].mxu0
      %v948 = vadd.f32 0.0, %v947
      %v949 = vpop.f32.mrb[0].mxu0
      %v950 = vpop.f32.mrb[0].mxu0
      %v951 = vadd.f32 0.0, %v950
      %v952 = vpop.f32.mrb[0].mxu0
      %953 = vmatprep.mubr.bf16.mxu0 0
      %954 = vmatmul.mubr.bf16.gmra.mrb[0].mxu0 %v845
      %v955 = vpop.f32.mrb[0].mxu0
      %v956 = vadd.f32 0.0, %v955
      %v957 = vpop.f32.mrb[0].mxu0
      %v958 = vpop.f32.mrb[0].mxu0
      %v959 = vadd.f32 0.0, %v958
      %v960 = vpop.f32.mrb[0].mxu0
      %961 = vmatprep.mubr.bf16.mxu0 0
      %962 = vmatmul.mubr.bf16.gmra.mrb[0].mxu0 %v848
      %v963 = vpop.f32.mrb[0].mxu0
      %v964 = vadd.f32 0.0, %v963
      %v965 = vpop.f32.mrb[0].mxu0
      %v966 = vpop.f32.mrb[0].mxu0
      %v967 = vadd.f32 0.0, %v966
      %v968 = vpop.f32.mrb[0].mxu0
      %969 = vmatprep.mubr.bf16.mxu0 0
      %970 = vmatmul.mubr.bf16.gmra.mrb[0].mxu0 %v851
      %v971 = vpop.f32.mrb[0].mxu0
      %v972 = vadd.f32 0.0, %v971
      %v973 = vpop.f32.mrb[0].mxu0
      %v974 = vpop.f32.mrb[0].mxu0
      %v975 = vadd.f32 0.0, %v974
      %v976 = vpop.f32.mrb[0].mxu0
      %977 = vmatprep.mubr.bf16.mxu0 0
      %978 = vmatmul.mubr.bf16.gmra.mrb[0].mxu0 %v854
      %v979 = vpop.f32.mrb[0].mxu0
      %v980 = vadd.f32 0.0, %v979
      %v981 = vpop.f32.mrb[0].mxu0
      %v982 = vpop.f32.mrb[0].mxu0
      %v983 = vadd.f32 0.0, %v982
      %v984 = vpop.f32.mrb[0].mxu0
      %985 = vmatprep.mubr.bf16.mxu0 0
      %986 = vmatmul.mubr.bf16.gmra.mrb[0].mxu0 %v857
      %v987 = vpop.f32.mrb[0].mxu0
      %v988 = vadd.f32 0.0, %v987
      %v989 = vpop.f32.mrb[0].mxu0
      %v990 = vpop.f32.mrb[0].mxu0
      %v991 = vadd.f32 0.0, %v990
      %v992 = vpop.f32.mrb[0].mxu0
      %993 = vmatprep.mubr.bf16.mxu0 0
      %994 = vmatmul.mubr.bf16.gmra.mrb[0].mxu0 %v860
      %v995 = vpop.f32.mrb[0].mxu0
      %v996 = vadd.f32 0.0, %v995
      %v997 = vpop.f32.mrb[0].mxu0
      %v998 = vpop.f32.mrb[0].mxu0
      %v999 = vadd.f32 0.0, %v998
      %v1000 = vpop.f32.mrb[0].mxu0
      %1001 = vmatprep.mubr.bf16.mxu0 0
      %1002 = vmatmul.mubr.bf16.gmra.mrb[0].mxu0 %v863
      %v1003 = vpop.f32.mrb[0].mxu0
      %v1004 = vadd.f32 0.0, %v1003
      %v1005 = vpop.f32.mrb[0].mxu0
      %v1006 = vpop.f32.mrb[0].mxu0
      %v1007 = vadd.f32 0.0, %v1006
      %v1008 = vpop.f32.mrb[0].mxu0
      %1009 = vmatprep.mubr.bf16.mxu0 0
      %1010 = vmatmul.mubr.bf16.gmra.mrb[0].mxu0 %v866
      %v1011 = vpop.f32.mrb[0].mxu0
      %v1012 = vadd.f32 0.0, %v1011
      %v1013 = vpop.f32.mrb[0].mxu0
      %v1014 = vpop.f32.mrb[0].mxu0
      %v1015 = vadd.f32 0.0, %v1014
      %v1016 = vpop.f32.mrb[0].mxu0
      %1017 = vmatprep.mubr.bf16.mxu0 0
      %1018 = vmatmul.mubr.bf16.gmra.mrb[0].mxu0 %v869
      %v1019 = vpop.f32.mrb[0].mxu0
      %v1020 = vadd.f32 0.0, %v1019
      %v1021 = vpop.f32.mrb[0].mxu0
      %v1022 = vpop.f32.mrb[0].mxu0
      %v1023 = vadd.f32 0.0, %v1022
      %v1024 = vpop.f32.mrb[0].mxu0
      %1025 = vmatprep.mubr.bf16.mxu0 0
      %1026 = vmatmul.mubr.bf16.gmra.mrb[0].mxu0 %v872
      %v1027 = vpop.f32.mrb[0].mxu0
      %v1028 = vadd.f32 0.0, %v1027
      %v1029 = vpop.f32.mrb[0].mxu0
      %v1030 = vpop.f32.mrb[0].mxu0
      %v1031 = vadd.f32 0.0, %v1030
      %v1032 = vpop.f32.mrb[0].mxu0
      %1033 = vmatprep.mubr.bf16.mxu0 0
      %1034 = vmatmul.mubr.bf16.gmra.mrb[0].mxu0 %v875
      %v1035 = vpop.f32.mrb[0].mxu0
      %v1036 = vadd.f32 0.0, %v1035
      %v1037 = vpop.f32.mrb[0].mxu0
      %v1038 = vpop.f32.mrb[0].mxu0
      %v1039 = vadd.f32 0.0, %v1038
      %v1040 = vpop.f32.mrb[0].mxu0
      %1041 = vmatprep.mubr.bf16.mxu0 0
      %1042 = vmatmul.mubr.bf16.gmra.mrb[0].mxu0 %v878
      %v1043 = vpop.f32.mrb[0].mxu0
      %v1044 = vadd.f32 0.0, %v1043
      %v1045 = vpop.f32.mrb[0].mxu0
      %v1046 = vpop.f32.mrb[0].mxu0
      %v1047 = vadd.f32 0.0, %v1046
      %v1048 = vpop.f32.mrb[0].mxu0
      %1049 = vmatprep.mubr.bf16.mxu0 0
      %1050 = vmatmul.mubr.bf16.gmra.mrb[0].mxu0 %v881
      %v1051 = vpop.f32.mrb[0].mxu0
      %v1052 = vadd.f32 0.0, %v1051
      %v1053 = vpop.f32.mrb[0].mxu0
      %v1054 = vpop.f32.mrb[0].mxu0
      %v1055 = vadd.f32 0.0, %v1054
      %v1056 = vpop.f32.mrb[0].mxu0
      %1057 = vmatprep.mubr.bf16.mxu0 0
      %1058 = vmatmul.mubr.bf16.gmra.mrb[0].mxu0 %v884
      %v1059 = vpop.f32.mrb[0].mxu0
      %v1060 = vadd.f32 0.0, %v1059
      %v1061 = vpop.f32.mrb[0].mxu0
      %v1062 = vpop.f32.mrb[0].mxu0
      %v1063 = vadd.f32 0.0, %v1062
      %v1064 = vpop.f32.mrb[0].mxu0
      %1065 = vmatprep.mubr.bf16.mxu0 0
      %1066 = vmatmul.mubr.bf16.gmra.mrb[0].mxu0 %v887
      %v1067 = vpop.f32.mrb[0].mxu0
      %v1068 = vadd.f32 0.0, %v1067
      %v1069 = vpop.f32.mrb[0].mxu0
      %v1070 = vpop.f32.mrb[0].mxu0
      %v1071 = vadd.f32 0.0, %v1070
      %v1072 = vpop.f32.mrb[0].mxu0
      %1073 = vmatprep.mubr.bf16.mxu0 0
      %1074 = vmatmul.mubr.bf16.gmra.mrb[0].mxu0 %v890
      %v1075 = vpop.f32.mrb[0].mxu0
      %v1076 = vadd.f32 0.0, %v1075
      %v1077 = vpop.f32.mrb[0].mxu0
      %v1078 = vpop.f32.mrb[0].mxu0
      %v1079 = vadd.f32 0.0, %v1078
      %v1080 = vpop.f32.mrb[0].mxu0
      %1081 = vmatprep.mubr.bf16.mxu0 0
      %1082 = vmatmul.mubr.bf16.gmra.mrb[0].mxu0 %v893
      %v1083 = vpop.f32.mrb[0].mxu0
      %v1084 = vadd.f32 0.0, %v1083
      %v1085 = vpop.f32.mrb[0].mxu0
      %v1086 = vpop.f32.mrb[0].mxu0
      %v1087 = vadd.f32 0.0, %v1086
      %v1088 = vpop.f32.mrb[0].mxu0
      %1089 = vmatprep.mubr.bf16.mxu0 0
      %1090 = vmatmul.mubr.bf16.gmra.mrb[0].mxu0 %v896
      %v1091 = vpop.f32.mrb[0].mxu0
      %v1092 = vadd.f32 0.0, %v1091
      %v1093 = vpop.f32.mrb[0].mxu0
      %v1094 = vpop.f32.mrb[0].mxu0
      %v1095 = vadd.f32 0.0, %v1094
      %v1096 = vpop.f32.mrb[0].mxu0
      %1097 = vmatprep.mubr.bf16.mxu0 0
      %1098 = vmatmul.mubr.bf16.gmra.mrb[0].mxu0 %v899
      %v1099 = vpop.f32.mrb[0].mxu0
      %v1100 = vadd.f32 0.0, %v1099
      %v1101 = vpop.f32.mrb[0].mxu0
      %v1102 = vpop.f32.mrb[0].mxu0
      %v1103 = vadd.f32 0.0, %v1102
      %v1104 = vpop.f32.mrb[0].mxu0
      %1105 = vmatprep.mubr.bf16.mxu0 0
      %1106 = vmatmul.mubr.bf16.gmra.mrb[0].mxu0 %v902
      %v1107 = vpop.f32.mrb[0].mxu0
      %v1108 = vadd.f32 0.0, %v1107
      %v1109 = vpop.f32.mrb[0].mxu0
      %v1110 = vpop.f32.mrb[0].mxu0
      %v1111 = vadd.f32 0.0, %v1110
      %v1112 = vpop.f32.mrb[0].mxu0
      %1113 = vmatprep.mubr.bf16.mxu0 0
      %1114 = vmatmul.mubr.bf16.gmra.mrb[0].mxu0 %v905
      %v1115 = vpop.f32.mrb[0].mxu0
      %v1116 = vadd.f32 0.0, %v1115
      %v1117 = vpop.f32.mrb[0].mxu0
      %v1118 = vpop.f32.mrb[0].mxu0
      %v1119 = vadd.f32 0.0, %v1118
      %v1120 = vpop.f32.mrb[0].mxu0
      %1121 = vmatprep.mubr.bf16.mxu0 0
      %1122 = vmatmul.mubr.bf16.gmra.mrb[0].mxu0 %v908
      %v1123 = vpop.f32.mrb[0].mxu0
      %v1124 = vadd.f32 0.0, %v1123
      %v1125 = vpop.f32.mrb[0].mxu0
      %v1126 = vpop.f32.mrb[0].mxu0
      %v1127 = vadd.f32 0.0, %v1126
      %v1128 = vpop.f32.mrb[0].mxu0
      %1129 = vmatprep.mubr.bf16.mxu0 0
      %1130 = vmatmul.mubr.bf16.gmra.mrb[0].mxu0 %v911
      %v1131 = vpop.f32.mrb[0].mxu0
      %v1132 = vadd.f32 0.0, %v1131
      %v1133 = vpop.f32.mrb[0].mxu0
      %v1134 = vpop.f32.mrb[0].mxu0
      %v1135 = vadd.f32 0.0, %v1134
      %v1136 = vpop.f32.mrb[0].mxu0
      %1137 = vdwg.mxu0
      %v1142 = vunpack.c.l.b16 %v638
      %v1143 = vunpack.c.l.b16 %v639
      %v1144 = vunpack.c.l.b16 %v640
      %v1145 = vunpack.c.l.b16 %v641
      %v1146 = vpack.c.b16 %v1143, %v1142
      %v1147 = vpack.c.b16 %v1145, %v1144
      %v1151 = vsel %vm327, %v733, 0
      %v1154 = vsel %vm327, %v734, 0
      %v1157 = vsel %vm327, %v735, 0
      %v1160 = vsel %vm327, %v736, 0
      %v1163 = vsel %vm327, %v737, 0
      %v1166 = vsel %vm327, %v738, 0
      %v1169 = vsel %vm327, %v739, 0
      %v1172 = vsel %vm327, %v740, 0
      %v1175 = vsel %vm327, %v741, 0
      %v1178 = vsel %vm327, %v742, 0
      %v1181 = vsel %vm327, %v743, 0
      %v1184 = vsel %vm327, %v744, 0
      %v1187 = vsel %vm327, %v745, 0
      %v1190 = vsel %vm327, %v746, 0
      %v1193 = vsel %vm327, %v747, 0
      %v1196 = vsel %vm327, %v748, 0
      %v1199 = vsel %vm327, %v749, 0
      %v1202 = vsel %vm327, %v750, 0
      %v1205 = vsel %vm327, %v751, 0
      %v1208 = vsel %vm327, %v752, 0
      %v1211 = vsel %vm327, %v753, 0
      %v1214 = vsel %vm327, %v754, 0
      %v1217 = vsel %vm327, %v755, 0
      %v1220 = vsel %vm327, %v756, 0
      %1222 = vmatprep.subr.bf16.mxu0 0
      %1223 = vmatpush1.bf16.msra.mxu0 %v1146
      %1224 = vmatprep.subr.bf16.mxu0 0
      %1225 = vmatpush1.bf16.msra.mxu0 %v1147
      %1226 = vmatprep.subr.bf16.mxu0 0
      %1227 = vmatpush1.bf16.msra.mxu0 0
      %1228 = vmatprep.subr.bf16.mxu0 0
      %1229 = vmatpush1.bf16.msra.mxu0 0
      %1230 = vmatprep.subr.bf16.mxu0 0
      %1231 = vmatpush1.bf16.msra.mxu0 0
      %1232 = vmatprep.subr.bf16.mxu0 0
      %1233 = vmatpush1.bf16.msra.mxu0 0
      %1234 = vmatprep.subr.bf16.mxu0 0
      %1235 = vmatpush1.bf16.msra.mxu0 0
      %1236 = vmatprep.subr.bf16.mxu0 0
      %1237 = vmatpush1.bf16.msra.mxu0 0
      %1238 = vmatprep.subr.bf16.mxu0 0
      %1239 = vmatpush1.bf16.msra.mxu0 0
      %1240 = vmatprep.subr.bf16.mxu0 0
      %1241 = vmatpush1.bf16.msra.mxu0 0
      %1242 = vmatprep.subr.bf16.mxu0 0
      %1243 = vmatpush1.bf16.msra.mxu0 0
      %1244 = vmatprep.subr.bf16.mxu0 0
      %1245 = vmatpush1.bf16.msra.mxu0 0
      %1246 = vmatprep.subr.bf16.mxu0 0
      %1247 = vmatpush1.bf16.msra.mxu0 0
      %1248 = vmatprep.subr.bf16.mxu0 0
      %1249 = vmatpush1.bf16.msra.mxu0 0
      %1250 = vmatprep.subr.bf16.mxu0 0
      %1251 = vmatpush1.bf16.msra.mxu0 0
      %1252 = vmatprep.subr.bf16.mxu0 0
      %1253 = vmatpush1.bf16.msra.mxu0 0
      %1254 = vmatprep.mubr.bf16.mxu0 0
      %1255 = vmatmul.mubr.bf16.gmra.mrb[0].mxu0 %v1151
      %v1256 = vpop.f32.mrb[0].mxu0
      %v1257 = vadd.f32 %v948, %v1256
      %v1258 = vpop.f32.mrb[0].mxu0
      %v1259 = vpop.f32.mrb[0].mxu0
      %v1260 = vadd.f32 %v951, %v1259
      %v1261 = vpop.f32.mrb[0].mxu0
      %1262 = vmatprep.mubr.bf16.mxu0 0
      %1263 = vmatmul.mubr.bf16.gmra.mrb[0].mxu0 %v1154
      %v1264 = vpop.f32.mrb[0].mxu0
      %v1265 = vadd.f32 %v956, %v1264
      %v1266 = vpop.f32.mrb[0].mxu0
      %v1267 = vpop.f32.mrb[0].mxu0
      %v1268 = vadd.f32 %v959, %v1267
      %v1269 = vpop.f32.mrb[0].mxu0
      %1270 = vmatprep.mubr.bf16.mxu0 0
      %1271 = vmatmul.mubr.bf16.gmra.mrb[0].mxu0 %v1157
      %v1272 = vpop.f32.mrb[0].mxu0
      %v1273 = vadd.f32 %v964, %v1272
      %v1274 = vpop.f32.mrb[0].mxu0
      %v1275 = vpop.f32.mrb[0].mxu0
      %v1276 = vadd.f32 %v967, %v1275
      %v1277 = vpop.f32.mrb[0].mxu0
      %1278 = vmatprep.mubr.bf16.mxu0 0
      %1279 = vmatmul.mubr.bf16.gmra.mrb[0].mxu0 %v1160
      %v1280 = vpop.f32.mrb[0].mxu0
      %v1281 = vadd.f32 %v972, %v1280
      %v1282 = vpop.f32.mrb[0].mxu0
      %v1283 = vpop.f32.mrb[0].mxu0
      %v1284 = vadd.f32 %v975, %v1283
      %v1285 = vpop.f32.mrb[0].mxu0
      %1286 = vmatprep.mubr.bf16.mxu0 0
      %1287 = vmatmul.mubr.bf16.gmra.mrb[0].mxu0 %v1163
      %v1288 = vpop.f32.mrb[0].mxu0
      %v1289 = vadd.f32 %v980, %v1288
      %v1290 = vpop.f32.mrb[0].mxu0
      %v1291 = vpop.f32.mrb[0].mxu0
      %v1292 = vadd.f32 %v983, %v1291
      %v1293 = vpop.f32.mrb[0].mxu0
      %1294 = vmatprep.mubr.bf16.mxu0 0
      %1295 = vmatmul.mubr.bf16.gmra.mrb[0].mxu0 %v1166
      %v1296 = vpop.f32.mrb[0].mxu0
      %v1297 = vadd.f32 %v988, %v1296
      %v1298 = vpop.f32.mrb[0].mxu0
      %v1299 = vpop.f32.mrb[0].mxu0
      %v1300 = vadd.f32 %v991, %v1299
      %v1301 = vpop.f32.mrb[0].mxu0
      %1302 = vmatprep.mubr.bf16.mxu0 0
      %1303 = vmatmul.mubr.bf16.gmra.mrb[0].mxu0 %v1169
      %v1304 = vpop.f32.mrb[0].mxu0
      %v1305 = vadd.f32 %v996, %v1304
      %v1306 = vpop.f32.mrb[0].mxu0
      %v1307 = vpop.f32.mrb[0].mxu0
      %v1308 = vadd.f32 %v999, %v1307
      %v1309 = vpop.f32.mrb[0].mxu0
      %1310 = vmatprep.mubr.bf16.mxu0 0
      %1311 = vmatmul.mubr.bf16.gmra.mrb[0].mxu0 %v1172
      %v1312 = vpop.f32.mrb[0].mxu0
      %v1313 = vadd.f32 %v1004, %v1312
      %v1314 = vpop.f32.mrb[0].mxu0
      %v1315 = vpop.f32.mrb[0].mxu0
      %v1316 = vadd.f32 %v1007, %v1315
      %v1317 = vpop.f32.mrb[0].mxu0
      %1318 = vmatprep.mubr.bf16.mxu0 0
      %1319 = vmatmul.mubr.bf16.gmra.mrb[0].mxu0 %v1175
      %v1320 = vpop.f32.mrb[0].mxu0
      %v1321 = vadd.f32 %v1012, %v1320
      %v1322 = vpop.f32.mrb[0].mxu0
      %v1323 = vpop.f32.mrb[0].mxu0
      %v1324 = vadd.f32 %v1015, %v1323
      %v1325 = vpop.f32.mrb[0].mxu0
      %1326 = vmatprep.mubr.bf16.mxu0 0
      %1327 = vmatmul.mubr.bf16.gmra.mrb[0].mxu0 %v1178
      %v1328 = vpop.f32.mrb[0].mxu0
      %v1329 = vadd.f32 %v1020, %v1328
      %v1330 = vpop.f32.mrb[0].mxu0
      %v1331 = vpop.f32.mrb[0].mxu0
      %v1332 = vadd.f32 %v1023, %v1331
      %v1333 = vpop.f32.mrb[0].mxu0
      %1334 = vmatprep.mubr.bf16.mxu0 0
      %1335 = vmatmul.mubr.bf16.gmra.mrb[0].mxu0 %v1181
      %v1336 = vpop.f32.mrb[0].mxu0
      %v1337 = vadd.f32 %v1028, %v1336
      %v1338 = vpop.f32.mrb[0].mxu0
      %v1339 = vpop.f32.mrb[0].mxu0
      %v1340 = vadd.f32 %v1031, %v1339
      %v1341 = vpop.f32.mrb[0].mxu0
      %1342 = vmatprep.mubr.bf16.mxu0 0
      %1343 = vmatmul.mubr.bf16.gmra.mrb[0].mxu0 %v1184
      %v1344 = vpop.f32.mrb[0].mxu0
      %v1345 = vadd.f32 %v1036, %v1344
      %v1346 = vpop.f32.mrb[0].mxu0
      %v1347 = vpop.f32.mrb[0].mxu0
      %v1348 = vadd.f32 %v1039, %v1347
      %v1349 = vpop.f32.mrb[0].mxu0
      %1350 = vmatprep.mubr.bf16.mxu0 0
      %1351 = vmatmul.mubr.bf16.gmra.mrb[0].mxu0 %v1187
      %v1352 = vpop.f32.mrb[0].mxu0
      %v1353 = vadd.f32 %v1044, %v1352
      %v1354 = vpop.f32.mrb[0].mxu0
      %v1355 = vpop.f32.mrb[0].mxu0
      %v1356 = vadd.f32 %v1047, %v1355
      %v1357 = vpop.f32.mrb[0].mxu0
      %1358 = vmatprep.mubr.bf16.mxu0 0
      %1359 = vmatmul.mubr.bf16.gmra.mrb[0].mxu0 %v1190
      %v1360 = vpop.f32.mrb[0].mxu0
      %v1361 = vadd.f32 %v1052, %v1360
      %v1362 = vpop.f32.mrb[0].mxu0
      %v1363 = vpop.f32.mrb[0].mxu0
      %v1364 = vadd.f32 %v1055, %v1363
      %v1365 = vpop.f32.mrb[0].mxu0
      %1366 = vmatprep.mubr.bf16.mxu0 0
      %1367 = vmatmul.mubr.bf16.gmra.mrb[0].mxu0 %v1193
      %v1368 = vpop.f32.mrb[0].mxu0
      %v1369 = vadd.f32 %v1060, %v1368
      %v1370 = vpop.f32.mrb[0].mxu0
      %v1371 = vpop.f32.mrb[0].mxu0
      %v1372 = vadd.f32 %v1063, %v1371
      %v1373 = vpop.f32.mrb[0].mxu0
      %1374 = vmatprep.mubr.bf16.mxu0 0
      %1375 = vmatmul.mubr.bf16.gmra.mrb[0].mxu0 %v1196
      %v1376 = vpop.f32.mrb[0].mxu0
      %v1377 = vadd.f32 %v1068, %v1376
      %v1378 = vpop.f32.mrb[0].mxu0
      %v1379 = vpop.f32.mrb[0].mxu0
      %v1380 = vadd.f32 %v1071, %v1379
      %v1381 = vpop.f32.mrb[0].mxu0
      %1382 = vmatprep.mubr.bf16.mxu0 0
      %1383 = vmatmul.mubr.bf16.gmra.mrb[0].mxu0 %v1199
      %v1384 = vpop.f32.mrb[0].mxu0
      %v1385 = vadd.f32 %v1076, %v1384
      %v1386 = vpop.f32.mrb[0].mxu0
      %v1387 = vpop.f32.mrb[0].mxu0
      %v1388 = vadd.f32 %v1079, %v1387
      %v1389 = vpop.f32.mrb[0].mxu0
      %1390 = vmatprep.mubr.bf16.mxu0 0
      %1391 = vmatmul.mubr.bf16.gmra.mrb[0].mxu0 %v1202
      %v1392 = vpop.f32.mrb[0].mxu0
      %v1393 = vadd.f32 %v1084, %v1392
      %v1394 = vpop.f32.mrb[0].mxu0
      %v1395 = vpop.f32.mrb[0].mxu0
      %v1396 = vadd.f32 %v1087, %v1395
      %v1397 = vpop.f32.mrb[0].mxu0
      %1398 = vmatprep.mubr.bf16.mxu0 0
      %1399 = vmatmul.mubr.bf16.gmra.mrb[0].mxu0 %v1205
      %v1400 = vpop.f32.mrb[0].mxu0
      %v1401 = vadd.f32 %v1092, %v1400
      %v1402 = vpop.f32.mrb[0].mxu0
      %v1403 = vpop.f32.mrb[0].mxu0
      %v1404 = vadd.f32 %v1095, %v1403
      %v1405 = vpop.f32.mrb[0].mxu0
      %1406 = vmatprep.mubr.bf16.mxu0 0
      %1407 = vmatmul.mubr.bf16.gmra.mrb[0].mxu0 %v1208
      %v1408 = vpop.f32.mrb[0].mxu0
      %v1409 = vadd.f32 %v1100, %v1408
      %v1410 = vpop.f32.mrb[0].mxu0
      %v1411 = vpop.f32.mrb[0].mxu0
      %v1412 = vadd.f32 %v1103, %v1411
      %v1413 = vpop.f32.mrb[0].mxu0
      %1414 = vmatprep.mubr.bf16.mxu0 0
      %1415 = vmatmul.mubr.bf16.gmra.mrb[0].mxu0 %v1211
      %v1416 = vpop.f32.mrb[0].mxu0
      %v1417 = vadd.f32 %v1108, %v1416
      %v1418 = vpop.f32.mrb[0].mxu0
      %v1419 = vpop.f32.mrb[0].mxu0
      %v1420 = vadd.f32 %v1111, %v1419
      %v1421 = vpop.f32.mrb[0].mxu0
      %1422 = vmatprep.mubr.bf16.mxu0 0
      %1423 = vmatmul.mubr.bf16.gmra.mrb[0].mxu0 %v1214
      %v1424 = vpop.f32.mrb[0].mxu0
      %v1425 = vadd.f32 %v1116, %v1424
      %v1426 = vpop.f32.mrb[0].mxu0
      %v1427 = vpop.f32.mrb[0].mxu0
      %v1428 = vadd.f32 %v1119, %v1427
      %v1429 = vpop.f32.mrb[0].mxu0
      %1430 = vmatprep.mubr.bf16.mxu0 0
      %1431 = vmatmul.mubr.bf16.gmra.mrb[0].mxu0 %v1217
      %v1432 = vpop.f32.mrb[0].mxu0
      %v1433 = vadd.f32 %v1124, %v1432
      %v1434 = vpop.f32.mrb[0].mxu0
      %v1435 = vpop.f32.mrb[0].mxu0
      %v1436 = vadd.f32 %v1127, %v1435
      %v1437 = vpop.f32.mrb[0].mxu0
      %1438 = vmatprep.mubr.bf16.mxu0 0
      %1439 = vmatmul.mubr.bf16.gmra.mrb[0].mxu0 %v1220
      %v1440 = vpop.f32.mrb[0].mxu0
      %v1441 = vadd.f32 %v1132, %v1440
      %v1442 = vpop.f32.mrb[0].mxu0
      %v1443 = vpop.f32.mrb[0].mxu0
      %v1444 = vadd.f32 %v1135, %v1443
      %v1445 = vpop.f32.mrb[0].mxu0
      %1446 = vdwg.mxu0
      %s1447 = scalar_lea.vmem [#allocation2], 48
      %v1448 = vld [vmem:[%s1447] sm:$0xff]
      %v1449 = vld [vmem:[%s1447 + $0x8] sm:$0xff]
      %v1450 = vld [vmem:[%s1447 + $0x10] sm:$0xff]
      %v1451 = vld [vmem:[%s1447 + $0x18] sm:$0xff]
      %v1452 = vld [vmem:[%s1447 + $0x20] sm:$0xff]
      %v1453 = vld [vmem:[%s1447 + $0x28] sm:$0xff]
      %v1454 = vld [vmem:[%s1447 + $0x30] sm:$0xff]
      %v1455 = vld [vmem:[%s1447 + $0x38] sm:$0xff]
      %v1456 = vld [vmem:[%s1447 + $0x40] sm:$0xff]
      %v1457 = vld [vmem:[%s1447 + $0x48] sm:$0xff]
      %v1458 = vld [vmem:[%s1447 + $0x50] sm:$0xff]
      %v1459 = vld [vmem:[%s1447 + $0x58] sm:$0xff]
      %v1460 = vld [vmem:[%s1447 + $0x60] sm:$0xff]
      %v1461 = vld [vmem:[%s1447 + $0x68] sm:$0xff]
      %v1462 = vld [vmem:[%s1447 + $0x70] sm:$0xff]
      %v1463 = vld [vmem:[%s1447 + $0x78] sm:$0xff]
      %v1464 = vld [vmem:[%s1447 + $0x80] sm:$0xff]
      %v1465 = vld [vmem:[%s1447 + $0x88] sm:$0xff]
      %v1466 = vld [vmem:[%s1447 + $0x90] sm:$0xff]
      %v1467 = vld [vmem:[%s1447 + $0x98] sm:$0xff]
      %v1468 = vld [vmem:[%s1447 + $0xa0] sm:$0xff]
      %v1469 = vld [vmem:[%s1447 + $0xa8] sm:$0xff]
      %v1470 = vld [vmem:[%s1447 + $0xb0] sm:$0xff]
      %v1471 = vld [vmem:[%s1447 + $0xb8] sm:$0xff]
      %v1472 = vld [vmem:[%s1447 + $0xc0] sm:$0xff]
      %v1473 = vld [vmem:[%s1447 + $0xc8] sm:$0xff]
      %v1474 = vld [vmem:[%s1447 + $0xd0] sm:$0xff]
      %v1475 = vld [vmem:[%s1447 + $0xd8] sm:$0xff]
      %v1476 = vld [vmem:[%s1447 + $0xe0] sm:$0xff]
      %v1477 = vld [vmem:[%s1447 + $0xe8] sm:$0xff]
      %v1478 = vld [vmem:[%s1447 + $0xf0] sm:$0xff]
      %v1479 = vld [vmem:[%s1447 + $0xf8] sm:$0xff]
      %v1480 = vld [vmem:[%s1447 + $0x100] sm:$0xff]
      %v1481 = vld [vmem:[%s1447 + $0x108] sm:$0xff]
      %v1482 = vld [vmem:[%s1447 + $0x110] sm:$0xff]
      %v1483 = vld [vmem:[%s1447 + $0x118] sm:$0xff]
      %v1484 = vld [vmem:[%s1447 + $0x120] sm:$0xff]
      %v1485 = vld [vmem:[%s1447 + $0x128] sm:$0xff]
      %v1486 = vld [vmem:[%s1447 + $0x130] sm:$0xff]
      %v1487 = vld [vmem:[%s1447 + $0x138] sm:$0xff]
      %v1488 = vld [vmem:[%s1447 + $0x140] sm:$0xff]
      %v1489 = vld [vmem:[%s1447 + $0x148] sm:$0xff]
      %v1490 = vld [vmem:[%s1447 + $0x150] sm:$0xff]
      %v1491 = vld [vmem:[%s1447 + $0x158] sm:$0xff]
      %v1492 = vld [vmem:[%s1447 + $0x160] sm:$0xff]
      %v1493 = vld [vmem:[%s1447 + $0x168] sm:$0xff]
      %v1494 = vld [vmem:[%s1447 + $0x170] sm:$0xff]
      %v1495 = vld [vmem:[%s1447 + $0x178] sm:$0xff]
      %v1496 = vpack.c.bf16 %v1449, %v1448
      %v1497 = vpack.c.bf16 %v1451, %v1450
      %v1498 = vpack.c.bf16 %v1453, %v1452
      %v1499 = vpack.c.bf16 %v1455, %v1454
      %v1500 = vpack.c.bf16 %v1457, %v1456
      %v1501 = vpack.c.bf16 %v1459, %v1458
      %v1502 = vpack.c.bf16 %v1461, %v1460
      %v1503 = vpack.c.bf16 %v1463, %v1462
      %v1504 = vpack.c.bf16 %v1465, %v1464
      %v1505 = vpack.c.bf16 %v1467, %v1466
      %v1506 = vpack.c.bf16 %v1469, %v1468
      %v1507 = vpack.c.bf16 %v1471, %v1470
      %v1508 = vpack.c.bf16 %v1473, %v1472
      %v1509 = vpack.c.bf16 %v1475, %v1474
      %v1510 = vpack.c.bf16 %v1477, %v1476
      %v1511 = vpack.c.bf16 %v1479, %v1478
      %v1512 = vpack.c.bf16 %v1481, %v1480
      %v1513 = vpack.c.bf16 %v1483, %v1482
      %v1514 = vpack.c.bf16 %v1485, %v1484
      %v1515 = vpack.c.bf16 %v1487, %v1486
      %v1516 = vpack.c.bf16 %v1489, %v1488
      %v1517 = vpack.c.bf16 %v1491, %v1490
      %v1518 = vpack.c.bf16 %v1493, %v1492
      %v1519 = vpack.c.bf16 %v1495, %v1494
      %v1524 = vunpack.c.l.b16 %v646
      %v1525 = vunpack.c.l.b16 %v647
      %v1526 = vunpack.c.l.b16 %v648
      %v1527 = vunpack.c.l.b16 %v649
      %v1528 = vpack.c.b16 %v1525, %v1524
      %v1529 = vpack.c.b16 %v1527, %v1526
      %v1533 = vsel %vm327, %v1496, 0
      %v1536 = vsel %vm327, %v1497, 0
      %v1539 = vsel %vm327, %v1498, 0
      %v1542 = vsel %vm327, %v1499, 0
      %v1545 = vsel %vm327, %v1500, 0
      %v1548 = vsel %vm327, %v1501, 0
      %v1551 = vsel %vm327, %v1502, 0
      %v1554 = vsel %vm327, %v1503, 0
      %v1557 = vsel %vm327, %v1504, 0
      %v1560 = vsel %vm327, %v1505, 0
      %v1563 = vsel %vm327, %v1506, 0
      %v1566 = vsel %vm327, %v1507, 0
      %v1569 = vsel %vm327, %v1508, 0
      %v1572 = vsel %vm327, %v1509, 0
      %v1575 = vsel %vm327, %v1510, 0
      %v1578 = vsel %vm327, %v1511, 0
      %v1581 = vsel %vm327, %v1512, 0
      %v1584 = vsel %vm327, %v1513, 0
      %v1587 = vsel %vm327, %v1514, 0
      %v1590 = vsel %vm327, %v1515, 0
      %v1593 = vsel %vm327, %v1516, 0
      %v1596 = vsel %vm327, %v1517, 0
      %v1599 = vsel %vm327, %v1518, 0
      %v1602 = vsel %vm327, %v1519, 0
      %1604 = vmatprep.subr.bf16.mxu0 0
      %1605 = vmatpush1.bf16.msra.mxu0 %v1528
      %1606 = vmatprep.subr.bf16.mxu0 0
      %1607 = vmatpush1.bf16.msra.mxu0 %v1529
      %1608 = vmatprep.subr.bf16.mxu0 0
      %1609 = vmatpush1.bf16.msra.mxu0 0
      %1610 = vmatprep.subr.bf16.mxu0 0
      %1611 = vmatpush1.bf16.msra.mxu0 0
      %1612 = vmatprep.subr.bf16.mxu0 0
      %1613 = vmatpush1.bf16.msra.mxu0 0
      %1614 = vmatprep.subr.bf16.mxu0 0
      %1615 = vmatpush1.bf16.msra.mxu0 0
      %1616 = vmatprep.subr.bf16.mxu0 0
      %1617 = vmatpush1.bf16.msra.mxu0 0
      %1618 = vmatprep.subr.bf16.mxu0 0
      %1619 = vmatpush1.bf16.msra.mxu0 0
      %1620 = vmatprep.subr.bf16.mxu0 0
      %1621 = vmatpush1.bf16.msra.mxu0 0
      %1622 = vmatprep.subr.bf16.mxu0 0
      %1623 = vmatpush1.bf16.msra.mxu0 0
      %1624 = vmatprep.subr.bf16.mxu0 0
      %1625 = vmatpush1.bf16.msra.mxu0 0
      %1626 = vmatprep.subr.bf16.mxu0 0
      %1627 = vmatpush1.bf16.msra.mxu0 0
      %1628 = vmatprep.subr.bf16.mxu0 0
      %1629 = vmatpush1.bf16.msra.mxu0 0
      %1630 = vmatprep.subr.bf16.mxu0 0
      %1631 = vmatpush1.bf16.msra.mxu0 0
      %1632 = vmatprep.subr.bf16.mxu0 0
      %1633 = vmatpush1.bf16.msra.mxu0 0
      %1634 = vmatprep.subr.bf16.mxu0 0
      %1635 = vmatpush1.bf16.msra.mxu0 0
      %1636 = vmatprep.mubr.bf16.mxu0 0
      %1637 = vmatmul.mubr.bf16.gmra.mrb[0].mxu0 %v1533
      %v1638 = vpop.f32.mrb[0].mxu0
      %v1639 = vadd.f32 0.0, %v1638
      %v1640 = vpop.f32.mrb[0].mxu0
      %v1641 = vpop.f32.mrb[0].mxu0
      %v1642 = vadd.f32 0.0, %v1641
      %v1643 = vpop.f32.mrb[0].mxu0
      %1644 = vmatprep.mubr.bf16.mxu0 0
      %1645 = vmatmul.mubr.bf16.gmra.mrb[0].mxu0 %v1536
      %v1646 = vpop.f32.mrb[0].mxu0
      %v1647 = vadd.f32 0.0, %v1646
      %v1648 = vpop.f32.mrb[0].mxu0
      %v1649 = vpop.f32.mrb[0].mxu0
      %v1650 = vadd.f32 0.0, %v1649
      %v1651 = vpop.f32.mrb[0].mxu0
      %1652 = vmatprep.mubr.bf16.mxu0 0
      %1653 = vmatmul.mubr.bf16.gmra.mrb[0].mxu0 %v1539
      %v1654 = vpop.f32.mrb[0].mxu0
      %v1655 = vadd.f32 0.0, %v1654
      %v1656 = vpop.f32.mrb[0].mxu0
      %v1657 = vpop.f32.mrb[0].mxu0
      %v1658 = vadd.f32 0.0, %v1657
      %v1659 = vpop.f32.mrb[0].mxu0
      %1660 = vmatprep.mubr.bf16.mxu0 0
      %1661 = vmatmul.mubr.bf16.gmra.mrb[0].mxu0 %v1542
      %v1662 = vpop.f32.mrb[0].mxu0
      %v1663 = vadd.f32 0.0, %v1662
      %v1664 = vpop.f32.mrb[0].mxu0
      %v1665 = vpop.f32.mrb[0].mxu0
      %v1666 = vadd.f32 0.0, %v1665
      %v1667 = vpop.f32.mrb[0].mxu0
      %1668 = vmatprep.mubr.bf16.mxu0 0
      %1669 = vmatmul.mubr.bf16.gmra.mrb[0].mxu0 %v1545
      %v1670 = vpop.f32.mrb[0].mxu0
      %v1671 = vadd.f32 0.0, %v1670
      %v1672 = vpop.f32.mrb[0].mxu0
      %v1673 = vpop.f32.mrb[0].mxu0
      %v1674 = vadd.f32 0.0, %v1673
      %v1675 = vpop.f32.mrb[0].mxu0
      %1676 = vmatprep.mubr.bf16.mxu0 0
      %1677 = vmatmul.mubr.bf16.gmra.mrb[0].mxu0 %v1548
      %v1678 = vpop.f32.mrb[0].mxu0
      %v1679 = vadd.f32 0.0, %v1678
      %v1680 = vpop.f32.mrb[0].mxu0
      %v1681 = vpop.f32.mrb[0].mxu0
      %v1682 = vadd.f32 0.0, %v1681
      %v1683 = vpop.f32.mrb[0].mxu0
      %1684 = vmatprep.mubr.bf16.mxu0 0
      %1685 = vmatmul.mubr.bf16.gmra.mrb[0].mxu0 %v1551
      %v1686 = vpop.f32.mrb[0].mxu0
      %v1687 = vadd.f32 0.0, %v1686
      %v1688 = vpop.f32.mrb[0].mxu0
      %v1689 = vpop.f32.mrb[0].mxu0
      %v1690 = vadd.f32 0.0, %v1689
      %v1691 = vpop.f32.mrb[0].mxu0
      %1692 = vmatprep.mubr.bf16.mxu0 0
      %1693 = vmatmul.mubr.bf16.gmra.mrb[0].mxu0 %v1554
      %v1694 = vpop.f32.mrb[0].mxu0
      %v1695 = vadd.f32 0.0, %v1694
      %v1696 = vpop.f32.mrb[0].mxu0
      %v1697 = vpop.f32.mrb[0].mxu0
      %v1698 = vadd.f32 0.0, %v1697
      %v1699 = vpop.f32.mrb[0].mxu0
      %1700 = vmatprep.mubr.bf16.mxu0 0
      %1701 = vmatmul.mubr.bf16.gmra.mrb[0].mxu0 %v1557
      %v1702 = vpop.f32.mrb[0].mxu0
      %v1703 = vadd.f32 0.0, %v1702
      %v1704 = vpop.f32.mrb[0].mxu0
      %v1705 = vpop.f32.mrb[0].mxu0
      %v1706 = vadd.f32 0.0, %v1705
      %v1707 = vpop.f32.mrb[0].mxu0
      %1708 = vmatprep.mubr.bf16.mxu0 0
      %1709 = vmatmul.mubr.bf16.gmra.mrb[0].mxu0 %v1560
      %v1710 = vpop.f32.mrb[0].mxu0
      %v1711 = vadd.f32 0.0, %v1710
      %v1712 = vpop.f32.mrb[0].mxu0
      %v1713 = vpop.f32.mrb[0].mxu0
      %v1714 = vadd.f32 0.0, %v1713
      %v1715 = vpop.f32.mrb[0].mxu0
      %1716 = vmatprep.mubr.bf16.mxu0 0
      %1717 = vmatmul.mubr.bf16.gmra.mrb[0].mxu0 %v1563
      %v1718 = vpop.f32.mrb[0].mxu0
      %v1719 = vadd.f32 0.0, %v1718
      %v1720 = vpop.f32.mrb[0].mxu0
      %v1721 = vpop.f32.mrb[0].mxu0
      %v1722 = vadd.f32 0.0, %v1721
      %v1723 = vpop.f32.mrb[0].mxu0
      %1724 = vmatprep.mubr.bf16.mxu0 0
      %1725 = vmatmul.mubr.bf16.gmra.mrb[0].mxu0 %v1566
      %v1726 = vpop.f32.mrb[0].mxu0
      %v1727 = vadd.f32 0.0, %v1726
      %v1728 = vpop.f32.mrb[0].mxu0
      %v1729 = vpop.f32.mrb[0].mxu0
      %v1730 = vadd.f32 0.0, %v1729
      %v1731 = vpop.f32.mrb[0].mxu0
      %1732 = vmatprep.mubr.bf16.mxu0 0
      %1733 = vmatmul.mubr.bf16.gmra.mrb[0].mxu0 %v1569
      %v1734 = vpop.f32.mrb[0].mxu0
      %v1735 = vadd.f32 0.0, %v1734
      %v1736 = vpop.f32.mrb[0].mxu0
      %v1737 = vpop.f32.mrb[0].mxu0
      %v1738 = vadd.f32 0.0, %v1737
      %v1739 = vpop.f32.mrb[0].mxu0
      %1740 = vmatprep.mubr.bf16.mxu0 0
      %1741 = vmatmul.mubr.bf16.gmra.mrb[0].mxu0 %v1572
      %v1742 = vpop.f32.mrb[0].mxu0
      %v1743 = vadd.f32 0.0, %v1742
      %v1744 = vpop.f32.mrb[0].mxu0
      %v1745 = vpop.f32.mrb[0].mxu0
      %v1746 = vadd.f32 0.0, %v1745
      %v1747 = vpop.f32.mrb[0].mxu0
      %1748 = vmatprep.mubr.bf16.mxu0 0
      %1749 = vmatmul.mubr.bf16.gmra.mrb[0].mxu0 %v1575
      %v1750 = vpop.f32.mrb[0].mxu0
      %v1751 = vadd.f32 0.0, %v1750
      %v1752 = vpop.f32.mrb[0].mxu0
      %v1753 = vpop.f32.mrb[0].mxu0
      %v1754 = vadd.f32 0.0, %v1753
      %v1755 = vpop.f32.mrb[0].mxu0
      %1756 = vmatprep.mubr.bf16.mxu0 0
      %1757 = vmatmul.mubr.bf16.gmra.mrb[0].mxu0 %v1578
      %v1758 = vpop.f32.mrb[0].mxu0
      %v1759 = vadd.f32 0.0, %v1758
      %v1760 = vpop.f32.mrb[0].mxu0
      %v1761 = vpop.f32.mrb[0].mxu0
      %v1762 = vadd.f32 0.0, %v1761
      %v1763 = vpop.f32.mrb[0].mxu0
      %1764 = vmatprep.mubr.bf16.mxu0 0
      %1765 = vmatmul.mubr.bf16.gmra.mrb[0].mxu0 %v1581
      %v1766 = vpop.f32.mrb[0].mxu0
      %v1767 = vadd.f32 0.0, %v1766
      %v1768 = vpop.f32.mrb[0].mxu0
      %v1769 = vpop.f32.mrb[0].mxu0
      %v1770 = vadd.f32 0.0, %v1769
      %v1771 = vpop.f32.mrb[0].mxu0
      %1772 = vmatprep.mubr.bf16.mxu0 0
      %1773 = vmatmul.mubr.bf16.gmra.mrb[0].mxu0 %v1584
      %v1774 = vpop.f32.mrb[0].mxu0
      %v1775 = vadd.f32 0.0, %v1774
      %v1776 = vpop.f32.mrb[0].mxu0
      %v1777 = vpop.f32.mrb[0].mxu0
      %v1778 = vadd.f32 0.0, %v1777
      %v1779 = vpop.f32.mrb[0].mxu0
      %1780 = vmatprep.mubr.bf16.mxu0 0
      %1781 = vmatmul.mubr.bf16.gmra.mrb[0].mxu0 %v1587
      %v1782 = vpop.f32.mrb[0].mxu0
      %v1783 = vadd.f32 0.0, %v1782
      %v1784 = vpop.f32.mrb[0].mxu0
      %v1785 = vpop.f32.mrb[0].mxu0
      %v1786 = vadd.f32 0.0, %v1785
      %v1787 = vpop.f32.mrb[0].mxu0
      %1788 = vmatprep.mubr.bf16.mxu0 0
      %1789 = vmatmul.mubr.bf16.gmra.mrb[0].mxu0 %v1590
      %v1790 = vpop.f32.mrb[0].mxu0
      %v1791 = vadd.f32 0.0, %v1790
      %v1792 = vpop.f32.mrb[0].mxu0
      %v1793 = vpop.f32.mrb[0].mxu0
      %v1794 = vadd.f32 0.0, %v1793
      %v1795 = vpop.f32.mrb[0].mxu0
      %1796 = vmatprep.mubr.bf16.mxu0 0
      %1797 = vmatmul.mubr.bf16.gmra.mrb[0].mxu0 %v1593
      %v1798 = vpop.f32.mrb[0].mxu0
      %v1799 = vadd.f32 0.0, %v1798
      %v1800 = vpop.f32.mrb[0].mxu0
      %v1801 = vpop.f32.mrb[0].mxu0
      %v1802 = vadd.f32 0.0, %v1801
      %v1803 = vpop.f32.mrb[0].mxu0
      %1804 = vmatprep.mubr.bf16.mxu0 0
      %1805 = vmatmul.mubr.bf16.gmra.mrb[0].mxu0 %v1596
      %v1806 = vpop.f32.mrb[0].mxu0
      %v1807 = vadd.f32 0.0, %v1806
      %v1808 = vpop.f32.mrb[0].mxu0
      %v1809 = vpop.f32.mrb[0].mxu0
      %v1810 = vadd.f32 0.0, %v1809
      %v1811 = vpop.f32.mrb[0].mxu0
      %1812 = vmatprep.mubr.bf16.mxu0 0
      %1813 = vmatmul.mubr.bf16.gmra.mrb[0].mxu0 %v1599
      %v1814 = vpop.f32.mrb[0].mxu0
      %v1815 = vadd.f32 0.0, %v1814
      %v1816 = vpop.f32.mrb[0].mxu0
      %v1817 = vpop.f32.mrb[0].mxu0
      %v1818 = vadd.f32 0.0, %v1817
      %v1819 = vpop.f32.mrb[0].mxu0
      %1820 = vmatprep.mubr.bf16.mxu0 0
      %1821 = vmatmul.mubr.bf16.gmra.mrb[0].mxu0 %v1602
      %v1822 = vpop.f32.mrb[0].mxu0
      %v1823 = vadd.f32 0.0, %v1822
      %v1824 = vpop.f32.mrb[0].mxu0
      %v1825 = vpop.f32.mrb[0].mxu0
      %v1826 = vadd.f32 0.0, %v1825
      %v1827 = vpop.f32.mrb[0].mxu0
      %1828 = vdwg.mxu0
      %v1829 = vadd.f32 %v1257, %v1639
      %v1830 = vadd.f32 %v1260, %v1642
      %v1831 = vadd.f32 %v1265, %v1647
      %v1832 = vadd.f32 %v1268, %v1650
      %v1833 = vadd.f32 %v1273, %v1655
      %v1834 = vadd.f32 %v1276, %v1658
      %v1835 = vadd.f32 %v1281, %v1663
      %v1836 = vadd.f32 %v1284, %v1666
      %v1837 = vadd.f32 %v1289, %v1671
      %v1838 = vadd.f32 %v1292, %v1674
      %v1839 = vadd.f32 %v1297, %v1679
      %v1840 = vadd.f32 %v1300, %v1682
      %v1841 = vadd.f32 %v1305, %v1687
      %v1842 = vadd.f32 %v1308, %v1690
      %v1843 = vadd.f32 %v1313, %v1695
      %v1844 = vadd.f32 %v1316, %v1698
      %v1845 = vadd.f32 %v1321, %v1703
      %v1846 = vadd.f32 %v1324, %v1706
      %v1847 = vadd.f32 %v1329, %v1711
      %v1848 = vadd.f32 %v1332, %v1714
      %v1849 = vadd.f32 %v1337, %v1719
      %v1850 = vadd.f32 %v1340, %v1722
      %v1851 = vadd.f32 %v1345, %v1727
      %v1852 = vadd.f32 %v1348, %v1730
      %v1853 = vadd.f32 %v1353, %v1735
      %v1854 = vadd.f32 %v1356, %v1738
      %v1855 = vadd.f32 %v1361, %v1743
      %v1856 = vadd.f32 %v1364, %v1746
      %v1857 = vadd.f32 %v1369, %v1751
      %v1858 = vadd.f32 %v1372, %v1754
      %v1859 = vadd.f32 %v1377, %v1759
      %v1860 = vadd.f32 %v1380, %v1762
      %v1861 = vadd.f32 %v1385, %v1767
      %v1862 = vadd.f32 %v1388, %v1770
      %v1863 = vadd.f32 %v1393, %v1775
      %v1864 = vadd.f32 %v1396, %v1778
      %v1865 = vadd.f32 %v1401, %v1783
      %v1866 = vadd.f32 %v1404, %v1786
      %v1867 = vadd.f32 %v1409, %v1791
      %v1868 = vadd.f32 %v1412, %v1794
      %v1869 = vadd.f32 %v1417, %v1799
      %v1870 = vadd.f32 %v1420, %v1802
      %v1871 = vadd.f32 %v1425, %v1807
      %v1872 = vadd.f32 %v1428, %v1810
      %v1873 = vadd.f32 %v1433, %v1815
      %v1874 = vadd.f32 %v1436, %v1818
      %v1875 = vadd.f32 %v1441, %v1823
      %v1876 = vadd.f32 %v1444, %v1826
      %vm1925 = vcmask 1046528
      %v1926 = vrot.slane %v1829, 1
      %v1927 = vrot.slane %v1830, 1
      %v1928 = vsel %vm1925, %v1926, %v1927
      %v1929 = vrot.slane %v1831, 1
      %v1930 = vsel %vm1925, %v1927, %v1929
      %v1931 = vrot.slane %v1832, 1
      %v1932 = vrot.slane %v1833, 1
      %v1933 = vsel %vm1925, %v1931, %v1932
      %v1934 = vrot.slane %v1834, 1
      %v1935 = vsel %vm1925, %v1932, %v1934
      %v1936 = vrot.slane %v1835, 1
      %v1937 = vrot.slane %v1836, 1
      %v1938 = vsel %vm1925, %v1936, %v1937
      %v1939 = vrot.slane %v1837, 1
      %v1940 = vsel %vm1925, %v1937, %v1939
      %v1941 = vrot.slane %v1838, 1
      %v1942 = vrot.slane %v1839, 1
      %v1943 = vsel %vm1925, %v1941, %v1942
      %v1944 = vrot.slane %v1840, 1
      %v1945 = vsel %vm1925, %v1942, %v1944
      %v1946 = vrot.slane %v1841, 1
      %v1947 = vrot.slane %v1842, 1
      %v1948 = vsel %vm1925, %v1946, %v1947
      %v1949 = vrot.slane %v1843, 1
      %v1950 = vsel %vm1925, %v1947, %v1949
      %v1951 = vrot.slane %v1844, 1
      %v1952 = vrot.slane %v1845, 1
      %v1953 = vsel %vm1925, %v1951, %v1952
      %v1954 = vrot.slane %v1846, 1
      %v1955 = vsel %vm1925, %v1952, %v1954
      %v1956 = vrot.slane %v1847, 1
      %v1957 = vrot.slane %v1848, 1
      %v1958 = vsel %vm1925, %v1956, %v1957
      %v1959 = vrot.slane %v1849, 1
      %v1960 = vsel %vm1925, %v1957, %v1959
      %v1961 = vrot.slane %v1850, 1
      %v1962 = vrot.slane %v1851, 1
      %v1963 = vsel %vm1925, %v1961, %v1962
      %v1964 = vrot.slane %v1852, 1
      %v1965 = vsel %vm1925, %v1962, %v1964
      %v1966 = vrot.slane %v1853, 1
      %v1967 = vrot.slane %v1854, 1
      %v1968 = vsel %vm1925, %v1966, %v1967
      %v1969 = vrot.slane %v1855, 1
      %v1970 = vsel %vm1925, %v1967, %v1969
      %v1971 = vrot.slane %v1856, 1
      %v1972 = vrot.slane %v1857, 1
      %v1973 = vsel %vm1925, %v1971, %v1972
      %v1974 = vrot.slane %v1858, 1
      %v1975 = vsel %vm1925, %v1972, %v1974
      %v1976 = vrot.slane %v1859, 1
      %v1977 = vrot.slane %v1860, 1
      %v1978 = vsel %vm1925, %v1976, %v1977
      %v1979 = vrot.slane %v1861, 1
      %v1980 = vsel %vm1925, %v1977, %v1979
      %v1981 = vrot.slane %v1862, 1
      %v1982 = vrot.slane %v1863, 1
      %v1983 = vsel %vm1925, %v1981, %v1982
      %v1984 = vrot.slane %v1864, 1
      %v1985 = vsel %vm1925, %v1982, %v1984
      %v1986 = vrot.slane %v1865, 1
      %v1987 = vrot.slane %v1866, 1
      %v1988 = vsel %vm1925, %v1986, %v1987
      %v1989 = vrot.slane %v1867, 1
      %v1990 = vsel %vm1925, %v1987, %v1989
      %v1991 = vrot.slane %v1868, 1
      %v1992 = vrot.slane %v1869, 1
      %v1993 = vsel %vm1925, %v1991, %v1992
      %v1994 = vrot.slane %v1870, 1
      %v1995 = vsel %vm1925, %v1992, %v1994
      %v1996 = vrot.slane %v1871, 1
      %v1997 = vrot.slane %v1872, 1
      %v1998 = vsel %vm1925, %v1996, %v1997
      %v1999 = vrot.slane %v1873, 1
      %v2000 = vsel %vm1925, %v1997, %v1999
      %v2001 = vrot.slane %v1874, 1
      %v2002 = vrot.slane %v1875, 1
      %v2003 = vsel %vm1925, %v2001, %v2002
      %v2004 = vrot.slane %v1876, 1
      %v2005 = vsel %vm1925, %v2002, %v2004
      %2006 = vrot.lane.b32.xlu0 %v1928, 96
      %v2007 = vpop.permute.xlu0 %2006
      %2008 = vrot.lane.b32.xlu0 %v1930, 96
      %v2009 = vpop.permute.xlu0 %2008
      %2010 = vrot.lane.b32.xlu0 %v1933, 96
      %v2011 = vpop.permute.xlu0 %2010
      %2012 = vrot.lane.b32.xlu0 %v1935, 96
      %v2013 = vpop.permute.xlu0 %2012
      %2014 = vrot.lane.b32.xlu0 %v1938, 96
      %v2015 = vpop.permute.xlu0 %2014
      %2016 = vrot.lane.b32.xlu0 %v1940, 96
      %v2017 = vpop.permute.xlu0 %2016
      %2018 = vrot.lane.b32.xlu0 %v1943, 96
      %v2019 = vpop.permute.xlu0 %2018
      %2020 = vrot.lane.b32.xlu0 %v1945, 96
      %v2021 = vpop.permute.xlu0 %2020
      %2022 = vrot.lane.b32.xlu0 %v1948, 96
      %v2023 = vpop.permute.xlu0 %2022
      %2024 = vrot.lane.b32.xlu0 %v1950, 96
      %v2025 = vpop.permute.xlu0 %2024
      %2026 = vrot.lane.b32.xlu0 %v1953, 96
      %v2027 = vpop.permute.xlu0 %2026
      %2028 = vrot.lane.b32.xlu0 %v1955, 96
      %v2029 = vpop.permute.xlu0 %2028
      %2030 = vrot.lane.b32.xlu0 %v1958, 96
      %v2031 = vpop.permute.xlu0 %2030
      %2032 = vrot.lane.b32.xlu0 %v1960, 96
      %v2033 = vpop.permute.xlu0 %2032
      %2034 = vrot.lane.b32.xlu0 %v1963, 96
      %v2035 = vpop.permute.xlu0 %2034
      %2036 = vrot.lane.b32.xlu0 %v1965, 96
      %v2037 = vpop.permute.xlu0 %2036
      %2038 = vrot.lane.b32.xlu0 %v1968, 96
      %v2039 = vpop.permute.xlu0 %2038
      %2040 = vrot.lane.b32.xlu0 %v1970, 96
      %v2041 = vpop.permute.xlu0 %2040
      %2042 = vrot.lane.b32.xlu0 %v1973, 96
      %v2043 = vpop.permute.xlu0 %2042
      %2044 = vrot.lane.b32.xlu0 %v1975, 96
      %v2045 = vpop.permute.xlu0 %2044
      %2046 = vrot.lane.b32.xlu0 %v1978, 96
      %v2047 = vpop.permute.xlu0 %2046
      %2048 = vrot.lane.b32.xlu0 %v1980, 96
      %v2049 = vpop.permute.xlu0 %2048
      %2050 = vrot.lane.b32.xlu0 %v1983, 96
      %v2051 = vpop.permute.xlu0 %2050
      %2052 = vrot.lane.b32.xlu0 %v1985, 96
      %v2053 = vpop.permute.xlu0 %2052
      %2054 = vrot.lane.b32.xlu0 %v1988, 96
      %v2055 = vpop.permute.xlu0 %2054
      %2056 = vrot.lane.b32.xlu0 %v1990, 96
      %v2057 = vpop.permute.xlu0 %2056
      %2058 = vrot.lane.b32.xlu0 %v1993, 96
      %v2059 = vpop.permute.xlu0 %2058
      %2060 = vrot.lane.b32.xlu0 %v1995, 96
      %v2061 = vpop.permute.xlu0 %2060
      %2062 = vrot.lane.b32.xlu0 %v1998, 96
      %v2063 = vpop.permute.xlu0 %2062
      %2064 = vrot.lane.b32.xlu0 %v2000, 96
      %v2065 = vpop.permute.xlu0 %2064
      %2066 = vrot.lane.b32.xlu0 %v2003, 96
      %v2067 = vpop.permute.xlu0 %2066
      %2068 = vrot.lane.b32.xlu0 %v2005, 96
      %v2069 = vpop.permute.xlu0 %2068
      %v2102 = vadd.f32 %v1829, %v2007
      %v2103 = vadd.f32 %v1830, %v2009
      %v2104 = vadd.f32 %v1832, %v2011
      %v2105 = vadd.f32 %v1833, %v2013
      %v2106 = vadd.f32 %v1835, %v2015
      %v2107 = vadd.f32 %v1836, %v2017
      %v2108 = vadd.f32 %v1838, %v2019
      %v2109 = vadd.f32 %v1839, %v2021
      %v2110 = vadd.f32 %v1841, %v2023
      %v2111 = vadd.f32 %v1842, %v2025
      %v2112 = vadd.f32 %v1844, %v2027
      %v2113 = vadd.f32 %v1845, %v2029
      %v2114 = vadd.f32 %v1847, %v2031
      %v2115 = vadd.f32 %v1848, %v2033
      %v2116 = vadd.f32 %v1850, %v2035
      %v2117 = vadd.f32 %v1851, %v2037
      %v2118 = vadd.f32 %v1853, %v2039
      %v2119 = vadd.f32 %v1854, %v2041
      %v2120 = vadd.f32 %v1856, %v2043
      %v2121 = vadd.f32 %v1857, %v2045
      %v2122 = vadd.f32 %v1859, %v2047
      %v2123 = vadd.f32 %v1860, %v2049
      %v2124 = vadd.f32 %v1862, %v2051
      %v2125 = vadd.f32 %v1863, %v2053
      %v2126 = vadd.f32 %v1865, %v2055
      %v2127 = vadd.f32 %v1866, %v2057
      %v2128 = vadd.f32 %v1868, %v2059
      %v2129 = vadd.f32 %v1869, %v2061
      %v2130 = vadd.f32 %v1871, %v2063
      %v2131 = vadd.f32 %v1872, %v2065
      %v2132 = vadd.f32 %v1874, %v2067
      %v2133 = vadd.f32 %v1875, %v2069
      %vm2134 = vcmask 1045504
      %v2135 = vrot.slane %v1829, 2
      %v2136 = vrot.slane %v1830, 2
      %v2137 = vsel %vm2134, %v2135, %v2136
      %v2138 = vrot.slane %v1831, 2
      %v2139 = vsel %vm2134, %v2136, %v2138
      %v2140 = vrot.slane %v1832, 2
      %v2141 = vrot.slane %v1833, 2
      %v2142 = vsel %vm2134, %v2140, %v2141
      %v2143 = vrot.slane %v1834, 2
      %v2144 = vsel %vm2134, %v2141, %v2143
      %v2145 = vrot.slane %v1835, 2
      %v2146 = vrot.slane %v1836, 2
      %v2147 = vsel %vm2134, %v2145, %v2146
      %v2148 = vrot.slane %v1837, 2
      %v2149 = vsel %vm2134, %v2146, %v2148
      %v2150 = vrot.slane %v1838, 2
      %v2151 = vrot.slane %v1839, 2
      %v2152 = vsel %vm2134, %v2150, %v2151
      %v2153 = vrot.slane %v1840, 2
      %v2154 = vsel %vm2134, %v2151, %v2153
      %v2155 = vrot.slane %v1841, 2
      %v2156 = vrot.slane %v1842, 2
      %v2157 = vsel %vm2134, %v2155, %v2156
      %v2158 = vrot.slane %v1843, 2
      %v2159 = vsel %vm2134, %v2156, %v2158
      %v2160 = vrot.slane %v1844, 2
      %v2161 = vrot.slane %v1845, 2
      %v2162 = vsel %vm2134, %v2160, %v2161
      %v2163 = vrot.slane %v1846, 2
      %v2164 = vsel %vm2134, %v2161, %v2163
      %v2165 = vrot.slane %v1847, 2
      %v2166 = vrot.slane %v1848, 2
      %v2167 = vsel %vm2134, %v2165, %v2166
      %v2168 = vrot.slane %v1849, 2
      %v2169 = vsel %vm2134, %v2166, %v2168
      %v2170 = vrot.slane %v1850, 2
      %v2171 = vrot.slane %v1851, 2
      %v2172 = vsel %vm2134, %v2170, %v2171
      %v2173 = vrot.slane %v1852, 2
      %v2174 = vsel %vm2134, %v2171, %v2173
      %v2175 = vrot.slane %v1853, 2
      %v2176 = vrot.slane %v1854, 2
      %v2177 = vsel %vm2134, %v2175, %v2176
      %v2178 = vrot.slane %v1855, 2
      %v2179 = vsel %vm2134, %v2176, %v2178
      %v2180 = vrot.slane %v1856, 2
      %v2181 = vrot.slane %v1857, 2
      %v2182 = vsel %vm2134, %v2180, %v2181
      %v2183 = vrot.slane %v1858, 2
      %v2184 = vsel %vm2134, %v2181, %v2183
      %v2185 = vrot.slane %v1859, 2
      %v2186 = vrot.slane %v1860, 2
      %v2187 = vsel %vm2134, %v2185, %v2186
      %v2188 = vrot.slane %v1861, 2
      %v2189 = vsel %vm2134, %v2186, %v2188
      %v2190 = vrot.slane %v1862, 2
      %v2191 = vrot.slane %v1863, 2
      %v2192 = vsel %vm2134, %v2190, %v2191
      %v2193 = vrot.slane %v1864, 2
      %v2194 = vsel %vm2134, %v2191, %v2193
      %v2195 = vrot.slane %v1865, 2
      %v2196 = vrot.slane %v1866, 2
      %v2197 = vsel %vm2134, %v2195, %v2196
      %v2198 = vrot.slane %v1867, 2
      %v2199 = vsel %vm2134, %v2196, %v2198
      %v2200 = vrot.slane %v1868, 2
      %v2201 = vrot.slane %v1869, 2
      %v2202 = vsel %vm2134, %v2200, %v2201
      %v2203 = vrot.slane %v1870, 2
      %v2204 = vsel %vm2134, %v2201, %v2203
      %v2205 = vrot.slane %v1871, 2
      %v2206 = vrot.slane %v1872, 2
      %v2207 = vsel %vm2134, %v2205, %v2206
      %v2208 = vrot.slane %v1873, 2
      %v2209 = vsel %vm2134, %v2206, %v2208
      %v2210 = vrot.slane %v1874, 2
      %v2211 = vrot.slane %v1875, 2
      %v2212 = vsel %vm2134, %v2210, %v2211
      %v2213 = vrot.slane %v1876, 2
      %v2214 = vsel %vm2134, %v2211, %v2213
      %2215 = vrot.lane.b32.xlu0 %v2137, 64
      %v2216 = vpop.permute.xlu0 %2215
      %2217 = vrot.lane.b32.xlu0 %v2139, 64
      %v2218 = vpop.permute.xlu0 %2217
      %2219 = vrot.lane.b32.xlu0 %v2142, 64
      %v2220 = vpop.permute.xlu0 %2219
      %2221 = vrot.lane.b32.xlu0 %v2144, 64
      %v2222 = vpop.permute.xlu0 %2221
      %2223 = vrot.lane.b32.xlu0 %v2147, 64
      %v2224 = vpop.permute.xlu0 %2223
      %2225 = vrot.lane.b32.xlu0 %v2149, 64
      %v2226 = vpop.permute.xlu0 %2225
      %2227 = vrot.lane.b32.xlu0 %v2152, 64
      %v2228 = vpop.permute.xlu0 %2227
      %2229 = vrot.lane.b32.xlu0 %v2154, 64
      %v2230 = vpop.permute.xlu0 %2229
      %2231 = vrot.lane.b32.xlu0 %v2157, 64
      %v2232 = vpop.permute.xlu0 %2231
      %2233 = vrot.lane.b32.xlu0 %v2159, 64
      %v2234 = vpop.permute.xlu0 %2233
      %2235 = vrot.lane.b32.xlu0 %v2162, 64
      %v2236 = vpop.permute.xlu0 %2235
      %2237 = vrot.lane.b32.xlu0 %v2164, 64
      %v2238 = vpop.permute.xlu0 %2237
      %2239 = vrot.lane.b32.xlu0 %v2167, 64
      %v2240 = vpop.permute.xlu0 %2239
      %2241 = vrot.lane.b32.xlu0 %v2169, 64
      %v2242 = vpop.permute.xlu0 %2241
      %2243 = vrot.lane.b32.xlu0 %v2172, 64
      %v2244 = vpop.permute.xlu0 %2243
      %2245 = vrot.lane.b32.xlu0 %v2174, 64
      %v2246 = vpop.permute.xlu0 %2245
      %2247 = vrot.lane.b32.xlu0 %v2177, 64
      %v2248 = vpop.permute.xlu0 %2247
      %2249 = vrot.lane.b32.xlu0 %v2179, 64
      %v2250 = vpop.permute.xlu0 %2249
      %2251 = vrot.lane.b32.xlu0 %v2182, 64
      %v2252 = vpop.permute.xlu0 %2251
      %2253 = vrot.lane.b32.xlu0 %v2184, 64
      %v2254 = vpop.permute.xlu0 %2253
      %2255 = vrot.lane.b32.xlu0 %v2187, 64
      %v2256 = vpop.permute.xlu0 %2255
      %2257 = vrot.lane.b32.xlu0 %v2189, 64
      %v2258 = vpop.permute.xlu0 %2257
      %2259 = vrot.lane.b32.xlu0 %v2192, 64
      %v2260 = vpop.permute.xlu0 %2259
      %2261 = vrot.lane.b32.xlu0 %v2194, 64
      %v2262 = vpop.permute.xlu0 %2261
      %2263 = vrot.lane.b32.xlu0 %v2197, 64
      %v2264 = vpop.permute.xlu0 %2263
      %2265 = vrot.lane.b32.xlu0 %v2199, 64
      %v2266 = vpop.permute.xlu0 %2265
      %2267 = vrot.lane.b32.xlu0 %v2202, 64
      %v2268 = vpop.permute.xlu0 %2267
      %2269 = vrot.lane.b32.xlu0 %v2204, 64
      %v2270 = vpop.permute.xlu0 %2269
      %2271 = vrot.lane.b32.xlu0 %v2207, 64
      %v2272 = vpop.permute.xlu0 %2271
      %2273 = vrot.lane.b32.xlu0 %v2209, 64
      %v2274 = vpop.permute.xlu0 %2273
      %2275 = vrot.lane.b32.xlu0 %v2212, 64
      %v2276 = vpop.permute.xlu0 %2275
      %2277 = vrot.lane.b32.xlu0 %v2214, 64
      %v2278 = vpop.permute.xlu0 %2277
      %v2311 = vadd.f32 %v2102, %v2216
      %v2312 = vadd.f32 %v2103, %v2218
      %v2313 = vadd.f32 %v2104, %v2220
      %v2314 = vadd.f32 %v2105, %v2222
      %v2315 = vadd.f32 %v2106, %v2224
      %v2316 = vadd.f32 %v2107, %v2226
      %v2317 = vadd.f32 %v2108, %v2228
      %v2318 = vadd.f32 %v2109, %v2230
      %v2319 = vadd.f32 %v2110, %v2232
      %v2320 = vadd.f32 %v2111, %v2234
      %v2321 = vadd.f32 %v2112, %v2236
      %v2322 = vadd.f32 %v2113, %v2238
      %v2323 = vadd.f32 %v2114, %v2240
      %v2324 = vadd.f32 %v2115, %v2242
      %v2325 = vadd.f32 %v2116, %v2244
      %v2326 = vadd.f32 %v2117, %v2246
      %v2327 = vadd.f32 %v2118, %v2248
      %v2328 = vadd.f32 %v2119, %v2250
      %v2329 = vadd.f32 %v2120, %v2252
      %v2330 = vadd.f32 %v2121, %v2254
      %v2331 = vadd.f32 %v2122, %v2256
      %v2332 = vadd.f32 %v2123, %v2258
      %v2333 = vadd.f32 %v2124, %v2260
      %v2334 = vadd.f32 %v2125, %v2262
      %v2335 = vadd.f32 %v2126, %v2264
      %v2336 = vadd.f32 %v2127, %v2266
      %v2337 = vadd.f32 %v2128, %v2268
      %v2338 = vadd.f32 %v2129, %v2270
      %v2339 = vadd.f32 %v2130, %v2272
      %v2340 = vadd.f32 %v2131, %v2274
      %v2341 = vadd.f32 %v2132, %v2276
      %v2342 = vadd.f32 %v2133, %v2278
      %v2344 = vlaneseq
      %v2345 = vshrl.u32 %v2344, 7
      %v2346 = vsub.s32 0, %v2345
      %v2347 = vrot.slane %v650, %v2346
      %v2349 = vadd.f32 %v2311, %v2347
      %v2350 = vadd.f32 %v2312, %v2347
      %v2351 = vadd.f32 %v2313, %v2347
      %v2352 = vadd.f32 %v2314, %v2347
      %v2353 = vadd.f32 %v2315, %v2347
      %v2354 = vadd.f32 %v2316, %v2347
      %v2355 = vadd.f32 %v2317, %v2347
      %v2356 = vadd.f32 %v2318, %v2347
      %v2357 = vadd.f32 %v2319, %v2347
      %v2358 = vadd.f32 %v2320, %v2347
      %v2359 = vadd.f32 %v2321, %v2347
      %v2360 = vadd.f32 %v2322, %v2347
      %v2361 = vadd.f32 %v2323, %v2347
      %v2362 = vadd.f32 %v2324, %v2347
      %v2363 = vadd.f32 %v2325, %v2347
      %v2364 = vadd.f32 %v2326, %v2347
      %v2365 = vadd.f32 %v2327, %v2347
      %v2366 = vadd.f32 %v2328, %v2347
      %v2367 = vadd.f32 %v2329, %v2347
      %v2368 = vadd.f32 %v2330, %v2347
      %v2369 = vadd.f32 %v2331, %v2347
      %v2370 = vadd.f32 %v2332, %v2347
      %v2371 = vadd.f32 %v2333, %v2347
      %v2372 = vadd.f32 %v2334, %v2347
      %v2373 = vadd.f32 %v2335, %v2347
      %v2374 = vadd.f32 %v2336, %v2347
      %v2375 = vadd.f32 %v2337, %v2347
      %v2376 = vadd.f32 %v2338, %v2347
      %v2377 = vadd.f32 %v2339, %v2347
      %v2378 = vadd.f32 %v2340, %v2347
      %v2379 = vadd.f32 %v2341, %v2347
      %v2380 = vadd.f32 %v2342, %v2347
      %v2381 = vmax.f32 %v2349, 0.0
      %v2382 = vmax.f32 %v2350, 0.0
      %v2383 = vmax.f32 %v2351, 0.0
      %v2384 = vmax.f32 %v2352, 0.0
      %v2385 = vmax.f32 %v2353, 0.0
      %v2386 = vmax.f32 %v2354, 0.0
      %v2387 = vmax.f32 %v2355, 0.0
      %v2388 = vmax.f32 %v2356, 0.0
      %v2389 = vmax.f32 %v2357, 0.0
      %v2390 = vmax.f32 %v2358, 0.0
      %v2391 = vmax.f32 %v2359, 0.0
      %v2392 = vmax.f32 %v2360, 0.0
      %v2393 = vmax.f32 %v2361, 0.0
      %v2394 = vmax.f32 %v2362, 0.0
      %v2395 = vmax.f32 %v2363, 0.0
      %v2396 = vmax.f32 %v2364, 0.0
      %v2397 = vmax.f32 %v2365, 0.0
      %v2398 = vmax.f32 %v2366, 0.0
      %v2399 = vmax.f32 %v2367, 0.0
      %v2400 = vmax.f32 %v2368, 0.0
      %v2401 = vmax.f32 %v2369, 0.0
      %v2402 = vmax.f32 %v2370, 0.0
      %v2403 = vmax.f32 %v2371, 0.0
      %v2404 = vmax.f32 %v2372, 0.0
      %v2405 = vmax.f32 %v2373, 0.0
      %v2406 = vmax.f32 %v2374, 0.0
      %v2407 = vmax.f32 %v2375, 0.0
      %v2408 = vmax.f32 %v2376, 0.0
      %v2409 = vmax.f32 %v2377, 0.0
      %v2410 = vmax.f32 %v2378, 0.0
      %v2411 = vmax.f32 %v2379, 0.0
      %v2412 = vmax.f32 %v2380, 0.0
      %2413 = vst.msk [vmem:[#allocation3] sm:$0xff] %vm327, %v2381
      %2414 = vst.msk [vmem:[#allocation3 + $0x8] sm:$0xff] %vm327, %v2382
      %2415 = vst.msk [vmem:[#allocation3 + $0x10] sm:$0xff] %vm327, %v2383
      %2416 = vst.msk [vmem:[#allocation3 + $0x18] sm:$0xff] %vm327, %v2384
      %2417 = vst.msk [vmem:[#allocation3 + $0x20] sm:$0xff] %vm327, %v2385
      %2418 = vst.msk [vmem:[#allocation3 + $0x28] sm:$0xff] %vm327, %v2386
      %2419 = vst.msk [vmem:[#allocation3 + $0x30] sm:$0xff] %vm327, %v2387
      %2420 = vst.msk [vmem:[#allocation3 + $0x38] sm:$0xff] %vm327, %v2388
      %2421 = vst.msk [vmem:[#allocation3 + $0x40] sm:$0xff] %vm327, %v2389
      %2422 = vst.msk [vmem:[#allocation3 + $0x48] sm:$0xff] %vm327, %v2390
      %2423 = vst.msk [vmem:[#allocation3 + $0x50] sm:$0xff] %vm327, %v2391
      %2424 = vst.msk [vmem:[#allocation3 + $0x58] sm:$0xff] %vm327, %v2392
      %2425 = vst.msk [vmem:[#allocation3 + $0x60] sm:$0xff] %vm327, %v2393
      %2426 = vst.msk [vmem:[#allocation3 + $0x68] sm:$0xff] %vm327, %v2394
      %2427 = vst.msk [vmem:[#allocation3 + $0x70] sm:$0xff] %vm327, %v2395
      %2428 = vst.msk [vmem:[#allocation3 + $0x78] sm:$0xff] %vm327, %v2396
      %2429 = vst.msk [vmem:[#allocation3 + $0x80] sm:$0xff] %vm327, %v2397
      %2430 = vst.msk [vmem:[#allocation3 + $0x88] sm:$0xff] %vm327, %v2398
      %2431 = vst.msk [vmem:[#allocation3 + $0x90] sm:$0xff] %vm327, %v2399
      %2432 = vst.msk [vmem:[#allocation3 + $0x98] sm:$0xff] %vm327, %v2400
      %2433 = vst.msk [vmem:[#allocation3 + $0xa0] sm:$0xff] %vm327, %v2401
      %2434 = vst.msk [vmem:[#allocation3 + $0xa8] sm:$0xff] %vm327, %v2402
      %2435 = vst.msk [vmem:[#allocation3 + $0xb0] sm:$0xff] %vm327, %v2403
      %2436 = vst.msk [vmem:[#allocation3 + $0xb8] sm:$0xff] %vm327, %v2404
      %2437 = vst.msk [vmem:[#allocation3 + $0xc0] sm:$0xff] %vm327, %v2405
      %2438 = vst.msk [vmem:[#allocation3 + $0xc8] sm:$0xff] %vm327, %v2406
      %2439 = vst.msk [vmem:[#allocation3 + $0xd0] sm:$0xff] %vm327, %v2407
      %2440 = vst.msk [vmem:[#allocation3 + $0xd8] sm:$0xff] %vm327, %v2408
      %2441 = vst.msk [vmem:[#allocation3 + $0xe0] sm:$0xff] %vm327, %v2409
      %2442 = vst.msk [vmem:[#allocation3 + $0xe8] sm:$0xff] %vm327, %v2410
      %2443 = vst.msk [vmem:[#allocation3 + $0xf0] sm:$0xff] %vm327, %v2411
      %2444 = vst.msk [vmem:[#allocation3 + $0xf8] sm:$0xff] %vm327, %v2412
      %2445 = vst.msk [vmem:[#allocation4] sm:$0xff] %vm327, %v2381
      %2446 = vst.msk [vmem:[#allocation4 + $0x8] sm:$0xff] %vm327, %v2382
      %2447 = vst.msk [vmem:[#allocation4 + $0x10] sm:$0xff] %vm327, %v2383
      %2448 = vst.msk [vmem:[#allocation4 + $0x18] sm:$0xff] %vm327, %v2384
      %2449 = vst.msk [vmem:[#allocation4 + $0x20] sm:$0xff] %vm327, %v2385
      %2450 = vst.msk [vmem:[#allocation4 + $0x28] sm:$0xff] %vm327, %v2386
      %2451 = vst.msk [vmem:[#allocation4 + $0x30] sm:$0xff] %vm327, %v2387
      %2452 = vst.msk [vmem:[#allocation4 + $0x38] sm:$0xff] %vm327, %v2388
      %2453 = vst.msk [vmem:[#allocation4 + $0x40] sm:$0xff] %vm327, %v2389
      %2454 = vst.msk [vmem:[#allocation4 + $0x48] sm:$0xff] %vm327, %v2390
      %2455 = vst.msk [vmem:[#allocation4 + $0x50] sm:$0xff] %vm327, %v2391
      %2456 = vst.msk [vmem:[#allocation4 + $0x58] sm:$0xff] %vm327, %v2392
      %2457 = vst.msk [vmem:[#allocation4 + $0x60] sm:$0xff] %vm327, %v2393
      %2458 = vst.msk [vmem:[#allocation4 + $0x68] sm:$0xff] %vm327, %v2394
      %2459 = vst.msk [vmem:[#allocation4 + $0x70] sm:$0xff] %vm327, %v2395
      %2460 = vst.msk [vmem:[#allocation4 + $0x78] sm:$0xff] %vm327, %v2396
      %2461 = vst.msk [vmem:[#allocation4 + $0x80] sm:$0xff] %vm327, %v2397
      %2462 = vst.msk [vmem:[#allocation4 + $0x88] sm:$0xff] %vm327, %v2398
      %2463 = vst.msk [vmem:[#allocation4 + $0x90] sm:$0xff] %vm327, %v2399
      %2464 = vst.msk [vmem:[#allocation4 + $0x98] sm:$0xff] %vm327, %v2400
      %2465 = vst.msk [vmem:[#allocation4 + $0xa0] sm:$0xff] %vm327, %v2401
      %2466 = vst.msk [vmem:[#allocation4 + $0xa8] sm:$0xff] %vm327, %v2402
      %2467 = vst.msk [vmem:[#allocation4 + $0xb0] sm:$0xff] %vm327, %v2403
      %2468 = vst.msk [vmem:[#allocation4 + $0xb8] sm:$0xff] %vm327, %v2404
      %2469 = vst.msk [vmem:[#allocation4 + $0xc0] sm:$0xff] %vm327, %v2405
      %2470 = vst.msk [vmem:[#allocation4 + $0xc8] sm:$0xff] %vm327, %v2406
      %2471 = vst.msk [vmem:[#allocation4 + $0xd0] sm:$0xff] %vm327, %v2407
      %2472 = vst.msk [vmem:[#allocation4 + $0xd8] sm:$0xff] %vm327, %v2408
      %2473 = vst.msk [vmem:[#allocation4 + $0xe0] sm:$0xff] %vm327, %v2409
      %2474 = vst.msk [vmem:[#allocation4 + $0xe8] sm:$0xff] %vm327, %v2410
      %2475 = vst.msk [vmem:[#allocation4 + $0xf0] sm:$0xff] %vm327, %v2411
      %2476 = vst.msk [vmem:[#allocation4 + $0xf8] sm:$0xff] %vm327, %v2412
      loop: start=0, step=1, limit=4
      $region53: #{tpu_custom_call.1} parent=51 // loop_pre_header
        _
      $region54: #{tpu_custom_call.1} parent=51 // loop_header
        %s2478 = sphi 0, %s2482
        %p2479 = scmp.ge.s32.totalorder %s2478, 4
      $region55: #{tpu_custom_call.1} parent=51 // loop_header_branch
        %2481 = sbr.rel (%p2479) target = $region59
      $region56: #{tpu_custom_call.1} parent=51 // loop_body
        %v2483 = vld [vmem:[#allocation3] sm:$0xff]
        %v2484 = vld [vmem:[#allocation3 + $0x8] sm:$0xff]
        %v2485 = vld [vmem:[#allocation3 + $0x10] sm:$0xff]
        %v2486 = vld [vmem:[#allocation3 + $0x18] sm:$0xff]
        %v2487 = vld [vmem:[#allocation3 + $0x20] sm:$0xff]
        %v2488 = vld [vmem:[#allocation3 + $0x28] sm:$0xff]
        %v2489 = vld [vmem:[#allocation3 + $0x30] sm:$0xff]
        %v2490 = vld [vmem:[#allocation3 + $0x38] sm:$0xff]
        %v2491 = vld [vmem:[#allocation3 + $0x40] sm:$0xff]
        %v2492 = vld [vmem:[#allocation3 + $0x48] sm:$0xff]
        %v2493 = vld [vmem:[#allocation3 + $0x50] sm:$0xff]
        %v2494 = vld [vmem:[#allocation3 + $0x58] sm:$0xff]
        %v2495 = vld [vmem:[#allocation3 + $0x60] sm:$0xff]
        %v2496 = vld [vmem:[#allocation3 + $0x68] sm:$0xff]
        %v2497 = vld [vmem:[#allocation3 + $0x70] sm:$0xff]
        %v2498 = vld [vmem:[#allocation3 + $0x78] sm:$0xff]
        %v2499 = vld [vmem:[#allocation3 + $0x80] sm:$0xff]
        %v2500 = vld [vmem:[#allocation3 + $0x88] sm:$0xff]
        %v2501 = vld [vmem:[#allocation3 + $0x90] sm:$0xff]
        %v2502 = vld [vmem:[#allocation3 + $0x98] sm:$0xff]
        %v2503 = vld [vmem:[#allocation3 + $0xa0] sm:$0xff]
        %v2504 = vld [vmem:[#allocation3 + $0xa8] sm:$0xff]
        %v2505 = vld [vmem:[#allocation3 + $0xb0] sm:$0xff]
        %v2506 = vld [vmem:[#allocation3 + $0xb8] sm:$0xff]
        %v2507 = vld [vmem:[#allocation3 + $0xc0] sm:$0xff]
        %v2508 = vld [vmem:[#allocation3 + $0xc8] sm:$0xff]
        %v2509 = vld [vmem:[#allocation3 + $0xd0] sm:$0xff]
        %v2510 = vld [vmem:[#allocation3 + $0xd8] sm:$0xff]
        %v2511 = vld [vmem:[#allocation3 + $0xe0] sm:$0xff]
        %v2512 = vld [vmem:[#allocation3 + $0xe8] sm:$0xff]
        %v2513 = vld [vmem:[#allocation3 + $0xf0] sm:$0xff]
        %v2514 = vld [vmem:[#allocation3 + $0xf8] sm:$0xff]
        %s2515 = smul.u32 %s2478, 2
        %s2516 = smul.u32 %s2515, 12
        %s2517 = smul.addr %s2516, 4
        %s2518 = scalar_lea.vmem %s4, %s2517
        %v2519 = vld [vmem:[%s2518] sm:$0xf]
        %v2520 = vld [vmem:[%s2518 + $0x4] sm:$0xf]
        %v2521 = vld [vmem:[%s2518 + $0x8] sm:$0xf]
        %v2522 = vld [vmem:[%s2518 + $0xc] sm:$0xf]
        %v2523 = vld [vmem:[%s2518 + $0x10] sm:$0xf]
        %v2524 = vld [vmem:[%s2518 + $0x14] sm:$0xf]
        %v2525 = vld [vmem:[%s2518 + $0x18] sm:$0xf]
        %v2526 = vld [vmem:[%s2518 + $0x1c] sm:$0xf]
        %v2527 = vld [vmem:[%s2518 + $0x20] sm:$0xf]
        %v2528 = vld [vmem:[%s2518 + $0x24] sm:$0xf]
        %v2529 = vld [vmem:[%s2518 + $0x28] sm:$0xf]
        %v2530 = vld [vmem:[%s2518 + $0x2c] sm:$0xf]
        %s2531 = scalar_lea.vmem %s5, %s2515
        %v2532 = vld [vmem:[%s2531] sm:$0x1]
        %2533 = vst.msk [vmem:[%s651 + $0x1] sm:$0xff] %vm327, %v2483
        %2534 = vst.msk [vmem:[%s651 + $0x9] sm:$0xff] %vm327, %v2484
        %2535 = vst.msk [vmem:[%s651 + $0x19] sm:$0xff] %vm327, %v2485
        %2536 = vst.msk [vmem:[%s651 + $0x21] sm:$0xff] %vm327, %v2486
        %2537 = vst.msk [vmem:[%s651 + $0x31] sm:$0xff] %vm327, %v2487
        %2538 = vst.msk [vmem:[%s651 + $0x39] sm:$0xff] %vm327, %v2488
        %2539 = vst.msk [vmem:[%s651 + $0x49] sm:$0xff] %vm327, %v2489
        %2540 = vst.msk [vmem:[%s651 + $0x51] sm:$0xff] %vm327, %v2490
        %2541 = vst.msk [vmem:[%s651 + $0x61] sm:$0xff] %vm327, %v2491
        %2542 = vst.msk [vmem:[%s651 + $0x69] sm:$0xff] %vm327, %v2492
        %2543 = vst.msk [vmem:[%s651 + $0x79] sm:$0xff] %vm327, %v2493
        %2544 = vst.msk [vmem:[%s651 + $0x81] sm:$0xff] %vm327, %v2494
        %2545 = vst.msk [vmem:[%s651 + $0x91] sm:$0xff] %vm327, %v2495
        %2546 = vst.msk [vmem:[%s651 + $0x99] sm:$0xff] %vm327, %v2496
        %2547 = vst.msk [vmem:[%s651 + $0xa9] sm:$0xff] %vm327, %v2497
        %2548 = vst.msk [vmem:[%s651 + $0xb1] sm:$0xff] %vm327, %v2498
        %2549 = vst.msk [vmem:[%s651 + $0xc1] sm:$0xff] %vm327, %v2499
        %2550 = vst.msk [vmem:[%s651 + $0xc9] sm:$0xff] %vm327, %v2500
        %2551 = vst.msk [vmem:[%s651 + $0xd9] sm:$0xff] %vm327, %v2501
        %2552 = vst.msk [vmem:[%s651 + $0xe1] sm:$0xff] %vm327, %v2502
        %2553 = vst.msk [vmem:[%s651 + $0xf1] sm:$0xff] %vm327, %v2503
        %2554 = vst.msk [vmem:[%s651 + $0xf9] sm:$0xff] %vm327, %v2504
        %2555 = vst.msk [vmem:[%s651 + $0x109] sm:$0xff] %vm327, %v2505
        %2556 = vst.msk [vmem:[%s651 + $0x111] sm:$0xff] %vm327, %v2506
        %2557 = vst.msk [vmem:[%s651 + $0x121] sm:$0xff] %vm327, %v2507
        %2558 = vst.msk [vmem:[%s651 + $0x129] sm:$0xff] %vm327, %v2508
        %2559 = vst.msk [vmem:[%s651 + $0x139] sm:$0xff] %vm327, %v2509
        %2560 = vst.msk [vmem:[%s651 + $0x141] sm:$0xff] %vm327, %v2510
        %2561 = vst.msk [vmem:[%s651 + $0x151] sm:$0xff] %vm327, %v2511
        %2562 = vst.msk [vmem:[%s651 + $0x159] sm:$0xff] %vm327, %v2512
        %2563 = vst.msk [vmem:[%s651 + $0x169] sm:$0xff] %vm327, %v2513
        %2564 = vst.msk [vmem:[%s651 + $0x171] sm:$0xff] %vm327, %v2514
        %v2565 = vld [vmem:[#allocation2] sm:$0xff]
        %v2566 = vld [vmem:[#allocation2 + $0x8] sm:$0xff]
        %v2567 = vld [vmem:[#allocation2 + $0x10] sm:$0xff]
        %v2568 = vld [vmem:[#allocation2 + $0x18] sm:$0xff]
        %v2569 = vld [vmem:[#allocation2 + $0x20] sm:$0xff]
        %v2570 = vld [vmem:[#allocation2 + $0x28] sm:$0xff]
        %v2571 = vld [vmem:[#allocation2 + $0x30] sm:$0xff]
        %v2572 = vld [vmem:[#allocation2 + $0x38] sm:$0xff]
        %v2573 = vld [vmem:[#allocation2 + $0x40] sm:$0xff]
        %v2574 = vld [vmem:[#allocation2 + $0x48] sm:$0xff]
        %v2575 = vld [vmem:[#allocation2 + $0x50] sm:$0xff]
        %v2576 = vld [vmem:[#allocation2 + $0x58] sm:$0xff]
        %v2577 = vld [vmem:[#allocation2 + $0x60] sm:$0xff]
        %v2578 = vld [vmem:[#allocation2 + $0x68] sm:$0xff]
        %v2579 = vld [vmem:[#allocation2 + $0x70] sm:$0xff]
        %v2580 = vld [vmem:[#allocation2 + $0x78] sm:$0xff]
        %v2581 = vld [vmem:[#allocation2 + $0x80] sm:$0xff]
        %v2582 = vld [vmem:[#allocation2 + $0x88] sm:$0xff]
        %v2583 = vld [vmem:[#allocation2 + $0x90] sm:$0xff]
        %v2584 = vld [vmem:[#allocation2 + $0x98] sm:$0xff]
        %v2585 = vld [vmem:[#allocation2 + $0xa0] sm:$0xff]
        %v2586 = vld [vmem:[#allocation2 + $0xa8] sm:$0xff]
        %v2587 = vld [vmem:[#allocation2 + $0xb0] sm:$0xff]
        %v2588 = vld [vmem:[#allocation2 + $0xb8] sm:$0xff]
        %v2589 = vld [vmem:[#allocation2 + $0xc0] sm:$0xff]
        %v2590 = vld [vmem:[#allocation2 + $0xc8] sm:$0xff]
        %v2591 = vld [vmem:[#allocation2 + $0xd0] sm:$0xff]
        %v2592 = vld [vmem:[#allocation2 + $0xd8] sm:$0xff]
        %v2593 = vld [vmem:[#allocation2 + $0xe0] sm:$0xff]
        %v2594 = vld [vmem:[#allocation2 + $0xe8] sm:$0xff]
        %v2595 = vld [vmem:[#allocation2 + $0xf0] sm:$0xff]
        %v2596 = vld [vmem:[#allocation2 + $0xf8] sm:$0xff]
        %v2597 = vld [vmem:[#allocation2 + $0x100] sm:$0xff]
        %v2598 = vld [vmem:[#allocation2 + $0x108] sm:$0xff]
        %v2599 = vld [vmem:[#allocation2 + $0x110] sm:$0xff]
        %v2600 = vld [vmem:[#allocation2 + $0x118] sm:$0xff]
        %v2601 = vld [vmem:[#allocation2 + $0x120] sm:$0xff]
        %v2602 = vld [vmem:[#allocation2 + $0x128] sm:$0xff]
        %v2603 = vld [vmem:[#allocation2 + $0x130] sm:$0xff]
        %v2604 = vld [vmem:[#allocation2 + $0x138] sm:$0xff]
        %v2605 = vld [vmem:[#allocation2 + $0x140] sm:$0xff]
        %v2606 = vld [vmem:[#allocation2 + $0x148] sm:$0xff]
        %v2607 = vld [vmem:[#allocation2 + $0x150] sm:$0xff]
        %v2608 = vld [vmem:[#allocation2 + $0x158] sm:$0xff]
        %v2609 = vld [vmem:[#allocation2 + $0x160] sm:$0xff]
        %v2610 = vld [vmem:[#allocation2 + $0x168] sm:$0xff]
        %v2611 = vld [vmem:[#allocation2 + $0x170] sm:$0xff]
        %v2612 = vld [vmem:[#allocation2 + $0x178] sm:$0xff]
        %v2613 = vpack.c.bf16 %v2566, %v2565
        %v2614 = vpack.c.bf16 %v2568, %v2567
        %v2615 = vpack.c.bf16 %v2570, %v2569
        %v2616 = vpack.c.bf16 %v2572, %v2571
        %v2617 = vpack.c.bf16 %v2574, %v2573
        %v2618 = vpack.c.bf16 %v2576, %v2575
        %v2619 = vpack.c.bf16 %v2578, %v2577
        %v2620 = vpack.c.bf16 %v2580, %v2579
        %v2621 = vpack.c.bf16 %v2582, %v2581
        %v2622 = vpack.c.bf16 %v2584, %v2583
        %v2623 = vpack.c.bf16 %v2586, %v2585
        %v2624 = vpack.c.bf16 %v2588, %v2587
        %v2625 = vpack.c.bf16 %v2590, %v2589
        %v2626 = vpack.c.bf16 %v2592, %v2591
        %v2627 = vpack.c.bf16 %v2594, %v2593
        %v2628 = vpack.c.bf16 %v2596, %v2595
        %v2629 = vpack.c.bf16 %v2598, %v2597
        %v2630 = vpack.c.bf16 %v2600, %v2599
        %v2631 = vpack.c.bf16 %v2602, %v2601
        %v2632 = vpack.c.bf16 %v2604, %v2603
        %v2633 = vpack.c.bf16 %v2606, %v2605
        %v2634 = vpack.c.bf16 %v2608, %v2607
        %v2635 = vpack.c.bf16 %v2610, %v2609
        %v2636 = vpack.c.bf16 %v2612, %v2611
        %v2637 = vld [vmem:[%s651] sm:$0xff]
        %v2638 = vld [vmem:[%s651 + $0x8] sm:$0xff]
        %v2639 = vld [vmem:[%s651 + $0x10] sm:$0xff]
        %v2640 = vld [vmem:[%s651 + $0x18] sm:$0xff]
        %v2641 = vld [vmem:[%s651 + $0x20] sm:$0xff]
        %v2642 = vld [vmem:[%s651 + $0x28] sm:$0xff]
        %v2643 = vld [vmem:[%s651 + $0x30] sm:$0xff]
        %v2644 = vld [vmem:[%s651 + $0x38] sm:$0xff]
        %v2645 = vld [vmem:[%s651 + $0x40] sm:$0xff]
        %v2646 = vld [vmem:[%s651 + $0x48] sm:$0xff]
        %v2647 = vld [vmem:[%s651 + $0x50] sm:$0xff]
        %v2648 = vld [vmem:[%s651 + $0x58] sm:$0xff]
        %v2649 = vld [vmem:[%s651 + $0x60] sm:$0xff]
        %v2650 = vld [vmem:[%s651 + $0x68] sm:$0xff]
        %v2651 = vld [vmem:[%s651 + $0x70] sm:$0xff]
        %v2652 = vld [vmem:[%s651 + $0x78] sm:$0xff]
        %v2653 = vld [vmem:[%s651 + $0x80] sm:$0xff]
        %v2654 = vld [vmem:[%s651 + $0x88] sm:$0xff]
        %v2655 = vld [vmem:[%s651 + $0x90] sm:$0xff]
        %v2656 = vld [vmem:[%s651 + $0x98] sm:$0xff]
        %v2657 = vld [vmem:[%s651 + $0xa0] sm:$0xff]
        %v2658 = vld [vmem:[%s651 + $0xa8] sm:$0xff]
        %v2659 = vld [vmem:[%s651 + $0xb0] sm:$0xff]
        %v2660 = vld [vmem:[%s651 + $0xb8] sm:$0xff]
        %v2661 = vld [vmem:[%s651 + $0xc0] sm:$0xff]
        %v2662 = vld [vmem:[%s651 + $0xc8] sm:$0xff]
        %v2663 = vld [vmem:[%s651 + $0xd0] sm:$0xff]
        %v2664 = vld [vmem:[%s651 + $0xd8] sm:$0xff]
        %v2665 = vld [vmem:[%s651 + $0xe0] sm:$0xff]
        %v2666 = vld [vmem:[%s651 + $0xe8] sm:$0xff]
        %v2667 = vld [vmem:[%s651 + $0xf0] sm:$0xff]
        %v2668 = vld [vmem:[%s651 + $0xf8] sm:$0xff]
        %v2669 = vld [vmem:[%s651 + $0x100] sm:$0xff]
        %v2670 = vld [vmem:[%s651 + $0x108] sm:$0xff]
        %v2671 = vld [vmem:[%s651 + $0x110] sm:$0xff]
        %v2672 = vld [vmem:[%s651 + $0x118] sm:$0xff]
        %v2673 = vld [vmem:[%s651 + $0x120] sm:$0xff]
        %v2674 = vld [vmem:[%s651 + $0x128] sm:$0xff]
        %v2675 = vld [vmem:[%s651 + $0x130] sm:$0xff]
        %v2676 = vld [vmem:[%s651 + $0x138] sm:$0xff]
        %v2677 = vld [vmem:[%s651 + $0x140] sm:$0xff]
        %v2678 = vld [vmem:[%s651 + $0x148] sm:$0xff]
        %v2679 = vld [vmem:[%s651 + $0x150] sm:$0xff]
        %v2680 = vld [vmem:[%s651 + $0x158] sm:$0xff]
        %v2681 = vld [vmem:[%s651 + $0x160] sm:$0xff]
        %v2682 = vld [vmem:[%s651 + $0x168] sm:$0xff]
        %v2683 = vld [vmem:[%s651 + $0x170] sm:$0xff]
        %v2684 = vld [vmem:[%s651 + $0x178] sm:$0xff]
        %v2685 = vpack.c.bf16 %v2638, %v2637
        %v2686 = vpack.c.bf16 %v2640, %v2639
        %v2687 = vpack.c.bf16 %v2642, %v2641
        %v2688 = vpack.c.bf16 %v2644, %v2643
        %v2689 = vpack.c.bf16 %v2646, %v2645
        %v2690 = vpack.c.bf16 %v2648, %v2647
        %v2691 = vpack.c.bf16 %v2650, %v2649
        %v2692 = vpack.c.bf16 %v2652, %v2651
        %v2693 = vpack.c.bf16 %v2654, %v2653
        %v2694 = vpack.c.bf16 %v2656, %v2655
        %v2695 = vpack.c.bf16 %v2658, %v2657
        %v2696 = vpack.c.bf16 %v2660, %v2659
        %v2697 = vpack.c.bf16 %v2662, %v2661
        %v2698 = vpack.c.bf16 %v2664, %v2663
        %v2699 = vpack.c.bf16 %v2666, %v2665
        %v2700 = vpack.c.bf16 %v2668, %v2667
        %v2701 = vpack.c.bf16 %v2670, %v2669
        %v2702 = vpack.c.bf16 %v2672, %v2671
        %v2703 = vpack.c.bf16 %v2674, %v2673
        %v2704 = vpack.c.bf16 %v2676, %v2675
        %v2705 = vpack.c.bf16 %v2678, %v2677
        %v2706 = vpack.c.bf16 %v2680, %v2679
        %v2707 = vpack.c.bf16 %v2682, %v2681
        %v2708 = vpack.c.bf16 %v2684, %v2683
        %v2713 = vunpack.c.l.b16 %v2523
        %v2714 = vunpack.c.l.b16 %v2524
        %v2715 = vunpack.c.l.b16 %v2525
        %v2716 = vunpack.c.l.b16 %v2526
        %v2717 = vpack.c.b16 %v2714, %v2713
        %v2718 = vpack.c.b16 %v2716, %v2715
        %v2722 = vsel %vm327, %v2685, 0
        %v2725 = vsel %vm327, %v2686, 0
        %v2728 = vsel %vm327, %v2687, 0
        %v2731 = vsel %vm327, %v2688, 0
        %v2734 = vsel %vm327, %v2689, 0
        %v2737 = vsel %vm327, %v2690, 0
        %v2740 = vsel %vm327, %v2691, 0
        %v2743 = vsel %vm327, %v2692, 0
        %v2746 = vsel %vm327, %v2693, 0
        %v2749 = vsel %vm327, %v2694, 0
        %v2752 = vsel %vm327, %v2695, 0
        %v2755 = vsel %vm327, %v2696, 0
        %v2758 = vsel %vm327, %v2697, 0
        %v2761 = vsel %vm327, %v2698, 0
        %v2764 = vsel %vm327, %v2699, 0
        %v2767 = vsel %vm327, %v2700, 0
        %v2770 = vsel %vm327, %v2701, 0
        %v2773 = vsel %vm327, %v2702, 0
        %v2776 = vsel %vm327, %v2703, 0
        %v2779 = vsel %vm327, %v2704, 0
        %v2782 = vsel %vm327, %v2705, 0
        %v2785 = vsel %vm327, %v2706, 0
        %v2788 = vsel %vm327, %v2707, 0
        %v2791 = vsel %vm327, %v2708, 0
        %2793 = vmatprep.subr.bf16.mxu0 0
        %2794 = vmatpush1.bf16.msra.mxu0 %v2717
        %2795 = vmatprep.subr.bf16.mxu0 0
        %2796 = vmatpush1.bf16.msra.mxu0 %v2718
        %2797 = vmatprep.subr.bf16.mxu0 0
        %2798 = vmatpush1.bf16.msra.mxu0 0
        %2799 = vmatprep.subr.bf16.mxu0 0
        %2800 = vmatpush1.bf16.msra.mxu0 0
        %2801 = vmatprep.subr.bf16.mxu0 0
        %2802 = vmatpush1.bf16.msra.mxu0 0
        %2803 = vmatprep.subr.bf16.mxu0 0
        %2804 = vmatpush1.bf16.msra.mxu0 0
        %2805 = vmatprep.subr.bf16.mxu0 0
        %2806 = vmatpush1.bf16.msra.mxu0 0
        %2807 = vmatprep.subr.bf16.mxu0 0
        %2808 = vmatpush1.bf16.msra.mxu0 0
        %2809 = vmatprep.subr.bf16.mxu0 0
        %2810 = vmatpush1.bf16.msra.mxu0 0
        %2811 = vmatprep.subr.bf16.mxu0 0
        %2812 = vmatpush1.bf16.msra.mxu0 0
        %2813 = vmatprep.subr.bf16.mxu0 0
        %2814 = vmatpush1.bf16.msra.mxu0 0
        %2815 = vmatprep.subr.bf16.mxu0 0
        %2816 = vmatpush1.bf16.msra.mxu0 0
        %2817 = vmatprep.subr.bf16.mxu0 0
        %2818 = vmatpush1.bf16.msra.mxu0 0
        %2819 = vmatprep.subr.bf16.mxu0 0
        %2820 = vmatpush1.bf16.msra.mxu0 0
        %2821 = vmatprep.subr.bf16.mxu0 0
        %2822 = vmatpush1.bf16.msra.mxu0 0
        %2823 = vmatprep.subr.bf16.mxu0 0
        %2824 = vmatpush1.bf16.msra.mxu0 0
        %2825 = vmatprep.mubr.bf16.mxu0 0
        %2826 = vmatmul.mubr.bf16.gmra.mrb[0].mxu0 %v2722
        %v2827 = vpop.f32.mrb[0].mxu0
        %v2828 = vadd.f32 0.0, %v2827
        %v2829 = vpop.f32.mrb[0].mxu0
        %v2830 = vpop.f32.mrb[0].mxu0
        %v2831 = vadd.f32 0.0, %v2830
        %v2832 = vpop.f32.mrb[0].mxu0
        %2833 = vmatprep.mubr.bf16.mxu0 0
        %2834 = vmatmul.mubr.bf16.gmra.mrb[0].mxu0 %v2725
        %v2835 = vpop.f32.mrb[0].mxu0
        %v2836 = vadd.f32 0.0, %v2835
        %v2837 = vpop.f32.mrb[0].mxu0
        %v2838 = vpop.f32.mrb[0].mxu0
        %v2839 = vadd.f32 0.0, %v2838
        %v2840 = vpop.f32.mrb[0].mxu0
        %2841 = vmatprep.mubr.bf16.mxu0 0
        %2842 = vmatmul.mubr.bf16.gmra.mrb[0].mxu0 %v2728
        %v2843 = vpop.f32.mrb[0].mxu0
        %v2844 = vadd.f32 0.0, %v2843
        %v2845 = vpop.f32.mrb[0].mxu0
        %v2846 = vpop.f32.mrb[0].mxu0
        %v2847 = vadd.f32 0.0, %v2846
        %v2848 = vpop.f32.mrb[0].mxu0
        %2849 = vmatprep.mubr.bf16.mxu0 0
        %2850 = vmatmul.mubr.bf16.gmra.mrb[0].mxu0 %v2731
        %v2851 = vpop.f32.mrb[0].mxu0
        %v2852 = vadd.f32 0.0, %v2851
        %v2853 = vpop.f32.mrb[0].mxu0
        %v2854 = vpop.f32.mrb[0].mxu0
        %v2855 = vadd.f32 0.0, %v2854
        %v2856 = vpop.f32.mrb[0].mxu0
        %2857 = vmatprep.mubr.bf16.mxu0 0
        %2858 = vmatmul.mubr.bf16.gmra.mrb[0].mxu0 %v2734
        %v2859 = vpop.f32.mrb[0].mxu0
        %v2860 = vadd.f32 0.0, %v2859
        %v2861 = vpop.f32.mrb[0].mxu0
        %v2862 = vpop.f32.mrb[0].mxu0
        %v2863 = vadd.f32 0.0, %v2862
        %v2864 = vpop.f32.mrb[0].mxu0
        %2865 = vmatprep.mubr.bf16.mxu0 0
        %2866 = vmatmul.mubr.bf16.gmra.mrb[0].mxu0 %v2737
        %v2867 = vpop.f32.mrb[0].mxu0
        %v2868 = vadd.f32 0.0, %v2867
        %v2869 = vpop.f32.mrb[0].mxu0
        %v2870 = vpop.f32.mrb[0].mxu0
        %v2871 = vadd.f32 0.0, %v2870
        %v2872 = vpop.f32.mrb[0].mxu0
        %2873 = vmatprep.mubr.bf16.mxu0 0
        %2874 = vmatmul.mubr.bf16.gmra.mrb[0].mxu0 %v2740
        %v2875 = vpop.f32.mrb[0].mxu0
        %v2876 = vadd.f32 0.0, %v2875
        %v2877 = vpop.f32.mrb[0].mxu0
        %v2878 = vpop.f32.mrb[0].mxu0
        %v2879 = vadd.f32 0.0, %v2878
        %v2880 = vpop.f32.mrb[0].mxu0
        %2881 = vmatprep.mubr.bf16.mxu0 0
        %2882 = vmatmul.mubr.bf16.gmra.mrb[0].mxu0 %v2743
        %v2883 = vpop.f32.mrb[0].mxu0
        %v2884 = vadd.f32 0.0, %v2883
        %v2885 = vpop.f32.mrb[0].mxu0
        %v2886 = vpop.f32.mrb[0].mxu0
        %v2887 = vadd.f32 0.0, %v2886
        %v2888 = vpop.f32.mrb[0].mxu0
        %2889 = vmatprep.mubr.bf16.mxu0 0
        %2890 = vmatmul.mubr.bf16.gmra.mrb[0].mxu0 %v2746
        %v2891 = vpop.f32.mrb[0].mxu0
        %v2892 = vadd.f32 0.0, %v2891
        %v2893 = vpop.f32.mrb[0].mxu0
        %v2894 = vpop.f32.mrb[0].mxu0
        %v2895 = vadd.f32 0.0, %v2894
        %v2896 = vpop.f32.mrb[0].mxu0
        %2897 = vmatprep.mubr.bf16.mxu0 0
        %2898 = vmatmul.mubr.bf16.gmra.mrb[0].mxu0 %v2749
        %v2899 = vpop.f32.mrb[0].mxu0
        %v2900 = vadd.f32 0.0, %v2899
        %v2901 = vpop.f32.mrb[0].mxu0
        %v2902 = vpop.f32.mrb[0].mxu0
        %v2903 = vadd.f32 0.0, %v2902
        %v2904 = vpop.f32.mrb[0].mxu0
        %2905 = vmatprep.mubr.bf16.mxu0 0
        %2906 = vmatmul.mubr.bf16.gmra.mrb[0].mxu0 %v2752
        %v2907 = vpop.f32.mrb[0].mxu0
        %v2908 = vadd.f32 0.0, %v2907
        %v2909 = vpop.f32.mrb[0].mxu0
        %v2910 = vpop.f32.mrb[0].mxu0
        %v2911 = vadd.f32 0.0, %v2910
        %v2912 = vpop.f32.mrb[0].mxu0
        %2913 = vmatprep.mubr.bf16.mxu0 0
        %2914 = vmatmul.mubr.bf16.gmra.mrb[0].mxu0 %v2755
        %v2915 = vpop.f32.mrb[0].mxu0
        %v2916 = vadd.f32 0.0, %v2915
        %v2917 = vpop.f32.mrb[0].mxu0
        %v2918 = vpop.f32.mrb[0].mxu0
        %v2919 = vadd.f32 0.0, %v2918
        %v2920 = vpop.f32.mrb[0].mxu0
        %2921 = vmatprep.mubr.bf16.mxu0 0
        %2922 = vmatmul.mubr.bf16.gmra.mrb[0].mxu0 %v2758
        %v2923 = vpop.f32.mrb[0].mxu0
        %v2924 = vadd.f32 0.0, %v2923
        %v2925 = vpop.f32.mrb[0].mxu0
        %v2926 = vpop.f32.mrb[0].mxu0
        %v2927 = vadd.f32 0.0, %v2926
        %v2928 = vpop.f32.mrb[0].mxu0
        %2929 = vmatprep.mubr.bf16.mxu0 0
        %2930 = vmatmul.mubr.bf16.gmra.mrb[0].mxu0 %v2761
        %v2931 = vpop.f32.mrb[0].mxu0
        %v2932 = vadd.f32 0.0, %v2931
        %v2933 = vpop.f32.mrb[0].mxu0
        %v2934 = vpop.f32.mrb[0].mxu0
        %v2935 = vadd.f32 0.0, %v2934
        %v2936 = vpop.f32.mrb[0].mxu0
        %2937 = vmatprep.mubr.bf16.mxu0 0
        %2938 = vmatmul.mubr.bf16.gmra.mrb[0].mxu0 %v2764
        %v2939 = vpop.f32.mrb[0].mxu0
        %v2940 = vadd.f32 0.0, %v2939
        %v2941 = vpop.f32.mrb[0].mxu0
        %v2942 = vpop.f32.mrb[0].mxu0
        %v2943 = vadd.f32 0.0, %v2942
        %v2944 = vpop.f32.mrb[0].mxu0
        %2945 = vmatprep.mubr.bf16.mxu0 0
        %2946 = vmatmul.mubr.bf16.gmra.mrb[0].mxu0 %v2767
        %v2947 = vpop.f32.mrb[0].mxu0
        %v2948 = vadd.f32 0.0, %v2947
        %v2949 = vpop.f32.mrb[0].mxu0
        %v2950 = vpop.f32.mrb[0].mxu0
        %v2951 = vadd.f32 0.0, %v2950
        %v2952 = vpop.f32.mrb[0].mxu0
        %2953 = vmatprep.mubr.bf16.mxu0 0
        %2954 = vmatmul.mubr.bf16.gmra.mrb[0].mxu0 %v2770
        %v2955 = vpop.f32.mrb[0].mxu0
        %v2956 = vadd.f32 0.0, %v2955
        %v2957 = vpop.f32.mrb[0].mxu0
        %v2958 = vpop.f32.mrb[0].mxu0
        %v2959 = vadd.f32 0.0, %v2958
        %v2960 = vpop.f32.mrb[0].mxu0
        %2961 = vmatprep.mubr.bf16.mxu0 0
        %2962 = vmatmul.mubr.bf16.gmra.mrb[0].mxu0 %v2773
        %v2963 = vpop.f32.mrb[0].mxu0
        %v2964 = vadd.f32 0.0, %v2963
        %v2965 = vpop.f32.mrb[0].mxu0
        %v2966 = vpop.f32.mrb[0].mxu0
        %v2967 = vadd.f32 0.0, %v2966
        %v2968 = vpop.f32.mrb[0].mxu0
        %2969 = vmatprep.mubr.bf16.mxu0 0
        %2970 = vmatmul.mubr.bf16.gmra.mrb[0].mxu0 %v2776
        %v2971 = vpop.f32.mrb[0].mxu0
        %v2972 = vadd.f32 0.0, %v2971
        %v2973 = vpop.f32.mrb[0].mxu0
        %v2974 = vpop.f32.mrb[0].mxu0
        %v2975 = vadd.f32 0.0, %v2974
        %v2976 = vpop.f32.mrb[0].mxu0
        %2977 = vmatprep.mubr.bf16.mxu0 0
        %2978 = vmatmul.mubr.bf16.gmra.mrb[0].mxu0 %v2779
        %v2979 = vpop.f32.mrb[0].mxu0
        %v2980 = vadd.f32 0.0, %v2979
        %v2981 = vpop.f32.mrb[0].mxu0
        %v2982 = vpop.f32.mrb[0].mxu0
        %v2983 = vadd.f32 0.0, %v2982
        %v2984 = vpop.f32.mrb[0].mxu0
        %2985 = vmatprep.mubr.bf16.mxu0 0
        %2986 = vmatmul.mubr.bf16.gmra.mrb[0].mxu0 %v2782
        %v2987 = vpop.f32.mrb[0].mxu0
        %v2988 = vadd.f32 0.0, %v2987
        %v2989 = vpop.f32.mrb[0].mxu0
        %v2990 = vpop.f32.mrb[0].mxu0
        %v2991 = vadd.f32 0.0, %v2990
        %v2992 = vpop.f32.mrb[0].mxu0
        %2993 = vmatprep.mubr.bf16.mxu0 0
        %2994 = vmatmul.mubr.bf16.gmra.mrb[0].mxu0 %v2785
        %v2995 = vpop.f32.mrb[0].mxu0
        %v2996 = vadd.f32 0.0, %v2995
        %v2997 = vpop.f32.mrb[0].mxu0
        %v2998 = vpop.f32.mrb[0].mxu0
        %v2999 = vadd.f32 0.0, %v2998
        %v3000 = vpop.f32.mrb[0].mxu0
        %3001 = vmatprep.mubr.bf16.mxu0 0
        %3002 = vmatmul.mubr.bf16.gmra.mrb[0].mxu0 %v2788
        %v3003 = vpop.f32.mrb[0].mxu0
        %v3004 = vadd.f32 0.0, %v3003
        %v3005 = vpop.f32.mrb[0].mxu0
        %v3006 = vpop.f32.mrb[0].mxu0
        %v3007 = vadd.f32 0.0, %v3006
        %v3008 = vpop.f32.mrb[0].mxu0
        %3009 = vmatprep.mubr.bf16.mxu0 0
        %3010 = vmatmul.mubr.bf16.gmra.mrb[0].mxu0 %v2791
        %v3011 = vpop.f32.mrb[0].mxu0
        %v3012 = vadd.f32 0.0, %v3011
        %v3013 = vpop.f32.mrb[0].mxu0
        %v3014 = vpop.f32.mrb[0].mxu0
        %v3015 = vadd.f32 0.0, %v3014
        %v3016 = vpop.f32.mrb[0].mxu0
        %3017 = vdwg.mxu0
        %v3022 = vunpack.c.l.b16 %v2519
        %v3023 = vunpack.c.l.b16 %v2520
        %v3024 = vunpack.c.l.b16 %v2521
        %v3025 = vunpack.c.l.b16 %v2522
        %v3026 = vpack.c.b16 %v3023, %v3022
        %v3027 = vpack.c.b16 %v3025, %v3024
        %v3031 = vsel %vm327, %v2613, 0
        %v3034 = vsel %vm327, %v2614, 0
        %v3037 = vsel %vm327, %v2615, 0
        %v3040 = vsel %vm327, %v2616, 0
        %v3043 = vsel %vm327, %v2617, 0
        %v3046 = vsel %vm327, %v2618, 0
        %v3049 = vsel %vm327, %v2619, 0
        %v3052 = vsel %vm327, %v2620, 0
        %v3055 = vsel %vm327, %v2621, 0
        %v3058 = vsel %vm327, %v2622, 0
        %v3061 = vsel %vm327, %v2623, 0
        %v3064 = vsel %vm327, %v2624, 0
        %v3067 = vsel %vm327, %v2625, 0
        %v3070 = vsel %vm327, %v2626, 0
        %v3073 = vsel %vm327, %v2627, 0
        %v3076 = vsel %vm327, %v2628, 0
        %v3079 = vsel %vm327, %v2629, 0
        %v3082 = vsel %vm327, %v2630, 0
        %v3085 = vsel %vm327, %v2631, 0
        %v3088 = vsel %vm327, %v2632, 0
        %v3091 = vsel %vm327, %v2633, 0
        %v3094 = vsel %vm327, %v2634, 0
        %v3097 = vsel %vm327, %v2635, 0
        %v3100 = vsel %vm327, %v2636, 0
        %3102 = vmatprep.subr.bf16.mxu0 0
        %3103 = vmatpush1.bf16.msra.mxu0 %v3026
        %3104 = vmatprep.subr.bf16.mxu0 0
        %3105 = vmatpush1.bf16.msra.mxu0 %v3027
        %3106 = vmatprep.subr.bf16.mxu0 0
        %3107 = vmatpush1.bf16.msra.mxu0 0
        %3108 = vmatprep.subr.bf16.mxu0 0
        %3109 = vmatpush1.bf16.msra.mxu0 0
        %3110 = vmatprep.subr.bf16.mxu0 0
        %3111 = vmatpush1.bf16.msra.mxu0 0
        %3112 = vmatprep.subr.bf16.mxu0 0
        %3113 = vmatpush1.bf16.msra.mxu0 0
        %3114 = vmatprep.subr.bf16.mxu0 0
        %3115 = vmatpush1.bf16.msra.mxu0 0
        %3116 = vmatprep.subr.bf16.mxu0 0
        %3117 = vmatpush1.bf16.msra.mxu0 0
        %3118 = vmatprep.subr.bf16.mxu0 0
        %3119 = vmatpush1.bf16.msra.mxu0 0
        %3120 = vmatprep.subr.bf16.mxu0 0
        %3121 = vmatpush1.bf16.msra.mxu0 0
        %3122 = vmatprep.subr.bf16.mxu0 0
        %3123 = vmatpush1.bf16.msra.mxu0 0
        %3124 = vmatprep.subr.bf16.mxu0 0
        %3125 = vmatpush1.bf16.msra.mxu0 0
        %3126 = vmatprep.subr.bf16.mxu0 0
        %3127 = vmatpush1.bf16.msra.mxu0 0
        %3128 = vmatprep.subr.bf16.mxu0 0
        %3129 = vmatpush1.bf16.msra.mxu0 0
        %3130 = vmatprep.subr.bf16.mxu0 0
        %3131 = vmatpush1.bf16.msra.mxu0 0
        %3132 = vmatprep.subr.bf16.mxu0 0
        %3133 = vmatpush1.bf16.msra.mxu0 0
        %3134 = vmatprep.mubr.bf16.mxu0 0
        %3135 = vmatmul.mubr.bf16.gmra.mrb[0].mxu0 %v3031
        %v3136 = vpop.f32.mrb[0].mxu0
        %v3137 = vadd.f32 %v2828, %v3136
        %v3138 = vpop.f32.mrb[0].mxu0
        %v3139 = vpop.f32.mrb[0].mxu0
        %v3140 = vadd.f32 %v2831, %v3139
        %v3141 = vpop.f32.mrb[0].mxu0
        %3142 = vmatprep.mubr.bf16.mxu0 0
        %3143 = vmatmul.mubr.bf16.gmra.mrb[0].mxu0 %v3034
        %v3144 = vpop.f32.mrb[0].mxu0
        %v3145 = vadd.f32 %v2836, %v3144
        %v3146 = vpop.f32.mrb[0].mxu0
        %v3147 = vpop.f32.mrb[0].mxu0
        %v3148 = vadd.f32 %v2839, %v3147
        %v3149 = vpop.f32.mrb[0].mxu0
        %3150 = vmatprep.mubr.bf16.mxu0 0
        %3151 = vmatmul.mubr.bf16.gmra.mrb[0].mxu0 %v3037
        %v3152 = vpop.f32.mrb[0].mxu0
        %v3153 = vadd.f32 %v2844, %v3152
        %v3154 = vpop.f32.mrb[0].mxu0
        %v3155 = vpop.f32.mrb[0].mxu0
        %v3156 = vadd.f32 %v2847, %v3155
        %v3157 = vpop.f32.mrb[0].mxu0
        %3158 = vmatprep.mubr.bf16.mxu0 0
        %3159 = vmatmul.mubr.bf16.gmra.mrb[0].mxu0 %v3040
        %v3160 = vpop.f32.mrb[0].mxu0
        %v3161 = vadd.f32 %v2852, %v3160
        %v3162 = vpop.f32.mrb[0].mxu0
        %v3163 = vpop.f32.mrb[0].mxu0
        %v3164 = vadd.f32 %v2855, %v3163
        %v3165 = vpop.f32.mrb[0].mxu0
        %3166 = vmatprep.mubr.bf16.mxu0 0
        %3167 = vmatmul.mubr.bf16.gmra.mrb[0].mxu0 %v3043
        %v3168 = vpop.f32.mrb[0].mxu0
        %v3169 = vadd.f32 %v2860, %v3168
        %v3170 = vpop.f32.mrb[0].mxu0
        %v3171 = vpop.f32.mrb[0].mxu0
        %v3172 = vadd.f32 %v2863, %v3171
        %v3173 = vpop.f32.mrb[0].mxu0
        %3174 = vmatprep.mubr.bf16.mxu0 0
        %3175 = vmatmul.mubr.bf16.gmra.mrb[0].mxu0 %v3046
        %v3176 = vpop.f32.mrb[0].mxu0
        %v3177 = vadd.f32 %v2868, %v3176
        %v3178 = vpop.f32.mrb[0].mxu0
        %v3179 = vpop.f32.mrb[0].mxu0
        %v3180 = vadd.f32 %v2871, %v3179
        %v3181 = vpop.f32.mrb[0].mxu0
        %3182 = vmatprep.mubr.bf16.mxu0 0
        %3183 = vmatmul.mubr.bf16.gmra.mrb[0].mxu0 %v3049
        %v3184 = vpop.f32.mrb[0].mxu0
        %v3185 = vadd.f32 %v2876, %v3184
        %v3186 = vpop.f32.mrb[0].mxu0
        %v3187 = vpop.f32.mrb[0].mxu0
        %v3188 = vadd.f32 %v2879, %v3187
        %v3189 = vpop.f32.mrb[0].mxu0
        %3190 = vmatprep.mubr.bf16.mxu0 0
        %3191 = vmatmul.mubr.bf16.gmra.mrb[0].mxu0 %v3052
        %v3192 = vpop.f32.mrb[0].mxu0
        %v3193 = vadd.f32 %v2884, %v3192
        %v3194 = vpop.f32.mrb[0].mxu0
        %v3195 = vpop.f32.mrb[0].mxu0
        %v3196 = vadd.f32 %v2887, %v3195
        %v3197 = vpop.f32.mrb[0].mxu0
        %3198 = vmatprep.mubr.bf16.mxu0 0
        %3199 = vmatmul.mubr.bf16.gmra.mrb[0].mxu0 %v3055
        %v3200 = vpop.f32.mrb[0].mxu0
        %v3201 = vadd.f32 %v2892, %v3200
        %v3202 = vpop.f32.mrb[0].mxu0
        %v3203 = vpop.f32.mrb[0].mxu0
        %v3204 = vadd.f32 %v2895, %v3203
        %v3205 = vpop.f32.mrb[0].mxu0
        %3206 = vmatprep.mubr.bf16.mxu0 0
        %3207 = vmatmul.mubr.bf16.gmra.mrb[0].mxu0 %v3058
        %v3208 = vpop.f32.mrb[0].mxu0
        %v3209 = vadd.f32 %v2900, %v3208
        %v3210 = vpop.f32.mrb[0].mxu0
        %v3211 = vpop.f32.mrb[0].mxu0
        %v3212 = vadd.f32 %v2903, %v3211
        %v3213 = vpop.f32.mrb[0].mxu0
        %3214 = vmatprep.mubr.bf16.mxu0 0
        %3215 = vmatmul.mubr.bf16.gmra.mrb[0].mxu0 %v3061
        %v3216 = vpop.f32.mrb[0].mxu0
        %v3217 = vadd.f32 %v2908, %v3216
        %v3218 = vpop.f32.mrb[0].mxu0
        %v3219 = vpop.f32.mrb[0].mxu0
        %v3220 = vadd.f32 %v2911, %v3219
        %v3221 = vpop.f32.mrb[0].mxu0
        %3222 = vmatprep.mubr.bf16.mxu0 0
        %3223 = vmatmul.mubr.bf16.gmra.mrb[0].mxu0 %v3064
        %v3224 = vpop.f32.mrb[0].mxu0
        %v3225 = vadd.f32 %v2916, %v3224
        %v3226 = vpop.f32.mrb[0].mxu0
        %v3227 = vpop.f32.mrb[0].mxu0
        %v3228 = vadd.f32 %v2919, %v3227
        %v3229 = vpop.f32.mrb[0].mxu0
        %3230 = vmatprep.mubr.bf16.mxu0 0
        %3231 = vmatmul.mubr.bf16.gmra.mrb[0].mxu0 %v3067
        %v3232 = vpop.f32.mrb[0].mxu0
        %v3233 = vadd.f32 %v2924, %v3232
        %v3234 = vpop.f32.mrb[0].mxu0
        %v3235 = vpop.f32.mrb[0].mxu0
        %v3236 = vadd.f32 %v2927, %v3235
        %v3237 = vpop.f32.mrb[0].mxu0
        %3238 = vmatprep.mubr.bf16.mxu0 0
        %3239 = vmatmul.mubr.bf16.gmra.mrb[0].mxu0 %v3070
        %v3240 = vpop.f32.mrb[0].mxu0
        %v3241 = vadd.f32 %v2932, %v3240
        %v3242 = vpop.f32.mrb[0].mxu0
        %v3243 = vpop.f32.mrb[0].mxu0
        %v3244 = vadd.f32 %v2935, %v3243
        %v3245 = vpop.f32.mrb[0].mxu0
        %3246 = vmatprep.mubr.bf16.mxu0 0
        %3247 = vmatmul.mubr.bf16.gmra.mrb[0].mxu0 %v3073
        %v3248 = vpop.f32.mrb[0].mxu0
        %v3249 = vadd.f32 %v2940, %v3248
        %v3250 = vpop.f32.mrb[0].mxu0
        %v3251 = vpop.f32.mrb[0].mxu0
        %v3252 = vadd.f32 %v2943, %v3251
        %v3253 = vpop.f32.mrb[0].mxu0
        %3254 = vmatprep.mubr.bf16.mxu0 0
        %3255 = vmatmul.mubr.bf16.gmra.mrb[0].mxu0 %v3076
        %v3256 = vpop.f32.mrb[0].mxu0
        %v3257 = vadd.f32 %v2948, %v3256
        %v3258 = vpop.f32.mrb[0].mxu0
        %v3259 = vpop.f32.mrb[0].mxu0
        %v3260 = vadd.f32 %v2951, %v3259
        %v3261 = vpop.f32.mrb[0].mxu0
        %3262 = vmatprep.mubr.bf16.mxu0 0
        %3263 = vmatmul.mubr.bf16.gmra.mrb[0].mxu0 %v3079
        %v3264 = vpop.f32.mrb[0].mxu0
        %v3265 = vadd.f32 %v2956, %v3264
        %v3266 = vpop.f32.mrb[0].mxu0
        %v3267 = vpop.f32.mrb[0].mxu0
        %v3268 = vadd.f32 %v2959, %v3267
        %v3269 = vpop.f32.mrb[0].mxu0
        %3270 = vmatprep.mubr.bf16.mxu0 0
        %3271 = vmatmul.mubr.bf16.gmra.mrb[0].mxu0 %v3082
        %v3272 = vpop.f32.mrb[0].mxu0
        %v3273 = vadd.f32 %v2964, %v3272
        %v3274 = vpop.f32.mrb[0].mxu0
        %v3275 = vpop.f32.mrb[0].mxu0
        %v3276 = vadd.f32 %v2967, %v3275
        %v3277 = vpop.f32.mrb[0].mxu0
        %3278 = vmatprep.mubr.bf16.mxu0 0
        %3279 = vmatmul.mubr.bf16.gmra.mrb[0].mxu0 %v3085
        %v3280 = vpop.f32.mrb[0].mxu0
        %v3281 = vadd.f32 %v2972, %v3280
        %v3282 = vpop.f32.mrb[0].mxu0
        %v3283 = vpop.f32.mrb[0].mxu0
        %v3284 = vadd.f32 %v2975, %v3283
        %v3285 = vpop.f32.mrb[0].mxu0
        %3286 = vmatprep.mubr.bf16.mxu0 0
        %3287 = vmatmul.mubr.bf16.gmra.mrb[0].mxu0 %v3088
        %v3288 = vpop.f32.mrb[0].mxu0
        %v3289 = vadd.f32 %v2980, %v3288
        %v3290 = vpop.f32.mrb[0].mxu0
        %v3291 = vpop.f32.mrb[0].mxu0
        %v3292 = vadd.f32 %v2983, %v3291
        %v3293 = vpop.f32.mrb[0].mxu0
        %3294 = vmatprep.mubr.bf16.mxu0 0
        %3295 = vmatmul.mubr.bf16.gmra.mrb[0].mxu0 %v3091
        %v3296 = vpop.f32.mrb[0].mxu0
        %v3297 = vadd.f32 %v2988, %v3296
        %v3298 = vpop.f32.mrb[0].mxu0
        %v3299 = vpop.f32.mrb[0].mxu0
        %v3300 = vadd.f32 %v2991, %v3299
        %v3301 = vpop.f32.mrb[0].mxu0
        %3302 = vmatprep.mubr.bf16.mxu0 0
        %3303 = vmatmul.mubr.bf16.gmra.mrb[0].mxu0 %v3094
        %v3304 = vpop.f32.mrb[0].mxu0
        %v3305 = vadd.f32 %v2996, %v3304
        %v3306 = vpop.f32.mrb[0].mxu0
        %v3307 = vpop.f32.mrb[0].mxu0
        %v3308 = vadd.f32 %v2999, %v3307
        %v3309 = vpop.f32.mrb[0].mxu0
        %3310 = vmatprep.mubr.bf16.mxu0 0
        %3311 = vmatmul.mubr.bf16.gmra.mrb[0].mxu0 %v3097
        %v3312 = vpop.f32.mrb[0].mxu0
        %v3313 = vadd.f32 %v3004, %v3312
        %v3314 = vpop.f32.mrb[0].mxu0
        %v3315 = vpop.f32.mrb[0].mxu0
        %v3316 = vadd.f32 %v3007, %v3315
        %v3317 = vpop.f32.mrb[0].mxu0
        %3318 = vmatprep.mubr.bf16.mxu0 0
        %3319 = vmatmul.mubr.bf16.gmra.mrb[0].mxu0 %v3100
        %v3320 = vpop.f32.mrb[0].mxu0
        %v3321 = vadd.f32 %v3012, %v3320
        %v3322 = vpop.f32.mrb[0].mxu0
        %v3323 = vpop.f32.mrb[0].mxu0
        %v3324 = vadd.f32 %v3015, %v3323
        %v3325 = vpop.f32.mrb[0].mxu0
        %3326 = vdwg.mxu0
        %v3327 = vld [vmem:[%s1447] sm:$0xff]
        %v3328 = vld [vmem:[%s1447 + $0x8] sm:$0xff]
        %v3329 = vld [vmem:[%s1447 + $0x10] sm:$0xff]
        %v3330 = vld [vmem:[%s1447 + $0x18] sm:$0xff]
        %v3331 = vld [vmem:[%s1447 + $0x20] sm:$0xff]
        %v3332 = vld [vmem:[%s1447 + $0x28] sm:$0xff]
        %v3333 = vld [vmem:[%s1447 + $0x30] sm:$0xff]
        %v3334 = vld [vmem:[%s1447 + $0x38] sm:$0xff]
        %v3335 = vld [vmem:[%s1447 + $0x40] sm:$0xff]
        %v3336 = vld [vmem:[%s1447 + $0x48] sm:$0xff]
        %v3337 = vld [vmem:[%s1447 + $0x50] sm:$0xff]
        %v3338 = vld [vmem:[%s1447 + $0x58] sm:$0xff]
        %v3339 = vld [vmem:[%s1447 + $0x60] sm:$0xff]
        %v3340 = vld [vmem:[%s1447 + $0x68] sm:$0xff]
        %v3341 = vld [vmem:[%s1447 + $0x70] sm:$0xff]
        %v3342 = vld [vmem:[%s1447 + $0x78] sm:$0xff]
        %v3343 = vld [vmem:[%s1447 + $0x80] sm:$0xff]
        %v3344 = vld [vmem:[%s1447 + $0x88] sm:$0xff]
        %v3345 = vld [vmem:[%s1447 + $0x90] sm:$0xff]
        %v3346 = vld [vmem:[%s1447 + $0x98] sm:$0xff]
        %v3347 = vld [vmem:[%s1447 + $0xa0] sm:$0xff]
        %v3348 = vld [vmem:[%s1447 + $0xa8] sm:$0xff]
        %v3349 = vld [vmem:[%s1447 + $0xb0] sm:$0xff]
        %v3350 = vld [vmem:[%s1447 + $0xb8] sm:$0xff]
        %v3351 = vld [vmem:[%s1447 + $0xc0] sm:$0xff]
        %v3352 = vld [vmem:[%s1447 + $0xc8] sm:$0xff]
        %v3353 = vld [vmem:[%s1447 + $0xd0] sm:$0xff]
        %v3354 = vld [vmem:[%s1447 + $0xd8] sm:$0xff]
        %v3355 = vld [vmem:[%s1447 + $0xe0] sm:$0xff]
        %v3356 = vld [vmem:[%s1447 + $0xe8] sm:$0xff]
        %v3357 = vld [vmem:[%s1447 + $0xf0] sm:$0xff]
        %v3358 = vld [vmem:[%s1447 + $0xf8] sm:$0xff]
        %v3359 = vld [vmem:[%s1447 + $0x100] sm:$0xff]
        %v3360 = vld [vmem:[%s1447 + $0x108] sm:$0xff]
        %v3361 = vld [vmem:[%s1447 + $0x110] sm:$0xff]
        %v3362 = vld [vmem:[%s1447 + $0x118] sm:$0xff]
        %v3363 = vld [vmem:[%s1447 + $0x120] sm:$0xff]
        %v3364 = vld [vmem:[%s1447 + $0x128] sm:$0xff]
        %v3365 = vld [vmem:[%s1447 + $0x130] sm:$0xff]
        %v3366 = vld [vmem:[%s1447 + $0x138] sm:$0xff]
        %v3367 = vld [vmem:[%s1447 + $0x140] sm:$0xff]
        %v3368 = vld [vmem:[%s1447 + $0x148] sm:$0xff]
        %v3369 = vld [vmem:[%s1447 + $0x150] sm:$0xff]
        %v3370 = vld [vmem:[%s1447 + $0x158] sm:$0xff]
        %v3371 = vld [vmem:[%s1447 + $0x160] sm:$0xff]
        %v3372 = vld [vmem:[%s1447 + $0x168] sm:$0xff]
        %v3373 = vld [vmem:[%s1447 + $0x170] sm:$0xff]
        %v3374 = vld [vmem:[%s1447 + $0x178] sm:$0xff]
        %v3375 = vpack.c.bf16 %v3328, %v3327
        %v3376 = vpack.c.bf16 %v3330, %v3329
        %v3377 = vpack.c.bf16 %v3332, %v3331
        %v3378 = vpack.c.bf16 %v3334, %v3333
        %v3379 = vpack.c.bf16 %v3336, %v3335
        %v3380 = vpack.c.bf16 %v3338, %v3337
        %v3381 = vpack.c.bf16 %v3340, %v3339
        %v3382 = vpack.c.bf16 %v3342, %v3341
        %v3383 = vpack.c.bf16 %v3344, %v3343
        %v3384 = vpack.c.bf16 %v3346, %v3345
        %v3385 = vpack.c.bf16 %v3348, %v3347
        %v3386 = vpack.c.bf16 %v3350, %v3349
        %v3387 = vpack.c.bf16 %v3352, %v3351
        %v3388 = vpack.c.bf16 %v3354, %v3353
        %v3389 = vpack.c.bf16 %v3356, %v3355
        %v3390 = vpack.c.bf16 %v3358, %v3357
        %v3391 = vpack.c.bf16 %v3360, %v3359
        %v3392 = vpack.c.bf16 %v3362, %v3361
        %v3393 = vpack.c.bf16 %v3364, %v3363
        %v3394 = vpack.c.bf16 %v3366, %v3365
        %v3395 = vpack.c.bf16 %v3368, %v3367
        %v3396 = vpack.c.bf16 %v3370, %v3369
        %v3397 = vpack.c.bf16 %v3372, %v3371
        %v3398 = vpack.c.bf16 %v3374, %v3373
        %v3403 = vunpack.c.l.b16 %v2527
        %v3404 = vunpack.c.l.b16 %v2528
        %v3405 = vunpack.c.l.b16 %v2529
        %v3406 = vunpack.c.l.b16 %v2530
        %v3407 = vpack.c.b16 %v3404, %v3403
        %v3408 = vpack.c.b16 %v3406, %v3405
        %v3412 = vsel %vm327, %v3375, 0
        %v3415 = vsel %vm327, %v3376, 0
        %v3418 = vsel %vm327, %v3377, 0
        %v3421 = vsel %vm327, %v3378, 0
        %v3424 = vsel %vm327, %v3379, 0
        %v3427 = vsel %vm327, %v3380, 0
        %v3430 = vsel %vm327, %v3381, 0
        %v3433 = vsel %vm327, %v3382, 0
        %v3436 = vsel %vm327, %v3383, 0
        %v3439 = vsel %vm327, %v3384, 0
        %v3442 = vsel %vm327, %v3385, 0
        %v3445 = vsel %vm327, %v3386, 0
        %v3448 = vsel %vm327, %v3387, 0
        %v3451 = vsel %vm327, %v3388, 0
        %v3454 = vsel %vm327, %v3389, 0
        %v3457 = vsel %vm327, %v3390, 0
        %v3460 = vsel %vm327, %v3391, 0
        %v3463 = vsel %vm327, %v3392, 0
        %v3466 = vsel %vm327, %v3393, 0
        %v3469 = vsel %vm327, %v3394, 0
        %v3472 = vsel %vm327, %v3395, 0
        %v3475 = vsel %vm327, %v3396, 0
        %v3478 = vsel %vm327, %v3397, 0
        %v3481 = vsel %vm327, %v3398, 0
        %3483 = vmatprep.subr.bf16.mxu0 0
        %3484 = vmatpush1.bf16.msra.mxu0 %v3407
        %3485 = vmatprep.subr.bf16.mxu0 0
        %3486 = vmatpush1.bf16.msra.mxu0 %v3408
        %3487 = vmatprep.subr.bf16.mxu0 0
        %3488 = vmatpush1.bf16.msra.mxu0 0
        %3489 = vmatprep.subr.bf16.mxu0 0
        %3490 = vmatpush1.bf16.msra.mxu0 0
        %3491 = vmatprep.subr.bf16.mxu0 0
        %3492 = vmatpush1.bf16.msra.mxu0 0
        %3493 = vmatprep.subr.bf16.mxu0 0
        %3494 = vmatpush1.bf16.msra.mxu0 0
        %3495 = vmatprep.subr.bf16.mxu0 0
        %3496 = vmatpush1.bf16.msra.mxu0 0
        %3497 = vmatprep.subr.bf16.mxu0 0
        %3498 = vmatpush1.bf16.msra.mxu0 0
        %3499 = vmatprep.subr.bf16.mxu0 0
        %3500 = vmatpush1.bf16.msra.mxu0 0
        %3501 = vmatprep.subr.bf16.mxu0 0
        %3502 = vmatpush1.bf16.msra.mxu0 0
        %3503 = vmatprep.subr.bf16.mxu0 0
        %3504 = vmatpush1.bf16.msra.mxu0 0
        %3505 = vmatprep.subr.bf16.mxu0 0
        %3506 = vmatpush1.bf16.msra.mxu0 0
        %3507 = vmatprep.subr.bf16.mxu0 0
        %3508 = vmatpush1.bf16.msra.mxu0 0
        %3509 = vmatprep.subr.bf16.mxu0 0
        %3510 = vmatpush1.bf16.msra.mxu0 0
        %3511 = vmatprep.subr.bf16.mxu0 0
        %3512 = vmatpush1.bf16.msra.mxu0 0
        %3513 = vmatprep.subr.bf16.mxu0 0
        %3514 = vmatpush1.bf16.msra.mxu0 0
        %3515 = vmatprep.mubr.bf16.mxu0 0
        %3516 = vmatmul.mubr.bf16.gmra.mrb[0].mxu0 %v3412
        %v3517 = vpop.f32.mrb[0].mxu0
        %v3518 = vadd.f32 0.0, %v3517
        %v3519 = vpop.f32.mrb[0].mxu0
        %v3520 = vpop.f32.mrb[0].mxu0
        %v3521 = vadd.f32 0.0, %v3520
        %v3522 = vpop.f32.mrb[0].mxu0
        %3523 = vmatprep.mubr.bf16.mxu0 0
        %3524 = vmatmul.mubr.bf16.gmra.mrb[0].mxu0 %v3415
        %v3525 = vpop.f32.mrb[0].mxu0
        %v3526 = vadd.f32 0.0, %v3525
        %v3527 = vpop.f32.mrb[0].mxu0
        %v3528 = vpop.f32.mrb[0].mxu0
        %v3529 = vadd.f32 0.0, %v3528
        %v3530 = vpop.f32.mrb[0].mxu0
        %3531 = vmatprep.mubr.bf16.mxu0 0
        %3532 = vmatmul.mubr.bf16.gmra.mrb[0].mxu0 %v3418
        %v3533 = vpop.f32.mrb[0].mxu0
        %v3534 = vadd.f32 0.0, %v3533
        %v3535 = vpop.f32.mrb[0].mxu0
        %v3536 = vpop.f32.mrb[0].mxu0
        %v3537 = vadd.f32 0.0, %v3536
        %v3538 = vpop.f32.mrb[0].mxu0
        %3539 = vmatprep.mubr.bf16.mxu0 0
        %3540 = vmatmul.mubr.bf16.gmra.mrb[0].mxu0 %v3421
        %v3541 = vpop.f32.mrb[0].mxu0
        %v3542 = vadd.f32 0.0, %v3541
        %v3543 = vpop.f32.mrb[0].mxu0
        %v3544 = vpop.f32.mrb[0].mxu0
        %v3545 = vadd.f32 0.0, %v3544
        %v3546 = vpop.f32.mrb[0].mxu0
        %3547 = vmatprep.mubr.bf16.mxu0 0
        %3548 = vmatmul.mubr.bf16.gmra.mrb[0].mxu0 %v3424
        %v3549 = vpop.f32.mrb[0].mxu0
        %v3550 = vadd.f32 0.0, %v3549
        %v3551 = vpop.f32.mrb[0].mxu0
        %v3552 = vpop.f32.mrb[0].mxu0
        %v3553 = vadd.f32 0.0, %v3552
        %v3554 = vpop.f32.mrb[0].mxu0
        %3555 = vmatprep.mubr.bf16.mxu0 0
        %3556 = vmatmul.mubr.bf16.gmra.mrb[0].mxu0 %v3427
        %v3557 = vpop.f32.mrb[0].mxu0
        %v3558 = vadd.f32 0.0, %v3557
        %v3559 = vpop.f32.mrb[0].mxu0
        %v3560 = vpop.f32.mrb[0].mxu0
        %v3561 = vadd.f32 0.0, %v3560
        %v3562 = vpop.f32.mrb[0].mxu0
        %3563 = vmatprep.mubr.bf16.mxu0 0
        %3564 = vmatmul.mubr.bf16.gmra.mrb[0].mxu0 %v3430
        %v3565 = vpop.f32.mrb[0].mxu0
        %v3566 = vadd.f32 0.0, %v3565
        %v3567 = vpop.f32.mrb[0].mxu0
        %v3568 = vpop.f32.mrb[0].mxu0
        %v3569 = vadd.f32 0.0, %v3568
        %v3570 = vpop.f32.mrb[0].mxu0
        %3571 = vmatprep.mubr.bf16.mxu0 0
        %3572 = vmatmul.mubr.bf16.gmra.mrb[0].mxu0 %v3433
        %v3573 = vpop.f32.mrb[0].mxu0
        %v3574 = vadd.f32 0.0, %v3573
        %v3575 = vpop.f32.mrb[0].mxu0
        %v3576 = vpop.f32.mrb[0].mxu0
        %v3577 = vadd.f32 0.0, %v3576
        %v3578 = vpop.f32.mrb[0].mxu0
        %3579 = vmatprep.mubr.bf16.mxu0 0
        %3580 = vmatmul.mubr.bf16.gmra.mrb[0].mxu0 %v3436
        %v3581 = vpop.f32.mrb[0].mxu0
        %v3582 = vadd.f32 0.0, %v3581
        %v3583 = vpop.f32.mrb[0].mxu0
        %v3584 = vpop.f32.mrb[0].mxu0
        %v3585 = vadd.f32 0.0, %v3584
        %v3586 = vpop.f32.mrb[0].mxu0
        %3587 = vmatprep.mubr.bf16.mxu0 0
        %3588 = vmatmul.mubr.bf16.gmra.mrb[0].mxu0 %v3439
        %v3589 = vpop.f32.mrb[0].mxu0
        %v3590 = vadd.f32 0.0, %v3589
        %v3591 = vpop.f32.mrb[0].mxu0
        %v3592 = vpop.f32.mrb[0].mxu0
        %v3593 = vadd.f32 0.0, %v3592
        %v3594 = vpop.f32.mrb[0].mxu0
        %3595 = vmatprep.mubr.bf16.mxu0 0
        %3596 = vmatmul.mubr.bf16.gmra.mrb[0].mxu0 %v3442
        %v3597 = vpop.f32.mrb[0].mxu0
        %v3598 = vadd.f32 0.0, %v3597
        %v3599 = vpop.f32.mrb[0].mxu0
        %v3600 = vpop.f32.mrb[0].mxu0
        %v3601 = vadd.f32 0.0, %v3600
        %v3602 = vpop.f32.mrb[0].mxu0
        %3603 = vmatprep.mubr.bf16.mxu0 0
        %3604 = vmatmul.mubr.bf16.gmra.mrb[0].mxu0 %v3445
        %v3605 = vpop.f32.mrb[0].mxu0
        %v3606 = vadd.f32 0.0, %v3605
        %v3607 = vpop.f32.mrb[0].mxu0
        %v3608 = vpop.f32.mrb[0].mxu0
        %v3609 = vadd.f32 0.0, %v3608
        %v3610 = vpop.f32.mrb[0].mxu0
        %3611 = vmatprep.mubr.bf16.mxu0 0
        %3612 = vmatmul.mubr.bf16.gmra.mrb[0].mxu0 %v3448
        %v3613 = vpop.f32.mrb[0].mxu0
        %v3614 = vadd.f32 0.0, %v3613
        %v3615 = vpop.f32.mrb[0].mxu0
        %v3616 = vpop.f32.mrb[0].mxu0
        %v3617 = vadd.f32 0.0, %v3616
        %v3618 = vpop.f32.mrb[0].mxu0
        %3619 = vmatprep.mubr.bf16.mxu0 0
        %3620 = vmatmul.mubr.bf16.gmra.mrb[0].mxu0 %v3451
        %v3621 = vpop.f32.mrb[0].mxu0
        %v3622 = vadd.f32 0.0, %v3621
        %v3623 = vpop.f32.mrb[0].mxu0
        %v3624 = vpop.f32.mrb[0].mxu0
        %v3625 = vadd.f32 0.0, %v3624
        %v3626 = vpop.f32.mrb[0].mxu0
        %3627 = vmatprep.mubr.bf16.mxu0 0
        %3628 = vmatmul.mubr.bf16.gmra.mrb[0].mxu0 %v3454
        %v3629 = vpop.f32.mrb[0].mxu0
        %v3630 = vadd.f32 0.0, %v3629
        %v3631 = vpop.f32.mrb[0].mxu0
        %v3632 = vpop.f32.mrb[0].mxu0
        %v3633 = vadd.f32 0.0, %v3632
        %v3634 = vpop.f32.mrb[0].mxu0
        %3635 = vmatprep.mubr.bf16.mxu0 0
        %3636 = vmatmul.mubr.bf16.gmra.mrb[0].mxu0 %v3457
        %v3637 = vpop.f32.mrb[0].mxu0
        %v3638 = vadd.f32 0.0, %v3637
        %v3639 = vpop.f32.mrb[0].mxu0
        %v3640 = vpop.f32.mrb[0].mxu0
        %v3641 = vadd.f32 0.0, %v3640
        %v3642 = vpop.f32.mrb[0].mxu0
        %3643 = vmatprep.mubr.bf16.mxu0 0
        %3644 = vmatmul.mubr.bf16.gmra.mrb[0].mxu0 %v3460
        %v3645 = vpop.f32.mrb[0].mxu0
        %v3646 = vadd.f32 0.0, %v3645
        %v3647 = vpop.f32.mrb[0].mxu0
        %v3648 = vpop.f32.mrb[0].mxu0
        %v3649 = vadd.f32 0.0, %v3648
        %v3650 = vpop.f32.mrb[0].mxu0
        %3651 = vmatprep.mubr.bf16.mxu0 0
        %3652 = vmatmul.mubr.bf16.gmra.mrb[0].mxu0 %v3463
        %v3653 = vpop.f32.mrb[0].mxu0
        %v3654 = vadd.f32 0.0, %v3653
        %v3655 = vpop.f32.mrb[0].mxu0
        %v3656 = vpop.f32.mrb[0].mxu0
        %v3657 = vadd.f32 0.0, %v3656
        %v3658 = vpop.f32.mrb[0].mxu0
        %3659 = vmatprep.mubr.bf16.mxu0 0
        %3660 = vmatmul.mubr.bf16.gmra.mrb[0].mxu0 %v3466
        %v3661 = vpop.f32.mrb[0].mxu0
        %v3662 = vadd.f32 0.0, %v3661
        %v3663 = vpop.f32.mrb[0].mxu0
        %v3664 = vpop.f32.mrb[0].mxu0
        %v3665 = vadd.f32 0.0, %v3664
        %v3666 = vpop.f32.mrb[0].mxu0
        %3667 = vmatprep.mubr.bf16.mxu0 0
        %3668 = vmatmul.mubr.bf16.gmra.mrb[0].mxu0 %v3469
        %v3669 = vpop.f32.mrb[0].mxu0
        %v3670 = vadd.f32 0.0, %v3669
        %v3671 = vpop.f32.mrb[0].mxu0
        %v3672 = vpop.f32.mrb[0].mxu0
        %v3673 = vadd.f32 0.0, %v3672
        %v3674 = vpop.f32.mrb[0].mxu0
        %3675 = vmatprep.mubr.bf16.mxu0 0
        %3676 = vmatmul.mubr.bf16.gmra.mrb[0].mxu0 %v3472
        %v3677 = vpop.f32.mrb[0].mxu0
        %v3678 = vadd.f32 0.0, %v3677
        %v3679 = vpop.f32.mrb[0].mxu0
        %v3680 = vpop.f32.mrb[0].mxu0
        %v3681 = vadd.f32 0.0, %v3680
        %v3682 = vpop.f32.mrb[0].mxu0
        %3683 = vmatprep.mubr.bf16.mxu0 0
        %3684 = vmatmul.mubr.bf16.gmra.mrb[0].mxu0 %v3475
        %v3685 = vpop.f32.mrb[0].mxu0
        %v3686 = vadd.f32 0.0, %v3685
        %v3687 = vpop.f32.mrb[0].mxu0
        %v3688 = vpop.f32.mrb[0].mxu0
        %v3689 = vadd.f32 0.0, %v3688
        %v3690 = vpop.f32.mrb[0].mxu0
        %3691 = vmatprep.mubr.bf16.mxu0 0
        %3692 = vmatmul.mubr.bf16.gmra.mrb[0].mxu0 %v3478
        %v3693 = vpop.f32.mrb[0].mxu0
        %v3694 = vadd.f32 0.0, %v3693
        %v3695 = vpop.f32.mrb[0].mxu0
        %v3696 = vpop.f32.mrb[0].mxu0
        %v3697 = vadd.f32 0.0, %v3696
        %v3698 = vpop.f32.mrb[0].mxu0
        %3699 = vmatprep.mubr.bf16.mxu0 0
        %3700 = vmatmul.mubr.bf16.gmra.mrb[0].mxu0 %v3481
        %v3701 = vpop.f32.mrb[0].mxu0
        %v3702 = vadd.f32 0.0, %v3701
        %v3703 = vpop.f32.mrb[0].mxu0
        %v3704 = vpop.f32.mrb[0].mxu0
        %v3705 = vadd.f32 0.0, %v3704
        %v3706 = vpop.f32.mrb[0].mxu0
        %3707 = vdwg.mxu0
        %v3708 = vadd.f32 %v3137, %v3518
        %v3709 = vadd.f32 %v3140, %v3521
        %v3710 = vadd.f32 %v3145, %v3526
        %v3711 = vadd.f32 %v3148, %v3529
        %v3712 = vadd.f32 %v3153, %v3534
        %v3713 = vadd.f32 %v3156, %v3537
        %v3714 = vadd.f32 %v3161, %v3542
        %v3715 = vadd.f32 %v3164, %v3545
        %v3716 = vadd.f32 %v3169, %v3550
        %v3717 = vadd.f32 %v3172, %v3553
        %v3718 = vadd.f32 %v3177, %v3558
        %v3719 = vadd.f32 %v3180, %v3561
        %v3720 = vadd.f32 %v3185, %v3566
        %v3721 = vadd.f32 %v3188, %v3569
        %v3722 = vadd.f32 %v3193, %v3574
        %v3723 = vadd.f32 %v3196, %v3577
        %v3724 = vadd.f32 %v3201, %v3582
        %v3725 = vadd.f32 %v3204, %v3585
        %v3726 = vadd.f32 %v3209, %v3590
        %v3727 = vadd.f32 %v3212, %v3593
        %v3728 = vadd.f32 %v3217, %v3598
        %v3729 = vadd.f32 %v3220, %v3601
        %v3730 = vadd.f32 %v3225, %v3606
        %v3731 = vadd.f32 %v3228, %v3609
        %v3732 = vadd.f32 %v3233, %v3614
        %v3733 = vadd.f32 %v3236, %v3617
        %v3734 = vadd.f32 %v3241, %v3622
        %v3735 = vadd.f32 %v3244, %v3625
        %v3736 = vadd.f32 %v3249, %v3630
        %v3737 = vadd.f32 %v3252, %v3633
        %v3738 = vadd.f32 %v3257, %v3638
        %v3739 = vadd.f32 %v3260, %v3641
        %v3740 = vadd.f32 %v3265, %v3646
        %v3741 = vadd.f32 %v3268, %v3649
        %v3742 = vadd.f32 %v3273, %v3654
        %v3743 = vadd.f32 %v3276, %v3657
        %v3744 = vadd.f32 %v3281, %v3662
        %v3745 = vadd.f32 %v3284, %v3665
        %v3746 = vadd.f32 %v3289, %v3670
        %v3747 = vadd.f32 %v3292, %v3673
        %v3748 = vadd.f32 %v3297, %v3678
        %v3749 = vadd.f32 %v3300, %v3681
        %v3750 = vadd.f32 %v3305, %v3686
        %v3751 = vadd.f32 %v3308, %v3689
        %v3752 = vadd.f32 %v3313, %v3694
        %v3753 = vadd.f32 %v3316, %v3697
        %v3754 = vadd.f32 %v3321, %v3702
        %v3755 = vadd.f32 %v3324, %v3705
        %v3804 = vrot.slane %v3708, 1
        %v3805 = vrot.slane %v3709, 1
        %v3806 = vsel %vm1925, %v3804, %v3805
        %v3807 = vrot.slane %v3710, 1
        %v3808 = vsel %vm1925, %v3805, %v3807
        %v3809 = vrot.slane %v3711, 1
        %v3810 = vrot.slane %v3712, 1
        %v3811 = vsel %vm1925, %v3809, %v3810
        %v3812 = vrot.slane %v3713, 1
        %v3813 = vsel %vm1925, %v3810, %v3812
        %v3814 = vrot.slane %v3714, 1
        %v3815 = vrot.slane %v3715, 1
        %v3816 = vsel %vm1925, %v3814, %v3815
        %v3817 = vrot.slane %v3716, 1
        %v3818 = vsel %vm1925, %v3815, %v3817
        %v3819 = vrot.slane %v3717, 1
        %v3820 = vrot.slane %v3718, 1
        %v3821 = vsel %vm1925, %v3819, %v3820
        %v3822 = vrot.slane %v3719, 1
        %v3823 = vsel %vm1925, %v3820, %v3822
        %v3824 = vrot.slane %v3720, 1
        %v3825 = vrot.slane %v3721, 1
        %v3826 = vsel %vm1925, %v3824, %v3825
        %v3827 = vrot.slane %v3722, 1
        %v3828 = vsel %vm1925, %v3825, %v3827
        %v3829 = vrot.slane %v3723, 1
        %v3830 = vrot.slane %v3724, 1
        %v3831 = vsel %vm1925, %v3829, %v3830
        %v3832 = vrot.slane %v3725, 1
        %v3833 = vsel %vm1925, %v3830, %v3832
        %v3834 = vrot.slane %v3726, 1
        %v3835 = vrot.slane %v3727, 1
        %v3836 = vsel %vm1925, %v3834, %v3835
        %v3837 = vrot.slane %v3728, 1
        %v3838 = vsel %vm1925, %v3835, %v3837
        %v3839 = vrot.slane %v3729, 1
        %v3840 = vrot.slane %v3730, 1
        %v3841 = vsel %vm1925, %v3839, %v3840
        %v3842 = vrot.slane %v3731, 1
        %v3843 = vsel %vm1925, %v3840, %v3842
        %v3844 = vrot.slane %v3732, 1
        %v3845 = vrot.slane %v3733, 1
        %v3846 = vsel %vm1925, %v3844, %v3845
        %v3847 = vrot.slane %v3734, 1
        %v3848 = vsel %vm1925, %v3845, %v3847
        %v3849 = vrot.slane %v3735, 1
        %v3850 = vrot.slane %v3736, 1
        %v3851 = vsel %vm1925, %v3849, %v3850
        %v3852 = vrot.slane %v3737, 1
        %v3853 = vsel %vm1925, %v3850, %v3852
        %v3854 = vrot.slane %v3738, 1
        %v3855 = vrot.slane %v3739, 1
        %v3856 = vsel %vm1925, %v3854, %v3855
        %v3857 = vrot.slane %v3740, 1
        %v3858 = vsel %vm1925, %v3855, %v3857
        %v3859 = vrot.slane %v3741, 1
        %v3860 = vrot.slane %v3742, 1
        %v3861 = vsel %vm1925, %v3859, %v3860
        %v3862 = vrot.slane %v3743, 1
        %v3863 = vsel %vm1925, %v3860, %v3862
        %v3864 = vrot.slane %v3744, 1
        %v3865 = vrot.slane %v3745, 1
        %v3866 = vsel %vm1925, %v3864, %v3865
        %v3867 = vrot.slane %v3746, 1
        %v3868 = vsel %vm1925, %v3865, %v3867
        %v3869 = vrot.slane %v3747, 1
        %v3870 = vrot.slane %v3748, 1
        %v3871 = vsel %vm1925, %v3869, %v3870
        %v3872 = vrot.slane %v3749, 1
        %v3873 = vsel %vm1925, %v3870, %v3872
        %v3874 = vrot.slane %v3750, 1
        %v3875 = vrot.slane %v3751, 1
        %v3876 = vsel %vm1925, %v3874, %v3875
        %v3877 = vrot.slane %v3752, 1
        %v3878 = vsel %vm1925, %v3875, %v3877
        %v3879 = vrot.slane %v3753, 1
        %v3880 = vrot.slane %v3754, 1
        %v3881 = vsel %vm1925, %v3879, %v3880
        %v3882 = vrot.slane %v3755, 1
        %v3883 = vsel %vm1925, %v3880, %v3882
        %3884 = vrot.lane.b32.xlu0 %v3806, 96
        %v3885 = vpop.permute.xlu0 %3884
        %3886 = vrot.lane.b32.xlu0 %v3808, 96
        %v3887 = vpop.permute.xlu0 %3886
        %3888 = vrot.lane.b32.xlu0 %v3811, 96
        %v3889 = vpop.permute.xlu0 %3888
        %3890 = vrot.lane.b32.xlu0 %v3813, 96
        %v3891 = vpop.permute.xlu0 %3890
        %3892 = vrot.lane.b32.xlu0 %v3816, 96
        %v3893 = vpop.permute.xlu0 %3892
        %3894 = vrot.lane.b32.xlu0 %v3818, 96
        %v3895 = vpop.permute.xlu0 %3894
        %3896 = vrot.lane.b32.xlu0 %v3821, 96
        %v3897 = vpop.permute.xlu0 %3896
        %3898 = vrot.lane.b32.xlu0 %v3823, 96
        %v3899 = vpop.permute.xlu0 %3898
        %3900 = vrot.lane.b32.xlu0 %v3826, 96
        %v3901 = vpop.permute.xlu0 %3900
        %3902 = vrot.lane.b32.xlu0 %v3828, 96
        %v3903 = vpop.permute.xlu0 %3902
        %3904 = vrot.lane.b32.xlu0 %v3831, 96
        %v3905 = vpop.permute.xlu0 %3904
        %3906 = vrot.lane.b32.xlu0 %v3833, 96
        %v3907 = vpop.permute.xlu0 %3906
        %3908 = vrot.lane.b32.xlu0 %v3836, 96
        %v3909 = vpop.permute.xlu0 %3908
        %3910 = vrot.lane.b32.xlu0 %v3838, 96
        %v3911 = vpop.permute.xlu0 %3910
        %3912 = vrot.lane.b32.xlu0 %v3841, 96
        %v3913 = vpop.permute.xlu0 %3912
        %3914 = vrot.lane.b32.xlu0 %v3843, 96
        %v3915 = vpop.permute.xlu0 %3914
        %3916 = vrot.lane.b32.xlu0 %v3846, 96
        %v3917 = vpop.permute.xlu0 %3916
        %3918 = vrot.lane.b32.xlu0 %v3848, 96
        %v3919 = vpop.permute.xlu0 %3918
        %3920 = vrot.lane.b32.xlu0 %v3851, 96
        %v3921 = vpop.permute.xlu0 %3920
        %3922 = vrot.lane.b32.xlu0 %v3853, 96
        %v3923 = vpop.permute.xlu0 %3922
        %3924 = vrot.lane.b32.xlu0 %v3856, 96
        %v3925 = vpop.permute.xlu0 %3924
        %3926 = vrot.lane.b32.xlu0 %v3858, 96
        %v3927 = vpop.permute.xlu0 %3926
        %3928 = vrot.lane.b32.xlu0 %v3861, 96
        %v3929 = vpop.permute.xlu0 %3928
        %3930 = vrot.lane.b32.xlu0 %v3863, 96
        %v3931 = vpop.permute.xlu0 %3930
        %3932 = vrot.lane.b32.xlu0 %v3866, 96
        %v3933 = vpop.permute.xlu0 %3932
        %3934 = vrot.lane.b32.xlu0 %v3868, 96
        %v3935 = vpop.permute.xlu0 %3934
        %3936 = vrot.lane.b32.xlu0 %v3871, 96
        %v3937 = vpop.permute.xlu0 %3936
        %3938 = vrot.lane.b32.xlu0 %v3873, 96
        %v3939 = vpop.permute.xlu0 %3938
        %3940 = vrot.lane.b32.xlu0 %v3876, 96
        %v3941 = vpop.permute.xlu0 %3940
        %3942 = vrot.lane.b32.xlu0 %v3878, 96
        %v3943 = vpop.permute.xlu0 %3942
        %3944 = vrot.lane.b32.xlu0 %v3881, 96
        %v3945 = vpop.permute.xlu0 %3944
        %3946 = vrot.lane.b32.xlu0 %v3883, 96
        %v3947 = vpop.permute.xlu0 %3946
        %v3980 = vadd.f32 %v3708, %v3885
        %v3981 = vadd.f32 %v3709, %v3887
        %v3982 = vadd.f32 %v3711, %v3889
        %v3983 = vadd.f32 %v3712, %v3891
        %v3984 = vadd.f32 %v3714, %v3893
        %v3985 = vadd.f32 %v3715, %v3895
        %v3986 = vadd.f32 %v3717, %v3897
        %v3987 = vadd.f32 %v3718, %v3899
        %v3988 = vadd.f32 %v3720, %v3901
        %v3989 = vadd.f32 %v3721, %v3903
        %v3990 = vadd.f32 %v3723, %v3905
        %v3991 = vadd.f32 %v3724, %v3907
        %v3992 = vadd.f32 %v3726, %v3909
        %v3993 = vadd.f32 %v3727, %v3911
        %v3994 = vadd.f32 %v3729, %v3913
        %v3995 = vadd.f32 %v3730, %v3915
        %v3996 = vadd.f32 %v3732, %v3917
        %v3997 = vadd.f32 %v3733, %v3919
        %v3998 = vadd.f32 %v3735, %v3921
        %v3999 = vadd.f32 %v3736, %v3923
        %v4000 = vadd.f32 %v3738, %v3925
        %v4001 = vadd.f32 %v3739, %v3927
        %v4002 = vadd.f32 %v3741, %v3929
        %v4003 = vadd.f32 %v3742, %v3931
        %v4004 = vadd.f32 %v3744, %v3933
        %v4005 = vadd.f32 %v3745, %v3935
        %v4006 = vadd.f32 %v3747, %v3937
        %v4007 = vadd.f32 %v3748, %v3939
        %v4008 = vadd.f32 %v3750, %v3941
        %v4009 = vadd.f32 %v3751, %v3943
        %v4010 = vadd.f32 %v3753, %v3945
        %v4011 = vadd.f32 %v3754, %v3947
        %v4012 = vrot.slane %v3708, 2
        %v4013 = vrot.slane %v3709, 2
        %v4014 = vsel %vm2134, %v4012, %v4013
        %v4015 = vrot.slane %v3710, 2
        %v4016 = vsel %vm2134, %v4013, %v4015
        %v4017 = vrot.slane %v3711, 2
        %v4018 = vrot.slane %v3712, 2
        %v4019 = vsel %vm2134, %v4017, %v4018
        %v4020 = vrot.slane %v3713, 2
        %v4021 = vsel %vm2134, %v4018, %v4020
        %v4022 = vrot.slane %v3714, 2
        %v4023 = vrot.slane %v3715, 2
        %v4024 = vsel %vm2134, %v4022, %v4023
        %v4025 = vrot.slane %v3716, 2
        %v4026 = vsel %vm2134, %v4023, %v4025
        %v4027 = vrot.slane %v3717, 2
        %v4028 = vrot.slane %v3718, 2
        %v4029 = vsel %vm2134, %v4027, %v4028
        %v4030 = vrot.slane %v3719, 2
        %v4031 = vsel %vm2134, %v4028, %v4030
        %v4032 = vrot.slane %v3720, 2
        %v4033 = vrot.slane %v3721, 2
        %v4034 = vsel %vm2134, %v4032, %v4033
        %v4035 = vrot.slane %v3722, 2
        %v4036 = vsel %vm2134, %v4033, %v4035
        %v4037 = vrot.slane %v3723, 2
        %v4038 = vrot.slane %v3724, 2
        %v4039 = vsel %vm2134, %v4037, %v4038
        %v4040 = vrot.slane %v3725, 2
        %v4041 = vsel %vm2134, %v4038, %v4040
        %v4042 = vrot.slane %v3726, 2
        %v4043 = vrot.slane %v3727, 2
        %v4044 = vsel %vm2134, %v4042, %v4043
        %v4045 = vrot.slane %v3728, 2
        %v4046 = vsel %vm2134, %v4043, %v4045
        %v4047 = vrot.slane %v3729, 2
        %v4048 = vrot.slane %v3730, 2
        %v4049 = vsel %vm2134, %v4047, %v4048
        %v4050 = vrot.slane %v3731, 2
        %v4051 = vsel %vm2134, %v4048, %v4050
        %v4052 = vrot.slane %v3732, 2
        %v4053 = vrot.slane %v3733, 2
        %v4054 = vsel %vm2134, %v4052, %v4053
        %v4055 = vrot.slane %v3734, 2
        %v4056 = vsel %vm2134, %v4053, %v4055
        %v4057 = vrot.slane %v3735, 2
        %v4058 = vrot.slane %v3736, 2
        %v4059 = vsel %vm2134, %v4057, %v4058
        %v4060 = vrot.slane %v3737, 2
        %v4061 = vsel %vm2134, %v4058, %v4060
        %v4062 = vrot.slane %v3738, 2
        %v4063 = vrot.slane %v3739, 2
        %v4064 = vsel %vm2134, %v4062, %v4063
        %v4065 = vrot.slane %v3740, 2
        %v4066 = vsel %vm2134, %v4063, %v4065
        %v4067 = vrot.slane %v3741, 2
        %v4068 = vrot.slane %v3742, 2
        %v4069 = vsel %vm2134, %v4067, %v4068
        %v4070 = vrot.slane %v3743, 2
        %v4071 = vsel %vm2134, %v4068, %v4070
        %v4072 = vrot.slane %v3744, 2
        %v4073 = vrot.slane %v3745, 2
        %v4074 = vsel %vm2134, %v4072, %v4073
        %v4075 = vrot.slane %v3746, 2
        %v4076 = vsel %vm2134, %v4073, %v4075
        %v4077 = vrot.slane %v3747, 2
        %v4078 = vrot.slane %v3748, 2
        %v4079 = vsel %vm2134, %v4077, %v4078
        %v4080 = vrot.slane %v3749, 2
        %v4081 = vsel %vm2134, %v4078, %v4080
        %v4082 = vrot.slane %v3750, 2
        %v4083 = vrot.slane %v3751, 2
        %v4084 = vsel %vm2134, %v4082, %v4083
        %v4085 = vrot.slane %v3752, 2
        %v4086 = vsel %vm2134, %v4083, %v4085
        %v4087 = vrot.slane %v3753, 2
        %v4088 = vrot.slane %v3754, 2
        %v4089 = vsel %vm2134, %v4087, %v4088
        %v4090 = vrot.slane %v3755, 2
        %v4091 = vsel %vm2134, %v4088, %v4090
        %4092 = vrot.lane.b32.xlu0 %v4014, 64
        %v4093 = vpop.permute.xlu0 %4092
        %4094 = vrot.lane.b32.xlu0 %v4016, 64
        %v4095 = vpop.permute.xlu0 %4094
        %4096 = vrot.lane.b32.xlu0 %v4019, 64
        %v4097 = vpop.permute.xlu0 %4096
        %4098 = vrot.lane.b32.xlu0 %v4021, 64
        %v4099 = vpop.permute.xlu0 %4098
        %4100 = vrot.lane.b32.xlu0 %v4024, 64
        %v4101 = vpop.permute.xlu0 %4100
        %4102 = vrot.lane.b32.xlu0 %v4026, 64
        %v4103 = vpop.permute.xlu0 %4102
        %4104 = vrot.lane.b32.xlu0 %v4029, 64
        %v4105 = vpop.permute.xlu0 %4104
        %4106 = vrot.lane.b32.xlu0 %v4031, 64
        %v4107 = vpop.permute.xlu0 %4106
        %4108 = vrot.lane.b32.xlu0 %v4034, 64
        %v4109 = vpop.permute.xlu0 %4108
        %4110 = vrot.lane.b32.xlu0 %v4036, 64
        %v4111 = vpop.permute.xlu0 %4110
        %4112 = vrot.lane.b32.xlu0 %v4039, 64
        %v4113 = vpop.permute.xlu0 %4112
        %4114 = vrot.lane.b32.xlu0 %v4041, 64
        %v4115 = vpop.permute.xlu0 %4114
        %4116 = vrot.lane.b32.xlu0 %v4044, 64
        %v4117 = vpop.permute.xlu0 %4116
        %4118 = vrot.lane.b32.xlu0 %v4046, 64
        %v4119 = vpop.permute.xlu0 %4118
        %4120 = vrot.lane.b32.xlu0 %v4049, 64
        %v4121 = vpop.permute.xlu0 %4120
        %4122 = vrot.lane.b32.xlu0 %v4051, 64
        %v4123 = vpop.permute.xlu0 %4122
        %4124 = vrot.lane.b32.xlu0 %v4054, 64
        %v4125 = vpop.permute.xlu0 %4124
        %4126 = vrot.lane.b32.xlu0 %v4056, 64
        %v4127 = vpop.permute.xlu0 %4126
        %4128 = vrot.lane.b32.xlu0 %v4059, 64
        %v4129 = vpop.permute.xlu0 %4128
        %4130 = vrot.lane.b32.xlu0 %v4061, 64
        %v4131 = vpop.permute.xlu0 %4130
        %4132 = vrot.lane.b32.xlu0 %v4064, 64
        %v4133 = vpop.permute.xlu0 %4132
        %4134 = vrot.lane.b32.xlu0 %v4066, 64
        %v4135 = vpop.permute.xlu0 %4134
        %4136 = vrot.lane.b32.xlu0 %v4069, 64
        %v4137 = vpop.permute.xlu0 %4136
        %4138 = vrot.lane.b32.xlu0 %v4071, 64
        %v4139 = vpop.permute.xlu0 %4138
        %4140 = vrot.lane.b32.xlu0 %v4074, 64
        %v4141 = vpop.permute.xlu0 %4140
        %4142 = vrot.lane.b32.xlu0 %v4076, 64
        %v4143 = vpop.permute.xlu0 %4142
        %4144 = vrot.lane.b32.xlu0 %v4079, 64
        %v4145 = vpop.permute.xlu0 %4144
        %4146 = vrot.lane.b32.xlu0 %v4081, 64
        %v4147 = vpop.permute.xlu0 %4146
        %4148 = vrot.lane.b32.xlu0 %v4084, 64
        %v4149 = vpop.permute.xlu0 %4148
        %4150 = vrot.lane.b32.xlu0 %v4086, 64
        %v4151 = vpop.permute.xlu0 %4150
        %4152 = vrot.lane.b32.xlu0 %v4089, 64
        %v4153 = vpop.permute.xlu0 %4152
        %4154 = vrot.lane.b32.xlu0 %v4091, 64
        %v4155 = vpop.permute.xlu0 %4154
        %v4188 = vadd.f32 %v3980, %v4093
        %v4189 = vadd.f32 %v3981, %v4095
        %v4190 = vadd.f32 %v3982, %v4097
        %v4191 = vadd.f32 %v3983, %v4099
        %v4192 = vadd.f32 %v3984, %v4101
        %v4193 = vadd.f32 %v3985, %v4103
        %v4194 = vadd.f32 %v3986, %v4105
        %v4195 = vadd.f32 %v3987, %v4107
        %v4196 = vadd.f32 %v3988, %v4109
        %v4197 = vadd.f32 %v3989, %v4111
        %v4198 = vadd.f32 %v3990, %v4113
        %v4199 = vadd.f32 %v3991, %v4115
        %v4200 = vadd.f32 %v3992, %v4117
        %v4201 = vadd.f32 %v3993, %v4119
        %v4202 = vadd.f32 %v3994, %v4121
        %v4203 = vadd.f32 %v3995, %v4123
        %v4204 = vadd.f32 %v3996, %v4125
        %v4205 = vadd.f32 %v3997, %v4127
        %v4206 = vadd.f32 %v3998, %v4129
        %v4207 = vadd.f32 %v3999, %v4131
        %v4208 = vadd.f32 %v4000, %v4133
        %v4209 = vadd.f32 %v4001, %v4135
        %v4210 = vadd.f32 %v4002, %v4137
        %v4211 = vadd.f32 %v4003, %v4139
        %v4212 = vadd.f32 %v4004, %v4141
        %v4213 = vadd.f32 %v4005, %v4143
        %v4214 = vadd.f32 %v4006, %v4145
        %v4215 = vadd.f32 %v4007, %v4147
        %v4216 = vadd.f32 %v4008, %v4149
        %v4217 = vadd.f32 %v4009, %v4151
        %v4218 = vadd.f32 %v4010, %v4153
        %v4219 = vadd.f32 %v4011, %v4155
        %v4221 = vlaneseq
        %v4222 = vshrl.u32 %v4221, 7
        %v4223 = vsub.s32 0, %v4222
        %v4224 = vrot.slane %v2532, %v4223
        %v4226 = vadd.f32 %v4188, %v4224
        %v4227 = vadd.f32 %v4189, %v4224
        %v4228 = vadd.f32 %v4190, %v4224
        %v4229 = vadd.f32 %v4191, %v4224
        %v4230 = vadd.f32 %v4192, %v4224
        %v4231 = vadd.f32 %v4193, %v4224
        %v4232 = vadd.f32 %v4194, %v4224
        %v4233 = vadd.f32 %v4195, %v4224
        %v4234 = vadd.f32 %v4196, %v4224
        %v4235 = vadd.f32 %v4197, %v4224
        %v4236 = vadd.f32 %v4198, %v4224
        %v4237 = vadd.f32 %v4199, %v4224
        %v4238 = vadd.f32 %v4200, %v4224
        %v4239 = vadd.f32 %v4201, %v4224
        %v4240 = vadd.f32 %v4202, %v4224
        %v4241 = vadd.f32 %v4203, %v4224
        %v4242 = vadd.f32 %v4204, %v4224
        %v4243 = vadd.f32 %v4205, %v4224
        %v4244 = vadd.f32 %v4206, %v4224
        %v4245 = vadd.f32 %v4207, %v4224
        %v4246 = vadd.f32 %v4208, %v4224
        %v4247 = vadd.f32 %v4209, %v4224
        %v4248 = vadd.f32 %v4210, %v4224
        %v4249 = vadd.f32 %v4211, %v4224
        %v4250 = vadd.f32 %v4212, %v4224
        %v4251 = vadd.f32 %v4213, %v4224
        %v4252 = vadd.f32 %v4214, %v4224
        %v4253 = vadd.f32 %v4215, %v4224
        %v4254 = vadd.f32 %v4216, %v4224
        %v4255 = vadd.f32 %v4217, %v4224
        %v4256 = vadd.f32 %v4218, %v4224
        %v4257 = vadd.f32 %v4219, %v4224
        %v4258 = vmax.f32 %v4226, 0.0
        %v4259 = vmax.f32 %v4227, 0.0
        %v4260 = vmax.f32 %v4228, 0.0
        %v4261 = vmax.f32 %v4229, 0.0
        %v4262 = vmax.f32 %v4230, 0.0
        %v4263 = vmax.f32 %v4231, 0.0
        %v4264 = vmax.f32 %v4232, 0.0
        %v4265 = vmax.f32 %v4233, 0.0
        %v4266 = vmax.f32 %v4234, 0.0
        %v4267 = vmax.f32 %v4235, 0.0
        %v4268 = vmax.f32 %v4236, 0.0
        %v4269 = vmax.f32 %v4237, 0.0
        %v4270 = vmax.f32 %v4238, 0.0
        %v4271 = vmax.f32 %v4239, 0.0
        %v4272 = vmax.f32 %v4240, 0.0
        %v4273 = vmax.f32 %v4241, 0.0
        %v4274 = vmax.f32 %v4242, 0.0
        %v4275 = vmax.f32 %v4243, 0.0
        %v4276 = vmax.f32 %v4244, 0.0
        %v4277 = vmax.f32 %v4245, 0.0
        %v4278 = vmax.f32 %v4246, 0.0
        %v4279 = vmax.f32 %v4247, 0.0
        %v4280 = vmax.f32 %v4248, 0.0
        %v4281 = vmax.f32 %v4249, 0.0
        %v4282 = vmax.f32 %v4250, 0.0
        %v4283 = vmax.f32 %v4251, 0.0
        %v4284 = vmax.f32 %v4252, 0.0
        %v4285 = vmax.f32 %v4253, 0.0
        %v4286 = vmax.f32 %v4254, 0.0
        %v4287 = vmax.f32 %v4255, 0.0
        %v4288 = vmax.f32 %v4256, 0.0
        %v4289 = vmax.f32 %v4257, 0.0
        %s4290 = sadd.s32 %s2515, 1
        %s4291 = smul.u32 %s4290, 12
        %s4292 = smul.addr %s4291, 4
        %s4293 = scalar_lea.vmem %s4, %s4292
        %v4294 = vld [vmem:[%s4293] sm:$0xf]
        %v4295 = vld [vmem:[%s4293 + $0x4] sm:$0xf]
        %v4296 = vld [vmem:[%s4293 + $0x8] sm:$0xf]
        %v4297 = vld [vmem:[%s4293 + $0xc] sm:$0xf]
        %v4298 = vld [vmem:[%s4293 + $0x10] sm:$0xf]
        %v4299 = vld [vmem:[%s4293 + $0x14] sm:$0xf]
        %v4300 = vld [vmem:[%s4293 + $0x18] sm:$0xf]
        %v4301 = vld [vmem:[%s4293 + $0x1c] sm:$0xf]
        %v4302 = vld [vmem:[%s4293 + $0x20] sm:$0xf]
        %v4303 = vld [vmem:[%s4293 + $0x24] sm:$0xf]
        %v4304 = vld [vmem:[%s4293 + $0x28] sm:$0xf]
        %v4305 = vld [vmem:[%s4293 + $0x2c] sm:$0xf]
        %s4306 = scalar_lea.vmem %s5, %s4290
        %v4307 = vld [vmem:[%s4306] sm:$0x1]
        %4308 = vst.msk [vmem:[%s651 + $0x1] sm:$0xff] %vm327, %v4258
        %4309 = vst.msk [vmem:[%s651 + $0x9] sm:$0xff] %vm327, %v4259
        %4310 = vst.msk [vmem:[%s651 + $0x19] sm:$0xff] %vm327, %v4260
        %4311 = vst.msk [vmem:[%s651 + $0x21] sm:$0xff] %vm327, %v4261
        %4312 = vst.msk [vmem:[%s651 + $0x31] sm:$0xff] %vm327, %v4262
        %4313 = vst.msk [vmem:[%s651 + $0x39] sm:$0xff] %vm327, %v4263
        %4314 = vst.msk [vmem:[%s651 + $0x49] sm:$0xff] %vm327, %v4264
        %4315 = vst.msk [vmem:[%s651 + $0x51] sm:$0xff] %vm327, %v4265
        %4316 = vst.msk [vmem:[%s651 + $0x61] sm:$0xff] %vm327, %v4266
        %4317 = vst.msk [vmem:[%s651 + $0x69] sm:$0xff] %vm327, %v4267
        %4318 = vst.msk [vmem:[%s651 + $0x79] sm:$0xff] %vm327, %v4268
        %4319 = vst.msk [vmem:[%s651 + $0x81] sm:$0xff] %vm327, %v4269
        %4320 = vst.msk [vmem:[%s651 + $0x91] sm:$0xff] %vm327, %v4270
        %4321 = vst.msk [vmem:[%s651 + $0x99] sm:$0xff] %vm327, %v4271
        %4322 = vst.msk [vmem:[%s651 + $0xa9] sm:$0xff] %vm327, %v4272
        %4323 = vst.msk [vmem:[%s651 + $0xb1] sm:$0xff] %vm327, %v4273
        %4324 = vst.msk [vmem:[%s651 + $0xc1] sm:$0xff] %vm327, %v4274
        %4325 = vst.msk [vmem:[%s651 + $0xc9] sm:$0xff] %vm327, %v4275
        %4326 = vst.msk [vmem:[%s651 + $0xd9] sm:$0xff] %vm327, %v4276
        %4327 = vst.msk [vmem:[%s651 + $0xe1] sm:$0xff] %vm327, %v4277
        %4328 = vst.msk [vmem:[%s651 + $0xf1] sm:$0xff] %vm327, %v4278
        %4329 = vst.msk [vmem:[%s651 + $0xf9] sm:$0xff] %vm327, %v4279
        %4330 = vst.msk [vmem:[%s651 + $0x109] sm:$0xff] %vm327, %v4280
        %4331 = vst.msk [vmem:[%s651 + $0x111] sm:$0xff] %vm327, %v4281
        %4332 = vst.msk [vmem:[%s651 + $0x121] sm:$0xff] %vm327, %v4282
        %4333 = vst.msk [vmem:[%s651 + $0x129] sm:$0xff] %vm327, %v4283
        %4334 = vst.msk [vmem:[%s651 + $0x139] sm:$0xff] %vm327, %v4284
        %4335 = vst.msk [vmem:[%s651 + $0x141] sm:$0xff] %vm327, %v4285
        %4336 = vst.msk [vmem:[%s651 + $0x151] sm:$0xff] %vm327, %v4286
        %4337 = vst.msk [vmem:[%s651 + $0x159] sm:$0xff] %vm327, %v4287
        %4338 = vst.msk [vmem:[%s651 + $0x169] sm:$0xff] %vm327, %v4288
        %4339 = vst.msk [vmem:[%s651 + $0x171] sm:$0xff] %vm327, %v4289
        %v4340 = vld [vmem:[#allocation2] sm:$0xff]
        %v4341 = vld [vmem:[#allocation2 + $0x8] sm:$0xff]
        %v4342 = vld [vmem:[#allocation2 + $0x10] sm:$0xff]
        %v4343 = vld [vmem:[#allocation2 + $0x18] sm:$0xff]
        %v4344 = vld [vmem:[#allocation2 + $0x20] sm:$0xff]
        %v4345 = vld [vmem:[#allocation2 + $0x28] sm:$0xff]
        %v4346 = vld [vmem:[#allocation2 + $0x30] sm:$0xff]
        %v4347 = vld [vmem:[#allocation2 + $0x38] sm:$0xff]
        %v4348 = vld [vmem:[#allocation2 + $0x40] sm:$0xff]
        %v4349 = vld [vmem:[#allocation2 + $0x48] sm:$0xff]
        %v4350 = vld [vmem:[#allocation2 + $0x50] sm:$0xff]
        %v4351 = vld [vmem:[#allocation2 + $0x58] sm:$0xff]
        %v4352 = vld [vmem:[#allocation2 + $0x60] sm:$0xff]
        %v4353 = vld [vmem:[#allocation2 + $0x68] sm:$0xff]
        %v4354 = vld [vmem:[#allocation2 + $0x70] sm:$0xff]
        %v4355 = vld [vmem:[#allocation2 + $0x78] sm:$0xff]
        %v4356 = vld [vmem:[#allocation2 + $0x80] sm:$0xff]
        %v4357 = vld [vmem:[#allocation2 + $0x88] sm:$0xff]
        %v4358 = vld [vmem:[#allocation2 + $0x90] sm:$0xff]
        %v4359 = vld [vmem:[#allocation2 + $0x98] sm:$0xff]
        %v4360 = vld [vmem:[#allocation2 + $0xa0] sm:$0xff]
        %v4361 = vld [vmem:[#allocation2 + $0xa8] sm:$0xff]
        %v4362 = vld [vmem:[#allocation2 + $0xb0] sm:$0xff]
        %v4363 = vld [vmem:[#allocation2 + $0xb8] sm:$0xff]
        %v4364 = vld [vmem:[#allocation2 + $0xc0] sm:$0xff]
        %v4365 = vld [vmem:[#allocation2 + $0xc8] sm:$0xff]
        %v4366 = vld [vmem:[#allocation2 + $0xd0] sm:$0xff]
        %v4367 = vld [vmem:[#allocation2 + $0xd8] sm:$0xff]
        %v4368 = vld [vmem:[#allocation2 + $0xe0] sm:$0xff]
        %v4369 = vld [vmem:[#allocation2 + $0xe8] sm:$0xff]
        %v4370 = vld [vmem:[#allocation2 + $0xf0] sm:$0xff]
        %v4371 = vld [vmem:[#allocation2 + $0xf8] sm:$0xff]
        %v4372 = vld [vmem:[#allocation2 + $0x100] sm:$0xff]
        %v4373 = vld [vmem:[#allocation2 + $0x108] sm:$0xff]
        %v4374 = vld [vmem:[#allocation2 + $0x110] sm:$0xff]
        %v4375 = vld [vmem:[#allocation2 + $0x118] sm:$0xff]
        %v4376 = vld [vmem:[#allocation2 + $0x120] sm:$0xff]
        %v4377 = vld [vmem:[#allocation2 + $0x128] sm:$0xff]
        %v4378 = vld [vmem:[#allocation2 + $0x130] sm:$0xff]
        %v4379 = vld [vmem:[#allocation2 + $0x138] sm:$0xff]
        %v4380 = vld [vmem:[#allocation2 + $0x140] sm:$0xff]
        %v4381 = vld [vmem:[#allocation2 + $0x148] sm:$0xff]
        %v4382 = vld [vmem:[#allocation2 + $0x150] sm:$0xff]
        %v4383 = vld [vmem:[#allocation2 + $0x158] sm:$0xff]
        %v4384 = vld [vmem:[#allocation2 + $0x160] sm:$0xff]
        %v4385 = vld [vmem:[#allocation2 + $0x168] sm:$0xff]
        %v4386 = vld [vmem:[#allocation2 + $0x170] sm:$0xff]
        %v4387 = vld [vmem:[#allocation2 + $0x178] sm:$0xff]
        %v4388 = vpack.c.bf16 %v4341, %v4340
        %v4389 = vpack.c.bf16 %v4343, %v4342
        %v4390 = vpack.c.bf16 %v4345, %v4344
        %v4391 = vpack.c.bf16 %v4347, %v4346
        %v4392 = vpack.c.bf16 %v4349, %v4348
        %v4393 = vpack.c.bf16 %v4351, %v4350
        %v4394 = vpack.c.bf16 %v4353, %v4352
        %v4395 = vpack.c.bf16 %v4355, %v4354
        %v4396 = vpack.c.bf16 %v4357, %v4356
        %v4397 = vpack.c.bf16 %v4359, %v4358
        %v4398 = vpack.c.bf16 %v4361, %v4360
        %v4399 = vpack.c.bf16 %v4363, %v4362
        %v4400 = vpack.c.bf16 %v4365, %v4364
        %v4401 = vpack.c.bf16 %v4367, %v4366
        %v4402 = vpack.c.bf16 %v4369, %v4368
        %v4403 = vpack.c.bf16 %v4371, %v4370
        %v4404 = vpack.c.bf16 %v4373, %v4372
        %v4405 = vpack.c.bf16 %v4375, %v4374
        %v4406 = vpack.c.bf16 %v4377, %v4376
        %v4407 = vpack.c.bf16 %v4379, %v4378
        %v4408 = vpack.c.bf16 %v4381, %v4380
        %v4409 = vpack.c.bf16 %v4383, %v4382
        %v4410 = vpack.c.bf16 %v4385, %v4384
        %v4411 = vpack.c.bf16 %v4387, %v4386
        %v4412 = vld [vmem:[%s651] sm:$0xff]
        %v4413 = vld [vmem:[%s651 + $0x8] sm:$0xff]
        %v4414 = vld [vmem:[%s651 + $0x10] sm:$0xff]
        %v4415 = vld [vmem:[%s651 + $0x18] sm:$0xff]
        %v4416 = vld [vmem:[%s651 + $0x20] sm:$0xff]
        %v4417 = vld [vmem:[%s651 + $0x28] sm:$0xff]
        %v4418 = vld [vmem:[%s651 + $0x30] sm:$0xff]
        %v4419 = vld [vmem:[%s651 + $0x38] sm:$0xff]
        %v4420 = vld [vmem:[%s651 + $0x40] sm:$0xff]
        %v4421 = vld [vmem:[%s651 + $0x48] sm:$0xff]
        %v4422 = vld [vmem:[%s651 + $0x50] sm:$0xff]
        %v4423 = vld [vmem:[%s651 + $0x58] sm:$0xff]
        %v4424 = vld [vmem:[%s651 + $0x60] sm:$0xff]
        %v4425 = vld [vmem:[%s651 + $0x68] sm:$0xff]
        %v4426 = vld [vmem:[%s651 + $0x70] sm:$0xff]
        %v4427 = vld [vmem:[%s651 + $0x78] sm:$0xff]
        %v4428 = vld [vmem:[%s651 + $0x80] sm:$0xff]
        %v4429 = vld [vmem:[%s651 + $0x88] sm:$0xff]
        %v4430 = vld [vmem:[%s651 + $0x90] sm:$0xff]
        %v4431 = vld [vmem:[%s651 + $0x98] sm:$0xff]
        %v4432 = vld [vmem:[%s651 + $0xa0] sm:$0xff]
        %v4433 = vld [vmem:[%s651 + $0xa8] sm:$0xff]
        %v4434 = vld [vmem:[%s651 + $0xb0] sm:$0xff]
        %v4435 = vld [vmem:[%s651 + $0xb8] sm:$0xff]
        %v4436 = vld [vmem:[%s651 + $0xc0] sm:$0xff]
        %v4437 = vld [vmem:[%s651 + $0xc8] sm:$0xff]
        %v4438 = vld [vmem:[%s651 + $0xd0] sm:$0xff]
        %v4439 = vld [vmem:[%s651 + $0xd8] sm:$0xff]
        %v4440 = vld [vmem:[%s651 + $0xe0] sm:$0xff]
        %v4441 = vld [vmem:[%s651 + $0xe8] sm:$0xff]
        %v4442 = vld [vmem:[%s651 + $0xf0] sm:$0xff]
        %v4443 = vld [vmem:[%s651 + $0xf8] sm:$0xff]
        %v4444 = vld [vmem:[%s651 + $0x100] sm:$0xff]
        %v4445 = vld [vmem:[%s651 + $0x108] sm:$0xff]
        %v4446 = vld [vmem:[%s651 + $0x110] sm:$0xff]
        %v4447 = vld [vmem:[%s651 + $0x118] sm:$0xff]
        %v4448 = vld [vmem:[%s651 + $0x120] sm:$0xff]
        %v4449 = vld [vmem:[%s651 + $0x128] sm:$0xff]
        %v4450 = vld [vmem:[%s651 + $0x130] sm:$0xff]
        %v4451 = vld [vmem:[%s651 + $0x138] sm:$0xff]
        %v4452 = vld [vmem:[%s651 + $0x140] sm:$0xff]
        %v4453 = vld [vmem:[%s651 + $0x148] sm:$0xff]
        %v4454 = vld [vmem:[%s651 + $0x150] sm:$0xff]
        %v4455 = vld [vmem:[%s651 + $0x158] sm:$0xff]
        %v4456 = vld [vmem:[%s651 + $0x160] sm:$0xff]
        %v4457 = vld [vmem:[%s651 + $0x168] sm:$0xff]
        %v4458 = vld [vmem:[%s651 + $0x170] sm:$0xff]
        %v4459 = vld [vmem:[%s651 + $0x178] sm:$0xff]
        %v4460 = vpack.c.bf16 %v4413, %v4412
        %v4461 = vpack.c.bf16 %v4415, %v4414
        %v4462 = vpack.c.bf16 %v4417, %v4416
        %v4463 = vpack.c.bf16 %v4419, %v4418
        %v4464 = vpack.c.bf16 %v4421, %v4420
        %v4465 = vpack.c.bf16 %v4423, %v4422
        %v4466 = vpack.c.bf16 %v4425, %v4424
        %v4467 = vpack.c.bf16 %v4427, %v4426
        %v4468 = vpack.c.bf16 %v4429, %v4428
        %v4469 = vpack.c.bf16 %v4431, %v4430
        %v4470 = vpack.c.bf16 %v4433, %v4432
        %v4471 = vpack.c.bf16 %v4435, %v4434
        %v4472 = vpack.c.bf16 %v4437, %v4436
        %v4473 = vpack.c.bf16 %v4439, %v4438
        %v4474 = vpack.c.bf16 %v4441, %v4440
        %v4475 = vpack.c.bf16 %v4443, %v4442
        %v4476 = vpack.c.bf16 %v4445, %v4444
        %v4477 = vpack.c.bf16 %v4447, %v4446
        %v4478 = vpack.c.bf16 %v4449, %v4448
        %v4479 = vpack.c.bf16 %v4451, %v4450
        %v4480 = vpack.c.bf16 %v4453, %v4452
        %v4481 = vpack.c.bf16 %v4455, %v4454
        %v4482 = vpack.c.bf16 %v4457, %v4456
        %v4483 = vpack.c.bf16 %v4459, %v4458
        %v4488 = vunpack.c.l.b16 %v4298
        %v4489 = vunpack.c.l.b16 %v4299
        %v4490 = vunpack.c.l.b16 %v4300
        %v4491 = vunpack.c.l.b16 %v4301
        %v4492 = vpack.c.b16 %v4489, %v4488
        %v4493 = vpack.c.b16 %v4491, %v4490
        %v4497 = vsel %vm327, %v4460, 0
        %v4500 = vsel %vm327, %v4461, 0
        %v4503 = vsel %vm327, %v4462, 0
        %v4506 = vsel %vm327, %v4463, 0
        %v4509 = vsel %vm327, %v4464, 0
        %v4512 = vsel %vm327, %v4465, 0
        %v4515 = vsel %vm327, %v4466, 0
        %v4518 = vsel %vm327, %v4467, 0
        %v4521 = vsel %vm327, %v4468, 0
        %v4524 = vsel %vm327, %v4469, 0
        %v4527 = vsel %vm327, %v4470, 0
        %v4530 = vsel %vm327, %v4471, 0
        %v4533 = vsel %vm327, %v4472, 0
        %v4536 = vsel %vm327, %v4473, 0
        %v4539 = vsel %vm327, %v4474, 0
        %v4542 = vsel %vm327, %v4475, 0
        %v4545 = vsel %vm327, %v4476, 0
        %v4548 = vsel %vm327, %v4477, 0
        %v4551 = vsel %vm327, %v4478, 0
        %v4554 = vsel %vm327, %v4479, 0
        %v4557 = vsel %vm327, %v4480, 0
        %v4560 = vsel %vm327, %v4481, 0
        %v4563 = vsel %vm327, %v4482, 0
        %v4566 = vsel %vm327, %v4483, 0
        %4568 = vmatprep.subr.bf16.mxu0 0
        %4569 = vmatpush1.bf16.msra.mxu0 %v4492
        %4570 = vmatprep.subr.bf16.mxu0 0
        %4571 = vmatpush1.bf16.msra.mxu0 %v4493
        %4572 = vmatprep.subr.bf16.mxu0 0
        %4573 = vmatpush1.bf16.msra.mxu0 0
        %4574 = vmatprep.subr.bf16.mxu0 0
        %4575 = vmatpush1.bf16.msra.mxu0 0
        %4576 = vmatprep.subr.bf16.mxu0 0
        %4577 = vmatpush1.bf16.msra.mxu0 0
        %4578 = vmatprep.subr.bf16.mxu0 0
        %4579 = vmatpush1.bf16.msra.mxu0 0
        %4580 = vmatprep.subr.bf16.mxu0 0
        %4581 = vmatpush1.bf16.msra.mxu0 0
        %4582 = vmatprep.subr.bf16.mxu0 0
        %4583 = vmatpush1.bf16.msra.mxu0 0
        %4584 = vmatprep.subr.bf16.mxu0 0
        %4585 = vmatpush1.bf16.msra.mxu0 0
        %4586 = vmatprep.subr.bf16.mxu0 0
        %4587 = vmatpush1.bf16.msra.mxu0 0
        %4588 = vmatprep.subr.bf16.mxu0 0
        %4589 = vmatpush1.bf16.msra.mxu0 0
        %4590 = vmatprep.subr.bf16.mxu0 0
        %4591 = vmatpush1.bf16.msra.mxu0 0
        %4592 = vmatprep.subr.bf16.mxu0 0
        %4593 = vmatpush1.bf16.msra.mxu0 0
        %4594 = vmatprep.subr.bf16.mxu0 0
        %4595 = vmatpush1.bf16.msra.mxu0 0
        %4596 = vmatprep.subr.bf16.mxu0 0
        %4597 = vmatpush1.bf16.msra.mxu0 0
        %4598 = vmatprep.subr.bf16.mxu0 0
        %4599 = vmatpush1.bf16.msra.mxu0 0
        %4600 = vmatprep.mubr.bf16.mxu0 0
        %4601 = vmatmul.mubr.bf16.gmra.mrb[0].mxu0 %v4497
        %v4602 = vpop.f32.mrb[0].mxu0
        %v4603 = vadd.f32 0.0, %v4602
        %v4604 = vpop.f32.mrb[0].mxu0
        %v4605 = vpop.f32.mrb[0].mxu0
        %v4606 = vadd.f32 0.0, %v4605
        %v4607 = vpop.f32.mrb[0].mxu0
        %4608 = vmatprep.mubr.bf16.mxu0 0
        %4609 = vmatmul.mubr.bf16.gmra.mrb[0].mxu0 %v4500
        %v4610 = vpop.f32.mrb[0].mxu0
        %v4611 = vadd.f32 0.0, %v4610
        %v4612 = vpop.f32.mrb[0].mxu0
        %v4613 = vpop.f32.mrb[0].mxu0
        %v4614 = vadd.f32 0.0, %v4613
        %v4615 = vpop.f32.mrb[0].mxu0
        %4616 = vmatprep.mubr.bf16.mxu0 0
        %4617 = vmatmul.mubr.bf16.gmra.mrb[0].mxu0 %v4503
        %v4618 = vpop.f32.mrb[0].mxu0
        %v4619 = vadd.f32 0.0, %v4618
        %v4620 = vpop.f32.mrb[0].mxu0
        %v4621 = vpop.f32.mrb[0].mxu0
        %v4622 = vadd.f32 0.0, %v4621
        %v4623 = vpop.f32.mrb[0].mxu0
        %4624 = vmatprep.mubr.bf16.mxu0 0
        %4625 = vmatmul.mubr.bf16.gmra.mrb[0].mxu0 %v4506
        %v4626 = vpop.f32.mrb[0].mxu0
        %v4627 = vadd.f32 0.0, %v4626
        %v4628 = vpop.f32.mrb[0].mxu0
        %v4629 = vpop.f32.mrb[0].mxu0
        %v4630 = vadd.f32 0.0, %v4629
        %v4631 = vpop.f32.mrb[0].mxu0
        %4632 = vmatprep.mubr.bf16.mxu0 0
        %4633 = vmatmul.mubr.bf16.gmra.mrb[0].mxu0 %v4509
        %v4634 = vpop.f32.mrb[0].mxu0
        %v4635 = vadd.f32 0.0, %v4634
        %v4636 = vpop.f32.mrb[0].mxu0
        %v4637 = vpop.f32.mrb[0].mxu0
        %v4638 = vadd.f32 0.0, %v4637
        %v4639 = vpop.f32.mrb[0].mxu0
        %4640 = vmatprep.mubr.bf16.mxu0 0
        %4641 = vmatmul.mubr.bf16.gmra.mrb[0].mxu0 %v4512
        %v4642 = vpop.f32.mrb[0].mxu0
        %v4643 = vadd.f32 0.0, %v4642
        %v4644 = vpop.f32.mrb[0].mxu0
        %v4645 = vpop.f32.mrb[0].mxu0
        %v4646 = vadd.f32 0.0, %v4645
        %v4647 = vpop.f32.mrb[0].mxu0
        %4648 = vmatprep.mubr.bf16.mxu0 0
        %4649 = vmatmul.mubr.bf16.gmra.mrb[0].mxu0 %v4515
        %v4650 = vpop.f32.mrb[0].mxu0
        %v4651 = vadd.f32 0.0, %v4650
        %v4652 = vpop.f32.mrb[0].mxu0
        %v4653 = vpop.f32.mrb[0].mxu0
        %v4654 = vadd.f32 0.0, %v4653
        %v4655 = vpop.f32.mrb[0].mxu0
        %4656 = vmatprep.mubr.bf16.mxu0 0
        %4657 = vmatmul.mubr.bf16.gmra.mrb[0].mxu0 %v4518
        %v4658 = vpop.f32.mrb[0].mxu0
        %v4659 = vadd.f32 0.0, %v4658
        %v4660 = vpop.f32.mrb[0].mxu0
        %v4661 = vpop.f32.mrb[0].mxu0
        %v4662 = vadd.f32 0.0, %v4661
        %v4663 = vpop.f32.mrb[0].mxu0
        %4664 = vmatprep.mubr.bf16.mxu0 0
        %4665 = vmatmul.mubr.bf16.gmra.mrb[0].mxu0 %v4521
        %v4666 = vpop.f32.mrb[0].mxu0
        %v4667 = vadd.f32 0.0, %v4666
        %v4668 = vpop.f32.mrb[0].mxu0
        %v4669 = vpop.f32.mrb[0].mxu0
        %v4670 = vadd.f32 0.0, %v4669
        %v4671 = vpop.f32.mrb[0].mxu0
        %4672 = vmatprep.mubr.bf16.mxu0 0
        %4673 = vmatmul.mubr.bf16.gmra.mrb[0].mxu0 %v4524
        %v4674 = vpop.f32.mrb[0].mxu0
        %v4675 = vadd.f32 0.0, %v4674
        %v4676 = vpop.f32.mrb[0].mxu0
        %v4677 = vpop.f32.mrb[0].mxu0
        %v4678 = vadd.f32 0.0, %v4677
        %v4679 = vpop.f32.mrb[0].mxu0
        %4680 = vmatprep.mubr.bf16.mxu0 0
        %4681 = vmatmul.mubr.bf16.gmra.mrb[0].mxu0 %v4527
        %v4682 = vpop.f32.mrb[0].mxu0
        %v4683 = vadd.f32 0.0, %v4682
        %v4684 = vpop.f32.mrb[0].mxu0
        %v4685 = vpop.f32.mrb[0].mxu0
        %v4686 = vadd.f32 0.0, %v4685
        %v4687 = vpop.f32.mrb[0].mxu0
        %4688 = vmatprep.mubr.bf16.mxu0 0
        %4689 = vmatmul.mubr.bf16.gmra.mrb[0].mxu0 %v4530
        %v4690 = vpop.f32.mrb[0].mxu0
        %v4691 = vadd.f32 0.0, %v4690
        %v4692 = vpop.f32.mrb[0].mxu0
        %v4693 = vpop.f32.mrb[0].mxu0
        %v4694 = vadd.f32 0.0, %v4693
        %v4695 = vpop.f32.mrb[0].mxu0
        %4696 = vmatprep.mubr.bf16.mxu0 0
        %4697 = vmatmul.mubr.bf16.gmra.mrb[0].mxu0 %v4533
        %v4698 = vpop.f32.mrb[0].mxu0
        %v4699 = vadd.f32 0.0, %v4698
        %v4700 = vpop.f32.mrb[0].mxu0
        %v4701 = vpop.f32.mrb[0].mxu0
        %v4702 = vadd.f32 0.0, %v4701
        %v4703 = vpop.f32.mrb[0].mxu0
        %4704 = vmatprep.mubr.bf16.mxu0 0
        %4705 = vmatmul.mubr.bf16.gmra.mrb[0].mxu0 %v4536
        %v4706 = vpop.f32.mrb[0].mxu0
        %v4707 = vadd.f32 0.0, %v4706
        %v4708 = vpop.f32.mrb[0].mxu0
        %v4709 = vpop.f32.mrb[0].mxu0
        %v4710 = vadd.f32 0.0, %v4709
        %v4711 = vpop.f32.mrb[0].mxu0
        %4712 = vmatprep.mubr.bf16.mxu0 0
        %4713 = vmatmul.mubr.bf16.gmra.mrb[0].mxu0 %v4539
        %v4714 = vpop.f32.mrb[0].mxu0
        %v4715 = vadd.f32 0.0, %v4714
        %v4716 = vpop.f32.mrb[0].mxu0
        %v4717 = vpop.f32.mrb[0].mxu0
        %v4718 = vadd.f32 0.0, %v4717
        %v4719 = vpop.f32.mrb[0].mxu0
        %4720 = vmatprep.mubr.bf16.mxu0 0
        %4721 = vmatmul.mubr.bf16.gmra.mrb[0].mxu0 %v4542
        %v4722 = vpop.f32.mrb[0].mxu0
        %v4723 = vadd.f32 0.0, %v4722
        %v4724 = vpop.f32.mrb[0].mxu0
        %v4725 = vpop.f32.mrb[0].mxu0
        %v4726 = vadd.f32 0.0, %v4725
        %v4727 = vpop.f32.mrb[0].mxu0
        %4728 = vmatprep.mubr.bf16.mxu0 0
        %4729 = vmatmul.mubr.bf16.gmra.mrb[0].mxu0 %v4545
        %v4730 = vpop.f32.mrb[0].mxu0
        %v4731 = vadd.f32 0.0, %v4730
        %v4732 = vpop.f32.mrb[0].mxu0
        %v4733 = vpop.f32.mrb[0].mxu0
        %v4734 = vadd.f32 0.0, %v4733
        %v4735 = vpop.f32.mrb[0].mxu0
        %4736 = vmatprep.mubr.bf16.mxu0 0
        %4737 = vmatmul.mubr.bf16.gmra.mrb[0].mxu0 %v4548
        %v4738 = vpop.f32.mrb[0].mxu0
        %v4739 = vadd.f32 0.0, %v4738
        %v4740 = vpop.f32.mrb[0].mxu0
        %v4741 = vpop.f32.mrb[0].mxu0
        %v4742 = vadd.f32 0.0, %v4741
        %v4743 = vpop.f32.mrb[0].mxu0
        %4744 = vmatprep.mubr.bf16.mxu0 0
        %4745 = vmatmul.mubr.bf16.gmra.mrb[0].mxu0 %v4551
        %v4746 = vpop.f32.mrb[0].mxu0
        %v4747 = vadd.f32 0.0, %v4746
        %v4748 = vpop.f32.mrb[0].mxu0
        %v4749 = vpop.f32.mrb[0].mxu0
        %v4750 = vadd.f32 0.0, %v4749
        %v4751 = vpop.f32.mrb[0].mxu0
        %4752 = vmatprep.mubr.bf16.mxu0 0
        %4753 = vmatmul.mubr.bf16.gmra.mrb[0].mxu0 %v4554
        %v4754 = vpop.f32.mrb[0].mxu0
        %v4755 = vadd.f32 0.0, %v4754
        %v4756 = vpop.f32.mrb[0].mxu0
        %v4757 = vpop.f32.mrb[0].mxu0
        %v4758 = vadd.f32 0.0, %v4757
        %v4759 = vpop.f32.mrb[0].mxu0
        %4760 = vmatprep.mubr.bf16.mxu0 0
        %4761 = vmatmul.mubr.bf16.gmra.mrb[0].mxu0 %v4557
        %v4762 = vpop.f32.mrb[0].mxu0
        %v4763 = vadd.f32 0.0, %v4762
        %v4764 = vpop.f32.mrb[0].mxu0
        %v4765 = vpop.f32.mrb[0].mxu0
        %v4766 = vadd.f32 0.0, %v4765
        %v4767 = vpop.f32.mrb[0].mxu0
        %4768 = vmatprep.mubr.bf16.mxu0 0
        %4769 = vmatmul.mubr.bf16.gmra.mrb[0].mxu0 %v4560
        %v4770 = vpop.f32.mrb[0].mxu0
        %v4771 = vadd.f32 0.0, %v4770
        %v4772 = vpop.f32.mrb[0].mxu0
        %v4773 = vpop.f32.mrb[0].mxu0
        %v4774 = vadd.f32 0.0, %v4773
        %v4775 = vpop.f32.mrb[0].mxu0
        %4776 = vmatprep.mubr.bf16.mxu0 0
        %4777 = vmatmul.mubr.bf16.gmra.mrb[0].mxu0 %v4563
        %v4778 = vpop.f32.mrb[0].mxu0
        %v4779 = vadd.f32 0.0, %v4778
        %v4780 = vpop.f32.mrb[0].mxu0
        %v4781 = vpop.f32.mrb[0].mxu0
        %v4782 = vadd.f32 0.0, %v4781
        %v4783 = vpop.f32.mrb[0].mxu0
        %4784 = vmatprep.mubr.bf16.mxu0 0
        %4785 = vmatmul.mubr.bf16.gmra.mrb[0].mxu0 %v4566
        %v4786 = vpop.f32.mrb[0].mxu0
        %v4787 = vadd.f32 0.0, %v4786
        %v4788 = vpop.f32.mrb[0].mxu0
        %v4789 = vpop.f32.mrb[0].mxu0
        %v4790 = vadd.f32 0.0, %v4789
        %v4791 = vpop.f32.mrb[0].mxu0
        %4792 = vdwg.mxu0
        %v4797 = vunpack.c.l.b16 %v4294
        %v4798 = vunpack.c.l.b16 %v4295
        %v4799 = vunpack.c.l.b16 %v4296
        %v4800 = vunpack.c.l.b16 %v4297
        %v4801 = vpack.c.b16 %v4798, %v4797
        %v4802 = vpack.c.b16 %v4800, %v4799
        %v4806 = vsel %vm327, %v4388, 0
        %v4809 = vsel %vm327, %v4389, 0
        %v4812 = vsel %vm327, %v4390, 0
        %v4815 = vsel %vm327, %v4391, 0
        %v4818 = vsel %vm327, %v4392, 0
        %v4821 = vsel %vm327, %v4393, 0
        %v4824 = vsel %vm327, %v4394, 0
        %v4827 = vsel %vm327, %v4395, 0
        %v4830 = vsel %vm327, %v4396, 0
        %v4833 = vsel %vm327, %v4397, 0
        %v4836 = vsel %vm327, %v4398, 0
        %v4839 = vsel %vm327, %v4399, 0
        %v4842 = vsel %vm327, %v4400, 0
        %v4845 = vsel %vm327, %v4401, 0
        %v4848 = vsel %vm327, %v4402, 0
        %v4851 = vsel %vm327, %v4403, 0
        %v4854 = vsel %vm327, %v4404, 0
        %v4857 = vsel %vm327, %v4405, 0
        %v4860 = vsel %vm327, %v4406, 0
        %v4863 = vsel %vm327, %v4407, 0
        %v4866 = vsel %vm327, %v4408, 0
        %v4869 = vsel %vm327, %v4409, 0
        %v4872 = vsel %vm327, %v4410, 0
        %v4875 = vsel %vm327, %v4411, 0
        %4877 = vmatprep.subr.bf16.mxu0 0
        %4878 = vmatpush1.bf16.msra.mxu0 %v4801
        %4879 = vmatprep.subr.bf16.mxu0 0
        %4880 = vmatpush1.bf16.msra.mxu0 %v4802
        %4881 = vmatprep.subr.bf16.mxu0 0
        %4882 = vmatpush1.bf16.msra.mxu0 0
        %4883 = vmatprep.subr.bf16.mxu0 0
        %4884 = vmatpush1.bf16.msra.mxu0 0
        %4885 = vmatprep.subr.bf16.mxu0 0
        %4886 = vmatpush1.bf16.msra.mxu0 0
        %4887 = vmatprep.subr.bf16.mxu0 0
        %4888 = vmatpush1.bf16.msra.mxu0 0
        %4889 = vmatprep.subr.bf16.mxu0 0
        %4890 = vmatpush1.bf16.msra.mxu0 0
        %4891 = vmatprep.subr.bf16.mxu0 0
        %4892 = vmatpush1.bf16.msra.mxu0 0
        %4893 = vmatprep.subr.bf16.mxu0 0
        %4894 = vmatpush1.bf16.msra.mxu0 0
        %4895 = vmatprep.subr.bf16.mxu0 0
        %4896 = vmatpush1.bf16.msra.mxu0 0
        %4897 = vmatprep.subr.bf16.mxu0 0
        %4898 = vmatpush1.bf16.msra.mxu0 0
        %4899 = vmatprep.subr.bf16.mxu0 0
        %4900 = vmatpush1.bf16.msra.mxu0 0
        %4901 = vmatprep.subr.bf16.mxu0 0
        %4902 = vmatpush1.bf16.msra.mxu0 0
        %4903 = vmatprep.subr.bf16.mxu0 0
        %4904 = vmatpush1.bf16.msra.mxu0 0
        %4905 = vmatprep.subr.bf16.mxu0 0
        %4906 = vmatpush1.bf16.msra.mxu0 0
        %4907 = vmatprep.subr.bf16.mxu0 0
        %4908 = vmatpush1.bf16.msra.mxu0 0
        %4909 = vmatprep.mubr.bf16.mxu0 0
        %4910 = vmatmul.mubr.bf16.gmra.mrb[0].mxu0 %v4806
        %v4911 = vpop.f32.mrb[0].mxu0
        %v4912 = vadd.f32 %v4603, %v4911
        %v4913 = vpop.f32.mrb[0].mxu0
        %v4914 = vpop.f32.mrb[0].mxu0
        %v4915 = vadd.f32 %v4606, %v4914
        %v4916 = vpop.f32.mrb[0].mxu0
        %4917 = vmatprep.mubr.bf16.mxu0 0
        %4918 = vmatmul.mubr.bf16.gmra.mrb[0].mxu0 %v4809
        %v4919 = vpop.f32.mrb[0].mxu0
        %v4920 = vadd.f32 %v4611, %v4919
        %v4921 = vpop.f32.mrb[0].mxu0
        %v4922 = vpop.f32.mrb[0].mxu0
        %v4923 = vadd.f32 %v4614, %v4922
        %v4924 = vpop.f32.mrb[0].mxu0
        %4925 = vmatprep.mubr.bf16.mxu0 0
        %4926 = vmatmul.mubr.bf16.gmra.mrb[0].mxu0 %v4812
        %v4927 = vpop.f32.mrb[0].mxu0
        %v4928 = vadd.f32 %v4619, %v4927
        %v4929 = vpop.f32.mrb[0].mxu0
        %v4930 = vpop.f32.mrb[0].mxu0
        %v4931 = vadd.f32 %v4622, %v4930
        %v4932 = vpop.f32.mrb[0].mxu0
        %4933 = vmatprep.mubr.bf16.mxu0 0
        %4934 = vmatmul.mubr.bf16.gmra.mrb[0].mxu0 %v4815
        %v4935 = vpop.f32.mrb[0].mxu0
        %v4936 = vadd.f32 %v4627, %v4935
        %v4937 = vpop.f32.mrb[0].mxu0
        %v4938 = vpop.f32.mrb[0].mxu0
        %v4939 = vadd.f32 %v4630, %v4938
        %v4940 = vpop.f32.mrb[0].mxu0
        %4941 = vmatprep.mubr.bf16.mxu0 0
        %4942 = vmatmul.mubr.bf16.gmra.mrb[0].mxu0 %v4818
        %v4943 = vpop.f32.mrb[0].mxu0
        %v4944 = vadd.f32 %v4635, %v4943
        %v4945 = vpop.f32.mrb[0].mxu0
        %v4946 = vpop.f32.mrb[0].mxu0
        %v4947 = vadd.f32 %v4638, %v4946
        %v4948 = vpop.f32.mrb[0].mxu0
        %4949 = vmatprep.mubr.bf16.mxu0 0
        %4950 = vmatmul.mubr.bf16.gmra.mrb[0].mxu0 %v4821
        %v4951 = vpop.f32.mrb[0].mxu0
        %v4952 = vadd.f32 %v4643, %v4951
        %v4953 = vpop.f32.mrb[0].mxu0
        %v4954 = vpop.f32.mrb[0].mxu0
        %v4955 = vadd.f32 %v4646, %v4954
        %v4956 = vpop.f32.mrb[0].mxu0
        %4957 = vmatprep.mubr.bf16.mxu0 0
        %4958 = vmatmul.mubr.bf16.gmra.mrb[0].mxu0 %v4824
        %v4959 = vpop.f32.mrb[0].mxu0
        %v4960 = vadd.f32 %v4651, %v4959
        %v4961 = vpop.f32.mrb[0].mxu0
        %v4962 = vpop.f32.mrb[0].mxu0
        %v4963 = vadd.f32 %v4654, %v4962
        %v4964 = vpop.f32.mrb[0].mxu0
        %4965 = vmatprep.mubr.bf16.mxu0 0
        %4966 = vmatmul.mubr.bf16.gmra.mrb[0].mxu0 %v4827
        %v4967 = vpop.f32.mrb[0].mxu0
        %v4968 = vadd.f32 %v4659, %v4967
        %v4969 = vpop.f32.mrb[0].mxu0
        %v4970 = vpop.f32.mrb[0].mxu0
        %v4971 = vadd.f32 %v4662, %v4970
        %v4972 = vpop.f32.mrb[0].mxu0
        %4973 = vmatprep.mubr.bf16.mxu0 0
        %4974 = vmatmul.mubr.bf16.gmra.mrb[0].mxu0 %v4830
        %v4975 = vpop.f32.mrb[0].mxu0
        %v4976 = vadd.f32 %v4667, %v4975
        %v4977 = vpop.f32.mrb[0].mxu0
        %v4978 = vpop.f32.mrb[0].mxu0
        %v4979 = vadd.f32 %v4670, %v4978
        %v4980 = vpop.f32.mrb[0].mxu0
        %4981 = vmatprep.mubr.bf16.mxu0 0
        %4982 = vmatmul.mubr.bf16.gmra.mrb[0].mxu0 %v4833
        %v4983 = vpop.f32.mrb[0].mxu0
        %v4984 = vadd.f32 %v4675, %v4983
        %v4985 = vpop.f32.mrb[0].mxu0
        %v4986 = vpop.f32.mrb[0].mxu0
        %v4987 = vadd.f32 %v4678, %v4986
        %v4988 = vpop.f32.mrb[0].mxu0
        %4989 = vmatprep.mubr.bf16.mxu0 0
        %4990 = vmatmul.mubr.bf16.gmra.mrb[0].mxu0 %v4836
        %v4991 = vpop.f32.mrb[0].mxu0
        %v4992 = vadd.f32 %v4683, %v4991
        %v4993 = vpop.f32.mrb[0].mxu0
        %v4994 = vpop.f32.mrb[0].mxu0
        %v4995 = vadd.f32 %v4686, %v4994
        %v4996 = vpop.f32.mrb[0].mxu0
        %4997 = vmatprep.mubr.bf16.mxu0 0
        %4998 = vmatmul.mubr.bf16.gmra.mrb[0].mxu0 %v4839
        %v4999 = vpop.f32.mrb[0].mxu0
        %v5000 = vadd.f32 %v4691, %v4999
        %v5001 = vpop.f32.mrb[0].mxu0
        %v5002 = vpop.f32.mrb[0].mxu0
        %v5003 = vadd.f32 %v4694, %v5002
        %v5004 = vpop.f32.mrb[0].mxu0
        %5005 = vmatprep.mubr.bf16.mxu0 0
        %5006 = vmatmul.mubr.bf16.gmra.mrb[0].mxu0 %v4842
        %v5007 = vpop.f32.mrb[0].mxu0
        %v5008 = vadd.f32 %v4699, %v5007
        %v5009 = vpop.f32.mrb[0].mxu0
        %v5010 = vpop.f32.mrb[0].mxu0
        %v5011 = vadd.f32 %v4702, %v5010
        %v5012 = vpop.f32.mrb[0].mxu0
        %5013 = vmatprep.mubr.bf16.mxu0 0
        %5014 = vmatmul.mubr.bf16.gmra.mrb[0].mxu0 %v4845
        %v5015 = vpop.f32.mrb[0].mxu0
        %v5016 = vadd.f32 %v4707, %v5015
        %v5017 = vpop.f32.mrb[0].mxu0
        %v5018 = vpop.f32.mrb[0].mxu0
        %v5019 = vadd.f32 %v4710, %v5018
        %v5020 = vpop.f32.mrb[0].mxu0
        %5021 = vmatprep.mubr.bf16.mxu0 0
        %5022 = vmatmul.mubr.bf16.gmra.mrb[0].mxu0 %v4848
        %v5023 = vpop.f32.mrb[0].mxu0
        %v5024 = vadd.f32 %v4715, %v5023
        %v5025 = vpop.f32.mrb[0].mxu0
        %v5026 = vpop.f32.mrb[0].mxu0
        %v5027 = vadd.f32 %v4718, %v5026
        %v5028 = vpop.f32.mrb[0].mxu0
        %5029 = vmatprep.mubr.bf16.mxu0 0
        %5030 = vmatmul.mubr.bf16.gmra.mrb[0].mxu0 %v4851
        %v5031 = vpop.f32.mrb[0].mxu0
        %v5032 = vadd.f32 %v4723, %v5031
        %v5033 = vpop.f32.mrb[0].mxu0
        %v5034 = vpop.f32.mrb[0].mxu0
        %v5035 = vadd.f32 %v4726, %v5034
        %v5036 = vpop.f32.mrb[0].mxu0
        %5037 = vmatprep.mubr.bf16.mxu0 0
        %5038 = vmatmul.mubr.bf16.gmra.mrb[0].mxu0 %v4854
        %v5039 = vpop.f32.mrb[0].mxu0
        %v5040 = vadd.f32 %v4731, %v5039
        %v5041 = vpop.f32.mrb[0].mxu0
        %v5042 = vpop.f32.mrb[0].mxu0
        %v5043 = vadd.f32 %v4734, %v5042
        %v5044 = vpop.f32.mrb[0].mxu0
        %5045 = vmatprep.mubr.bf16.mxu0 0
        %5046 = vmatmul.mubr.bf16.gmra.mrb[0].mxu0 %v4857
        %v5047 = vpop.f32.mrb[0].mxu0
        %v5048 = vadd.f32 %v4739, %v5047
        %v5049 = vpop.f32.mrb[0].mxu0
        %v5050 = vpop.f32.mrb[0].mxu0
        %v5051 = vadd.f32 %v4742, %v5050
        %v5052 = vpop.f32.mrb[0].mxu0
        %5053 = vmatprep.mubr.bf16.mxu0 0
        %5054 = vmatmul.mubr.bf16.gmra.mrb[0].mxu0 %v4860
        %v5055 = vpop.f32.mrb[0].mxu0
        %v5056 = vadd.f32 %v4747, %v5055
        %v5057 = vpop.f32.mrb[0].mxu0
        %v5058 = vpop.f32.mrb[0].mxu0
        %v5059 = vadd.f32 %v4750, %v5058
        %v5060 = vpop.f32.mrb[0].mxu0
        %5061 = vmatprep.mubr.bf16.mxu0 0
        %5062 = vmatmul.mubr.bf16.gmra.mrb[0].mxu0 %v4863
        %v5063 = vpop.f32.mrb[0].mxu0
        %v5064 = vadd.f32 %v4755, %v5063
        %v5065 = vpop.f32.mrb[0].mxu0
        %v5066 = vpop.f32.mrb[0].mxu0
        %v5067 = vadd.f32 %v4758, %v5066
        %v5068 = vpop.f32.mrb[0].mxu0
        %5069 = vmatprep.mubr.bf16.mxu0 0
        %5070 = vmatmul.mubr.bf16.gmra.mrb[0].mxu0 %v4866
        %v5071 = vpop.f32.mrb[0].mxu0
        %v5072 = vadd.f32 %v4763, %v5071
        %v5073 = vpop.f32.mrb[0].mxu0
        %v5074 = vpop.f32.mrb[0].mxu0
        %v5075 = vadd.f32 %v4766, %v5074
        %v5076 = vpop.f32.mrb[0].mxu0
        %5077 = vmatprep.mubr.bf16.mxu0 0
        %5078 = vmatmul.mubr.bf16.gmra.mrb[0].mxu0 %v4869
        %v5079 = vpop.f32.mrb[0].mxu0
        %v5080 = vadd.f32 %v4771, %v5079
        %v5081 = vpop.f32.mrb[0].mxu0
        %v5082 = vpop.f32.mrb[0].mxu0
        %v5083 = vadd.f32 %v4774, %v5082
        %v5084 = vpop.f32.mrb[0].mxu0
        %5085 = vmatprep.mubr.bf16.mxu0 0
        %5086 = vmatmul.mubr.bf16.gmra.mrb[0].mxu0 %v4872
        %v5087 = vpop.f32.mrb[0].mxu0
        %v5088 = vadd.f32 %v4779, %v5087
        %v5089 = vpop.f32.mrb[0].mxu0
        %v5090 = vpop.f32.mrb[0].mxu0
        %v5091 = vadd.f32 %v4782, %v5090
        %v5092 = vpop.f32.mrb[0].mxu0
        %5093 = vmatprep.mubr.bf16.mxu0 0
        %5094 = vmatmul.mubr.bf16.gmra.mrb[0].mxu0 %v4875
        %v5095 = vpop.f32.mrb[0].mxu0
        %v5096 = vadd.f32 %v4787, %v5095
        %v5097 = vpop.f32.mrb[0].mxu0
        %v5098 = vpop.f32.mrb[0].mxu0
        %v5099 = vadd.f32 %v4790, %v5098
        %v5100 = vpop.f32.mrb[0].mxu0
        %5101 = vdwg.mxu0
        %v5102 = vld [vmem:[%s1447] sm:$0xff]
        %v5103 = vld [vmem:[%s1447 + $0x8] sm:$0xff]
        %v5104 = vld [vmem:[%s1447 + $0x10] sm:$0xff]
        %v5105 = vld [vmem:[%s1447 + $0x18] sm:$0xff]
        %v5106 = vld [vmem:[%s1447 + $0x20] sm:$0xff]
        %v5107 = vld [vmem:[%s1447 + $0x28] sm:$0xff]
        %v5108 = vld [vmem:[%s1447 + $0x30] sm:$0xff]
        %v5109 = vld [vmem:[%s1447 + $0x38] sm:$0xff]
        %v5110 = vld [vmem:[%s1447 + $0x40] sm:$0xff]
        %v5111 = vld [vmem:[%s1447 + $0x48] sm:$0xff]
        %v5112 = vld [vmem:[%s1447 + $0x50] sm:$0xff]
        %v5113 = vld [vmem:[%s1447 + $0x58] sm:$0xff]
        %v5114 = vld [vmem:[%s1447 + $0x60] sm:$0xff]
        %v5115 = vld [vmem:[%s1447 + $0x68] sm:$0xff]
        %v5116 = vld [vmem:[%s1447 + $0x70] sm:$0xff]
        %v5117 = vld [vmem:[%s1447 + $0x78] sm:$0xff]
        %v5118 = vld [vmem:[%s1447 + $0x80] sm:$0xff]
        %v5119 = vld [vmem:[%s1447 + $0x88] sm:$0xff]
        %v5120 = vld [vmem:[%s1447 + $0x90] sm:$0xff]
        %v5121 = vld [vmem:[%s1447 + $0x98] sm:$0xff]
        %v5122 = vld [vmem:[%s1447 + $0xa0] sm:$0xff]
        %v5123 = vld [vmem:[%s1447 + $0xa8] sm:$0xff]
        %v5124 = vld [vmem:[%s1447 + $0xb0] sm:$0xff]
        %v5125 = vld [vmem:[%s1447 + $0xb8] sm:$0xff]
        %v5126 = vld [vmem:[%s1447 + $0xc0] sm:$0xff]
        %v5127 = vld [vmem:[%s1447 + $0xc8] sm:$0xff]
        %v5128 = vld [vmem:[%s1447 + $0xd0] sm:$0xff]
        %v5129 = vld [vmem:[%s1447 + $0xd8] sm:$0xff]
        %v5130 = vld [vmem:[%s1447 + $0xe0] sm:$0xff]
        %v5131 = vld [vmem:[%s1447 + $0xe8] sm:$0xff]
        %v5132 = vld [vmem:[%s1447 + $0xf0] sm:$0xff]
        %v5133 = vld [vmem:[%s1447 + $0xf8] sm:$0xff]
        %v5134 = vld [vmem:[%s1447 + $0x100] sm:$0xff]
        %v5135 = vld [vmem:[%s1447 + $0x108] sm:$0xff]
        %v5136 = vld [vmem:[%s1447 + $0x110] sm:$0xff]
        %v5137 = vld [vmem:[%s1447 + $0x118] sm:$0xff]
        %v5138 = vld [vmem:[%s1447 + $0x120] sm:$0xff]
        %v5139 = vld [vmem:[%s1447 + $0x128] sm:$0xff]
        %v5140 = vld [vmem:[%s1447 + $0x130] sm:$0xff]
        %v5141 = vld [vmem:[%s1447 + $0x138] sm:$0xff]
        %v5142 = vld [vmem:[%s1447 + $0x140] sm:$0xff]
        %v5143 = vld [vmem:[%s1447 + $0x148] sm:$0xff]
        %v5144 = vld [vmem:[%s1447 + $0x150] sm:$0xff]
        %v5145 = vld [vmem:[%s1447 + $0x158] sm:$0xff]
        %v5146 = vld [vmem:[%s1447 + $0x160] sm:$0xff]
        %v5147 = vld [vmem:[%s1447 + $0x168] sm:$0xff]
        %v5148 = vld [vmem:[%s1447 + $0x170] sm:$0xff]
        %v5149 = vld [vmem:[%s1447 + $0x178] sm:$0xff]
        %v5150 = vpack.c.bf16 %v5103, %v5102
        %v5151 = vpack.c.bf16 %v5105, %v5104
        %v5152 = vpack.c.bf16 %v5107, %v5106
        %v5153 = vpack.c.bf16 %v5109, %v5108
        %v5154 = vpack.c.bf16 %v5111, %v5110
        %v5155 = vpack.c.bf16 %v5113, %v5112
        %v5156 = vpack.c.bf16 %v5115, %v5114
        %v5157 = vpack.c.bf16 %v5117, %v5116
        %v5158 = vpack.c.bf16 %v5119, %v5118
        %v5159 = vpack.c.bf16 %v5121, %v5120
        %v5160 = vpack.c.bf16 %v5123, %v5122
        %v5161 = vpack.c.bf16 %v5125, %v5124
        %v5162 = vpack.c.bf16 %v5127, %v5126
        %v5163 = vpack.c.bf16 %v5129, %v5128
        %v5164 = vpack.c.bf16 %v5131, %v5130
        %v5165 = vpack.c.bf16 %v5133, %v5132
        %v5166 = vpack.c.bf16 %v5135, %v5134
        %v5167 = vpack.c.bf16 %v5137, %v5136
        %v5168 = vpack.c.bf16 %v5139, %v5138
        %v5169 = vpack.c.bf16 %v5141, %v5140
        %v5170 = vpack.c.bf16 %v5143, %v5142
        %v5171 = vpack.c.bf16 %v5145, %v5144
        %v5172 = vpack.c.bf16 %v5147, %v5146
        %v5173 = vpack.c.bf16 %v5149, %v5148
        %v5178 = vunpack.c.l.b16 %v4302
        %v5179 = vunpack.c.l.b16 %v4303
        %v5180 = vunpack.c.l.b16 %v4304
        %v5181 = vunpack.c.l.b16 %v4305
        %v5182 = vpack.c.b16 %v5179, %v5178
        %v5183 = vpack.c.b16 %v5181, %v5180
        %v5187 = vsel %vm327, %v5150, 0
        %v5190 = vsel %vm327, %v5151, 0
        %v5193 = vsel %vm327, %v5152, 0
        %v5196 = vsel %vm327, %v5153, 0
        %v5199 = vsel %vm327, %v5154, 0
        %v5202 = vsel %vm327, %v5155, 0
        %v5205 = vsel %vm327, %v5156, 0
        %v5208 = vsel %vm327, %v5157, 0
        %v5211 = vsel %vm327, %v5158, 0
        %v5214 = vsel %vm327, %v5159, 0
        %v5217 = vsel %vm327, %v5160, 0
        %v5220 = vsel %vm327, %v5161, 0
        %v5223 = vsel %vm327, %v5162, 0
        %v5226 = vsel %vm327, %v5163, 0
        %v5229 = vsel %vm327, %v5164, 0
        %v5232 = vsel %vm327, %v5165, 0
        %v5235 = vsel %vm327, %v5166, 0
        %v5238 = vsel %vm327, %v5167, 0
        %v5241 = vsel %vm327, %v5168, 0
        %v5244 = vsel %vm327, %v5169, 0
        %v5247 = vsel %vm327, %v5170, 0
        %v5250 = vsel %vm327, %v5171, 0
        %v5253 = vsel %vm327, %v5172, 0
        %v5256 = vsel %vm327, %v5173, 0
        %5258 = vmatprep.subr.bf16.mxu0 0
        %5259 = vmatpush1.bf16.msra.mxu0 %v5182
        %5260 = vmatprep.subr.bf16.mxu0 0
        %5261 = vmatpush1.bf16.msra.mxu0 %v5183
        %5262 = vmatprep.subr.bf16.mxu0 0
        %5263 = vmatpush1.bf16.msra.mxu0 0
        %5264 = vmatprep.subr.bf16.mxu0 0
        %5265 = vmatpush1.bf16.msra.mxu0 0
        %5266 = vmatprep.subr.bf16.mxu0 0
        %5267 = vmatpush1.bf16.msra.mxu0 0
        %5268 = vmatprep.subr.bf16.mxu0 0
        %5269 = vmatpush1.bf16.msra.mxu0 0
        %5270 = vmatprep.subr.bf16.mxu0 0
        %5271 = vmatpush1.bf16.msra.mxu0 0
        %5272 = vmatprep.subr.bf16.mxu0 0
        %5273 = vmatpush1.bf16.msra.mxu0 0
        %5274 = vmatprep.subr.bf16.mxu0 0
        %5275 = vmatpush1.bf16.msra.mxu0 0
        %5276 = vmatprep.subr.bf16.mxu0 0
        %5277 = vmatpush1.bf16.msra.mxu0 0
        %5278 = vmatprep.subr.bf16.mxu0 0
        %5279 = vmatpush1.bf16.msra.mxu0 0
        %5280 = vmatprep.subr.bf16.mxu0 0
        %5281 = vmatpush1.bf16.msra.mxu0 0
        %5282 = vmatprep.subr.bf16.mxu0 0
        %5283 = vmatpush1.bf16.msra.mxu0 0
        %5284 = vmatprep.subr.bf16.mxu0 0
        %5285 = vmatpush1.bf16.msra.mxu0 0
        %5286 = vmatprep.subr.bf16.mxu0 0
        %5287 = vmatpush1.bf16.msra.mxu0 0
        %5288 = vmatprep.subr.bf16.mxu0 0
        %5289 = vmatpush1.bf16.msra.mxu0 0
        %5290 = vmatprep.mubr.bf16.mxu0 0
        %5291 = vmatmul.mubr.bf16.gmra.mrb[0].mxu0 %v5187
        %v5292 = vpop.f32.mrb[0].mxu0
        %v5293 = vadd.f32 0.0, %v5292
        %v5294 = vpop.f32.mrb[0].mxu0
        %v5295 = vpop.f32.mrb[0].mxu0
        %v5296 = vadd.f32 0.0, %v5295
        %v5297 = vpop.f32.mrb[0].mxu0
        %5298 = vmatprep.mubr.bf16.mxu0 0
        %5299 = vmatmul.mubr.bf16.gmra.mrb[0].mxu0 %v5190
        %v5300 = vpop.f32.mrb[0].mxu0
        %v5301 = vadd.f32 0.0, %v5300
        %v5302 = vpop.f32.mrb[0].mxu0
        %v5303 = vpop.f32.mrb[0].mxu0
        %v5304 = vadd.f32 0.0, %v5303
        %v5305 = vpop.f32.mrb[0].mxu0
        %5306 = vmatprep.mubr.bf16.mxu0 0
        %5307 = vmatmul.mubr.bf16.gmra.mrb[0].mxu0 %v5193
        %v5308 = vpop.f32.mrb[0].mxu0
        %v5309 = vadd.f32 0.0, %v5308
        %v5310 = vpop.f32.mrb[0].mxu0
        %v5311 = vpop.f32.mrb[0].mxu0
        %v5312 = vadd.f32 0.0, %v5311
        %v5313 = vpop.f32.mrb[0].mxu0
        %5314 = vmatprep.mubr.bf16.mxu0 0
        %5315 = vmatmul.mubr.bf16.gmra.mrb[0].mxu0 %v5196
        %v5316 = vpop.f32.mrb[0].mxu0
        %v5317 = vadd.f32 0.0, %v5316
        %v5318 = vpop.f32.mrb[0].mxu0
        %v5319 = vpop.f32.mrb[0].mxu0
        %v5320 = vadd.f32 0.0, %v5319
        %v5321 = vpop.f32.mrb[0].mxu0
        %5322 = vmatprep.mubr.bf16.mxu0 0
        %5323 = vmatmul.mubr.bf16.gmra.mrb[0].mxu0 %v5199
        %v5324 = vpop.f32.mrb[0].mxu0
        %v5325 = vadd.f32 0.0, %v5324
        %v5326 = vpop.f32.mrb[0].mxu0
        %v5327 = vpop.f32.mrb[0].mxu0
        %v5328 = vadd.f32 0.0, %v5327
        %v5329 = vpop.f32.mrb[0].mxu0
        %5330 = vmatprep.mubr.bf16.mxu0 0
        %5331 = vmatmul.mubr.bf16.gmra.mrb[0].mxu0 %v5202
        %v5332 = vpop.f32.mrb[0].mxu0
        %v5333 = vadd.f32 0.0, %v5332
        %v5334 = vpop.f32.mrb[0].mxu0
        %v5335 = vpop.f32.mrb[0].mxu0
        %v5336 = vadd.f32 0.0, %v5335
        %v5337 = vpop.f32.mrb[0].mxu0
        %5338 = vmatprep.mubr.bf16.mxu0 0
        %5339 = vmatmul.mubr.bf16.gmra.mrb[0].mxu0 %v5205
        %v5340 = vpop.f32.mrb[0].mxu0
        %v5341 = vadd.f32 0.0, %v5340
        %v5342 = vpop.f32.mrb[0].mxu0
        %v5343 = vpop.f32.mrb[0].mxu0
        %v5344 = vadd.f32 0.0, %v5343
        %v5345 = vpop.f32.mrb[0].mxu0
        %5346 = vmatprep.mubr.bf16.mxu0 0
        %5347 = vmatmul.mubr.bf16.gmra.mrb[0].mxu0 %v5208
        %v5348 = vpop.f32.mrb[0].mxu0
        %v5349 = vadd.f32 0.0, %v5348
        %v5350 = vpop.f32.mrb[0].mxu0
        %v5351 = vpop.f32.mrb[0].mxu0
        %v5352 = vadd.f32 0.0, %v5351
        %v5353 = vpop.f32.mrb[0].mxu0
        %5354 = vmatprep.mubr.bf16.mxu0 0
        %5355 = vmatmul.mubr.bf16.gmra.mrb[0].mxu0 %v5211
        %v5356 = vpop.f32.mrb[0].mxu0
        %v5357 = vadd.f32 0.0, %v5356
        %v5358 = vpop.f32.mrb[0].mxu0
        %v5359 = vpop.f32.mrb[0].mxu0
        %v5360 = vadd.f32 0.0, %v5359
        %v5361 = vpop.f32.mrb[0].mxu0
        %5362 = vmatprep.mubr.bf16.mxu0 0
        %5363 = vmatmul.mubr.bf16.gmra.mrb[0].mxu0 %v5214
        %v5364 = vpop.f32.mrb[0].mxu0
        %v5365 = vadd.f32 0.0, %v5364
        %v5366 = vpop.f32.mrb[0].mxu0
        %v5367 = vpop.f32.mrb[0].mxu0
        %v5368 = vadd.f32 0.0, %v5367
        %v5369 = vpop.f32.mrb[0].mxu0
        %5370 = vmatprep.mubr.bf16.mxu0 0
        %5371 = vmatmul.mubr.bf16.gmra.mrb[0].mxu0 %v5217
        %v5372 = vpop.f32.mrb[0].mxu0
        %v5373 = vadd.f32 0.0, %v5372
        %v5374 = vpop.f32.mrb[0].mxu0
        %v5375 = vpop.f32.mrb[0].mxu0
        %v5376 = vadd.f32 0.0, %v5375
        %v5377 = vpop.f32.mrb[0].mxu0
        %5378 = vmatprep.mubr.bf16.mxu0 0
        %5379 = vmatmul.mubr.bf16.gmra.mrb[0].mxu0 %v5220
        %v5380 = vpop.f32.mrb[0].mxu0
        %v5381 = vadd.f32 0.0, %v5380
        %v5382 = vpop.f32.mrb[0].mxu0
        %v5383 = vpop.f32.mrb[0].mxu0
        %v5384 = vadd.f32 0.0, %v5383
        %v5385 = vpop.f32.mrb[0].mxu0
        %5386 = vmatprep.mubr.bf16.mxu0 0
        %5387 = vmatmul.mubr.bf16.gmra.mrb[0].mxu0 %v5223
        %v5388 = vpop.f32.mrb[0].mxu0
        %v5389 = vadd.f32 0.0, %v5388
        %v5390 = vpop.f32.mrb[0].mxu0
        %v5391 = vpop.f32.mrb[0].mxu0
        %v5392 = vadd.f32 0.0, %v5391
        %v5393 = vpop.f32.mrb[0].mxu0
        %5394 = vmatprep.mubr.bf16.mxu0 0
        %5395 = vmatmul.mubr.bf16.gmra.mrb[0].mxu0 %v5226
        %v5396 = vpop.f32.mrb[0].mxu0
        %v5397 = vadd.f32 0.0, %v5396
        %v5398 = vpop.f32.mrb[0].mxu0
        %v5399 = vpop.f32.mrb[0].mxu0
        %v5400 = vadd.f32 0.0, %v5399
        %v5401 = vpop.f32.mrb[0].mxu0
        %5402 = vmatprep.mubr.bf16.mxu0 0
        %5403 = vmatmul.mubr.bf16.gmra.mrb[0].mxu0 %v5229
        %v5404 = vpop.f32.mrb[0].mxu0
        %v5405 = vadd.f32 0.0, %v5404
        %v5406 = vpop.f32.mrb[0].mxu0
        %v5407 = vpop.f32.mrb[0].mxu0
        %v5408 = vadd.f32 0.0, %v5407
        %v5409 = vpop.f32.mrb[0].mxu0
        %5410 = vmatprep.mubr.bf16.mxu0 0
        %5411 = vmatmul.mubr.bf16.gmra.mrb[0].mxu0 %v5232
        %v5412 = vpop.f32.mrb[0].mxu0
        %v5413 = vadd.f32 0.0, %v5412
        %v5414 = vpop.f32.mrb[0].mxu0
        %v5415 = vpop.f32.mrb[0].mxu0
        %v5416 = vadd.f32 0.0, %v5415
        %v5417 = vpop.f32.mrb[0].mxu0
        %5418 = vmatprep.mubr.bf16.mxu0 0
        %5419 = vmatmul.mubr.bf16.gmra.mrb[0].mxu0 %v5235
        %v5420 = vpop.f32.mrb[0].mxu0
        %v5421 = vadd.f32 0.0, %v5420
        %v5422 = vpop.f32.mrb[0].mxu0
        %v5423 = vpop.f32.mrb[0].mxu0
        %v5424 = vadd.f32 0.0, %v5423
        %v5425 = vpop.f32.mrb[0].mxu0
        %5426 = vmatprep.mubr.bf16.mxu0 0
        %5427 = vmatmul.mubr.bf16.gmra.mrb[0].mxu0 %v5238
        %v5428 = vpop.f32.mrb[0].mxu0
        %v5429 = vadd.f32 0.0, %v5428
        %v5430 = vpop.f32.mrb[0].mxu0
        %v5431 = vpop.f32.mrb[0].mxu0
        %v5432 = vadd.f32 0.0, %v5431
        %v5433 = vpop.f32.mrb[0].mxu0
        %5434 = vmatprep.mubr.bf16.mxu0 0
        %5435 = vmatmul.mubr.bf16.gmra.mrb[0].mxu0 %v5241
        %v5436 = vpop.f32.mrb[0].mxu0
        %v5437 = vadd.f32 0.0, %v5436
        %v5438 = vpop.f32.mrb[0].mxu0
        %v5439 = vpop.f32.mrb[0].mxu0
        %v5440 = vadd.f32 0.0, %v5439
        %v5441 = vpop.f32.mrb[0].mxu0
        %5442 = vmatprep.mubr.bf16.mxu0 0
        %5443 = vmatmul.mubr.bf16.gmra.mrb[0].mxu0 %v5244
        %v5444 = vpop.f32.mrb[0].mxu0
        %v5445 = vadd.f32 0.0, %v5444
        %v5446 = vpop.f32.mrb[0].mxu0
        %v5447 = vpop.f32.mrb[0].mxu0
        %v5448 = vadd.f32 0.0, %v5447
        %v5449 = vpop.f32.mrb[0].mxu0
        %5450 = vmatprep.mubr.bf16.mxu0 0
        %5451 = vmatmul.mubr.bf16.gmra.mrb[0].mxu0 %v5247
        %v5452 = vpop.f32.mrb[0].mxu0
        %v5453 = vadd.f32 0.0, %v5452
        %v5454 = vpop.f32.mrb[0].mxu0
        %v5455 = vpop.f32.mrb[0].mxu0
        %v5456 = vadd.f32 0.0, %v5455
        %v5457 = vpop.f32.mrb[0].mxu0
        %5458 = vmatprep.mubr.bf16.mxu0 0
        %5459 = vmatmul.mubr.bf16.gmra.mrb[0].mxu0 %v5250
        %v5460 = vpop.f32.mrb[0].mxu0
        %v5461 = vadd.f32 0.0, %v5460
        %v5462 = vpop.f32.mrb[0].mxu0
        %v5463 = vpop.f32.mrb[0].mxu0
        %v5464 = vadd.f32 0.0, %v5463
        %v5465 = vpop.f32.mrb[0].mxu0
        %5466 = vmatprep.mubr.bf16.mxu0 0
        %5467 = vmatmul.mubr.bf16.gmra.mrb[0].mxu0 %v5253
        %v5468 = vpop.f32.mrb[0].mxu0
        %v5469 = vadd.f32 0.0, %v5468
        %v5470 = vpop.f32.mrb[0].mxu0
        %v5471 = vpop.f32.mrb[0].mxu0
        %v5472 = vadd.f32 0.0, %v5471
        %v5473 = vpop.f32.mrb[0].mxu0
        %5474 = vmatprep.mubr.bf16.mxu0 0
        %5475 = vmatmul.mubr.bf16.gmra.mrb[0].mxu0 %v5256
        %v5476 = vpop.f32.mrb[0].mxu0
        %v5477 = vadd.f32 0.0, %v5476
        %v5478 = vpop.f32.mrb[0].mxu0
        %v5479 = vpop.f32.mrb[0].mxu0
        %v5480 = vadd.f32 0.0, %v5479
        %v5481 = vpop.f32.mrb[0].mxu0
        %5482 = vdwg.mxu0
        %v5483 = vadd.f32 %v4912, %v5293
        %v5484 = vadd.f32 %v4915, %v5296
        %v5485 = vadd.f32 %v4920, %v5301
        %v5486 = vadd.f32 %v4923, %v5304
        %v5487 = vadd.f32 %v4928, %v5309
        %v5488 = vadd.f32 %v4931, %v5312
        %v5489 = vadd.f32 %v4936, %v5317
        %v5490 = vadd.f32 %v4939, %v5320
        %v5491 = vadd.f32 %v4944, %v5325
        %v5492 = vadd.f32 %v4947, %v5328
        %v5493 = vadd.f32 %v4952, %v5333
        %v5494 = vadd.f32 %v4955, %v5336
        %v5495 = vadd.f32 %v4960, %v5341
        %v5496 = vadd.f32 %v4963, %v5344
        %v5497 = vadd.f32 %v4968, %v5349
        %v5498 = vadd.f32 %v4971, %v5352
        %v5499 = vadd.f32 %v4976, %v5357
        %v5500 = vadd.f32 %v4979, %v5360
        %v5501 = vadd.f32 %v4984, %v5365
        %v5502 = vadd.f32 %v4987, %v5368
        %v5503 = vadd.f32 %v4992, %v5373
        %v5504 = vadd.f32 %v4995, %v5376
        %v5505 = vadd.f32 %v5000, %v5381
        %v5506 = vadd.f32 %v5003, %v5384
        %v5507 = vadd.f32 %v5008, %v5389
        %v5508 = vadd.f32 %v5011, %v5392
        %v5509 = vadd.f32 %v5016, %v5397
        %v5510 = vadd.f32 %v5019, %v5400
        %v5511 = vadd.f32 %v5024, %v5405
        %v5512 = vadd.f32 %v5027, %v5408
        %v5513 = vadd.f32 %v5032, %v5413
        %v5514 = vadd.f32 %v5035, %v5416
        %v5515 = vadd.f32 %v5040, %v5421
        %v5516 = vadd.f32 %v5043, %v5424
        %v5517 = vadd.f32 %v5048, %v5429
        %v5518 = vadd.f32 %v5051, %v5432
        %v5519 = vadd.f32 %v5056, %v5437
        %v5520 = vadd.f32 %v5059, %v5440
        %v5521 = vadd.f32 %v5064, %v5445
        %v5522 = vadd.f32 %v5067, %v5448
        %v5523 = vadd.f32 %v5072, %v5453
        %v5524 = vadd.f32 %v5075, %v5456
        %v5525 = vadd.f32 %v5080, %v5461
        %v5526 = vadd.f32 %v5083, %v5464
        %v5527 = vadd.f32 %v5088, %v5469
        %v5528 = vadd.f32 %v5091, %v5472
        %v5529 = vadd.f32 %v5096, %v5477
        %v5530 = vadd.f32 %v5099, %v5480
        %v5579 = vrot.slane %v5483, 1
        %v5580 = vrot.slane %v5484, 1
        %v5581 = vsel %vm1925, %v5579, %v5580
        %v5582 = vrot.slane %v5485, 1
        %v5583 = vsel %vm1925, %v5580, %v5582
        %v5584 = vrot.slane %v5486, 1
        %v5585 = vrot.slane %v5487, 1
        %v5586 = vsel %vm1925, %v5584, %v5585
        %v5587 = vrot.slane %v5488, 1
        %v5588 = vsel %vm1925, %v5585, %v5587
        %v5589 = vrot.slane %v5489, 1
        %v5590 = vrot.slane %v5490, 1
        %v5591 = vsel %vm1925, %v5589, %v5590
        %v5592 = vrot.slane %v5491, 1
        %v5593 = vsel %vm1925, %v5590, %v5592
        %v5594 = vrot.slane %v5492, 1
        %v5595 = vrot.slane %v5493, 1
        %v5596 = vsel %vm1925, %v5594, %v5595
        %v5597 = vrot.slane %v5494, 1
        %v5598 = vsel %vm1925, %v5595, %v5597
        %v5599 = vrot.slane %v5495, 1
        %v5600 = vrot.slane %v5496, 1
        %v5601 = vsel %vm1925, %v5599, %v5600
        %v5602 = vrot.slane %v5497, 1
        %v5603 = vsel %vm1925, %v5600, %v5602
        %v5604 = vrot.slane %v5498, 1
        %v5605 = vrot.slane %v5499, 1
        %v5606 = vsel %vm1925, %v5604, %v5605
        %v5607 = vrot.slane %v5500, 1
        %v5608 = vsel %vm1925, %v5605, %v5607
        %v5609 = vrot.slane %v5501, 1
        %v5610 = vrot.slane %v5502, 1
        %v5611 = vsel %vm1925, %v5609, %v5610
        %v5612 = vrot.slane %v5503, 1
        %v5613 = vsel %vm1925, %v5610, %v5612
        %v5614 = vrot.slane %v5504, 1
        %v5615 = vrot.slane %v5505, 1
        %v5616 = vsel %vm1925, %v5614, %v5615
        %v5617 = vrot.slane %v5506, 1
        %v5618 = vsel %vm1925, %v5615, %v5617
        %v5619 = vrot.slane %v5507, 1
        %v5620 = vrot.slane %v5508, 1
        %v5621 = vsel %vm1925, %v5619, %v5620
        %v5622 = vrot.slane %v5509, 1
        %v5623 = vsel %vm1925, %v5620, %v5622
        %v5624 = vrot.slane %v5510, 1
        %v5625 = vrot.slane %v5511, 1
        %v5626 = vsel %vm1925, %v5624, %v5625
        %v5627 = vrot.slane %v5512, 1
        %v5628 = vsel %vm1925, %v5625, %v5627
        %v5629 = vrot.slane %v5513, 1
        %v5630 = vrot.slane %v5514, 1
        %v5631 = vsel %vm1925, %v5629, %v5630
        %v5632 = vrot.slane %v5515, 1
        %v5633 = vsel %vm1925, %v5630, %v5632
        %v5634 = vrot.slane %v5516, 1
        %v5635 = vrot.slane %v5517, 1
        %v5636 = vsel %vm1925, %v5634, %v5635
        %v5637 = vrot.slane %v5518, 1
        %v5638 = vsel %vm1925, %v5635, %v5637
        %v5639 = vrot.slane %v5519, 1
        %v5640 = vrot.slane %v5520, 1
        %v5641 = vsel %vm1925, %v5639, %v5640
        %v5642 = vrot.slane %v5521, 1
        %v5643 = vsel %vm1925, %v5640, %v5642
        %v5644 = vrot.slane %v5522, 1
        %v5645 = vrot.slane %v5523, 1
        %v5646 = vsel %vm1925, %v5644, %v5645
        %v5647 = vrot.slane %v5524, 1
        %v5648 = vsel %vm1925, %v5645, %v5647
        %v5649 = vrot.slane %v5525, 1
        %v5650 = vrot.slane %v5526, 1
        %v5651 = vsel %vm1925, %v5649, %v5650
        %v5652 = vrot.slane %v5527, 1
        %v5653 = vsel %vm1925, %v5650, %v5652
        %v5654 = vrot.slane %v5528, 1
        %v5655 = vrot.slane %v5529, 1
        %v5656 = vsel %vm1925, %v5654, %v5655
        %v5657 = vrot.slane %v5530, 1
        %v5658 = vsel %vm1925, %v5655, %v5657
        %5659 = vrot.lane.b32.xlu0 %v5581, 96
        %v5660 = vpop.permute.xlu0 %5659
        %5661 = vrot.lane.b32.xlu0 %v5583, 96
        %v5662 = vpop.permute.xlu0 %5661
        %5663 = vrot.lane.b32.xlu0 %v5586, 96
        %v5664 = vpop.permute.xlu0 %5663
        %5665 = vrot.lane.b32.xlu0 %v5588, 96
        %v5666 = vpop.permute.xlu0 %5665
        %5667 = vrot.lane.b32.xlu0 %v5591, 96
        %v5668 = vpop.permute.xlu0 %5667
        %5669 = vrot.lane.b32.xlu0 %v5593, 96
        %v5670 = vpop.permute.xlu0 %5669
        %5671 = vrot.lane.b32.xlu0 %v5596, 96
        %v5672 = vpop.permute.xlu0 %5671
        %5673 = vrot.lane.b32.xlu0 %v5598, 96
        %v5674 = vpop.permute.xlu0 %5673
        %5675 = vrot.lane.b32.xlu0 %v5601, 96
        %v5676 = vpop.permute.xlu0 %5675
        %5677 = vrot.lane.b32.xlu0 %v5603, 96
        %v5678 = vpop.permute.xlu0 %5677
        %5679 = vrot.lane.b32.xlu0 %v5606, 96
        %v5680 = vpop.permute.xlu0 %5679
        %5681 = vrot.lane.b32.xlu0 %v5608, 96
        %v5682 = vpop.permute.xlu0 %5681
        %5683 = vrot.lane.b32.xlu0 %v5611, 96
        %v5684 = vpop.permute.xlu0 %5683
        %5685 = vrot.lane.b32.xlu0 %v5613, 96
        %v5686 = vpop.permute.xlu0 %5685
        %5687 = vrot.lane.b32.xlu0 %v5616, 96
        %v5688 = vpop.permute.xlu0 %5687
        %5689 = vrot.lane.b32.xlu0 %v5618, 96
        %v5690 = vpop.permute.xlu0 %5689
        %5691 = vrot.lane.b32.xlu0 %v5621, 96
        %v5692 = vpop.permute.xlu0 %5691
        %5693 = vrot.lane.b32.xlu0 %v5623, 96
        %v5694 = vpop.permute.xlu0 %5693
        %5695 = vrot.lane.b32.xlu0 %v5626, 96
        %v5696 = vpop.permute.xlu0 %5695
        %5697 = vrot.lane.b32.xlu0 %v5628, 96
        %v5698 = vpop.permute.xlu0 %5697
        %5699 = vrot.lane.b32.xlu0 %v5631, 96
        %v5700 = vpop.permute.xlu0 %5699
        %5701 = vrot.lane.b32.xlu0 %v5633, 96
        %v5702 = vpop.permute.xlu0 %5701
        %5703 = vrot.lane.b32.xlu0 %v5636, 96
        %v5704 = vpop.permute.xlu0 %5703
        %5705 = vrot.lane.b32.xlu0 %v5638, 96
        %v5706 = vpop.permute.xlu0 %5705
        %5707 = vrot.lane.b32.xlu0 %v5641, 96
        %v5708 = vpop.permute.xlu0 %5707
        %5709 = vrot.lane.b32.xlu0 %v5643, 96
        %v5710 = vpop.permute.xlu0 %5709
        %5711 = vrot.lane.b32.xlu0 %v5646, 96
        %v5712 = vpop.permute.xlu0 %5711
        %5713 = vrot.lane.b32.xlu0 %v5648, 96
        %v5714 = vpop.permute.xlu0 %5713
        %5715 = vrot.lane.b32.xlu0 %v5651, 96
        %v5716 = vpop.permute.xlu0 %5715
        %5717 = vrot.lane.b32.xlu0 %v5653, 96
        %v5718 = vpop.permute.xlu0 %5717
        %5719 = vrot.lane.b32.xlu0 %v5656, 96
        %v5720 = vpop.permute.xlu0 %5719
        %5721 = vrot.lane.b32.xlu0 %v5658, 96
        %v5722 = vpop.permute.xlu0 %5721
        %v5755 = vadd.f32 %v5483, %v5660
        %v5756 = vadd.f32 %v5484, %v5662
        %v5757 = vadd.f32 %v5486, %v5664
        %v5758 = vadd.f32 %v5487, %v5666
        %v5759 = vadd.f32 %v5489, %v5668
        %v5760 = vadd.f32 %v5490, %v5670
        %v5761 = vadd.f32 %v5492, %v5672
        %v5762 = vadd.f32 %v5493, %v5674
        %v5763 = vadd.f32 %v5495, %v5676
        %v5764 = vadd.f32 %v5496, %v5678
        %v5765 = vadd.f32 %v5498, %v5680
        %v5766 = vadd.f32 %v5499, %v5682
        %v5767 = vadd.f32 %v5501, %v5684
        %v5768 = vadd.f32 %v5502, %v5686
        %v5769 = vadd.f32 %v5504, %v5688
        %v5770 = vadd.f32 %v5505, %v5690
        %v5771 = vadd.f32 %v5507, %v5692
        %v5772 = vadd.f32 %v5508, %v5694
        %v5773 = vadd.f32 %v5510, %v5696
        %v5774 = vadd.f32 %v5511, %v5698
        %v5775 = vadd.f32 %v5513, %v5700
        %v5776 = vadd.f32 %v5514, %v5702
        %v5777 = vadd.f32 %v5516, %v5704
        %v5778 = vadd.f32 %v5517, %v5706
        %v5779 = vadd.f32 %v5519, %v5708
        %v5780 = vadd.f32 %v5520, %v5710
        %v5781 = vadd.f32 %v5522, %v5712
        %v5782 = vadd.f32 %v5523, %v5714
        %v5783 = vadd.f32 %v5525, %v5716
        %v5784 = vadd.f32 %v5526, %v5718
        %v5785 = vadd.f32 %v5528, %v5720
        %v5786 = vadd.f32 %v5529, %v5722
        %v5787 = vrot.slane %v5483, 2
        %v5788 = vrot.slane %v5484, 2
        %v5789 = vsel %vm2134, %v5787, %v5788
        %v5790 = vrot.slane %v5485, 2
        %v5791 = vsel %vm2134, %v5788, %v5790
        %v5792 = vrot.slane %v5486, 2
        %v5793 = vrot.slane %v5487, 2
        %v5794 = vsel %vm2134, %v5792, %v5793
        %v5795 = vrot.slane %v5488, 2
        %v5796 = vsel %vm2134, %v5793, %v5795
        %v5797 = vrot.slane %v5489, 2
        %v5798 = vrot.slane %v5490, 2
        %v5799 = vsel %vm2134, %v5797, %v5798
        %v5800 = vrot.slane %v5491, 2
        %v5801 = vsel %vm2134, %v5798, %v5800
        %v5802 = vrot.slane %v5492, 2
        %v5803 = vrot.slane %v5493, 2
        %v5804 = vsel %vm2134, %v5802, %v5803
        %v5805 = vrot.slane %v5494, 2
        %v5806 = vsel %vm2134, %v5803, %v5805
        %v5807 = vrot.slane %v5495, 2
        %v5808 = vrot.slane %v5496, 2
        %v5809 = vsel %vm2134, %v5807, %v5808
        %v5810 = vrot.slane %v5497, 2
        %v5811 = vsel %vm2134, %v5808, %v5810
        %v5812 = vrot.slane %v5498, 2
        %v5813 = vrot.slane %v5499, 2
        %v5814 = vsel %vm2134, %v5812, %v5813
        %v5815 = vrot.slane %v5500, 2
        %v5816 = vsel %vm2134, %v5813, %v5815
        %v5817 = vrot.slane %v5501, 2
        %v5818 = vrot.slane %v5502, 2
        %v5819 = vsel %vm2134, %v5817, %v5818
        %v5820 = vrot.slane %v5503, 2
        %v5821 = vsel %vm2134, %v5818, %v5820
        %v5822 = vrot.slane %v5504, 2
        %v5823 = vrot.slane %v5505, 2
        %v5824 = vsel %vm2134, %v5822, %v5823
        %v5825 = vrot.slane %v5506, 2
        %v5826 = vsel %vm2134, %v5823, %v5825
        %v5827 = vrot.slane %v5507, 2
        %v5828 = vrot.slane %v5508, 2
        %v5829 = vsel %vm2134, %v5827, %v5828
        %v5830 = vrot.slane %v5509, 2
        %v5831 = vsel %vm2134, %v5828, %v5830
        %v5832 = vrot.slane %v5510, 2
        %v5833 = vrot.slane %v5511, 2
        %v5834 = vsel %vm2134, %v5832, %v5833
        %v5835 = vrot.slane %v5512, 2
        %v5836 = vsel %vm2134, %v5833, %v5835
        %v5837 = vrot.slane %v5513, 2
        %v5838 = vrot.slane %v5514, 2
        %v5839 = vsel %vm2134, %v5837, %v5838
        %v5840 = vrot.slane %v5515, 2
        %v5841 = vsel %vm2134, %v5838, %v5840
        %v5842 = vrot.slane %v5516, 2
        %v5843 = vrot.slane %v5517, 2
        %v5844 = vsel %vm2134, %v5842, %v5843
        %v5845 = vrot.slane %v5518, 2
        %v5846 = vsel %vm2134, %v5843, %v5845
        %v5847 = vrot.slane %v5519, 2
        %v5848 = vrot.slane %v5520, 2
        %v5849 = vsel %vm2134, %v5847, %v5848
        %v5850 = vrot.slane %v5521, 2
        %v5851 = vsel %vm2134, %v5848, %v5850
        %v5852 = vrot.slane %v5522, 2
        %v5853 = vrot.slane %v5523, 2
        %v5854 = vsel %vm2134, %v5852, %v5853
        %v5855 = vrot.slane %v5524, 2
        %v5856 = vsel %vm2134, %v5853, %v5855
        %v5857 = vrot.slane %v5525, 2
        %v5858 = vrot.slane %v5526, 2
        %v5859 = vsel %vm2134, %v5857, %v5858
        %v5860 = vrot.slane %v5527, 2
        %v5861 = vsel %vm2134, %v5858, %v5860
        %v5862 = vrot.slane %v5528, 2
        %v5863 = vrot.slane %v5529, 2
        %v5864 = vsel %vm2134, %v5862, %v5863
        %v5865 = vrot.slane %v5530, 2
        %v5866 = vsel %vm2134, %v5863, %v5865
        %5867 = vrot.lane.b32.xlu0 %v5789, 64
        %v5868 = vpop.permute.xlu0 %5867
        %5869 = vrot.lane.b32.xlu0 %v5791, 64
        %v5870 = vpop.permute.xlu0 %5869
        %5871 = vrot.lane.b32.xlu0 %v5794, 64
        %v5872 = vpop.permute.xlu0 %5871
        %5873 = vrot.lane.b32.xlu0 %v5796, 64
        %v5874 = vpop.permute.xlu0 %5873
        %5875 = vrot.lane.b32.xlu0 %v5799, 64
        %v5876 = vpop.permute.xlu0 %5875
        %5877 = vrot.lane.b32.xlu0 %v5801, 64
        %v5878 = vpop.permute.xlu0 %5877
        %5879 = vrot.lane.b32.xlu0 %v5804, 64
        %v5880 = vpop.permute.xlu0 %5879
        %5881 = vrot.lane.b32.xlu0 %v5806, 64
        %v5882 = vpop.permute.xlu0 %5881
        %5883 = vrot.lane.b32.xlu0 %v5809, 64
        %v5884 = vpop.permute.xlu0 %5883
        %5885 = vrot.lane.b32.xlu0 %v5811, 64
        %v5886 = vpop.permute.xlu0 %5885
        %5887 = vrot.lane.b32.xlu0 %v5814, 64
        %v5888 = vpop.permute.xlu0 %5887
        %5889 = vrot.lane.b32.xlu0 %v5816, 64
        %v5890 = vpop.permute.xlu0 %5889
        %5891 = vrot.lane.b32.xlu0 %v5819, 64
        %v5892 = vpop.permute.xlu0 %5891
        %5893 = vrot.lane.b32.xlu0 %v5821, 64
        %v5894 = vpop.permute.xlu0 %5893
        %5895 = vrot.lane.b32.xlu0 %v5824, 64
        %v5896 = vpop.permute.xlu0 %5895
        %5897 = vrot.lane.b32.xlu0 %v5826, 64
        %v5898 = vpop.permute.xlu0 %5897
        %5899 = vrot.lane.b32.xlu0 %v5829, 64
        %v5900 = vpop.permute.xlu0 %5899
        %5901 = vrot.lane.b32.xlu0 %v5831, 64
        %v5902 = vpop.permute.xlu0 %5901
        %5903 = vrot.lane.b32.xlu0 %v5834, 64
        %v5904 = vpop.permute.xlu0 %5903
        %5905 = vrot.lane.b32.xlu0 %v5836, 64
        %v5906 = vpop.permute.xlu0 %5905
        %5907 = vrot.lane.b32.xlu0 %v5839, 64
        %v5908 = vpop.permute.xlu0 %5907
        %5909 = vrot.lane.b32.xlu0 %v5841, 64
        %v5910 = vpop.permute.xlu0 %5909
        %5911 = vrot.lane.b32.xlu0 %v5844, 64
        %v5912 = vpop.permute.xlu0 %5911
        %5913 = vrot.lane.b32.xlu0 %v5846, 64
        %v5914 = vpop.permute.xlu0 %5913
        %5915 = vrot.lane.b32.xlu0 %v5849, 64
        %v5916 = vpop.permute.xlu0 %5915
        %5917 = vrot.lane.b32.xlu0 %v5851, 64
        %v5918 = vpop.permute.xlu0 %5917
        %5919 = vrot.lane.b32.xlu0 %v5854, 64
        %v5920 = vpop.permute.xlu0 %5919
        %5921 = vrot.lane.b32.xlu0 %v5856, 64
        %v5922 = vpop.permute.xlu0 %5921
        %5923 = vrot.lane.b32.xlu0 %v5859, 64
        %v5924 = vpop.permute.xlu0 %5923
        %5925 = vrot.lane.b32.xlu0 %v5861, 64
        %v5926 = vpop.permute.xlu0 %5925
        %5927 = vrot.lane.b32.xlu0 %v5864, 64
        %v5928 = vpop.permute.xlu0 %5927
        %5929 = vrot.lane.b32.xlu0 %v5866, 64
        %v5930 = vpop.permute.xlu0 %5929
        %v5963 = vadd.f32 %v5755, %v5868
        %v5964 = vadd.f32 %v5756, %v5870
        %v5965 = vadd.f32 %v5757, %v5872
        %v5966 = vadd.f32 %v5758, %v5874
        %v5967 = vadd.f32 %v5759, %v5876
        %v5968 = vadd.f32 %v5760, %v5878
        %v5969 = vadd.f32 %v5761, %v5880
        %v5970 = vadd.f32 %v5762, %v5882
        %v5971 = vadd.f32 %v5763, %v5884
        %v5972 = vadd.f32 %v5764, %v5886
        %v5973 = vadd.f32 %v5765, %v5888
        %v5974 = vadd.f32 %v5766, %v5890
        %v5975 = vadd.f32 %v5767, %v5892
        %v5976 = vadd.f32 %v5768, %v5894
        %v5977 = vadd.f32 %v5769, %v5896
        %v5978 = vadd.f32 %v5770, %v5898
        %v5979 = vadd.f32 %v5771, %v5900
        %v5980 = vadd.f32 %v5772, %v5902
        %v5981 = vadd.f32 %v5773, %v5904
        %v5982 = vadd.f32 %v5774, %v5906
        %v5983 = vadd.f32 %v5775, %v5908
        %v5984 = vadd.f32 %v5776, %v5910
        %v5985 = vadd.f32 %v5777, %v5912
        %v5986 = vadd.f32 %v5778, %v5914
        %v5987 = vadd.f32 %v5779, %v5916
        %v5988 = vadd.f32 %v5780, %v5918
        %v5989 = vadd.f32 %v5781, %v5920
        %v5990 = vadd.f32 %v5782, %v5922
        %v5991 = vadd.f32 %v5783, %v5924
        %v5992 = vadd.f32 %v5784, %v5926
        %v5993 = vadd.f32 %v5785, %v5928
        %v5994 = vadd.f32 %v5786, %v5930
        %v5996 = vlaneseq
        %v5997 = vshrl.u32 %v5996, 7
        %v5998 = vsub.s32 0, %v5997
        %v5999 = vrot.slane %v4307, %v5998
        %v6001 = vadd.f32 %v5963, %v5999
        %v6002 = vadd.f32 %v5964, %v5999
        %v6003 = vadd.f32 %v5965, %v5999
        %v6004 = vadd.f32 %v5966, %v5999
        %v6005 = vadd.f32 %v5967, %v5999
        %v6006 = vadd.f32 %v5968, %v5999
        %v6007 = vadd.f32 %v5969, %v5999
        %v6008 = vadd.f32 %v5970, %v5999
        %v6009 = vadd.f32 %v5971, %v5999
        %v6010 = vadd.f32 %v5972, %v5999
        %v6011 = vadd.f32 %v5973, %v5999
        %v6012 = vadd.f32 %v5974, %v5999
        %v6013 = vadd.f32 %v5975, %v5999
        %v6014 = vadd.f32 %v5976, %v5999
        %v6015 = vadd.f32 %v5977, %v5999
        %v6016 = vadd.f32 %v5978, %v5999
        %v6017 = vadd.f32 %v5979, %v5999
        %v6018 = vadd.f32 %v5980, %v5999
        %v6019 = vadd.f32 %v5981, %v5999
        %v6020 = vadd.f32 %v5982, %v5999
        %v6021 = vadd.f32 %v5983, %v5999
        %v6022 = vadd.f32 %v5984, %v5999
        %v6023 = vadd.f32 %v5985, %v5999
        %v6024 = vadd.f32 %v5986, %v5999
        %v6025 = vadd.f32 %v5987, %v5999
        %v6026 = vadd.f32 %v5988, %v5999
        %v6027 = vadd.f32 %v5989, %v5999
        %v6028 = vadd.f32 %v5990, %v5999
        %v6029 = vadd.f32 %v5991, %v5999
        %v6030 = vadd.f32 %v5992, %v5999
        %v6031 = vadd.f32 %v5993, %v5999
        %v6032 = vadd.f32 %v5994, %v5999
        %v6033 = vld [vmem:[#allocation4] sm:$0xff]
        %v6034 = vld [vmem:[#allocation4 + $0x8] sm:$0xff]
        %v6035 = vld [vmem:[#allocation4 + $0x10] sm:$0xff]
        %v6036 = vld [vmem:[#allocation4 + $0x18] sm:$0xff]
        %v6037 = vld [vmem:[#allocation4 + $0x20] sm:$0xff]
        %v6038 = vld [vmem:[#allocation4 + $0x28] sm:$0xff]
        %v6039 = vld [vmem:[#allocation4 + $0x30] sm:$0xff]
        %v6040 = vld [vmem:[#allocation4 + $0x38] sm:$0xff]
        %v6041 = vld [vmem:[#allocation4 + $0x40] sm:$0xff]
        %v6042 = vld [vmem:[#allocation4 + $0x48] sm:$0xff]
        %v6043 = vld [vmem:[#allocation4 + $0x50] sm:$0xff]
        %v6044 = vld [vmem:[#allocation4 + $0x58] sm:$0xff]
        %v6045 = vld [vmem:[#allocation4 + $0x60] sm:$0xff]
        %v6046 = vld [vmem:[#allocation4 + $0x68] sm:$0xff]
        %v6047 = vld [vmem:[#allocation4 + $0x70] sm:$0xff]
        %v6048 = vld [vmem:[#allocation4 + $0x78] sm:$0xff]
        %v6049 = vld [vmem:[#allocation4 + $0x80] sm:$0xff]
        %v6050 = vld [vmem:[#allocation4 + $0x88] sm:$0xff]
        %v6051 = vld [vmem:[#allocation4 + $0x90] sm:$0xff]
        %v6052 = vld [vmem:[#allocation4 + $0x98] sm:$0xff]
        %v6053 = vld [vmem:[#allocation4 + $0xa0] sm:$0xff]
        %v6054 = vld [vmem:[#allocation4 + $0xa8] sm:$0xff]
        %v6055 = vld [vmem:[#allocation4 + $0xb0] sm:$0xff]
        %v6056 = vld [vmem:[#allocation4 + $0xb8] sm:$0xff]
        %v6057 = vld [vmem:[#allocation4 + $0xc0] sm:$0xff]
        %v6058 = vld [vmem:[#allocation4 + $0xc8] sm:$0xff]
        %v6059 = vld [vmem:[#allocation4 + $0xd0] sm:$0xff]
        %v6060 = vld [vmem:[#allocation4 + $0xd8] sm:$0xff]
        %v6061 = vld [vmem:[#allocation4 + $0xe0] sm:$0xff]
        %v6062 = vld [vmem:[#allocation4 + $0xe8] sm:$0xff]
        %v6063 = vld [vmem:[#allocation4 + $0xf0] sm:$0xff]
        %v6064 = vld [vmem:[#allocation4 + $0xf8] sm:$0xff]
        %v6065 = vadd.f32 %v4226, %v4258
        %v6066 = vadd.f32 %v4227, %v4259
        %v6067 = vadd.f32 %v4228, %v4260
        %v6068 = vadd.f32 %v4229, %v4261
        %v6069 = vadd.f32 %v4230, %v4262
        %v6070 = vadd.f32 %v4231, %v4263
        %v6071 = vadd.f32 %v4232, %v4264
        %v6072 = vadd.f32 %v4233, %v4265
        %v6073 = vadd.f32 %v4234, %v4266
        %v6074 = vadd.f32 %v4235, %v4267
        %v6075 = vadd.f32 %v4236, %v4268
        %v6076 = vadd.f32 %v4237, %v4269
        %v6077 = vadd.f32 %v4238, %v4270
        %v6078 = vadd.f32 %v4239, %v4271
        %v6079 = vadd.f32 %v4240, %v4272
        %v6080 = vadd.f32 %v4241, %v4273
        %v6081 = vadd.f32 %v4242, %v4274
        %v6082 = vadd.f32 %v4243, %v4275
        %v6083 = vadd.f32 %v4244, %v4276
        %v6084 = vadd.f32 %v4245, %v4277
        %v6085 = vadd.f32 %v4246, %v4278
        %v6086 = vadd.f32 %v4247, %v4279
        %v6087 = vadd.f32 %v4248, %v4280
        %v6088 = vadd.f32 %v4249, %v4281
        %v6089 = vadd.f32 %v4250, %v4282
        %v6090 = vadd.f32 %v4251, %v4283
        %v6091 = vadd.f32 %v4252, %v4284
        %v6092 = vadd.f32 %v4253, %v4285
        %v6093 = vadd.f32 %v4254, %v4286
        %v6094 = vadd.f32 %v4255, %v4287
        %v6095 = vadd.f32 %v4256, %v4288
        %v6096 = vadd.f32 %v4257, %v4289
        %v6097 = vadd.f32 %v6065, %v6001
        %v6098 = vadd.f32 %v6066, %v6002
        %v6099 = vadd.f32 %v6067, %v6003
        %v6100 = vadd.f32 %v6068, %v6004
        %v6101 = vadd.f32 %v6069, %v6005
        %v6102 = vadd.f32 %v6070, %v6006
        %v6103 = vadd.f32 %v6071, %v6007
        %v6104 = vadd.f32 %v6072, %v6008
        %v6105 = vadd.f32 %v6073, %v6009
        %v6106 = vadd.f32 %v6074, %v6010
        %v6107 = vadd.f32 %v6075, %v6011
        %v6108 = vadd.f32 %v6076, %v6012
        %v6109 = vadd.f32 %v6077, %v6013
        %v6110 = vadd.f32 %v6078, %v6014
        %v6111 = vadd.f32 %v6079, %v6015
        %v6112 = vadd.f32 %v6080, %v6016
        %v6113 = vadd.f32 %v6081, %v6017
        %v6114 = vadd.f32 %v6082, %v6018
        %v6115 = vadd.f32 %v6083, %v6019
        %v6116 = vadd.f32 %v6084, %v6020
        %v6117 = vadd.f32 %v6085, %v6021
        %v6118 = vadd.f32 %v6086, %v6022
        %v6119 = vadd.f32 %v6087, %v6023
        %v6120 = vadd.f32 %v6088, %v6024
        %v6121 = vadd.f32 %v6089, %v6025
        %v6122 = vadd.f32 %v6090, %v6026
        %v6123 = vadd.f32 %v6091, %v6027
        %v6124 = vadd.f32 %v6092, %v6028
        %v6125 = vadd.f32 %v6093, %v6029
        %v6126 = vadd.f32 %v6094, %v6030
        %v6127 = vadd.f32 %v6095, %v6031
        %v6128 = vadd.f32 %v6096, %v6032
        %v6129 = vadd.f32 %v6033, %v6097
        %v6130 = vadd.f32 %v6034, %v6098
        %v6131 = vadd.f32 %v6035, %v6099
        %v6132 = vadd.f32 %v6036, %v6100
        %v6133 = vadd.f32 %v6037, %v6101
        %v6134 = vadd.f32 %v6038, %v6102
        %v6135 = vadd.f32 %v6039, %v6103
        %v6136 = vadd.f32 %v6040, %v6104
        %v6137 = vadd.f32 %v6041, %v6105
        %v6138 = vadd.f32 %v6042, %v6106
        %v6139 = vadd.f32 %v6043, %v6107
        %v6140 = vadd.f32 %v6044, %v6108
        %v6141 = vadd.f32 %v6045, %v6109
        %v6142 = vadd.f32 %v6046, %v6110
        %v6143 = vadd.f32 %v6047, %v6111
        %v6144 = vadd.f32 %v6048, %v6112
        %v6145 = vadd.f32 %v6049, %v6113
        %v6146 = vadd.f32 %v6050, %v6114
        %v6147 = vadd.f32 %v6051, %v6115
        %v6148 = vadd.f32 %v6052, %v6116
        %v6149 = vadd.f32 %v6053, %v6117
        %v6150 = vadd.f32 %v6054, %v6118
        %v6151 = vadd.f32 %v6055, %v6119
        %v6152 = vadd.f32 %v6056, %v6120
        %v6153 = vadd.f32 %v6057, %v6121
        %v6154 = vadd.f32 %v6058, %v6122
        %v6155 = vadd.f32 %v6059, %v6123
        %v6156 = vadd.f32 %v6060, %v6124
        %v6157 = vadd.f32 %v6061, %v6125
        %v6158 = vadd.f32 %v6062, %v6126
        %v6159 = vadd.f32 %v6063, %v6127
        %v6160 = vadd.f32 %v6064, %v6128
        %6161 = vst.msk [vmem:[#allocation4] sm:$0xff] %vm327, %v6129
        %6162 = vst.msk [vmem:[#allocation4 + $0x8] sm:$0xff] %vm327, %v6130
        %6163 = vst.msk [vmem:[#allocation4 + $0x10] sm:$0xff] %vm327, %v6131
        %6164 = vst.msk [vmem:[#allocation4 + $0x18] sm:$0xff] %vm327, %v6132
        %6165 = vst.msk [vmem:[#allocation4 + $0x20] sm:$0xff] %vm327, %v6133
        %6166 = vst.msk [vmem:[#allocation4 + $0x28] sm:$0xff] %vm327, %v6134
        %6167 = vst.msk [vmem:[#allocation4 + $0x30] sm:$0xff] %vm327, %v6135
        %6168 = vst.msk [vmem:[#allocation4 + $0x38] sm:$0xff] %vm327, %v6136
        %6169 = vst.msk [vmem:[#allocation4 + $0x40] sm:$0xff] %vm327, %v6137
        %6170 = vst.msk [vmem:[#allocation4 + $0x48] sm:$0xff] %vm327, %v6138
        %6171 = vst.msk [vmem:[#allocation4 + $0x50] sm:$0xff] %vm327, %v6139
        %6172 = vst.msk [vmem:[#allocation4 + $0x58] sm:$0xff] %vm327, %v6140
        %6173 = vst.msk [vmem:[#allocation4 + $0x60] sm:$0xff] %vm327, %v6141
        %6174 = vst.msk [vmem:[#allocation4 + $0x68] sm:$0xff] %vm327, %v6142
        %6175 = vst.msk [vmem:[#allocation4 + $0x70] sm:$0xff] %vm327, %v6143
        %6176 = vst.msk [vmem:[#allocation4 + $0x78] sm:$0xff] %vm327, %v6144
        %6177 = vst.msk [vmem:[#allocation4 + $0x80] sm:$0xff] %vm327, %v6145
        %6178 = vst.msk [vmem:[#allocation4 + $0x88] sm:$0xff] %vm327, %v6146
        %6179 = vst.msk [vmem:[#allocation4 + $0x90] sm:$0xff] %vm327, %v6147
        %6180 = vst.msk [vmem:[#allocation4 + $0x98] sm:$0xff] %vm327, %v6148
        %6181 = vst.msk [vmem:[#allocation4 + $0xa0] sm:$0xff] %vm327, %v6149
        %6182 = vst.msk [vmem:[#allocation4 + $0xa8] sm:$0xff] %vm327, %v6150
        %6183 = vst.msk [vmem:[#allocation4 + $0xb0] sm:$0xff] %vm327, %v6151
        %6184 = vst.msk [vmem:[#allocation4 + $0xb8] sm:$0xff] %vm327, %v6152
        %6185 = vst.msk [vmem:[#allocation4 + $0xc0] sm:$0xff] %vm327, %v6153
        %6186 = vst.msk [vmem:[#allocation4 + $0xc8] sm:$0xff] %vm327, %v6154
        %6187 = vst.msk [vmem:[#allocation4 + $0xd0] sm:$0xff] %vm327, %v6155
        %6188 = vst.msk [vmem:[#allocation4 + $0xd8] sm:$0xff] %vm327, %v6156
        %6189 = vst.msk [vmem:[#allocation4 + $0xe0] sm:$0xff] %vm327, %v6157
        %6190 = vst.msk [vmem:[#allocation4 + $0xe8] sm:$0xff] %vm327, %v6158
        %6191 = vst.msk [vmem:[#allocation4 + $0xf0] sm:$0xff] %vm327, %v6159
        %6192 = vst.msk [vmem:[#allocation4 + $0xf8] sm:$0xff] %vm327, %v6160
        %6193 = vst.msk [vmem:[#allocation3] sm:$0xff] %vm327, %v6001
        %6194 = vst.msk [vmem:[#allocation3 + $0x8] sm:$0xff] %vm327, %v6002
        %6195 = vst.msk [vmem:[#allocation3 + $0x10] sm:$0xff] %vm327, %v6003
        %6196 = vst.msk [vmem:[#allocation3 + $0x18] sm:$0xff] %vm327, %v6004
        %6197 = vst.msk [vmem:[#allocation3 + $0x20] sm:$0xff] %vm327, %v6005
        %6198 = vst.msk [vmem:[#allocation3 + $0x28] sm:$0xff] %vm327, %v6006
        %6199 = vst.msk [vmem:[#allocation3 + $0x30] sm:$0xff] %vm327, %v6007
        %6200 = vst.msk [vmem:[#allocation3 + $0x38] sm:$0xff] %vm327, %v6008
        %6201 = vst.msk [vmem:[#allocation3 + $0x40] sm:$0xff] %vm327, %v6009
        %6202 = vst.msk [vmem:[#allocation3 + $0x48] sm:$0xff] %vm327, %v6010
        %6203 = vst.msk [vmem:[#allocation3 + $0x50] sm:$0xff] %vm327, %v6011
        %6204 = vst.msk [vmem:[#allocation3 + $0x58] sm:$0xff] %vm327, %v6012
        %6205 = vst.msk [vmem:[#allocation3 + $0x60] sm:$0xff] %vm327, %v6013
        %6206 = vst.msk [vmem:[#allocation3 + $0x68] sm:$0xff] %vm327, %v6014
        %6207 = vst.msk [vmem:[#allocation3 + $0x70] sm:$0xff] %vm327, %v6015
        %6208 = vst.msk [vmem:[#allocation3 + $0x78] sm:$0xff] %vm327, %v6016
        %6209 = vst.msk [vmem:[#allocation3 + $0x80] sm:$0xff] %vm327, %v6017
        %6210 = vst.msk [vmem:[#allocation3 + $0x88] sm:$0xff] %vm327, %v6018
        %6211 = vst.msk [vmem:[#allocation3 + $0x90] sm:$0xff] %vm327, %v6019
        %6212 = vst.msk [vmem:[#allocation3 + $0x98] sm:$0xff] %vm327, %v6020
        %6213 = vst.msk [vmem:[#allocation3 + $0xa0] sm:$0xff] %vm327, %v6021
        %6214 = vst.msk [vmem:[#allocation3 + $0xa8] sm:$0xff] %vm327, %v6022
        %6215 = vst.msk [vmem:[#allocation3 + $0xb0] sm:$0xff] %vm327, %v6023
        %6216 = vst.msk [vmem:[#allocation3 + $0xb8] sm:$0xff] %vm327, %v6024
        %6217 = vst.msk [vmem:[#allocation3 + $0xc0] sm:$0xff] %vm327, %v6025
        %6218 = vst.msk [vmem:[#allocation3 + $0xc8] sm:$0xff] %vm327, %v6026
        %6219 = vst.msk [vmem:[#allocation3 + $0xd0] sm:$0xff] %vm327, %v6027
        %6220 = vst.msk [vmem:[#allocation3 + $0xd8] sm:$0xff] %vm327, %v6028
        %6221 = vst.msk [vmem:[#allocation3 + $0xe0] sm:$0xff] %vm327, %v6029
        %6222 = vst.msk [vmem:[#allocation3 + $0xe8] sm:$0xff] %vm327, %v6030
        %6223 = vst.msk [vmem:[#allocation3 + $0xf0] sm:$0xff] %vm327, %v6031
        %6224 = vst.msk [vmem:[#allocation3 + $0xf8] sm:$0xff] %vm327, %v6032
      $region57: #{tpu_custom_call.1} parent=51 // loop_footer
        %s2482 = sadd.s32 1, %s2478
      $region58: #{tpu_custom_call.1} parent=51 // loop_footer_branch
        %2477 = sbr.rel target = $region54
      $region59: #{tpu_custom_call.1} parent=51 // loop_exit
        _
      %v6225 = vld [vmem:[#allocation4] sm:$0xff]
      %v6226 = vld [vmem:[#allocation4 + $0x8] sm:$0xff]
      %v6227 = vld [vmem:[#allocation4 + $0x10] sm:$0xff]
      %v6228 = vld [vmem:[#allocation4 + $0x18] sm:$0xff]
      %v6229 = vld [vmem:[#allocation4 + $0x20] sm:$0xff]
      %v6230 = vld [vmem:[#allocation4 + $0x28] sm:$0xff]
      %v6231 = vld [vmem:[#allocation4 + $0x30] sm:$0xff]
      %v6232 = vld [vmem:[#allocation4 + $0x38] sm:$0xff]
      %v6233 = vld [vmem:[#allocation4 + $0x40] sm:$0xff]
      %v6234 = vld [vmem:[#allocation4 + $0x48] sm:$0xff]
      %v6235 = vld [vmem:[#allocation4 + $0x50] sm:$0xff]
      %v6236 = vld [vmem:[#allocation4 + $0x58] sm:$0xff]
      %v6237 = vld [vmem:[#allocation4 + $0x60] sm:$0xff]
      %v6238 = vld [vmem:[#allocation4 + $0x68] sm:$0xff]
      %v6239 = vld [vmem:[#allocation4 + $0x70] sm:$0xff]
      %v6240 = vld [vmem:[#allocation4 + $0x78] sm:$0xff]
      %v6241 = vld [vmem:[#allocation4 + $0x80] sm:$0xff]
      %v6242 = vld [vmem:[#allocation4 + $0x88] sm:$0xff]
      %v6243 = vld [vmem:[#allocation4 + $0x90] sm:$0xff]
      %v6244 = vld [vmem:[#allocation4 + $0x98] sm:$0xff]
      %v6245 = vld [vmem:[#allocation4 + $0xa0] sm:$0xff]
      %v6246 = vld [vmem:[#allocation4 + $0xa8] sm:$0xff]
      %v6247 = vld [vmem:[#allocation4 + $0xb0] sm:$0xff]
      %v6248 = vld [vmem:[#allocation4 + $0xb8] sm:$0xff]
      %v6249 = vld [vmem:[#allocation4 + $0xc0] sm:$0xff]
      %v6250 = vld [vmem:[#allocation4 + $0xc8] sm:$0xff]
      %v6251 = vld [vmem:[#allocation4 + $0xd0] sm:$0xff]
      %v6252 = vld [vmem:[#allocation4 + $0xd8] sm:$0xff]
      %v6253 = vld [vmem:[#allocation4 + $0xe0] sm:$0xff]
      %v6254 = vld [vmem:[#allocation4 + $0xe8] sm:$0xff]
      %v6255 = vld [vmem:[#allocation4 + $0xf0] sm:$0xff]
      %v6256 = vld [vmem:[#allocation4 + $0xf8] sm:$0xff]
      %v6257 = vld [vmem:[%s6] sm:$0xf]
      %v6258 = vld [vmem:[%s6 + $0x4] sm:$0xf]
      %v6259 = vld [vmem:[%s6 + $0x8] sm:$0xf]
      %v6260 = vld [vmem:[%s6 + $0xc] sm:$0xf]
      %v6261 = vld [vmem:[%s6 + $0x10] sm:$0xf]
      %v6262 = vld [vmem:[%s6 + $0x14] sm:$0xf]
      %v6263 = vld [vmem:[%s6 + $0x18] sm:$0xf]
      %v6264 = vld [vmem:[%s6 + $0x1c] sm:$0xf]
      %v6265 = vld [vmem:[%s6 + $0x20] sm:$0xf]
      %v6266 = vld [vmem:[%s6 + $0x24] sm:$0xf]
      %v6267 = vld [vmem:[%s6 + $0x28] sm:$0xf]
      %v6268 = vld [vmem:[%s6 + $0x2c] sm:$0xf]
      %v6269 = vld [vmem:[%s7] sm:$0x1]
      %6270 = vst.msk [vmem:[%s651 + $0x1] sm:$0xff] %vm327, %v6225
      %6271 = vst.msk [vmem:[%s651 + $0x9] sm:$0xff] %vm327, %v6226
      %6272 = vst.msk [vmem:[%s651 + $0x19] sm:$0xff] %vm327, %v6227
      %6273 = vst.msk [vmem:[%s651 + $0x21] sm:$0xff] %vm327, %v6228
      %6274 = vst.msk [vmem:[%s651 + $0x31] sm:$0xff] %vm327, %v6229
      %6275 = vst.msk [vmem:[%s651 + $0x39] sm:$0xff] %vm327, %v6230
      %6276 = vst.msk [vmem:[%s651 + $0x49] sm:$0xff] %vm327, %v6231
      %6277 = vst.msk [vmem:[%s651 + $0x51] sm:$0xff] %vm327, %v6232
      %6278 = vst.msk [vmem:[%s651 + $0x61] sm:$0xff] %vm327, %v6233
      %6279 = vst.msk [vmem:[%s651 + $0x69] sm:$0xff] %vm327, %v6234
      %6280 = vst.msk [vmem:[%s651 + $0x79] sm:$0xff] %vm327, %v6235
      %6281 = vst.msk [vmem:[%s651 + $0x81] sm:$0xff] %vm327, %v6236
      %6282 = vst.msk [vmem:[%s651 + $0x91] sm:$0xff] %vm327, %v6237
      %6283 = vst.msk [vmem:[%s651 + $0x99] sm:$0xff] %vm327, %v6238
      %6284 = vst.msk [vmem:[%s651 + $0xa9] sm:$0xff] %vm327, %v6239
      %6285 = vst.msk [vmem:[%s651 + $0xb1] sm:$0xff] %vm327, %v6240
      %6286 = vst.msk [vmem:[%s651 + $0xc1] sm:$0xff] %vm327, %v6241
      %6287 = vst.msk [vmem:[%s651 + $0xc9] sm:$0xff] %vm327, %v6242
      %6288 = vst.msk [vmem:[%s651 + $0xd9] sm:$0xff] %vm327, %v6243
      %6289 = vst.msk [vmem:[%s651 + $0xe1] sm:$0xff] %vm327, %v6244
      %6290 = vst.msk [vmem:[%s651 + $0xf1] sm:$0xff] %vm327, %v6245
      %6291 = vst.msk [vmem:[%s651 + $0xf9] sm:$0xff] %vm327, %v6246
      %6292 = vst.msk [vmem:[%s651 + $0x109] sm:$0xff] %vm327, %v6247
      %6293 = vst.msk [vmem:[%s651 + $0x111] sm:$0xff] %vm327, %v6248
      %6294 = vst.msk [vmem:[%s651 + $0x121] sm:$0xff] %vm327, %v6249
      %6295 = vst.msk [vmem:[%s651 + $0x129] sm:$0xff] %vm327, %v6250
      %6296 = vst.msk [vmem:[%s651 + $0x139] sm:$0xff] %vm327, %v6251
      %6297 = vst.msk [vmem:[%s651 + $0x141] sm:$0xff] %vm327, %v6252
      %6298 = vst.msk [vmem:[%s651 + $0x151] sm:$0xff] %vm327, %v6253
      %6299 = vst.msk [vmem:[%s651 + $0x159] sm:$0xff] %vm327, %v6254
      %6300 = vst.msk [vmem:[%s651 + $0x169] sm:$0xff] %vm327, %v6255
      %6301 = vst.msk [vmem:[%s651 + $0x171] sm:$0xff] %vm327, %v6256
      %v6302 = vld [vmem:[#allocation2] sm:$0xff]
      %v6303 = vld [vmem:[#allocation2 + $0x8] sm:$0xff]
      %v6304 = vld [vmem:[#allocation2 + $0x10] sm:$0xff]
      %v6305 = vld [vmem:[#allocation2 + $0x18] sm:$0xff]
      %v6306 = vld [vmem:[#allocation2 + $0x20] sm:$0xff]
      %v6307 = vld [vmem:[#allocation2 + $0x28] sm:$0xff]
      %v6308 = vld [vmem:[#allocation2 + $0x30] sm:$0xff]
      %v6309 = vld [vmem:[#allocation2 + $0x38] sm:$0xff]
      %v6310 = vld [vmem:[#allocation2 + $0x40] sm:$0xff]
      %v6311 = vld [vmem:[#allocation2 + $0x48] sm:$0xff]
      %v6312 = vld [vmem:[#allocation2 + $0x50] sm:$0xff]
      %v6313 = vld [vmem:[#allocation2 + $0x58] sm:$0xff]
      %v6314 = vld [vmem:[#allocation2 + $0x60] sm:$0xff]
      %v6315 = vld [vmem:[#allocation2 + $0x68] sm:$0xff]
      %v6316 = vld [vmem:[#allocation2 + $0x70] sm:$0xff]
      %v6317 = vld [vmem:[#allocation2 + $0x78] sm:$0xff]
      %v6318 = vld [vmem:[#allocation2 + $0x80] sm:$0xff]
      %v6319 = vld [vmem:[#allocation2 + $0x88] sm:$0xff]
      %v6320 = vld [vmem:[#allocation2 + $0x90] sm:$0xff]
      %v6321 = vld [vmem:[#allocation2 + $0x98] sm:$0xff]
      %v6322 = vld [vmem:[#allocation2 + $0xa0] sm:$0xff]
      %v6323 = vld [vmem:[#allocation2 + $0xa8] sm:$0xff]
      %v6324 = vld [vmem:[#allocation2 + $0xb0] sm:$0xff]
      %v6325 = vld [vmem:[#allocation2 + $0xb8] sm:$0xff]
      %v6326 = vld [vmem:[#allocation2 + $0xc0] sm:$0xff]
      %v6327 = vld [vmem:[#allocation2 + $0xc8] sm:$0xff]
      %v6328 = vld [vmem:[#allocation2 + $0xd0] sm:$0xff]
      %v6329 = vld [vmem:[#allocation2 + $0xd8] sm:$0xff]
      %v6330 = vld [vmem:[#allocation2 + $0xe0] sm:$0xff]
      %v6331 = vld [vmem:[#allocation2 + $0xe8] sm:$0xff]
      %v6332 = vld [vmem:[#allocation2 + $0xf0] sm:$0xff]
      %v6333 = vld [vmem:[#allocation2 + $0xf8] sm:$0xff]
      %v6334 = vld [vmem:[#allocation2 + $0x100] sm:$0xff]
      %v6335 = vld [vmem:[#allocation2 + $0x108] sm:$0xff]
      %v6336 = vld [vmem:[#allocation2 + $0x110] sm:$0xff]
      %v6337 = vld [vmem:[#allocation2 + $0x118] sm:$0xff]
      %v6338 = vld [vmem:[#allocation2 + $0x120] sm:$0xff]
      %v6339 = vld [vmem:[#allocation2 + $0x128] sm:$0xff]
      %v6340 = vld [vmem:[#allocation2 + $0x130] sm:$0xff]
      %v6341 = vld [vmem:[#allocation2 + $0x138] sm:$0xff]
      %v6342 = vld [vmem:[#allocation2 + $0x140] sm:$0xff]
      %v6343 = vld [vmem:[#allocation2 + $0x148] sm:$0xff]
      %v6344 = vld [vmem:[#allocation2 + $0x150] sm:$0xff]
      %v6345 = vld [vmem:[#allocation2 + $0x158] sm:$0xff]
      %v6346 = vld [vmem:[#allocation2 + $0x160] sm:$0xff]
      %v6347 = vld [vmem:[#allocation2 + $0x168] sm:$0xff]
      %v6348 = vld [vmem:[#allocation2 + $0x170] sm:$0xff]
      %v6349 = vld [vmem:[#allocation2 + $0x178] sm:$0xff]
      %v6350 = vpack.c.bf16 %v6303, %v6302
      %v6351 = vpack.c.bf16 %v6305, %v6304
      %v6352 = vpack.c.bf16 %v6307, %v6306
      %v6353 = vpack.c.bf16 %v6309, %v6308
      %v6354 = vpack.c.bf16 %v6311, %v6310
      %v6355 = vpack.c.bf16 %v6313, %v6312
      %v6356 = vpack.c.bf16 %v6315, %v6314
      %v6357 = vpack.c.bf16 %v6317, %v6316
      %v6358 = vpack.c.bf16 %v6319, %v6318
      %v6359 = vpack.c.bf16 %v6321, %v6320
      %v6360 = vpack.c.bf16 %v6323, %v6322
      %v6361 = vpack.c.bf16 %v6325, %v6324
      %v6362 = vpack.c.bf16 %v6327, %v6326
      %v6363 = vpack.c.bf16 %v6329, %v6328
      %v6364 = vpack.c.bf16 %v6331, %v6330
      %v6365 = vpack.c.bf16 %v6333, %v6332
      %v6366 = vpack.c.bf16 %v6335, %v6334
      %v6367 = vpack.c.bf16 %v6337, %v6336
      %v6368 = vpack.c.bf16 %v6339, %v6338
      %v6369 = vpack.c.bf16 %v6341, %v6340
      %v6370 = vpack.c.bf16 %v6343, %v6342
      %v6371 = vpack.c.bf16 %v6345, %v6344
      %v6372 = vpack.c.bf16 %v6347, %v6346
      %v6373 = vpack.c.bf16 %v6349, %v6348
      %v6374 = vld [vmem:[%s651] sm:$0xff]
      %v6375 = vld [vmem:[%s651 + $0x8] sm:$0xff]
      %v6376 = vld [vmem:[%s651 + $0x10] sm:$0xff]
      %v6377 = vld [vmem:[%s651 + $0x18] sm:$0xff]
      %v6378 = vld [vmem:[%s651 + $0x20] sm:$0xff]
      %v6379 = vld [vmem:[%s651 + $0x28] sm:$0xff]
      %v6380 = vld [vmem:[%s651 + $0x30] sm:$0xff]
      %v6381 = vld [vmem:[%s651 + $0x38] sm:$0xff]
      %v6382 = vld [vmem:[%s651 + $0x40] sm:$0xff]
      %v6383 = vld [vmem:[%s651 + $0x48] sm:$0xff]
      %v6384 = vld [vmem:[%s651 + $0x50] sm:$0xff]
      %v6385 = vld [vmem:[%s651 + $0x58] sm:$0xff]
      %v6386 = vld [vmem:[%s651 + $0x60] sm:$0xff]
      %v6387 = vld [vmem:[%s651 + $0x68] sm:$0xff]
      %v6388 = vld [vmem:[%s651 + $0x70] sm:$0xff]
      %v6389 = vld [vmem:[%s651 + $0x78] sm:$0xff]
      %v6390 = vld [vmem:[%s651 + $0x80] sm:$0xff]
      %v6391 = vld [vmem:[%s651 + $0x88] sm:$0xff]
      %v6392 = vld [vmem:[%s651 + $0x90] sm:$0xff]
      %v6393 = vld [vmem:[%s651 + $0x98] sm:$0xff]
      %v6394 = vld [vmem:[%s651 + $0xa0] sm:$0xff]
      %v6395 = vld [vmem:[%s651 + $0xa8] sm:$0xff]
      %v6396 = vld [vmem:[%s651 + $0xb0] sm:$0xff]
      %v6397 = vld [vmem:[%s651 + $0xb8] sm:$0xff]
      %v6398 = vld [vmem:[%s651 + $0xc0] sm:$0xff]
      %v6399 = vld [vmem:[%s651 + $0xc8] sm:$0xff]
      %v6400 = vld [vmem:[%s651 + $0xd0] sm:$0xff]
      %v6401 = vld [vmem:[%s651 + $0xd8] sm:$0xff]
      %v6402 = vld [vmem:[%s651 + $0xe0] sm:$0xff]
      %v6403 = vld [vmem:[%s651 + $0xe8] sm:$0xff]
      %v6404 = vld [vmem:[%s651 + $0xf0] sm:$0xff]
      %v6405 = vld [vmem:[%s651 + $0xf8] sm:$0xff]
      %v6406 = vld [vmem:[%s651 + $0x100] sm:$0xff]
      %v6407 = vld [vmem:[%s651 + $0x108] sm:$0xff]
      %v6408 = vld [vmem:[%s651 + $0x110] sm:$0xff]
      %v6409 = vld [vmem:[%s651 + $0x118] sm:$0xff]
      %v6410 = vld [vmem:[%s651 + $0x120] sm:$0xff]
      %v6411 = vld [vmem:[%s651 + $0x128] sm:$0xff]
      %v6412 = vld [vmem:[%s651 + $0x130] sm:$0xff]
      %v6413 = vld [vmem:[%s651 + $0x138] sm:$0xff]
      %v6414 = vld [vmem:[%s651 + $0x140] sm:$0xff]
      %v6415 = vld [vmem:[%s651 + $0x148] sm:$0xff]
      %v6416 = vld [vmem:[%s651 + $0x150] sm:$0xff]
      %v6417 = vld [vmem:[%s651 + $0x158] sm:$0xff]
      %v6418 = vld [vmem:[%s651 + $0x160] sm:$0xff]
      %v6419 = vld [vmem:[%s651 + $0x168] sm:$0xff]
      %v6420 = vld [vmem:[%s651 + $0x170] sm:$0xff]
      %v6421 = vld [vmem:[%s651 + $0x178] sm:$0xff]
      %v6422 = vpack.c.bf16 %v6375, %v6374
      %v6423 = vpack.c.bf16 %v6377, %v6376
      %v6424 = vpack.c.bf16 %v6379, %v6378
      %v6425 = vpack.c.bf16 %v6381, %v6380
      %v6426 = vpack.c.bf16 %v6383, %v6382
      %v6427 = vpack.c.bf16 %v6385, %v6384
      %v6428 = vpack.c.bf16 %v6387, %v6386
      %v6429 = vpack.c.bf16 %v6389, %v6388
      %v6430 = vpack.c.bf16 %v6391, %v6390
      %v6431 = vpack.c.bf16 %v6393, %v6392
      %v6432 = vpack.c.bf16 %v6395, %v6394
      %v6433 = vpack.c.bf16 %v6397, %v6396
      %v6434 = vpack.c.bf16 %v6399, %v6398
      %v6435 = vpack.c.bf16 %v6401, %v6400
      %v6436 = vpack.c.bf16 %v6403, %v6402
      %v6437 = vpack.c.bf16 %v6405, %v6404
      %v6438 = vpack.c.bf16 %v6407, %v6406
      %v6439 = vpack.c.bf16 %v6409, %v6408
      %v6440 = vpack.c.bf16 %v6411, %v6410
      %v6441 = vpack.c.bf16 %v6413, %v6412
      %v6442 = vpack.c.bf16 %v6415, %v6414
      %v6443 = vpack.c.bf16 %v6417, %v6416
      %v6444 = vpack.c.bf16 %v6419, %v6418
      %v6445 = vpack.c.bf16 %v6421, %v6420
      %v6450 = vunpack.c.l.b16 %v6261
      %v6451 = vunpack.c.l.b16 %v6262
      %v6452 = vunpack.c.l.b16 %v6263
      %v6453 = vunpack.c.l.b16 %v6264
      %v6454 = vpack.c.b16 %v6451, %v6450
      %v6455 = vpack.c.b16 %v6453, %v6452
      %v6459 = vsel %vm327, %v6422, 0
      %v6462 = vsel %vm327, %v6423, 0
      %v6465 = vsel %vm327, %v6424, 0
      %v6468 = vsel %vm327, %v6425, 0
      %v6471 = vsel %vm327, %v6426, 0
      %v6474 = vsel %vm327, %v6427, 0
      %v6477 = vsel %vm327, %v6428, 0
      %v6480 = vsel %vm327, %v6429, 0
      %v6483 = vsel %vm327, %v6430, 0
      %v6486 = vsel %vm327, %v6431, 0
      %v6489 = vsel %vm327, %v6432, 0
      %v6492 = vsel %vm327, %v6433, 0
      %v6495 = vsel %vm327, %v6434, 0
      %v6498 = vsel %vm327, %v6435, 0
      %v6501 = vsel %vm327, %v6436, 0
      %v6504 = vsel %vm327, %v6437, 0
      %v6507 = vsel %vm327, %v6438, 0
      %v6510 = vsel %vm327, %v6439, 0
      %v6513 = vsel %vm327, %v6440, 0
      %v6516 = vsel %vm327, %v6441, 0
      %v6519 = vsel %vm327, %v6442, 0
      %v6522 = vsel %vm327, %v6443, 0
      %v6525 = vsel %vm327, %v6444, 0
      %v6528 = vsel %vm327, %v6445, 0
      %6530 = vmatprep.subr.bf16.mxu0 0
      %6531 = vmatpush1.bf16.msra.mxu0 %v6454
      %6532 = vmatprep.subr.bf16.mxu0 0
      %6533 = vmatpush1.bf16.msra.mxu0 %v6455
      %6534 = vmatprep.subr.bf16.mxu0 0
      %6535 = vmatpush1.bf16.msra.mxu0 0
      %6536 = vmatprep.subr.bf16.mxu0 0
      %6537 = vmatpush1.bf16.msra.mxu0 0
      %6538 = vmatprep.subr.bf16.mxu0 0
      %6539 = vmatpush1.bf16.msra.mxu0 0
      %6540 = vmatprep.subr.bf16.mxu0 0
      %6541 = vmatpush1.bf16.msra.mxu0 0
      %6542 = vmatprep.subr.bf16.mxu0 0
      %6543 = vmatpush1.bf16.msra.mxu0 0
      %6544 = vmatprep.subr.bf16.mxu0 0
      %6545 = vmatpush1.bf16.msra.mxu0 0
      %6546 = vmatprep.subr.bf16.mxu0 0
      %6547 = vmatpush1.bf16.msra.mxu0 0
      %6548 = vmatprep.subr.bf16.mxu0 0
      %6549 = vmatpush1.bf16.msra.mxu0 0
      %6550 = vmatprep.subr.bf16.mxu0 0
      %6551 = vmatpush1.bf16.msra.mxu0 0
      %6552 = vmatprep.subr.bf16.mxu0 0
      %6553 = vmatpush1.bf16.msra.mxu0 0
      %6554 = vmatprep.subr.bf16.mxu0 0
      %6555 = vmatpush1.bf16.msra.mxu0 0
      %6556 = vmatprep.subr.bf16.mxu0 0
      %6557 = vmatpush1.bf16.msra.mxu0 0
      %6558 = vmatprep.subr.bf16.mxu0 0
      %6559 = vmatpush1.bf16.msra.mxu0 0
      %6560 = vmatprep.subr.bf16.mxu0 0
      %6561 = vmatpush1.bf16.msra.mxu0 0
      %6562 = vmatprep.mubr.bf16.mxu0 0
      %6563 = vmatmul.mubr.bf16.gmra.mrb[0].mxu0 %v6459
      %v6564 = vpop.f32.mrb[0].mxu0
      %v6565 = vadd.f32 0.0, %v6564
      %v6566 = vpop.f32.mrb[0].mxu0
      %v6567 = vpop.f32.mrb[0].mxu0
      %v6568 = vadd.f32 0.0, %v6567
      %v6569 = vpop.f32.mrb[0].mxu0
      %6570 = vmatprep.mubr.bf16.mxu0 0
      %6571 = vmatmul.mubr.bf16.gmra.mrb[0].mxu0 %v6462
      %v6572 = vpop.f32.mrb[0].mxu0
      %v6573 = vadd.f32 0.0, %v6572
      %v6574 = vpop.f32.mrb[0].mxu0
      %v6575 = vpop.f32.mrb[0].mxu0
      %v6576 = vadd.f32 0.0, %v6575
      %v6577 = vpop.f32.mrb[0].mxu0
      %6578 = vmatprep.mubr.bf16.mxu0 0
      %6579 = vmatmul.mubr.bf16.gmra.mrb[0].mxu0 %v6465
      %v6580 = vpop.f32.mrb[0].mxu0
      %v6581 = vadd.f32 0.0, %v6580
      %v6582 = vpop.f32.mrb[0].mxu0
      %v6583 = vpop.f32.mrb[0].mxu0
      %v6584 = vadd.f32 0.0, %v6583
      %v6585 = vpop.f32.mrb[0].mxu0
      %6586 = vmatprep.mubr.bf16.mxu0 0
      %6587 = vmatmul.mubr.bf16.gmra.mrb[0].mxu0 %v6468
      %v6588 = vpop.f32.mrb[0].mxu0
      %v6589 = vadd.f32 0.0, %v6588
      %v6590 = vpop.f32.mrb[0].mxu0
      %v6591 = vpop.f32.mrb[0].mxu0
      %v6592 = vadd.f32 0.0, %v6591
      %v6593 = vpop.f32.mrb[0].mxu0
      %6594 = vmatprep.mubr.bf16.mxu0 0
      %6595 = vmatmul.mubr.bf16.gmra.mrb[0].mxu0 %v6471
      %v6596 = vpop.f32.mrb[0].mxu0
      %v6597 = vadd.f32 0.0, %v6596
      %v6598 = vpop.f32.mrb[0].mxu0
      %v6599 = vpop.f32.mrb[0].mxu0
      %v6600 = vadd.f32 0.0, %v6599
      %v6601 = vpop.f32.mrb[0].mxu0
      %6602 = vmatprep.mubr.bf16.mxu0 0
      %6603 = vmatmul.mubr.bf16.gmra.mrb[0].mxu0 %v6474
      %v6604 = vpop.f32.mrb[0].mxu0
      %v6605 = vadd.f32 0.0, %v6604
      %v6606 = vpop.f32.mrb[0].mxu0
      %v6607 = vpop.f32.mrb[0].mxu0
      %v6608 = vadd.f32 0.0, %v6607
      %v6609 = vpop.f32.mrb[0].mxu0
      %6610 = vmatprep.mubr.bf16.mxu0 0
      %6611 = vmatmul.mubr.bf16.gmra.mrb[0].mxu0 %v6477
      %v6612 = vpop.f32.mrb[0].mxu0
      %v6613 = vadd.f32 0.0, %v6612
      %v6614 = vpop.f32.mrb[0].mxu0
      %v6615 = vpop.f32.mrb[0].mxu0
      %v6616 = vadd.f32 0.0, %v6615
      %v6617 = vpop.f32.mrb[0].mxu0
      %6618 = vmatprep.mubr.bf16.mxu0 0
      %6619 = vmatmul.mubr.bf16.gmra.mrb[0].mxu0 %v6480
      %v6620 = vpop.f32.mrb[0].mxu0
      %v6621 = vadd.f32 0.0, %v6620
      %v6622 = vpop.f32.mrb[0].mxu0
      %v6623 = vpop.f32.mrb[0].mxu0
      %v6624 = vadd.f32 0.0, %v6623
      %v6625 = vpop.f32.mrb[0].mxu0
      %6626 = vmatprep.mubr.bf16.mxu0 0
      %6627 = vmatmul.mubr.bf16.gmra.mrb[0].mxu0 %v6483
      %v6628 = vpop.f32.mrb[0].mxu0
      %v6629 = vadd.f32 0.0, %v6628
      %v6630 = vpop.f32.mrb[0].mxu0
      %v6631 = vpop.f32.mrb[0].mxu0
      %v6632 = vadd.f32 0.0, %v6631
      %v6633 = vpop.f32.mrb[0].mxu0
      %6634 = vmatprep.mubr.bf16.mxu0 0
      %6635 = vmatmul.mubr.bf16.gmra.mrb[0].mxu0 %v6486
      %v6636 = vpop.f32.mrb[0].mxu0
      %v6637 = vadd.f32 0.0, %v6636
      %v6638 = vpop.f32.mrb[0].mxu0
      %v6639 = vpop.f32.mrb[0].mxu0
      %v6640 = vadd.f32 0.0, %v6639
      %v6641 = vpop.f32.mrb[0].mxu0
      %6642 = vmatprep.mubr.bf16.mxu0 0
      %6643 = vmatmul.mubr.bf16.gmra.mrb[0].mxu0 %v6489
      %v6644 = vpop.f32.mrb[0].mxu0
      %v6645 = vadd.f32 0.0, %v6644
      %v6646 = vpop.f32.mrb[0].mxu0
      %v6647 = vpop.f32.mrb[0].mxu0
      %v6648 = vadd.f32 0.0, %v6647
      %v6649 = vpop.f32.mrb[0].mxu0
      %6650 = vmatprep.mubr.bf16.mxu0 0
      %6651 = vmatmul.mubr.bf16.gmra.mrb[0].mxu0 %v6492
      %v6652 = vpop.f32.mrb[0].mxu0
      %v6653 = vadd.f32 0.0, %v6652
      %v6654 = vpop.f32.mrb[0].mxu0
      %v6655 = vpop.f32.mrb[0].mxu0
      %v6656 = vadd.f32 0.0, %v6655
      %v6657 = vpop.f32.mrb[0].mxu0
      %6658 = vmatprep.mubr.bf16.mxu0 0
      %6659 = vmatmul.mubr.bf16.gmra.mrb[0].mxu0 %v6495
      %v6660 = vpop.f32.mrb[0].mxu0
      %v6661 = vadd.f32 0.0, %v6660
      %v6662 = vpop.f32.mrb[0].mxu0
      %v6663 = vpop.f32.mrb[0].mxu0
      %v6664 = vadd.f32 0.0, %v6663
      %v6665 = vpop.f32.mrb[0].mxu0
      %6666 = vmatprep.mubr.bf16.mxu0 0
      %6667 = vmatmul.mubr.bf16.gmra.mrb[0].mxu0 %v6498
      %v6668 = vpop.f32.mrb[0].mxu0
      %v6669 = vadd.f32 0.0, %v6668
      %v6670 = vpop.f32.mrb[0].mxu0
      %v6671 = vpop.f32.mrb[0].mxu0
      %v6672 = vadd.f32 0.0, %v6671
      %v6673 = vpop.f32.mrb[0].mxu0
      %6674 = vmatprep.mubr.bf16.mxu0 0
      %6675 = vmatmul.mubr.bf16.gmra.mrb[0].mxu0 %v6501
      %v6676 = vpop.f32.mrb[0].mxu0
      %v6677 = vadd.f32 0.0, %v6676
      %v6678 = vpop.f32.mrb[0].mxu0
      %v6679 = vpop.f32.mrb[0].mxu0
      %v6680 = vadd.f32 0.0, %v6679
      %v6681 = vpop.f32.mrb[0].mxu0
      %6682 = vmatprep.mubr.bf16.mxu0 0
      %6683 = vmatmul.mubr.bf16.gmra.mrb[0].mxu0 %v6504
      %v6684 = vpop.f32.mrb[0].mxu0
      %v6685 = vadd.f32 0.0, %v6684
      %v6686 = vpop.f32.mrb[0].mxu0
      %v6687 = vpop.f32.mrb[0].mxu0
      %v6688 = vadd.f32 0.0, %v6687
      %v6689 = vpop.f32.mrb[0].mxu0
      %6690 = vmatprep.mubr.bf16.mxu0 0
      %6691 = vmatmul.mubr.bf16.gmra.mrb[0].mxu0 %v6507
      %v6692 = vpop.f32.mrb[0].mxu0
      %v6693 = vadd.f32 0.0, %v6692
      %v6694 = vpop.f32.mrb[0].mxu0
      %v6695 = vpop.f32.mrb[0].mxu0
      %v6696 = vadd.f32 0.0, %v6695
      %v6697 = vpop.f32.mrb[0].mxu0
      %6698 = vmatprep.mubr.bf16.mxu0 0
      %6699 = vmatmul.mubr.bf16.gmra.mrb[0].mxu0 %v6510
      %v6700 = vpop.f32.mrb[0].mxu0
      %v6701 = vadd.f32 0.0, %v6700
      %v6702 = vpop.f32.mrb[0].mxu0
      %v6703 = vpop.f32.mrb[0].mxu0
      %v6704 = vadd.f32 0.0, %v6703
      %v6705 = vpop.f32.mrb[0].mxu0
      %6706 = vmatprep.mubr.bf16.mxu0 0
      %6707 = vmatmul.mubr.bf16.gmra.mrb[0].mxu0 %v6513
      %v6708 = vpop.f32.mrb[0].mxu0
      %v6709 = vadd.f32 0.0, %v6708
      %v6710 = vpop.f32.mrb[0].mxu0
      %v6711 = vpop.f32.mrb[0].mxu0
      %v6712 = vadd.f32 0.0, %v6711
      %v6713 = vpop.f32.mrb[0].mxu0
      %6714 = vmatprep.mubr.bf16.mxu0 0
      %6715 = vmatmul.mubr.bf16.gmra.mrb[0].mxu0 %v6516
      %v6716 = vpop.f32.mrb[0].mxu0
      %v6717 = vadd.f32 0.0, %v6716
      %v6718 = vpop.f32.mrb[0].mxu0
      %v6719 = vpop.f32.mrb[0].mxu0
      %v6720 = vadd.f32 0.0, %v6719
      %v6721 = vpop.f32.mrb[0].mxu0
      %6722 = vmatprep.mubr.bf16.mxu0 0
      %6723 = vmatmul.mubr.bf16.gmra.mrb[0].mxu0 %v6519
      %v6724 = vpop.f32.mrb[0].mxu0
      %v6725 = vadd.f32 0.0, %v6724
      %v6726 = vpop.f32.mrb[0].mxu0
      %v6727 = vpop.f32.mrb[0].mxu0
      %v6728 = vadd.f32 0.0, %v6727
      %v6729 = vpop.f32.mrb[0].mxu0
      %6730 = vmatprep.mubr.bf16.mxu0 0
      %6731 = vmatmul.mubr.bf16.gmra.mrb[0].mxu0 %v6522
      %v6732 = vpop.f32.mrb[0].mxu0
      %v6733 = vadd.f32 0.0, %v6732
      %v6734 = vpop.f32.mrb[0].mxu0
      %v6735 = vpop.f32.mrb[0].mxu0
      %v6736 = vadd.f32 0.0, %v6735
      %v6737 = vpop.f32.mrb[0].mxu0
      %6738 = vmatprep.mubr.bf16.mxu0 0
      %6739 = vmatmul.mubr.bf16.gmra.mrb[0].mxu0 %v6525
      %v6740 = vpop.f32.mrb[0].mxu0
      %v6741 = vadd.f32 0.0, %v6740
      %v6742 = vpop.f32.mrb[0].mxu0
      %v6743 = vpop.f32.mrb[0].mxu0
      %v6744 = vadd.f32 0.0, %v6743
      %v6745 = vpop.f32.mrb[0].mxu0
      %6746 = vmatprep.mubr.bf16.mxu0 0
      %6747 = vmatmul.mubr.bf16.gmra.mrb[0].mxu0 %v6528
      %v6748 = vpop.f32.mrb[0].mxu0
      %v6749 = vadd.f32 0.0, %v6748
      %v6750 = vpop.f32.mrb[0].mxu0
      %v6751 = vpop.f32.mrb[0].mxu0
      %v6752 = vadd.f32 0.0, %v6751
      %v6753 = vpop.f32.mrb[0].mxu0
      %6754 = vdwg.mxu0
      %v6759 = vunpack.c.l.b16 %v6257
      %v6760 = vunpack.c.l.b16 %v6258
      %v6761 = vunpack.c.l.b16 %v6259
      %v6762 = vunpack.c.l.b16 %v6260
      %v6763 = vpack.c.b16 %v6760, %v6759
      %v6764 = vpack.c.b16 %v6762, %v6761
      %v6768 = vsel %vm327, %v6350, 0
      %v6771 = vsel %vm327, %v6351, 0
      %v6774 = vsel %vm327, %v6352, 0
      %v6777 = vsel %vm327, %v6353, 0
      %v6780 = vsel %vm327, %v6354, 0
      %v6783 = vsel %vm327, %v6355, 0
      %v6786 = vsel %vm327, %v6356, 0
      %v6789 = vsel %vm327, %v6357, 0
      %v6792 = vsel %vm327, %v6358, 0
      %v6795 = vsel %vm327, %v6359, 0
      %v6798 = vsel %vm327, %v6360, 0
      %v6801 = vsel %vm327, %v6361, 0
      %v6804 = vsel %vm327, %v6362, 0
      %v6807 = vsel %vm327, %v6363, 0
      %v6810 = vsel %vm327, %v6364, 0
      %v6813 = vsel %vm327, %v6365, 0
      %v6816 = vsel %vm327, %v6366, 0
      %v6819 = vsel %vm327, %v6367, 0
      %v6822 = vsel %vm327, %v6368, 0
      %v6825 = vsel %vm327, %v6369, 0
      %v6828 = vsel %vm327, %v6370, 0
      %v6831 = vsel %vm327, %v6371, 0
      %v6834 = vsel %vm327, %v6372, 0
      %v6837 = vsel %vm327, %v6373, 0
      %6839 = vmatprep.subr.bf16.mxu0 0
      %6840 = vmatpush1.bf16.msra.mxu0 %v6763
      %6841 = vmatprep.subr.bf16.mxu0 0
      %6842 = vmatpush1.bf16.msra.mxu0 %v6764
      %6843 = vmatprep.subr.bf16.mxu0 0
      %6844 = vmatpush1.bf16.msra.mxu0 0
      %6845 = vmatprep.subr.bf16.mxu0 0
      %6846 = vmatpush1.bf16.msra.mxu0 0
      %6847 = vmatprep.subr.bf16.mxu0 0
      %6848 = vmatpush1.bf16.msra.mxu0 0
      %6849 = vmatprep.subr.bf16.mxu0 0
      %6850 = vmatpush1.bf16.msra.mxu0 0
      %6851 = vmatprep.subr.bf16.mxu0 0
      %6852 = vmatpush1.bf16.msra.mxu0 0
      %6853 = vmatprep.subr.bf16.mxu0 0
      %6854 = vmatpush1.bf16.msra.mxu0 0
      %6855 = vmatprep.subr.bf16.mxu0 0
      %6856 = vmatpush1.bf16.msra.mxu0 0
      %6857 = vmatprep.subr.bf16.mxu0 0
      %6858 = vmatpush1.bf16.msra.mxu0 0
      %6859 = vmatprep.subr.bf16.mxu0 0
      %6860 = vmatpush1.bf16.msra.mxu0 0
      %6861 = vmatprep.subr.bf16.mxu0 0
      %6862 = vmatpush1.bf16.msra.mxu0 0
      %6863 = vmatprep.subr.bf16.mxu0 0
      %6864 = vmatpush1.bf16.msra.mxu0 0
      %6865 = vmatprep.subr.bf16.mxu0 0
      %6866 = vmatpush1.bf16.msra.mxu0 0
      %6867 = vmatprep.subr.bf16.mxu0 0
      %6868 = vmatpush1.bf16.msra.mxu0 0
      %6869 = vmatprep.subr.bf16.mxu0 0
      %6870 = vmatpush1.bf16.msra.mxu0 0
      %6871 = vmatprep.mubr.bf16.mxu0 0
      %6872 = vmatmul.mubr.bf16.gmra.mrb[0].mxu0 %v6768
      %v6873 = vpop.f32.mrb[0].mxu0
      %v6874 = vadd.f32 %v6565, %v6873
      %v6875 = vpop.f32.mrb[0].mxu0
      %v6876 = vpop.f32.mrb[0].mxu0
      %v6877 = vadd.f32 %v6568, %v6876
      %v6878 = vpop.f32.mrb[0].mxu0
      %6879 = vmatprep.mubr.bf16.mxu0 0
      %6880 = vmatmul.mubr.bf16.gmra.mrb[0].mxu0 %v6771
      %v6881 = vpop.f32.mrb[0].mxu0
      %v6882 = vadd.f32 %v6573, %v6881
      %v6883 = vpop.f32.mrb[0].mxu0
      %v6884 = vpop.f32.mrb[0].mxu0
      %v6885 = vadd.f32 %v6576, %v6884
      %v6886 = vpop.f32.mrb[0].mxu0
      %6887 = vmatprep.mubr.bf16.mxu0 0
      %6888 = vmatmul.mubr.bf16.gmra.mrb[0].mxu0 %v6774
      %v6889 = vpop.f32.mrb[0].mxu0
      %v6890 = vadd.f32 %v6581, %v6889
      %v6891 = vpop.f32.mrb[0].mxu0
      %v6892 = vpop.f32.mrb[0].mxu0
      %v6893 = vadd.f32 %v6584, %v6892
      %v6894 = vpop.f32.mrb[0].mxu0
      %6895 = vmatprep.mubr.bf16.mxu0 0
      %6896 = vmatmul.mubr.bf16.gmra.mrb[0].mxu0 %v6777
      %v6897 = vpop.f32.mrb[0].mxu0
      %v6898 = vadd.f32 %v6589, %v6897
      %v6899 = vpop.f32.mrb[0].mxu0
      %v6900 = vpop.f32.mrb[0].mxu0
      %v6901 = vadd.f32 %v6592, %v6900
      %v6902 = vpop.f32.mrb[0].mxu0
      %6903 = vmatprep.mubr.bf16.mxu0 0
      %6904 = vmatmul.mubr.bf16.gmra.mrb[0].mxu0 %v6780
      %v6905 = vpop.f32.mrb[0].mxu0
      %v6906 = vadd.f32 %v6597, %v6905
      %v6907 = vpop.f32.mrb[0].mxu0
      %v6908 = vpop.f32.mrb[0].mxu0
      %v6909 = vadd.f32 %v6600, %v6908
      %v6910 = vpop.f32.mrb[0].mxu0
      %6911 = vmatprep.mubr.bf16.mxu0 0
      %6912 = vmatmul.mubr.bf16.gmra.mrb[0].mxu0 %v6783
      %v6913 = vpop.f32.mrb[0].mxu0
      %v6914 = vadd.f32 %v6605, %v6913
      %v6915 = vpop.f32.mrb[0].mxu0
      %v6916 = vpop.f32.mrb[0].mxu0
      %v6917 = vadd.f32 %v6608, %v6916
      %v6918 = vpop.f32.mrb[0].mxu0
      %6919 = vmatprep.mubr.bf16.mxu0 0
      %6920 = vmatmul.mubr.bf16.gmra.mrb[0].mxu0 %v6786
      %v6921 = vpop.f32.mrb[0].mxu0
      %v6922 = vadd.f32 %v6613, %v6921
      %v6923 = vpop.f32.mrb[0].mxu0
      %v6924 = vpop.f32.mrb[0].mxu0
      %v6925 = vadd.f32 %v6616, %v6924
      %v6926 = vpop.f32.mrb[0].mxu0
      %6927 = vmatprep.mubr.bf16.mxu0 0
      %6928 = vmatmul.mubr.bf16.gmra.mrb[0].mxu0 %v6789
      %v6929 = vpop.f32.mrb[0].mxu0
      %v6930 = vadd.f32 %v6621, %v6929
      %v6931 = vpop.f32.mrb[0].mxu0
      %v6932 = vpop.f32.mrb[0].mxu0
      %v6933 = vadd.f32 %v6624, %v6932
      %v6934 = vpop.f32.mrb[0].mxu0
      %6935 = vmatprep.mubr.bf16.mxu0 0
      %6936 = vmatmul.mubr.bf16.gmra.mrb[0].mxu0 %v6792
      %v6937 = vpop.f32.mrb[0].mxu0
      %v6938 = vadd.f32 %v6629, %v6937
      %v6939 = vpop.f32.mrb[0].mxu0
      %v6940 = vpop.f32.mrb[0].mxu0
      %v6941 = vadd.f32 %v6632, %v6940
      %v6942 = vpop.f32.mrb[0].mxu0
      %6943 = vmatprep.mubr.bf16.mxu0 0
      %6944 = vmatmul.mubr.bf16.gmra.mrb[0].mxu0 %v6795
      %v6945 = vpop.f32.mrb[0].mxu0
      %v6946 = vadd.f32 %v6637, %v6945
      %v6947 = vpop.f32.mrb[0].mxu0
      %v6948 = vpop.f32.mrb[0].mxu0
      %v6949 = vadd.f32 %v6640, %v6948
      %v6950 = vpop.f32.mrb[0].mxu0
      %6951 = vmatprep.mubr.bf16.mxu0 0
      %6952 = vmatmul.mubr.bf16.gmra.mrb[0].mxu0 %v6798
      %v6953 = vpop.f32.mrb[0].mxu0
      %v6954 = vadd.f32 %v6645, %v6953
      %v6955 = vpop.f32.mrb[0].mxu0
      %v6956 = vpop.f32.mrb[0].mxu0
      %v6957 = vadd.f32 %v6648, %v6956
      %v6958 = vpop.f32.mrb[0].mxu0
      %6959 = vmatprep.mubr.bf16.mxu0 0
      %6960 = vmatmul.mubr.bf16.gmra.mrb[0].mxu0 %v6801
      %v6961 = vpop.f32.mrb[0].mxu0
      %v6962 = vadd.f32 %v6653, %v6961
      %v6963 = vpop.f32.mrb[0].mxu0
      %v6964 = vpop.f32.mrb[0].mxu0
      %v6965 = vadd.f32 %v6656, %v6964
      %v6966 = vpop.f32.mrb[0].mxu0
      %6967 = vmatprep.mubr.bf16.mxu0 0
      %6968 = vmatmul.mubr.bf16.gmra.mrb[0].mxu0 %v6804
      %v6969 = vpop.f32.mrb[0].mxu0
      %v6970 = vadd.f32 %v6661, %v6969
      %v6971 = vpop.f32.mrb[0].mxu0
      %v6972 = vpop.f32.mrb[0].mxu0
      %v6973 = vadd.f32 %v6664, %v6972
      %v6974 = vpop.f32.mrb[0].mxu0
      %6975 = vmatprep.mubr.bf16.mxu0 0
      %6976 = vmatmul.mubr.bf16.gmra.mrb[0].mxu0 %v6807
      %v6977 = vpop.f32.mrb[0].mxu0
      %v6978 = vadd.f32 %v6669, %v6977
      %v6979 = vpop.f32.mrb[0].mxu0
      %v6980 = vpop.f32.mrb[0].mxu0
      %v6981 = vadd.f32 %v6672, %v6980
      %v6982 = vpop.f32.mrb[0].mxu0
      %6983 = vmatprep.mubr.bf16.mxu0 0
      %6984 = vmatmul.mubr.bf16.gmra.mrb[0].mxu0 %v6810
      %v6985 = vpop.f32.mrb[0].mxu0
      %v6986 = vadd.f32 %v6677, %v6985
      %v6987 = vpop.f32.mrb[0].mxu0
      %v6988 = vpop.f32.mrb[0].mxu0
      %v6989 = vadd.f32 %v6680, %v6988
      %v6990 = vpop.f32.mrb[0].mxu0
      %6991 = vmatprep.mubr.bf16.mxu0 0
      %6992 = vmatmul.mubr.bf16.gmra.mrb[0].mxu0 %v6813
      %v6993 = vpop.f32.mrb[0].mxu0
      %v6994 = vadd.f32 %v6685, %v6993
      %v6995 = vpop.f32.mrb[0].mxu0
      %v6996 = vpop.f32.mrb[0].mxu0
      %v6997 = vadd.f32 %v6688, %v6996
      %v6998 = vpop.f32.mrb[0].mxu0
      %6999 = vmatprep.mubr.bf16.mxu0 0
      %7000 = vmatmul.mubr.bf16.gmra.mrb[0].mxu0 %v6816
      %v7001 = vpop.f32.mrb[0].mxu0
      %v7002 = vadd.f32 %v6693, %v7001
      %v7003 = vpop.f32.mrb[0].mxu0
      %v7004 = vpop.f32.mrb[0].mxu0
      %v7005 = vadd.f32 %v6696, %v7004
      %v7006 = vpop.f32.mrb[0].mxu0
      %7007 = vmatprep.mubr.bf16.mxu0 0
      %7008 = vmatmul.mubr.bf16.gmra.mrb[0].mxu0 %v6819
      %v7009 = vpop.f32.mrb[0].mxu0
      %v7010 = vadd.f32 %v6701, %v7009
      %v7011 = vpop.f32.mrb[0].mxu0
      %v7012 = vpop.f32.mrb[0].mxu0
      %v7013 = vadd.f32 %v6704, %v7012
      %v7014 = vpop.f32.mrb[0].mxu0
      %7015 = vmatprep.mubr.bf16.mxu0 0
      %7016 = vmatmul.mubr.bf16.gmra.mrb[0].mxu0 %v6822
      %v7017 = vpop.f32.mrb[0].mxu0
      %v7018 = vadd.f32 %v6709, %v7017
      %v7019 = vpop.f32.mrb[0].mxu0
      %v7020 = vpop.f32.mrb[0].mxu0
      %v7021 = vadd.f32 %v6712, %v7020
      %v7022 = vpop.f32.mrb[0].mxu0
      %7023 = vmatprep.mubr.bf16.mxu0 0
      %7024 = vmatmul.mubr.bf16.gmra.mrb[0].mxu0 %v6825
      %v7025 = vpop.f32.mrb[0].mxu0
      %v7026 = vadd.f32 %v6717, %v7025
      %v7027 = vpop.f32.mrb[0].mxu0
      %v7028 = vpop.f32.mrb[0].mxu0
      %v7029 = vadd.f32 %v6720, %v7028
      %v7030 = vpop.f32.mrb[0].mxu0
      %7031 = vmatprep.mubr.bf16.mxu0 0
      %7032 = vmatmul.mubr.bf16.gmra.mrb[0].mxu0 %v6828
      %v7033 = vpop.f32.mrb[0].mxu0
      %v7034 = vadd.f32 %v6725, %v7033
      %v7035 = vpop.f32.mrb[0].mxu0
      %v7036 = vpop.f32.mrb[0].mxu0
      %v7037 = vadd.f32 %v6728, %v7036
      %v7038 = vpop.f32.mrb[0].mxu0
      %7039 = vmatprep.mubr.bf16.mxu0 0
      %7040 = vmatmul.mubr.bf16.gmra.mrb[0].mxu0 %v6831
      %v7041 = vpop.f32.mrb[0].mxu0
      %v7042 = vadd.f32 %v6733, %v7041
      %v7043 = vpop.f32.mrb[0].mxu0
      %v7044 = vpop.f32.mrb[0].mxu0
      %v7045 = vadd.f32 %v6736, %v7044
      %v7046 = vpop.f32.mrb[0].mxu0
      %7047 = vmatprep.mubr.bf16.mxu0 0
      %7048 = vmatmul.mubr.bf16.gmra.mrb[0].mxu0 %v6834
      %v7049 = vpop.f32.mrb[0].mxu0
      %v7050 = vadd.f32 %v6741, %v7049
      %v7051 = vpop.f32.mrb[0].mxu0
      %v7052 = vpop.f32.mrb[0].mxu0
      %v7053 = vadd.f32 %v6744, %v7052
      %v7054 = vpop.f32.mrb[0].mxu0
      %7055 = vmatprep.mubr.bf16.mxu0 0
      %7056 = vmatmul.mubr.bf16.gmra.mrb[0].mxu0 %v6837
      %v7057 = vpop.f32.mrb[0].mxu0
      %v7058 = vadd.f32 %v6749, %v7057
      %v7059 = vpop.f32.mrb[0].mxu0
      %v7060 = vpop.f32.mrb[0].mxu0
      %v7061 = vadd.f32 %v6752, %v7060
      %v7062 = vpop.f32.mrb[0].mxu0
      %7063 = vdwg.mxu0
      %v7064 = vld [vmem:[%s1447] sm:$0xff]
      %v7065 = vld [vmem:[%s1447 + $0x8] sm:$0xff]
      %v7066 = vld [vmem:[%s1447 + $0x10] sm:$0xff]
      %v7067 = vld [vmem:[%s1447 + $0x18] sm:$0xff]
      %v7068 = vld [vmem:[%s1447 + $0x20] sm:$0xff]
      %v7069 = vld [vmem:[%s1447 + $0x28] sm:$0xff]
      %v7070 = vld [vmem:[%s1447 + $0x30] sm:$0xff]
      %v7071 = vld [vmem:[%s1447 + $0x38] sm:$0xff]
      %v7072 = vld [vmem:[%s1447 + $0x40] sm:$0xff]
      %v7073 = vld [vmem:[%s1447 + $0x48] sm:$0xff]
      %v7074 = vld [vmem:[%s1447 + $0x50] sm:$0xff]
      %v7075 = vld [vmem:[%s1447 + $0x58] sm:$0xff]
      %v7076 = vld [vmem:[%s1447 + $0x60] sm:$0xff]
      %v7077 = vld [vmem:[%s1447 + $0x68] sm:$0xff]
      %v7078 = vld [vmem:[%s1447 + $0x70] sm:$0xff]
      %v7079 = vld [vmem:[%s1447 + $0x78] sm:$0xff]
      %v7080 = vld [vmem:[%s1447 + $0x80] sm:$0xff]
      %v7081 = vld [vmem:[%s1447 + $0x88] sm:$0xff]
      %v7082 = vld [vmem:[%s1447 + $0x90] sm:$0xff]
      %v7083 = vld [vmem:[%s1447 + $0x98] sm:$0xff]
      %v7084 = vld [vmem:[%s1447 + $0xa0] sm:$0xff]
      %v7085 = vld [vmem:[%s1447 + $0xa8] sm:$0xff]
      %v7086 = vld [vmem:[%s1447 + $0xb0] sm:$0xff]
      %v7087 = vld [vmem:[%s1447 + $0xb8] sm:$0xff]
      %v7088 = vld [vmem:[%s1447 + $0xc0] sm:$0xff]
      %v7089 = vld [vmem:[%s1447 + $0xc8] sm:$0xff]
      %v7090 = vld [vmem:[%s1447 + $0xd0] sm:$0xff]
      %v7091 = vld [vmem:[%s1447 + $0xd8] sm:$0xff]
      %v7092 = vld [vmem:[%s1447 + $0xe0] sm:$0xff]
      %v7093 = vld [vmem:[%s1447 + $0xe8] sm:$0xff]
      %v7094 = vld [vmem:[%s1447 + $0xf0] sm:$0xff]
      %v7095 = vld [vmem:[%s1447 + $0xf8] sm:$0xff]
      %v7096 = vld [vmem:[%s1447 + $0x100] sm:$0xff]
      %v7097 = vld [vmem:[%s1447 + $0x108] sm:$0xff]
      %v7098 = vld [vmem:[%s1447 + $0x110] sm:$0xff]
      %v7099 = vld [vmem:[%s1447 + $0x118] sm:$0xff]
      %v7100 = vld [vmem:[%s1447 + $0x120] sm:$0xff]
      %v7101 = vld [vmem:[%s1447 + $0x128] sm:$0xff]
      %v7102 = vld [vmem:[%s1447 + $0x130] sm:$0xff]
      %v7103 = vld [vmem:[%s1447 + $0x138] sm:$0xff]
      %v7104 = vld [vmem:[%s1447 + $0x140] sm:$0xff]
      %v7105 = vld [vmem:[%s1447 + $0x148] sm:$0xff]
      %v7106 = vld [vmem:[%s1447 + $0x150] sm:$0xff]
      %v7107 = vld [vmem:[%s1447 + $0x158] sm:$0xff]
      %v7108 = vld [vmem:[%s1447 + $0x160] sm:$0xff]
      %v7109 = vld [vmem:[%s1447 + $0x168] sm:$0xff]
      %v7110 = vld [vmem:[%s1447 + $0x170] sm:$0xff]
      %v7111 = vld [vmem:[%s1447 + $0x178] sm:$0xff]
      %v7112 = vpack.c.bf16 %v7065, %v7064
      %v7113 = vpack.c.bf16 %v7067, %v7066
      %v7114 = vpack.c.bf16 %v7069, %v7068
      %v7115 = vpack.c.bf16 %v7071, %v7070
      %v7116 = vpack.c.bf16 %v7073, %v7072
      %v7117 = vpack.c.bf16 %v7075, %v7074
      %v7118 = vpack.c.bf16 %v7077, %v7076
      %v7119 = vpack.c.bf16 %v7079, %v7078
      %v7120 = vpack.c.bf16 %v7081, %v7080
      %v7121 = vpack.c.bf16 %v7083, %v7082
      %v7122 = vpack.c.bf16 %v7085, %v7084
      %v7123 = vpack.c.bf16 %v7087, %v7086
      %v7124 = vpack.c.bf16 %v7089, %v7088
      %v7125 = vpack.c.bf16 %v7091, %v7090
      %v7126 = vpack.c.bf16 %v7093, %v7092
      %v7127 = vpack.c.bf16 %v7095, %v7094
      %v7128 = vpack.c.bf16 %v7097, %v7096
      %v7129 = vpack.c.bf16 %v7099, %v7098
      %v7130 = vpack.c.bf16 %v7101, %v7100
      %v7131 = vpack.c.bf16 %v7103, %v7102
      %v7132 = vpack.c.bf16 %v7105, %v7104
      %v7133 = vpack.c.bf16 %v7107, %v7106
      %v7134 = vpack.c.bf16 %v7109, %v7108
      %v7135 = vpack.c.bf16 %v7111, %v7110
      %v7140 = vunpack.c.l.b16 %v6265
      %v7141 = vunpack.c.l.b16 %v6266
      %v7142 = vunpack.c.l.b16 %v6267
      %v7143 = vunpack.c.l.b16 %v6268
      %v7144 = vpack.c.b16 %v7141, %v7140
      %v7145 = vpack.c.b16 %v7143, %v7142
      %v7149 = vsel %vm327, %v7112, 0
      %v7152 = vsel %vm327, %v7113, 0
      %v7155 = vsel %vm327, %v7114, 0
      %v7158 = vsel %vm327, %v7115, 0
      %v7161 = vsel %vm327, %v7116, 0
      %v7164 = vsel %vm327, %v7117, 0
      %v7167 = vsel %vm327, %v7118, 0
      %v7170 = vsel %vm327, %v7119, 0
      %v7173 = vsel %vm327, %v7120, 0
      %v7176 = vsel %vm327, %v7121, 0
      %v7179 = vsel %vm327, %v7122, 0
      %v7182 = vsel %vm327, %v7123, 0
      %v7185 = vsel %vm327, %v7124, 0
      %v7188 = vsel %vm327, %v7125, 0
      %v7191 = vsel %vm327, %v7126, 0
      %v7194 = vsel %vm327, %v7127, 0
      %v7197 = vsel %vm327, %v7128, 0
      %v7200 = vsel %vm327, %v7129, 0
      %v7203 = vsel %vm327, %v7130, 0
      %v7206 = vsel %vm327, %v7131, 0
      %v7209 = vsel %vm327, %v7132, 0
      %v7212 = vsel %vm327, %v7133, 0
      %v7215 = vsel %vm327, %v7134, 0
      %v7218 = vsel %vm327, %v7135, 0
      %7220 = vmatprep.subr.bf16.mxu0 0
      %7221 = vmatpush1.bf16.msra.mxu0 %v7144
      %7222 = vmatprep.subr.bf16.mxu0 0
      %7223 = vmatpush1.bf16.msra.mxu0 %v7145
      %7224 = vmatprep.subr.bf16.mxu0 0
      %7225 = vmatpush1.bf16.msra.mxu0 0
      %7226 = vmatprep.subr.bf16.mxu0 0
      %7227 = vmatpush1.bf16.msra.mxu0 0
      %7228 = vmatprep.subr.bf16.mxu0 0
      %7229 = vmatpush1.bf16.msra.mxu0 0
      %7230 = vmatprep.subr.bf16.mxu0 0
      %7231 = vmatpush1.bf16.msra.mxu0 0
      %7232 = vmatprep.subr.bf16.mxu0 0
      %7233 = vmatpush1.bf16.msra.mxu0 0
      %7234 = vmatprep.subr.bf16.mxu0 0
      %7235 = vmatpush1.bf16.msra.mxu0 0
      %7236 = vmatprep.subr.bf16.mxu0 0
      %7237 = vmatpush1.bf16.msra.mxu0 0
      %7238 = vmatprep.subr.bf16.mxu0 0
      %7239 = vmatpush1.bf16.msra.mxu0 0
      %7240 = vmatprep.subr.bf16.mxu0 0
      %7241 = vmatpush1.bf16.msra.mxu0 0
      %7242 = vmatprep.subr.bf16.mxu0 0
      %7243 = vmatpush1.bf16.msra.mxu0 0
      %7244 = vmatprep.subr.bf16.mxu0 0
      %7245 = vmatpush1.bf16.msra.mxu0 0
      %7246 = vmatprep.subr.bf16.mxu0 0
      %7247 = vmatpush1.bf16.msra.mxu0 0
      %7248 = vmatprep.subr.bf16.mxu0 0
      %7249 = vmatpush1.bf16.msra.mxu0 0
      %7250 = vmatprep.subr.bf16.mxu0 0
      %7251 = vmatpush1.bf16.msra.mxu0 0
      %7252 = vmatprep.mubr.bf16.mxu0 0
      %7253 = vmatmul.mubr.bf16.gmra.mrb[0].mxu0 %v7149
      %v7254 = vpop.f32.mrb[0].mxu0
      %v7255 = vadd.f32 0.0, %v7254
      %v7256 = vpop.f32.mrb[0].mxu0
      %v7257 = vpop.f32.mrb[0].mxu0
      %v7258 = vadd.f32 0.0, %v7257
      %v7259 = vpop.f32.mrb[0].mxu0
      %7260 = vmatprep.mubr.bf16.mxu0 0
      %7261 = vmatmul.mubr.bf16.gmra.mrb[0].mxu0 %v7152
      %v7262 = vpop.f32.mrb[0].mxu0
      %v7263 = vadd.f32 0.0, %v7262
      %v7264 = vpop.f32.mrb[0].mxu0
      %v7265 = vpop.f32.mrb[0].mxu0
      %v7266 = vadd.f32 0.0, %v7265
      %v7267 = vpop.f32.mrb[0].mxu0
      %7268 = vmatprep.mubr.bf16.mxu0 0
      %7269 = vmatmul.mubr.bf16.gmra.mrb[0].mxu0 %v7155
      %v7270 = vpop.f32.mrb[0].mxu0
      %v7271 = vadd.f32 0.0, %v7270
      %v7272 = vpop.f32.mrb[0].mxu0
      %v7273 = vpop.f32.mrb[0].mxu0
      %v7274 = vadd.f32 0.0, %v7273
      %v7275 = vpop.f32.mrb[0].mxu0
      %7276 = vmatprep.mubr.bf16.mxu0 0
      %7277 = vmatmul.mubr.bf16.gmra.mrb[0].mxu0 %v7158
      %v7278 = vpop.f32.mrb[0].mxu0
      %v7279 = vadd.f32 0.0, %v7278
      %v7280 = vpop.f32.mrb[0].mxu0
      %v7281 = vpop.f32.mrb[0].mxu0
      %v7282 = vadd.f32 0.0, %v7281
      %v7283 = vpop.f32.mrb[0].mxu0
      %7284 = vmatprep.mubr.bf16.mxu0 0
      %7285 = vmatmul.mubr.bf16.gmra.mrb[0].mxu0 %v7161
      %v7286 = vpop.f32.mrb[0].mxu0
      %v7287 = vadd.f32 0.0, %v7286
      %v7288 = vpop.f32.mrb[0].mxu0
      %v7289 = vpop.f32.mrb[0].mxu0
      %v7290 = vadd.f32 0.0, %v7289
      %v7291 = vpop.f32.mrb[0].mxu0
      %7292 = vmatprep.mubr.bf16.mxu0 0
      %7293 = vmatmul.mubr.bf16.gmra.mrb[0].mxu0 %v7164
      %v7294 = vpop.f32.mrb[0].mxu0
      %v7295 = vadd.f32 0.0, %v7294
      %v7296 = vpop.f32.mrb[0].mxu0
      %v7297 = vpop.f32.mrb[0].mxu0
      %v7298 = vadd.f32 0.0, %v7297
      %v7299 = vpop.f32.mrb[0].mxu0
      %7300 = vmatprep.mubr.bf16.mxu0 0
      %7301 = vmatmul.mubr.bf16.gmra.mrb[0].mxu0 %v7167
      %v7302 = vpop.f32.mrb[0].mxu0
      %v7303 = vadd.f32 0.0, %v7302
      %v7304 = vpop.f32.mrb[0].mxu0
      %v7305 = vpop.f32.mrb[0].mxu0
      %v7306 = vadd.f32 0.0, %v7305
      %v7307 = vpop.f32.mrb[0].mxu0
      %7308 = vmatprep.mubr.bf16.mxu0 0
      %7309 = vmatmul.mubr.bf16.gmra.mrb[0].mxu0 %v7170
      %v7310 = vpop.f32.mrb[0].mxu0
      %v7311 = vadd.f32 0.0, %v7310
      %v7312 = vpop.f32.mrb[0].mxu0
      %v7313 = vpop.f32.mrb[0].mxu0
      %v7314 = vadd.f32 0.0, %v7313
      %v7315 = vpop.f32.mrb[0].mxu0
      %7316 = vmatprep.mubr.bf16.mxu0 0
      %7317 = vmatmul.mubr.bf16.gmra.mrb[0].mxu0 %v7173
      %v7318 = vpop.f32.mrb[0].mxu0
      %v7319 = vadd.f32 0.0, %v7318
      %v7320 = vpop.f32.mrb[0].mxu0
      %v7321 = vpop.f32.mrb[0].mxu0
      %v7322 = vadd.f32 0.0, %v7321
      %v7323 = vpop.f32.mrb[0].mxu0
      %7324 = vmatprep.mubr.bf16.mxu0 0
      %7325 = vmatmul.mubr.bf16.gmra.mrb[0].mxu0 %v7176
      %v7326 = vpop.f32.mrb[0].mxu0
      %v7327 = vadd.f32 0.0, %v7326
      %v7328 = vpop.f32.mrb[0].mxu0
      %v7329 = vpop.f32.mrb[0].mxu0
      %v7330 = vadd.f32 0.0, %v7329
      %v7331 = vpop.f32.mrb[0].mxu0
      %7332 = vmatprep.mubr.bf16.mxu0 0
      %7333 = vmatmul.mubr.bf16.gmra.mrb[0].mxu0 %v7179
      %v7334 = vpop.f32.mrb[0].mxu0
      %v7335 = vadd.f32 0.0, %v7334
      %v7336 = vpop.f32.mrb[0].mxu0
      %v7337 = vpop.f32.mrb[0].mxu0
      %v7338 = vadd.f32 0.0, %v7337
      %v7339 = vpop.f32.mrb[0].mxu0
      %7340 = vmatprep.mubr.bf16.mxu0 0
      %7341 = vmatmul.mubr.bf16.gmra.mrb[0].mxu0 %v7182
      %v7342 = vpop.f32.mrb[0].mxu0
      %v7343 = vadd.f32 0.0, %v7342
      %v7344 = vpop.f32.mrb[0].mxu0
      %v7345 = vpop.f32.mrb[0].mxu0
      %v7346 = vadd.f32 0.0, %v7345
      %v7347 = vpop.f32.mrb[0].mxu0
      %7348 = vmatprep.mubr.bf16.mxu0 0
      %7349 = vmatmul.mubr.bf16.gmra.mrb[0].mxu0 %v7185
      %v7350 = vpop.f32.mrb[0].mxu0
      %v7351 = vadd.f32 0.0, %v7350
      %v7352 = vpop.f32.mrb[0].mxu0
      %v7353 = vpop.f32.mrb[0].mxu0
      %v7354 = vadd.f32 0.0, %v7353
      %v7355 = vpop.f32.mrb[0].mxu0
      %7356 = vmatprep.mubr.bf16.mxu0 0
      %7357 = vmatmul.mubr.bf16.gmra.mrb[0].mxu0 %v7188
      %v7358 = vpop.f32.mrb[0].mxu0
      %v7359 = vadd.f32 0.0, %v7358
      %v7360 = vpop.f32.mrb[0].mxu0
      %v7361 = vpop.f32.mrb[0].mxu0
      %v7362 = vadd.f32 0.0, %v7361
      %v7363 = vpop.f32.mrb[0].mxu0
      %7364 = vmatprep.mubr.bf16.mxu0 0
      %7365 = vmatmul.mubr.bf16.gmra.mrb[0].mxu0 %v7191
      %v7366 = vpop.f32.mrb[0].mxu0
      %v7367 = vadd.f32 0.0, %v7366
      %v7368 = vpop.f32.mrb[0].mxu0
      %v7369 = vpop.f32.mrb[0].mxu0
      %v7370 = vadd.f32 0.0, %v7369
      %v7371 = vpop.f32.mrb[0].mxu0
      %7372 = vmatprep.mubr.bf16.mxu0 0
      %7373 = vmatmul.mubr.bf16.gmra.mrb[0].mxu0 %v7194
      %v7374 = vpop.f32.mrb[0].mxu0
      %v7375 = vadd.f32 0.0, %v7374
      %v7376 = vpop.f32.mrb[0].mxu0
      %v7377 = vpop.f32.mrb[0].mxu0
      %v7378 = vadd.f32 0.0, %v7377
      %v7379 = vpop.f32.mrb[0].mxu0
      %7380 = vmatprep.mubr.bf16.mxu0 0
      %7381 = vmatmul.mubr.bf16.gmra.mrb[0].mxu0 %v7197
      %v7382 = vpop.f32.mrb[0].mxu0
      %v7383 = vadd.f32 0.0, %v7382
      %v7384 = vpop.f32.mrb[0].mxu0
      %v7385 = vpop.f32.mrb[0].mxu0
      %v7386 = vadd.f32 0.0, %v7385
      %v7387 = vpop.f32.mrb[0].mxu0
      %7388 = vmatprep.mubr.bf16.mxu0 0
      %7389 = vmatmul.mubr.bf16.gmra.mrb[0].mxu0 %v7200
      %v7390 = vpop.f32.mrb[0].mxu0
      %v7391 = vadd.f32 0.0, %v7390
      %v7392 = vpop.f32.mrb[0].mxu0
      %v7393 = vpop.f32.mrb[0].mxu0
      %v7394 = vadd.f32 0.0, %v7393
      %v7395 = vpop.f32.mrb[0].mxu0
      %7396 = vmatprep.mubr.bf16.mxu0 0
      %7397 = vmatmul.mubr.bf16.gmra.mrb[0].mxu0 %v7203
      %v7398 = vpop.f32.mrb[0].mxu0
      %v7399 = vadd.f32 0.0, %v7398
      %v7400 = vpop.f32.mrb[0].mxu0
      %v7401 = vpop.f32.mrb[0].mxu0
      %v7402 = vadd.f32 0.0, %v7401
      %v7403 = vpop.f32.mrb[0].mxu0
      %7404 = vmatprep.mubr.bf16.mxu0 0
      %7405 = vmatmul.mubr.bf16.gmra.mrb[0].mxu0 %v7206
      %v7406 = vpop.f32.mrb[0].mxu0
      %v7407 = vadd.f32 0.0, %v7406
      %v7408 = vpop.f32.mrb[0].mxu0
      %v7409 = vpop.f32.mrb[0].mxu0
      %v7410 = vadd.f32 0.0, %v7409
      %v7411 = vpop.f32.mrb[0].mxu0
      %7412 = vmatprep.mubr.bf16.mxu0 0
      %7413 = vmatmul.mubr.bf16.gmra.mrb[0].mxu0 %v7209
      %v7414 = vpop.f32.mrb[0].mxu0
      %v7415 = vadd.f32 0.0, %v7414
      %v7416 = vpop.f32.mrb[0].mxu0
      %v7417 = vpop.f32.mrb[0].mxu0
      %v7418 = vadd.f32 0.0, %v7417
      %v7419 = vpop.f32.mrb[0].mxu0
      %7420 = vmatprep.mubr.bf16.mxu0 0
      %7421 = vmatmul.mubr.bf16.gmra.mrb[0].mxu0 %v7212
      %v7422 = vpop.f32.mrb[0].mxu0
      %v7423 = vadd.f32 0.0, %v7422
      %v7424 = vpop.f32.mrb[0].mxu0
      %v7425 = vpop.f32.mrb[0].mxu0
      %v7426 = vadd.f32 0.0, %v7425
      %v7427 = vpop.f32.mrb[0].mxu0
      %7428 = vmatprep.mubr.bf16.mxu0 0
      %7429 = vmatmul.mubr.bf16.gmra.mrb[0].mxu0 %v7215
      %v7430 = vpop.f32.mrb[0].mxu0
      %v7431 = vadd.f32 0.0, %v7430
      %v7432 = vpop.f32.mrb[0].mxu0
      %v7433 = vpop.f32.mrb[0].mxu0
      %v7434 = vadd.f32 0.0, %v7433
      %v7435 = vpop.f32.mrb[0].mxu0
      %7436 = vmatprep.mubr.bf16.mxu0 0
      %7437 = vmatmul.mubr.bf16.gmra.mrb[0].mxu0 %v7218
      %v7438 = vpop.f32.mrb[0].mxu0
      %v7439 = vadd.f32 0.0, %v7438
      %v7440 = vpop.f32.mrb[0].mxu0
      %v7441 = vpop.f32.mrb[0].mxu0
      %v7442 = vadd.f32 0.0, %v7441
      %v7443 = vpop.f32.mrb[0].mxu0
      %7444 = vdwg.mxu0
      %v7445 = vadd.f32 %v6874, %v7255
      %v7446 = vadd.f32 %v6877, %v7258
      %v7447 = vadd.f32 %v6882, %v7263
      %v7448 = vadd.f32 %v6885, %v7266
      %v7449 = vadd.f32 %v6890, %v7271
      %v7450 = vadd.f32 %v6893, %v7274
      %v7451 = vadd.f32 %v6898, %v7279
      %v7452 = vadd.f32 %v6901, %v7282
      %v7453 = vadd.f32 %v6906, %v7287
      %v7454 = vadd.f32 %v6909, %v7290
      %v7455 = vadd.f32 %v6914, %v7295
      %v7456 = vadd.f32 %v6917, %v7298
      %v7457 = vadd.f32 %v6922, %v7303
      %v7458 = vadd.f32 %v6925, %v7306
      %v7459 = vadd.f32 %v6930, %v7311
      %v7460 = vadd.f32 %v6933, %v7314
      %v7461 = vadd.f32 %v6938, %v7319
      %v7462 = vadd.f32 %v6941, %v7322
      %v7463 = vadd.f32 %v6946, %v7327
      %v7464 = vadd.f32 %v6949, %v7330
      %v7465 = vadd.f32 %v6954, %v7335
      %v7466 = vadd.f32 %v6957, %v7338
      %v7467 = vadd.f32 %v6962, %v7343
      %v7468 = vadd.f32 %v6965, %v7346
      %v7469 = vadd.f32 %v6970, %v7351
      %v7470 = vadd.f32 %v6973, %v7354
      %v7471 = vadd.f32 %v6978, %v7359
      %v7472 = vadd.f32 %v6981, %v7362
      %v7473 = vadd.f32 %v6986, %v7367
      %v7474 = vadd.f32 %v6989, %v7370
      %v7475 = vadd.f32 %v6994, %v7375
      %v7476 = vadd.f32 %v6997, %v7378
      %v7477 = vadd.f32 %v7002, %v7383
      %v7478 = vadd.f32 %v7005, %v7386
      %v7479 = vadd.f32 %v7010, %v7391
      %v7480 = vadd.f32 %v7013, %v7394
      %v7481 = vadd.f32 %v7018, %v7399
      %v7482 = vadd.f32 %v7021, %v7402
      %v7483 = vadd.f32 %v7026, %v7407
      %v7484 = vadd.f32 %v7029, %v7410
      %v7485 = vadd.f32 %v7034, %v7415
      %v7486 = vadd.f32 %v7037, %v7418
      %v7487 = vadd.f32 %v7042, %v7423
      %v7488 = vadd.f32 %v7045, %v7426
      %v7489 = vadd.f32 %v7050, %v7431
      %v7490 = vadd.f32 %v7053, %v7434
      %v7491 = vadd.f32 %v7058, %v7439
      %v7492 = vadd.f32 %v7061, %v7442
      %v7541 = vrot.slane %v7445, 1
      %v7542 = vrot.slane %v7446, 1
      %v7543 = vsel %vm1925, %v7541, %v7542
      %v7544 = vrot.slane %v7447, 1
      %v7545 = vsel %vm1925, %v7542, %v7544
      %v7546 = vrot.slane %v7448, 1
      %v7547 = vrot.slane %v7449, 1
      %v7548 = vsel %vm1925, %v7546, %v7547
      %v7549 = vrot.slane %v7450, 1
      %v7550 = vsel %vm1925, %v7547, %v7549
      %v7551 = vrot.slane %v7451, 1
      %v7552 = vrot.slane %v7452, 1
      %v7553 = vsel %vm1925, %v7551, %v7552
      %v7554 = vrot.slane %v7453, 1
      %v7555 = vsel %vm1925, %v7552, %v7554
      %v7556 = vrot.slane %v7454, 1
      %v7557 = vrot.slane %v7455, 1
      %v7558 = vsel %vm1925, %v7556, %v7557
      %v7559 = vrot.slane %v7456, 1
      %v7560 = vsel %vm1925, %v7557, %v7559
      %v7561 = vrot.slane %v7457, 1
      %v7562 = vrot.slane %v7458, 1
      %v7563 = vsel %vm1925, %v7561, %v7562
      %v7564 = vrot.slane %v7459, 1
      %v7565 = vsel %vm1925, %v7562, %v7564
      %v7566 = vrot.slane %v7460, 1
      %v7567 = vrot.slane %v7461, 1
      %v7568 = vsel %vm1925, %v7566, %v7567
      %v7569 = vrot.slane %v7462, 1
      %v7570 = vsel %vm1925, %v7567, %v7569
      %v7571 = vrot.slane %v7463, 1
      %v7572 = vrot.slane %v7464, 1
      %v7573 = vsel %vm1925, %v7571, %v7572
      %v7574 = vrot.slane %v7465, 1
      %v7575 = vsel %vm1925, %v7572, %v7574
      %v7576 = vrot.slane %v7466, 1
      %v7577 = vrot.slane %v7467, 1
      %v7578 = vsel %vm1925, %v7576, %v7577
      %v7579 = vrot.slane %v7468, 1
      %v7580 = vsel %vm1925, %v7577, %v7579
      %v7581 = vrot.slane %v7469, 1
      %v7582 = vrot.slane %v7470, 1
      %v7583 = vsel %vm1925, %v7581, %v7582
      %v7584 = vrot.slane %v7471, 1
      %v7585 = vsel %vm1925, %v7582, %v7584
      %v7586 = vrot.slane %v7472, 1
      %v7587 = vrot.slane %v7473, 1
      %v7588 = vsel %vm1925, %v7586, %v7587
      %v7589 = vrot.slane %v7474, 1
      %v7590 = vsel %vm1925, %v7587, %v7589
      %v7591 = vrot.slane %v7475, 1
      %v7592 = vrot.slane %v7476, 1
      %v7593 = vsel %vm1925, %v7591, %v7592
      %v7594 = vrot.slane %v7477, 1
      %v7595 = vsel %vm1925, %v7592, %v7594
      %v7596 = vrot.slane %v7478, 1
      %v7597 = vrot.slane %v7479, 1
      %v7598 = vsel %vm1925, %v7596, %v7597
      %v7599 = vrot.slane %v7480, 1
      %v7600 = vsel %vm1925, %v7597, %v7599
      %v7601 = vrot.slane %v7481, 1
      %v7602 = vrot.slane %v7482, 1
      %v7603 = vsel %vm1925, %v7601, %v7602
      %v7604 = vrot.slane %v7483, 1
      %v7605 = vsel %vm1925, %v7602, %v7604
      %v7606 = vrot.slane %v7484, 1
      %v7607 = vrot.slane %v7485, 1
      %v7608 = vsel %vm1925, %v7606, %v7607
      %v7609 = vrot.slane %v7486, 1
      %v7610 = vsel %vm1925, %v7607, %v7609
      %v7611 = vrot.slane %v7487, 1
      %v7612 = vrot.slane %v7488, 1
      %v7613 = vsel %vm1925, %v7611, %v7612
      %v7614 = vrot.slane %v7489, 1
      %v7615 = vsel %vm1925, %v7612, %v7614
      %v7616 = vrot.slane %v7490, 1
      %v7617 = vrot.slane %v7491, 1
      %v7618 = vsel %vm1925, %v7616, %v7617
      %v7619 = vrot.slane %v7492, 1
      %v7620 = vsel %vm1925, %v7617, %v7619
      %7621 = vrot.lane.b32.xlu0 %v7543, 96
      %v7622 = vpop.permute.xlu0 %7621
      %7623 = vrot.lane.b32.xlu0 %v7545, 96
      %v7624 = vpop.permute.xlu0 %7623
      %7625 = vrot.lane.b32.xlu0 %v7548, 96
      %v7626 = vpop.permute.xlu0 %7625
      %7627 = vrot.lane.b32.xlu0 %v7550, 96
      %v7628 = vpop.permute.xlu0 %7627
      %7629 = vrot.lane.b32.xlu0 %v7553, 96
      %v7630 = vpop.permute.xlu0 %7629
      %7631 = vrot.lane.b32.xlu0 %v7555, 96
      %v7632 = vpop.permute.xlu0 %7631
      %7633 = vrot.lane.b32.xlu0 %v7558, 96
      %v7634 = vpop.permute.xlu0 %7633
      %7635 = vrot.lane.b32.xlu0 %v7560, 96
      %v7636 = vpop.permute.xlu0 %7635
      %7637 = vrot.lane.b32.xlu0 %v7563, 96
      %v7638 = vpop.permute.xlu0 %7637
      %7639 = vrot.lane.b32.xlu0 %v7565, 96
      %v7640 = vpop.permute.xlu0 %7639
      %7641 = vrot.lane.b32.xlu0 %v7568, 96
      %v7642 = vpop.permute.xlu0 %7641
      %7643 = vrot.lane.b32.xlu0 %v7570, 96
      %v7644 = vpop.permute.xlu0 %7643
      %7645 = vrot.lane.b32.xlu0 %v7573, 96
      %v7646 = vpop.permute.xlu0 %7645
      %7647 = vrot.lane.b32.xlu0 %v7575, 96
      %v7648 = vpop.permute.xlu0 %7647
      %7649 = vrot.lane.b32.xlu0 %v7578, 96
      %v7650 = vpop.permute.xlu0 %7649
      %7651 = vrot.lane.b32.xlu0 %v7580, 96
      %v7652 = vpop.permute.xlu0 %7651
      %7653 = vrot.lane.b32.xlu0 %v7583, 96
      %v7654 = vpop.permute.xlu0 %7653
      %7655 = vrot.lane.b32.xlu0 %v7585, 96
      %v7656 = vpop.permute.xlu0 %7655
      %7657 = vrot.lane.b32.xlu0 %v7588, 96
      %v7658 = vpop.permute.xlu0 %7657
      %7659 = vrot.lane.b32.xlu0 %v7590, 96
      %v7660 = vpop.permute.xlu0 %7659
      %7661 = vrot.lane.b32.xlu0 %v7593, 96
      %v7662 = vpop.permute.xlu0 %7661
      %7663 = vrot.lane.b32.xlu0 %v7595, 96
      %v7664 = vpop.permute.xlu0 %7663
      %7665 = vrot.lane.b32.xlu0 %v7598, 96
      %v7666 = vpop.permute.xlu0 %7665
      %7667 = vrot.lane.b32.xlu0 %v7600, 96
      %v7668 = vpop.permute.xlu0 %7667
      %7669 = vrot.lane.b32.xlu0 %v7603, 96
      %v7670 = vpop.permute.xlu0 %7669
      %7671 = vrot.lane.b32.xlu0 %v7605, 96
      %v7672 = vpop.permute.xlu0 %7671
      %7673 = vrot.lane.b32.xlu0 %v7608, 96
      %v7674 = vpop.permute.xlu0 %7673
      %7675 = vrot.lane.b32.xlu0 %v7610, 96
      %v7676 = vpop.permute.xlu0 %7675
      %7677 = vrot.lane.b32.xlu0 %v7613, 96
      %v7678 = vpop.permute.xlu0 %7677
      %7679 = vrot.lane.b32.xlu0 %v7615, 96
      %v7680 = vpop.permute.xlu0 %7679
      %7681 = vrot.lane.b32.xlu0 %v7618, 96
      %v7682 = vpop.permute.xlu0 %7681
      %7683 = vrot.lane.b32.xlu0 %v7620, 96
      %v7684 = vpop.permute.xlu0 %7683
      %v7717 = vadd.f32 %v7445, %v7622
      %v7718 = vadd.f32 %v7446, %v7624
      %v7719 = vadd.f32 %v7448, %v7626
      %v7720 = vadd.f32 %v7449, %v7628
      %v7721 = vadd.f32 %v7451, %v7630
      %v7722 = vadd.f32 %v7452, %v7632
      %v7723 = vadd.f32 %v7454, %v7634
      %v7724 = vadd.f32 %v7455, %v7636
      %v7725 = vadd.f32 %v7457, %v7638
      %v7726 = vadd.f32 %v7458, %v7640
      %v7727 = vadd.f32 %v7460, %v7642
      %v7728 = vadd.f32 %v7461, %v7644
      %v7729 = vadd.f32 %v7463, %v7646
      %v7730 = vadd.f32 %v7464, %v7648
      %v7731 = vadd.f32 %v7466, %v7650
      %v7732 = vadd.f32 %v7467, %v7652
      %v7733 = vadd.f32 %v7469, %v7654
      %v7734 = vadd.f32 %v7470, %v7656
      %v7735 = vadd.f32 %v7472, %v7658
      %v7736 = vadd.f32 %v7473, %v7660
      %v7737 = vadd.f32 %v7475, %v7662
      %v7738 = vadd.f32 %v7476, %v7664
      %v7739 = vadd.f32 %v7478, %v7666
      %v7740 = vadd.f32 %v7479, %v7668
      %v7741 = vadd.f32 %v7481, %v7670
      %v7742 = vadd.f32 %v7482, %v7672
      %v7743 = vadd.f32 %v7484, %v7674
      %v7744 = vadd.f32 %v7485, %v7676
      %v7745 = vadd.f32 %v7487, %v7678
      %v7746 = vadd.f32 %v7488, %v7680
      %v7747 = vadd.f32 %v7490, %v7682
      %v7748 = vadd.f32 %v7491, %v7684
      %v7749 = vrot.slane %v7445, 2
      %v7750 = vrot.slane %v7446, 2
      %v7751 = vsel %vm2134, %v7749, %v7750
      %v7752 = vrot.slane %v7447, 2
      %v7753 = vsel %vm2134, %v7750, %v7752
      %v7754 = vrot.slane %v7448, 2
      %v7755 = vrot.slane %v7449, 2
      %v7756 = vsel %vm2134, %v7754, %v7755
      %v7757 = vrot.slane %v7450, 2
      %v7758 = vsel %vm2134, %v7755, %v7757
      %v7759 = vrot.slane %v7451, 2
      %v7760 = vrot.slane %v7452, 2
      %v7761 = vsel %vm2134, %v7759, %v7760
      %v7762 = vrot.slane %v7453, 2
      %v7763 = vsel %vm2134, %v7760, %v7762
      %v7764 = vrot.slane %v7454, 2
      %v7765 = vrot.slane %v7455, 2
      %v7766 = vsel %vm2134, %v7764, %v7765
      %v7767 = vrot.slane %v7456, 2
      %v7768 = vsel %vm2134, %v7765, %v7767
      %v7769 = vrot.slane %v7457, 2
      %v7770 = vrot.slane %v7458, 2
      %v7771 = vsel %vm2134, %v7769, %v7770
      %v7772 = vrot.slane %v7459, 2
      %v7773 = vsel %vm2134, %v7770, %v7772
      %v7774 = vrot.slane %v7460, 2
      %v7775 = vrot.slane %v7461, 2
      %v7776 = vsel %vm2134, %v7774, %v7775
      %v7777 = vrot.slane %v7462, 2
      %v7778 = vsel %vm2134, %v7775, %v7777
      %v7779 = vrot.slane %v7463, 2
      %v7780 = vrot.slane %v7464, 2
      %v7781 = vsel %vm2134, %v7779, %v7780
      %v7782 = vrot.slane %v7465, 2
      %v7783 = vsel %vm2134, %v7780, %v7782
      %v7784 = vrot.slane %v7466, 2
      %v7785 = vrot.slane %v7467, 2
      %v7786 = vsel %vm2134, %v7784, %v7785
      %v7787 = vrot.slane %v7468, 2
      %v7788 = vsel %vm2134, %v7785, %v7787
      %v7789 = vrot.slane %v7469, 2
      %v7790 = vrot.slane %v7470, 2
      %v7791 = vsel %vm2134, %v7789, %v7790
      %v7792 = vrot.slane %v7471, 2
      %v7793 = vsel %vm2134, %v7790, %v7792
      %v7794 = vrot.slane %v7472, 2
      %v7795 = vrot.slane %v7473, 2
      %v7796 = vsel %vm2134, %v7794, %v7795
      %v7797 = vrot.slane %v7474, 2
      %v7798 = vsel %vm2134, %v7795, %v7797
      %v7799 = vrot.slane %v7475, 2
      %v7800 = vrot.slane %v7476, 2
      %v7801 = vsel %vm2134, %v7799, %v7800
      %v7802 = vrot.slane %v7477, 2
      %v7803 = vsel %vm2134, %v7800, %v7802
      %v7804 = vrot.slane %v7478, 2
      %v7805 = vrot.slane %v7479, 2
      %v7806 = vsel %vm2134, %v7804, %v7805
      %v7807 = vrot.slane %v7480, 2
      %v7808 = vsel %vm2134, %v7805, %v7807
      %v7809 = vrot.slane %v7481, 2
      %v7810 = vrot.slane %v7482, 2
      %v7811 = vsel %vm2134, %v7809, %v7810
      %v7812 = vrot.slane %v7483, 2
      %v7813 = vsel %vm2134, %v7810, %v7812
      %v7814 = vrot.slane %v7484, 2
      %v7815 = vrot.slane %v7485, 2
      %v7816 = vsel %vm2134, %v7814, %v7815
      %v7817 = vrot.slane %v7486, 2
      %v7818 = vsel %vm2134, %v7815, %v7817
      %v7819 = vrot.slane %v7487, 2
      %v7820 = vrot.slane %v7488, 2
      %v7821 = vsel %vm2134, %v7819, %v7820
      %v7822 = vrot.slane %v7489, 2
      %v7823 = vsel %vm2134, %v7820, %v7822
      %v7824 = vrot.slane %v7490, 2
      %v7825 = vrot.slane %v7491, 2
      %v7826 = vsel %vm2134, %v7824, %v7825
      %v7827 = vrot.slane %v7492, 2
      %v7828 = vsel %vm2134, %v7825, %v7827
      %7829 = vrot.lane.b32.xlu0 %v7751, 64
      %v7830 = vpop.permute.xlu0 %7829
      %7831 = vrot.lane.b32.xlu0 %v7753, 64
      %v7832 = vpop.permute.xlu0 %7831
      %7833 = vrot.lane.b32.xlu0 %v7756, 64
      %v7834 = vpop.permute.xlu0 %7833
      %7835 = vrot.lane.b32.xlu0 %v7758, 64
      %v7836 = vpop.permute.xlu0 %7835
      %7837 = vrot.lane.b32.xlu0 %v7761, 64
      %v7838 = vpop.permute.xlu0 %7837
      %7839 = vrot.lane.b32.xlu0 %v7763, 64
      %v7840 = vpop.permute.xlu0 %7839
      %7841 = vrot.lane.b32.xlu0 %v7766, 64
      %v7842 = vpop.permute.xlu0 %7841
      %7843 = vrot.lane.b32.xlu0 %v7768, 64
      %v7844 = vpop.permute.xlu0 %7843
      %7845 = vrot.lane.b32.xlu0 %v7771, 64
      %v7846 = vpop.permute.xlu0 %7845
      %7847 = vrot.lane.b32.xlu0 %v7773, 64
      %v7848 = vpop.permute.xlu0 %7847
      %7849 = vrot.lane.b32.xlu0 %v7776, 64
      %v7850 = vpop.permute.xlu0 %7849
      %7851 = vrot.lane.b32.xlu0 %v7778, 64
      %v7852 = vpop.permute.xlu0 %7851
      %7853 = vrot.lane.b32.xlu0 %v7781, 64
      %v7854 = vpop.permute.xlu0 %7853
      %7855 = vrot.lane.b32.xlu0 %v7783, 64
      %v7856 = vpop.permute.xlu0 %7855
      %7857 = vrot.lane.b32.xlu0 %v7786, 64
      %v7858 = vpop.permute.xlu0 %7857
      %7859 = vrot.lane.b32.xlu0 %v7788, 64
      %v7860 = vpop.permute.xlu0 %7859
      %7861 = vrot.lane.b32.xlu0 %v7791, 64
      %v7862 = vpop.permute.xlu0 %7861
      %7863 = vrot.lane.b32.xlu0 %v7793, 64
      %v7864 = vpop.permute.xlu0 %7863
      %7865 = vrot.lane.b32.xlu0 %v7796, 64
      %v7866 = vpop.permute.xlu0 %7865
      %7867 = vrot.lane.b32.xlu0 %v7798, 64
      %v7868 = vpop.permute.xlu0 %7867
      %7869 = vrot.lane.b32.xlu0 %v7801, 64
      %v7870 = vpop.permute.xlu0 %7869
      %7871 = vrot.lane.b32.xlu0 %v7803, 64
      %v7872 = vpop.permute.xlu0 %7871
      %7873 = vrot.lane.b32.xlu0 %v7806, 64
      %v7874 = vpop.permute.xlu0 %7873
      %7875 = vrot.lane.b32.xlu0 %v7808, 64
      %v7876 = vpop.permute.xlu0 %7875
      %7877 = vrot.lane.b32.xlu0 %v7811, 64
      %v7878 = vpop.permute.xlu0 %7877
      %7879 = vrot.lane.b32.xlu0 %v7813, 64
      %v7880 = vpop.permute.xlu0 %7879
      %7881 = vrot.lane.b32.xlu0 %v7816, 64
      %v7882 = vpop.permute.xlu0 %7881
      %7883 = vrot.lane.b32.xlu0 %v7818, 64
      %v7884 = vpop.permute.xlu0 %7883
      %7885 = vrot.lane.b32.xlu0 %v7821, 64
      %v7886 = vpop.permute.xlu0 %7885
      %7887 = vrot.lane.b32.xlu0 %v7823, 64
      %v7888 = vpop.permute.xlu0 %7887
      %7889 = vrot.lane.b32.xlu0 %v7826, 64
      %v7890 = vpop.permute.xlu0 %7889
      %7891 = vrot.lane.b32.xlu0 %v7828, 64
      %v7892 = vpop.permute.xlu0 %7891
      %v7925 = vadd.f32 %v7717, %v7830
      %v7926 = vadd.f32 %v7718, %v7832
      %v7927 = vadd.f32 %v7719, %v7834
      %v7928 = vadd.f32 %v7720, %v7836
      %v7929 = vadd.f32 %v7721, %v7838
      %v7930 = vadd.f32 %v7722, %v7840
      %v7931 = vadd.f32 %v7723, %v7842
      %v7932 = vadd.f32 %v7724, %v7844
      %v7933 = vadd.f32 %v7725, %v7846
      %v7934 = vadd.f32 %v7726, %v7848
      %v7935 = vadd.f32 %v7727, %v7850
      %v7936 = vadd.f32 %v7728, %v7852
      %v7937 = vadd.f32 %v7729, %v7854
      %v7938 = vadd.f32 %v7730, %v7856
      %v7939 = vadd.f32 %v7731, %v7858
      %v7940 = vadd.f32 %v7732, %v7860
      %v7941 = vadd.f32 %v7733, %v7862
      %v7942 = vadd.f32 %v7734, %v7864
      %v7943 = vadd.f32 %v7735, %v7866
      %v7944 = vadd.f32 %v7736, %v7868
      %v7945 = vadd.f32 %v7737, %v7870
      %v7946 = vadd.f32 %v7738, %v7872
      %v7947 = vadd.f32 %v7739, %v7874
      %v7948 = vadd.f32 %v7740, %v7876
      %v7949 = vadd.f32 %v7741, %v7878
      %v7950 = vadd.f32 %v7742, %v7880
      %v7951 = vadd.f32 %v7743, %v7882
      %v7952 = vadd.f32 %v7744, %v7884
      %v7953 = vadd.f32 %v7745, %v7886
      %v7954 = vadd.f32 %v7746, %v7888
      %v7955 = vadd.f32 %v7747, %v7890
      %v7956 = vadd.f32 %v7748, %v7892
      %v7958 = vlaneseq
      %v7959 = vshrl.u32 %v7958, 7
      %v7960 = vsub.s32 0, %v7959
      %v7961 = vrot.slane %v6269, %v7960
      %v7963 = vadd.f32 %v7925, %v7961
      %v7964 = vadd.f32 %v7926, %v7961
      %v7965 = vadd.f32 %v7927, %v7961
      %v7966 = vadd.f32 %v7928, %v7961
      %v7967 = vadd.f32 %v7929, %v7961
      %v7968 = vadd.f32 %v7930, %v7961
      %v7969 = vadd.f32 %v7931, %v7961
      %v7970 = vadd.f32 %v7932, %v7961
      %v7971 = vadd.f32 %v7933, %v7961
      %v7972 = vadd.f32 %v7934, %v7961
      %v7973 = vadd.f32 %v7935, %v7961
      %v7974 = vadd.f32 %v7936, %v7961
      %v7975 = vadd.f32 %v7937, %v7961
      %v7976 = vadd.f32 %v7938, %v7961
      %v7977 = vadd.f32 %v7939, %v7961
      %v7978 = vadd.f32 %v7940, %v7961
      %v7979 = vadd.f32 %v7941, %v7961
      %v7980 = vadd.f32 %v7942, %v7961
      %v7981 = vadd.f32 %v7943, %v7961
      %v7982 = vadd.f32 %v7944, %v7961
      %v7983 = vadd.f32 %v7945, %v7961
      %v7984 = vadd.f32 %v7946, %v7961
      %v7985 = vadd.f32 %v7947, %v7961
      %v7986 = vadd.f32 %v7948, %v7961
      %v7987 = vadd.f32 %v7949, %v7961
      %v7988 = vadd.f32 %v7950, %v7961
      %v7989 = vadd.f32 %v7951, %v7961
      %v7990 = vadd.f32 %v7952, %v7961
      %v7991 = vadd.f32 %v7953, %v7961
      %v7992 = vadd.f32 %v7954, %v7961
      %v7993 = vadd.f32 %v7955, %v7961
      %v7994 = vadd.f32 %v7956, %v7961
      %7995 = vst.msk [vmem:[%s325] sm:$0xff] %vm652, %v7963
      %7996 = vst.msk [vmem:[%s325 + $0x8] sm:$0xff] %vm652, %v7964
      %7997 = vst.msk [vmem:[%s325 + $0x10] sm:$0xff] %vm652, %v7965
      %7998 = vst.msk [vmem:[%s325 + $0x18] sm:$0xff] %vm652, %v7966
      %7999 = vst.msk [vmem:[%s325 + $0x20] sm:$0xff] %vm652, %v7967
      %8000 = vst.msk [vmem:[%s325 + $0x28] sm:$0xff] %vm652, %v7968
      %8001 = vst.msk [vmem:[%s325 + $0x30] sm:$0xff] %vm652, %v7969
      %8002 = vst.msk [vmem:[%s325 + $0x38] sm:$0xff] %vm652, %v7970
      %8003 = vst.msk [vmem:[%s325 + $0x40] sm:$0xff] %vm652, %v7971
      %8004 = vst.msk [vmem:[%s325 + $0x48] sm:$0xff] %vm652, %v7972
      %8005 = vst.msk [vmem:[%s325 + $0x50] sm:$0xff] %vm652, %v7973
      %8006 = vst.msk [vmem:[%s325 + $0x58] sm:$0xff] %vm652, %v7974
      %8007 = vst.msk [vmem:[%s325 + $0x60] sm:$0xff] %vm652, %v7975
      %8008 = vst.msk [vmem:[%s325 + $0x68] sm:$0xff] %vm652, %v7976
      %8009 = vst.msk [vmem:[%s325 + $0x70] sm:$0xff] %vm652, %v7977
      %8010 = vst.msk [vmem:[%s325 + $0x78] sm:$0xff] %vm652, %v7978
      %8011 = vst.msk [vmem:[%s325 + $0x80] sm:$0xff] %vm652, %v7979
      %8012 = vst.msk [vmem:[%s325 + $0x88] sm:$0xff] %vm652, %v7980
      %8013 = vst.msk [vmem:[%s325 + $0x90] sm:$0xff] %vm652, %v7981
      %8014 = vst.msk [vmem:[%s325 + $0x98] sm:$0xff] %vm652, %v7982
      %8015 = vst.msk [vmem:[%s325 + $0xa0] sm:$0xff] %vm652, %v7983
      %8016 = vst.msk [vmem:[%s325 + $0xa8] sm:$0xff] %vm652, %v7984
      %8017 = vst.msk [vmem:[%s325 + $0xb0] sm:$0xff] %vm652, %v7985
      %8018 = vst.msk [vmem:[%s325 + $0xb8] sm:$0xff] %vm652, %v7986
      %8019 = vst.msk [vmem:[%s325 + $0xc0] sm:$0xff] %vm652, %v7987
      %8020 = vst.msk [vmem:[%s325 + $0xc8] sm:$0xff] %vm652, %v7988
      %8021 = vst.msk [vmem:[%s325 + $0xd0] sm:$0xff] %vm652, %v7989
      %8022 = vst.msk [vmem:[%s325 + $0xd8] sm:$0xff] %vm652, %v7990
      %8023 = vst.msk [vmem:[%s325 + $0xe0] sm:$0xff] %vm652, %v7991
      %8024 = vst.msk [vmem:[%s325 + $0xe8] sm:$0xff] %vm652, %v7992
      %8025 = vst.msk [vmem:[%s325 + $0xf0] sm:$0xff] %vm652, %v7993
      %8026 = vst.msk [vmem:[%s325 + $0xf8] sm:$0xff] %vm652, %v7994
      %p8027 = scmp.lt.s32.totalorder %s19, 1
      %s8028 = scalar_select %p8027, %s19, 1
      %s8029 = smul.addr %s8028, 32
      %s8030 = smul.addr %s8029, 8
      %s8031 = scalar_lea.vmem %s8, %s8030
      // Predicated region
      $region60: #{tpu_custom_call.1} parent=51 // pred_check
        %p8032 = pneg %p215
      $region61: #{tpu_custom_call.1} parent=51 // pred_check_branch
        %8034 = sbr.rel (%p8032) target = $region63
      $region62: #{tpu_custom_call.1} parent=51 // pred_region
        _
      $region63: #{tpu_custom_call.1} parent=51 // pred_fallthru
        _
    $region52: #{tpu_custom_call.1} parent=5 // pred_fallthru
      _
    %p8035 = scmp.le.s32.totalorder 2, %s14
    // Predicated region
    $region64: #{tpu_custom_call.1} parent=5 // pred_check
      %p8036 = pneg %p8035
    $region65: #{tpu_custom_call.1} parent=5 // pred_check_branch
      %8038 = sbr.rel (%p8036) target = $region67
    $region66: #{tpu_custom_call.1} parent=5 // pred_region
      %s8039 = ssub.s32 %s14, 2
      // Predicated region
      $region68: #{tpu_custom_call.1} parent=66 // pred_check
        %p8040 = pneg %p221
      $region69: #{tpu_custom_call.1} parent=66 // pred_check_branch
        %8042 = sbr.rel (%p8040) target = $region71
      $region70: #{tpu_custom_call.1} parent=66 // pred_region
        %p8043 = scmp.lt.s32.totalorder %s20, 1
        %s8044 = scalar_select %p8043, %s20, 1
        %s8045 = smul.addr %s8044, 32
        %s8046 = smul.addr %s8045, 8
        %s8047 = scalar_lea.vmem %s8, %s8046
      $region71: #{tpu_custom_call.1} parent=66 // pred_fallthru
        _
    $region67: #{tpu_custom_call.1} parent=5 // pred_fallthru
      _
  $region6: #{tpu_custom_call.1} parent=0 // loop_footer
    %s18 = sadd.s32 1, %s14
  $region7: #{tpu_custom_call.1} parent=0 // loop_footer_branch
    %13 = sbr.rel target = $region3
  $region8: #{tpu_custom_call.1} parent=0 // loop_exit
    _

</llo_original>
